<compile_context>
chip_gen: v7x
topology: tpu7x:2x2x1
jax: 0.10.0
libtpu: 0.0.40
codegen_flags: <defaults>
</compile_context>

<pallas_src>
import math
import functools

import jax
import jax.numpy as jnp
from jax.experimental import pallas as pl
from jax.experimental.pallas import tpu as pltpu


# ----------------------------- Pallas kernel --------------------------------

def dit_block_kernel(x_ref, mod_ref,
                     w_qkv_ref, b_qkv_ref,
                     w_out_ref, b_out_ref,
                     w_fc1_ref, b_fc1_ref,
                     w_fc2_ref, b_fc2_ref,
                     o_ref, ctx_ref, *, num_heads, mlp_chunk):
    B, tn, D = x_ref.shape          # x block: full B, one N-tile, full D
    H = num_heads
    hd = D // H
    Hmlp = w_fc1_ref.shape[1]
    n_chunks = Hmlp // mlp_chunk
    f32, bf16 = jnp.float32, jnp.bfloat16
    eps = 1e-6
    scale = 1.0 / math.sqrt(hd)
    SQRT_2_OVER_PI = math.sqrt(2.0 / math.pi)

    def layernorm(v):               # LayerNorm, elementwise_affine=False (f32)
        mu = jnp.mean(v, axis=-1, keepdims=True)
        c = v - mu
        var = jnp.mean(c * c, axis=-1, keepdims=True)
        return c * jax.lax.rsqrt(var + eps)

    def gelu(z):                    # tanh-form GELU (EUP tanh), |err| ~1e-3
        return 0.5 * z * (1.0 + jnp.tanh(SQRT_2_OVER_PI * (z + 0.044715 * z * z * z)))

    def gemm(a_f32, w_ref, b_ref):  # bf16 MXU inputs, f32 accumulation
        return (jnp.dot(a_f32.astype(bf16), w_ref[...],
                        preferred_element_type=f32) + b_ref[...])

    # ---- adaLN modulation precomputed in the wrapper; slice once -------------
    mod = mod_ref[...].astype(f32)                            # (B, 6D)

    def mslice(idx):
        return mod[:, idx * D:(idx + 1) * D].reshape(B, 1, D)

    shift_msa, scale_msa, gate_msa = mslice(0), mslice(1), mslice(2)
    shift_mlp, scale_mlp, gate_mlp = mslice(3), mslice(4), mslice(5)

    # ---- h1 = modulate(norm1(x)) — vectorized over the whole (B, tn, D) block
    xb = x_ref[...].astype(f32)
    h1 = layernorm(xb) * (1.0 + scale_msa) + shift_msa        # (B, tn, D)

    # ---- fused QKV projection: ONE GEMM for all B*tn tokens ------------------
    qkv = gemm(h1.reshape(B * tn, D), w_qkv_ref, b_qkv_ref).reshape(B, tn, 3 * D)
    q3 = qkv[:, :, 0 * D:1 * D]                               # (B, tn, D) each
    k3 = qkv[:, :, 1 * D:2 * D]
    v3 = qkv[:, :, 2 * D:3 * D]

    # Head-indicator (one-hot segment) matrices: per-head reduction / broadcast
    # run on the MXU, keeping heads packed along D (no unaligned per-head
    # slices, no cross-lane XLU reductions).
    d_i = jax.lax.broadcasted_iota(jnp.int32, (D, H), 0)
    h_i = jax.lax.broadcasted_iota(jnp.int32, (D, H), 1)
    seg = ((d_i >= h_i * hd) & (d_i < (h_i + 1) * hd)).astype(bf16)    # (D, H)
    h_j = jax.lax.broadcasted_iota(jnp.int32, (H, D), 0)
    d_j = jax.lax.broadcasted_iota(jnp.int32, (H, D), 1)
    segT = ((d_j >= h_j * hd) & (d_j < (h_j + 1) * hd)).astype(bf16)   # (H, D)

    # ---- multihead self-attention over axis 0 (torch batch_first=False) ------
    # Static loop over the tiny torch "sequence" axis (B); each iteration's
    # context is written straight into the VMEM scratch ref (no list/concat,
    # bounded live ranges).  For very large B switch this to lax.fori_loop.
    for i in range(B):
        e = q3[i][None, :, :] * k3                            # (B, tn, D)
        s = jnp.dot(e.reshape(B * tn, D).astype(bf16), seg,
                    preferred_element_type=f32).reshape(B, tn, H) * scale
        m = jnp.max(s, axis=0, keepdims=True)                 # softmax over j
        p = jnp.exp(s - m)
        den = jnp.sum(p, axis=0, keepdims=True)
        a = p * pl.reciprocal(den, approx=True)               # (B, tn, H), EUP vrcp
        a_full = jnp.dot(a.reshape(B * tn, H).astype(bf16), segT,
                         preferred_element_type=f32).reshape(B, tn, D)
        ctx_ref[i, :, :] = jnp.sum(a_full * v3, axis=0)       # (tn, D)

    attn = gemm(ctx_ref[...].reshape(B * tn, D),
                w_out_ref, b_out_ref).reshape(B, tn, D)

    # ---- x1 = h1 + gate_msa * attn ; h2 = modulate(norm2(x1)) ----------------
    # NOTE: the reference forward rebinds x, so residual bases are the
    # modulated/normed values (h1 and h2), not the block input.
    x1 = h1 + gate_msa * attn
    h2 = layernorm(x1) * (1.0 + scale_mlp) + shift_mlp        # (B, tn, D)

    # ---- MLP: fc1 -> GELU -> fc2, K-chunked over the 4D hidden dim -----------
    h2b = h2.reshape(B * tn, D).astype(bf16)                  # cast once
    f2 = jnp.zeros((B * tn, D), f32)
    for c in range(n_chunks):                                 # Hmlp % mlp_chunk == 0
        c0, c1 = c * mlp_chunk, (c + 1) * mlp_chunk
        f1c = gelu(jnp.dot(h2b, w_fc1_ref[:, c0:c1],
                           preferred_element_type=f32) + b_fc1_ref[:, c0:c1])
        f2 = f2 + jnp.dot(f1c.astype(bf16), w_fc2_ref[c0:c1, :],
                          preferred_element_type=f32)
    f2 = f2 + b_fc2_ref[...]
    # TODO(synk): dropout (p=0.1) inside Mlp / attention is identity here
    # (deterministic eval-mode forward).

    # ---- out = h2 + gate_mlp * mlp(h2) ---------------------------------------
    o_ref[...] = (h2 + gate_mlp * f2.reshape(B, tn, D)).astype(o_ref.dtype)


# ------------------------------- wrapper -------------------------------------

def _vmem_capacity_bytes():
    """Physical VMEM of the attached TPU (conservative fallback if unknown)."""
    try:
        info = pltpu.get_tpu_info()
        cap = getattr(info, "vmem_capacity_bytes", None)
        if cap:
            return int(cap)
    except Exception:
        pass
    return 64 * 1024 * 1024      # v7x-sized fallback: safe on every generation


def _resident_spec(shape, single_buffer):
    """Full-array block, same block every grid step (weights / biases / mod)."""
    ndim = len(shape)
    index_map = lambda i, _n=ndim: (0,) * _n
    if single_buffer:
        # Constant-index blocks never re-DMA; a second pipeline buffer is waste.
        return pl.BlockSpec(shape, index_map, pipeline_mode=pl.Buffered(1))
    return pl.BlockSpec(shape, index_map)


def dit_block(x, temb, params, num_heads, *, tn=None, mlp_chunk=None):
    B, N, D = x.shape
    assert D % num_heads == 0, "hidden_size must be divisible by num_heads"
    Hmlp = params["w_fc1"].shape[1]
    f32, bf16 = jnp.float32, jnp.bfloat16

    cap = _vmem_capacity_bytes()
    # Leave headroom for Mosaic internal scratch; v7x (64 MiB) -> ~56 MiB,
    # v5e/v6e (128 MiB) -> 112 MiB.
    vmem_limit = max(32 << 20, min(cap - (8 << 20), 112 << 20))

    # Token-tile over N (the MHA "batch" axis, so tiles are independent).
    # Bigger tiles on big-VMEM parts; prefer an even grid so both v7x TCs work.
    if tn is None:
        target = 512 if cap >= (100 << 20) else 256
        cands = [t for t in range(8, min(N, target) + 1, 8) if N % t == 0]
        even = [t for t in cands if (N // t) % 2 == 0]
        tn = max(even) if even else (max(cands) if cands else N)
    assert N % tn == 0 and (tn % 8 == 0 or tn == N)
    grid = (N // tn,)

    if mlp_chunk is None:
        mlp_chunk = 512 if Hmlp % 512 == 0 else Hmlp
    mlp_chunk = min(mlp_chunk, Hmlp)
    assert Hmlp % mlp_chunk == 0, "mlp_chunk must divide the MLP hidden dim"

    # adaLN modulation hoisted out of the kernel: it depends only on temb and
    # keeping the f32 (D, 6D) w_ada resident in VMEM would blow the v7x budget
    # at DiT-XL sizes (and it was recomputed every grid step).
    t = temb.astype(f32)
    mod = (t * jax.nn.sigmoid(t)) @ params["w_ada"].astype(f32) \
        + params["b_ada"].astype(f32)                         # (B, 6D) f32

    # bf16 weights for the big GEMMs (halves DMA + VMEM residency, native MXU
    # dtype).  Biases stay f32.
    w_qkv = params["w_qkv"].astype(bf16); b_qkv = params["b_qkv"].astype(f32)
    w_out = params["w_out"].astype(bf16); b_out = params["b_out"].astype(f32)
    w_fc1 = params["w_fc1"].astype(bf16); b_fc1 = params["b_fc1"].astype(f32)
    w_fc2 = params["w_fc2"].astype(bf16); b_fc2 = params["b_fc2"].astype(f32)
    # TODO(synk): if VMEM is still tight at DiT-XL on v7x, stream w_fc1/w_fc2
    # from HBM (memory_space=pl.ANY + emit_pipeline over mlp_chunk slices).

    operands = (x, mod, w_qkv, b_qkv, w_out, b_out, w_fc1, b_fc1, w_fc2, b_fc2)
    kernel = functools.partial(dit_block_kernel, num_heads=num_heads,
                               mlp_chunk=mlp_chunk)
    tile_spec = pl.BlockSpec((B, tn, D), lambda i: (0, i, 0))

    def build(single_buffer_weights):
        in_specs = [tile_spec] + [_resident_spec(a.shape, single_buffer_weights)
                                  for a in operands[1:]]
        return pl.pallas_call(
            kernel,
            out_shape=jax.ShapeDtypeStruct((B, N, D), x.dtype),
            grid_spec=pltpu.PrefetchScalarGridSpec(
                num_scalar_prefetch=0,
                grid=grid,
                in_specs=in_specs,
                out_specs=pl.BlockSpec((B, tn, D), lambda i: (0, i, 0)),
                scratch_shapes=[pltpu.VMEM((B, tn, D), jnp.float32)],  # ctx
            ),
            compiler_params=pltpu.CompilerParams(
                dimension_semantics=("parallel",),   # shards N-tiles across v7x TCs
                vmem_limit_bytes=vmem_limit,
            ),
        )

    try:
        return build(True)(*operands)
    except Exception:
        # Graceful fallback: if single-buffered residents (pl.Buffered(1)) are
        # not supported by this jax/libtpu build, rerun with the default
        # double-buffered resident specs (correctness is identical).
        return build(False)(*operands)


# -------------------------- pure-JAX reference --------------------------------

def dit_block_ref(x, temb, p, num_heads):
    """f32 reference that mirrors the PyTorch forward exactly (x is rebound)."""
    B, N, D = x.shape
    hd = D // num_heads
    ln = lambda v: ((v - v.mean(-1, keepdims=True))
                    * jax.lax.rsqrt(v.var(-1, keepdims=True) + 1e-6))
    mod = (temb * jax.nn.sigmoid(temb)) @ p["w_ada"] + p["b_ada"][0]
    (shift_msa, scale_msa, gate_msa,
     shift_mlp, scale_mlp, gate_mlp) = jnp.split(mod, 6, axis=1)

    # x = modulate(norm1(x), shift_msa, scale_msa)
    x = ln(x) * (1 + scale_msa[:, None, :]) + shift_msa[:, None, :]

    # torch MHA (batch_first=False): sequence axis = 0 (B), batch axis = 1 (N)
    qkv = x @ p["w_qkv"] + p["b_qkv"][0]
    q, k, v = jnp.split(qkv, 3, axis=-1)
    qh = q.reshape(B, N, num_heads, hd)
    kh = k.reshape(B, N, num_heads, hd)
    vh = v.reshape(B, N, num_heads, hd)
    sc = jnp.einsum("inhd,jnhd->nhij", qh, kh) / math.sqrt(hd)
    a = jax.nn.softmax(sc, axis=-1)
    ctx = jnp.einsum("nhij,jnhd->inhd", a, vh).reshape(B, N, D)
    attn_out = ctx @ p["w_out"] + p["b_out"][0]
    x = x + gate_msa[:, None, :] * attn_out

    # x = modulate(norm2(x), shift_mlp, scale_mlp)
    x = ln(x) * (1 + scale_mlp[:, None, :]) + shift_mlp[:, None, :]
    gelu = lambda z: 0.5 * z * (1.0 + jax.scipy.special.erf(z / math.sqrt(2.0)))
    f = gelu(x @ p["w_fc1"] + p["b_fc1"][0]) @ p["w_fc2"] + p["b_fc2"][0]
    return x + gate_mlp[:, None, :] * f


# --------------------------------- main ---------------------------------------

if __name__ == "__main__":
    # Small but lane-dense config: D is a multiple of 128 (real DiT D=1152 is).
    B, N, D = 2, 64, 128          # batch, seq, hidden_size
    num_heads = 4
    Hmlp = int(D * 4.0)           # mlp hidden = 512

    key = jax.random.PRNGKey(0)
    ks = jax.random.split(key, 12)

    def rnd(k, shape, scale=0.05):
        return (scale * jax.random.normal(k, shape)).astype(jnp.float32)

    x = rnd(ks[0], (B, N, D), scale=1.0)
    temb = rnd(ks[1], (B, D), scale=1.0)

    # weights stored pre-transposed so the kernel computes x @ W (+ b).
    params = {
        "w_ada": rnd(ks[2], (D, 6 * D)),  "b_ada": rnd(ks[3], (1, 6 * D)),
        "w_qkv": rnd(ks[4], (D, 3 * D)),  "b_qkv": rnd(ks[5], (1, 3 * D)),
        "w_out": rnd(ks[6], (D, D)),      "b_out": rnd(ks[7], (1, D)),
        "w_fc1": rnd(ks[8], (D, Hmlp)),   "b_fc1": rnd(ks[9], (1, Hmlp)),
        "w_fc2": rnd(ks[10], (Hmlp, D)),  "b_fc2": rnd(ks[11], (1, D)),
    }

    # tn=32 -> grid of 2 token-tiles (exercises the pipelined grid);
    # mlp_chunk=256 -> 2 K-chunks in the MLP (exercises the chunked path).
    out = dit_block(x, temb, params, num_heads, tn=32, mlp_chunk=256)
    out = jax.block_until_ready(out)

    ref = jax.block_until_ready(dit_block_ref(x, temb, params, num_heads))
    assert out.shape == (B, N, D)
    # Tolerance covers bf16 MXU inputs (QKV/out/MLP + score/weight segment
    # matmuls), tanh-GELU and approx reciprocal vs the exact f32/erf reference.
    err = float(jnp.max(jnp.abs(out - ref)))
    assert err < 3e-2, f"kernel/reference mismatch: {err}"

    print("KERNEL_OK")
</pallas_src>

<mosaic_0001>
module attributes {stable_mosaic.version = 11 : i64} {
  func.func @dit_block_kernel(%arg0: i32, %arg1: memref<2x32x128xf32, #tpu.memory_space<vmem>>, %arg2: memref<2x768xf32, #tpu.memory_space<vmem>>, %arg3: memref<128x384xbf16, #tpu.memory_space<vmem>>, %arg4: memref<1x384xf32, #tpu.memory_space<vmem>>, %arg5: memref<128x128xbf16, #tpu.memory_space<vmem>>, %arg6: memref<1x128xf32, #tpu.memory_space<vmem>>, %arg7: memref<128x512xbf16, #tpu.memory_space<vmem>>, %arg8: memref<1x512xf32, #tpu.memory_space<vmem>>, %arg9: memref<512x128xbf16, #tpu.memory_space<vmem>>, %arg10: memref<1x128xf32, #tpu.memory_space<vmem>>, %arg11: memref<2x32x128xf32, #tpu.memory_space<vmem>>, %arg12: memref<2x32x128xf32, #tpu.memory_space<vmem>>) attributes {dimension_semantics = [#tpu.dimension_semantics<parallel>], iteration_bounds = array<i64: 2>, scalar_prefetch = 0 : i64, scratch_operands = 1 : i64, tpu.core_type = #tpu.core_type<tc>, window_params = [{transform_indices = @transform_0, window_bounds = array<i64: 2, 32, 128>}, {pipeline_mode = #tpu.pipeline_mode<synchronous>, transform_indices = @transform_1, window_bounds = array<i64: 2, 768>}, {pipeline_mode = #tpu.pipeline_mode<synchronous>, transform_indices = @transform_2, window_bounds = array<i64: 128, 384>}, {pipeline_mode = #tpu.pipeline_mode<synchronous>, transform_indices = @transform_3, window_bounds = array<i64: 1, 384>}, {pipeline_mode = #tpu.pipeline_mode<synchronous>, transform_indices = @transform_4, window_bounds = array<i64: 128, 128>}, {pipeline_mode = #tpu.pipeline_mode<synchronous>, transform_indices = @transform_5, window_bounds = array<i64: 1, 128>}, {pipeline_mode = #tpu.pipeline_mode<synchronous>, transform_indices = @transform_6, window_bounds = array<i64: 128, 512>}, {pipeline_mode = #tpu.pipeline_mode<synchronous>, transform_indices = @transform_7, window_bounds = array<i64: 1, 512>}, {pipeline_mode = #tpu.pipeline_mode<synchronous>, transform_indices = @transform_8, window_bounds = array<i64: 512, 128>}, {pipeline_mode = #tpu.pipeline_mode<synchronous>, transform_indices = @transform_9, window_bounds = array<i64: 1, 128>}, {transform_indices = @transform_10, window_bounds = array<i64: 2, 32, 128>}]} {
    %c0 = arith.constant 0 : index
    %c0_0 = arith.constant 0 : index
    %0 = vector.load %arg2[%c0, %c0_0] : memref<2x768xf32, #tpu.memory_space<vmem>>, vector<2x768xf32>
    %1 = vector.extract_strided_slice %0 {offsets = [0, 0], sizes = [2, 128], strides = [1, 1]} : vector<2x768xf32> to vector<2x128xf32>
    %2 = vector.shape_cast %1 : vector<2x128xf32> to vector<2x1x128xf32>
    %3 = vector.extract_strided_slice %0 {offsets = [0, 128], sizes = [2, 128], strides = [1, 1]} : vector<2x768xf32> to vector<2x128xf32>
    %4 = vector.shape_cast %3 : vector<2x128xf32> to vector<2x1x128xf32>
    %5 = vector.extract_strided_slice %0 {offsets = [0, 256], sizes = [2, 128], strides = [1, 1]} : vector<2x768xf32> to vector<2x128xf32>
    %6 = vector.shape_cast %5 : vector<2x128xf32> to vector<2x1x128xf32>
    %7 = vector.extract_strided_slice %0 {offsets = [0, 384], sizes = [2, 128], strides = [1, 1]} : vector<2x768xf32> to vector<2x128xf32>
    %8 = vector.shape_cast %7 : vector<2x128xf32> to vector<2x1x128xf32>
    %9 = vector.extract_strided_slice %0 {offsets = [0, 512], sizes = [2, 128], strides = [1, 1]} : vector<2x768xf32> to vector<2x128xf32>
    %10 = vector.shape_cast %9 : vector<2x128xf32> to vector<2x1x128xf32>
    %11 = vector.extract_strided_slice %0 {offsets = [0, 640], sizes = [2, 128], strides = [1, 1]} : vector<2x768xf32> to vector<2x128xf32>
    %12 = vector.shape_cast %11 : vector<2x128xf32> to vector<2x1x128xf32>
    %c0_1 = arith.constant 0 : index
    %c0_2 = arith.constant 0 : index
    %c0_3 = arith.constant 0 : index
    %13 = vector.load %arg1[%c0_1, %c0_2, %c0_3] : memref<2x32x128xf32, #tpu.memory_space<vmem>>, vector<2x32x128xf32>
    %cst = arith.constant dense<0.000000e+00> : vector<2x32xf32>
    %14 = vector.multi_reduction <add>, %13, %cst [2] : vector<2x32x128xf32> to vector<2x32xf32>
    %15 = vector.shape_cast %14 : vector<2x32xf32> to vector<2x32x1xf32>
    %cst_4 = arith.constant 1.280000e+02 : f32
    %16 = vector.broadcast %cst_4 : f32 to vector<2x32x1xf32>
    %17 = arith.divf %15, %16 : vector<2x32x1xf32>
    %18 = vector.broadcast %17 : vector<2x32x1xf32> to vector<2x32x128xf32>
    %19 = arith.subf %13, %18 : vector<2x32x128xf32>
    %20 = arith.mulf %19, %19 : vector<2x32x128xf32>
    %cst_5 = arith.constant dense<0.000000e+00> : vector<2x32xf32>
    %21 = vector.multi_reduction <add>, %20, %cst_5 [2] : vector<2x32x128xf32> to vector<2x32xf32>
    %22 = vector.shape_cast %21 : vector<2x32xf32> to vector<2x32x1xf32>
    %cst_6 = arith.constant 1.280000e+02 : f32
    %23 = vector.broadcast %cst_6 : f32 to vector<2x32x1xf32>
    %24 = arith.divf %22, %23 : vector<2x32x1xf32>
    %cst_7 = arith.constant 9.99999997E-7 : f32
    %25 = vector.broadcast %cst_7 : f32 to vector<2x32x1xf32>
    %26 = arith.addf %24, %25 : vector<2x32x1xf32>
    %27 = math.rsqrt %26 : vector<2x32x1xf32>
    %28 = vector.broadcast %27 : vector<2x32x1xf32> to vector<2x32x128xf32>
    %29 = arith.mulf %19, %28 : vector<2x32x128xf32>
    %cst_8 = arith.constant 1.000000e+00 : f32
    %30 = vector.broadcast %cst_8 : f32 to vector<2x1x128xf32>
    %31 = arith.addf %30, %4 : vector<2x1x128xf32>
    %32 = vector.broadcast %31 : vector<2x1x128xf32> to vector<2x32x128xf32>
    %33 = arith.mulf %29, %32 : vector<2x32x128xf32>
    %34 = vector.broadcast %2 : vector<2x1x128xf32> to vector<2x32x128xf32>
    %35 = arith.addf %33, %34 : vector<2x32x128xf32>
    %36 = vector.shape_cast %35 : vector<2x32x128xf32> to vector<64x128xf32>
    %37 = arith.truncf %36 : vector<64x128xf32> to vector<64x128xbf16>
    %c0_9 = arith.constant 0 : index
    %c0_10 = arith.constant 0 : index
    %38 = vector.load %arg3[%c0_9, %c0_10] : memref<128x384xbf16, #tpu.memory_space<vmem>>, vector<128x384xbf16>
    %cst_11 = arith.constant dense<0.000000e+00> : vector<64x384xf32>
    %39 = tpu.matmul %37, %38, %cst_11 {dimension_numbers = #tpu.dot_dimension_numbers<[1], [0], [0], [1], [0, 0, 1, 1], [], []>} : vector<64x128xbf16>, vector<128x384xbf16>, vector<64x384xf32> -> vector<64x384xf32>
    %c0_12 = arith.constant 0 : index
    %c0_13 = arith.constant 0 : index
    %40 = vector.load %arg4[%c0_12, %c0_13] : memref<1x384xf32, #tpu.memory_space<vmem>>, vector<1x384xf32>
    %41 = vector.broadcast %40 : vector<1x384xf32> to vector<64x384xf32>
    %42 = arith.addf %39, %41 : vector<64x384xf32>
    %43 = vector.shape_cast %42 : vector<64x384xf32> to vector<2x32x384xf32>
    %44 = vector.extract_strided_slice %43 {offsets = [0, 0, 0], sizes = [2, 32, 128], strides = [1, 1, 1]} : vector<2x32x384xf32> to vector<2x32x128xf32>
    %45 = vector.extract_strided_slice %43 {offsets = [0, 0, 128], sizes = [2, 32, 128], strides = [1, 1, 1]} : vector<2x32x384xf32> to vector<2x32x128xf32>
    %46 = vector.extract_strided_slice %43 {offsets = [0, 0, 256], sizes = [2, 32, 128], strides = [1, 1, 1]} : vector<2x32x384xf32> to vector<2x32x128xf32>
    %47 = tpu.iota {dimensions = array<i32: 0>} : vector<128x4xi32>
    %48 = tpu.iota {dimensions = array<i32: 1>} : vector<128x4xi32>
    %c32_i32 = arith.constant 32 : i32
    %49 = vector.broadcast %c32_i32 : i32 to vector<128x4xi32>
    %50 = arith.muli %48, %49 : vector<128x4xi32>
    %51 = arith.cmpi sge, %47, %50 : vector<128x4xi32>
    %c1_i32 = arith.constant 1 : i32
    %52 = vector.broadcast %c1_i32 : i32 to vector<128x4xi32>
    %53 = arith.addi %48, %52 : vector<128x4xi32>
    %c32_i32_14 = arith.constant 32 : i32
    %54 = vector.broadcast %c32_i32_14 : i32 to vector<128x4xi32>
    %55 = arith.muli %53, %54 : vector<128x4xi32>
    %56 = arith.cmpi slt, %47, %55 : vector<128x4xi32>
    %57 = arith.andi %51, %56 : vector<128x4xi1>
    %58 = arith.extui %57 : vector<128x4xi1> to vector<128x4xi32>
    %59 = arith.sitofp %58 : vector<128x4xi32> to vector<128x4xf32>
    %60 = arith.truncf %59 : vector<128x4xf32> to vector<128x4xbf16>
    %61 = tpu.iota {dimensions = array<i32: 0>} : vector<4x128xi32>
    %62 = tpu.iota {dimensions = array<i32: 1>} : vector<4x128xi32>
    %c32_i32_15 = arith.constant 32 : i32
    %63 = vector.broadcast %c32_i32_15 : i32 to vector<4x128xi32>
    %64 = arith.muli %61, %63 : vector<4x128xi32>
    %65 = arith.cmpi sge, %62, %64 : vector<4x128xi32>
    %c1_i32_16 = arith.constant 1 : i32
    %66 = vector.broadcast %c1_i32_16 : i32 to vector<4x128xi32>
    %67 = arith.addi %61, %66 : vector<4x128xi32>
    %c32_i32_17 = arith.constant 32 : i32
    %68 = vector.broadcast %c32_i32_17 : i32 to vector<4x128xi32>
    %69 = arith.muli %67, %68 : vector<4x128xi32>
    %70 = arith.cmpi slt, %62, %69 : vector<4x128xi32>
    %71 = arith.andi %65, %70 : vector<4x128xi1>
    %72 = arith.extui %71 : vector<4x128xi1> to vector<4x128xi32>
    %73 = arith.sitofp %72 : vector<4x128xi32> to vector<4x128xf32>
    %74 = arith.truncf %73 : vector<4x128xf32> to vector<4x128xbf16>
    %75 = vector.extract_strided_slice %44 {offsets = [0, 0, 0], sizes = [1, 32, 128], strides = [1, 1, 1]} : vector<2x32x128xf32> to vector<1x32x128xf32>
    %76 = vector.shape_cast %75 : vector<1x32x128xf32> to vector<32x128xf32>
    %77 = vector.shape_cast %76 : vector<32x128xf32> to vector<1x32x128xf32>
    %78 = vector.broadcast %77 : vector<1x32x128xf32> to vector<2x32x128xf32>
    %79 = arith.mulf %78, %45 : vector<2x32x128xf32>
    %80 = vector.shape_cast %79 : vector<2x32x128xf32> to vector<64x128xf32>
    %81 = arith.truncf %80 : vector<64x128xf32> to vector<64x128xbf16>
    %cst_18 = arith.constant dense<0.000000e+00> : vector<64x4xf32>
    %82 = tpu.matmul %81, %60, %cst_18 {dimension_numbers = #tpu.dot_dimension_numbers<[1], [0], [0], [1], [0, 0, 1, 1], [], []>} : vector<64x128xbf16>, vector<128x4xbf16>, vector<64x4xf32> -> vector<64x4xf32>
    %83 = vector.shape_cast %82 : vector<64x4xf32> to vector<2x32x4xf32>
    %cst_19 = arith.constant 0.176776692 : f32
    %84 = vector.broadcast %cst_19 : f32 to vector<2x32x4xf32>
    %85 = arith.mulf %83, %84 : vector<2x32x4xf32>
    %cst_20 = arith.constant dense<0xFF800000> : vector<32x4xf32>
    %86 = vector.multi_reduction <maximumf>, %85, %cst_20 [0] : vector<2x32x4xf32> to vector<32x4xf32>
    %87 = vector.shape_cast %86 : vector<32x4xf32> to vector<1x32x4xf32>
    %88 = vector.broadcast %87 : vector<1x32x4xf32> to vector<2x32x4xf32>
    %89 = arith.subf %85, %88 : vector<2x32x4xf32>
    %90 = math.exp %89 : vector<2x32x4xf32>
    %cst_21 = arith.constant dense<0.000000e+00> : vector<32x4xf32>
    %91 = vector.multi_reduction <add>, %90, %cst_21 [0] : vector<2x32x4xf32> to vector<32x4xf32>
    %92 = vector.shape_cast %91 : vector<32x4xf32> to vector<1x32x4xf32>
    %93 = tpu.reciprocal %92 {approx = true} : vector<1x32x4xf32> -> vector<1x32x4xf32>
    %94 = vector.broadcast %93 : vector<1x32x4xf32> to vector<2x32x4xf32>
    %95 = arith.mulf %90, %94 : vector<2x32x4xf32>
    %96 = vector.shape_cast %95 : vector<2x32x4xf32> to vector<64x4xf32>
    %97 = arith.truncf %96 : vector<64x4xf32> to vector<64x4xbf16>
    %cst_22 = arith.constant dense<0.000000e+00> : vector<64x128xf32>
    %98 = tpu.matmul %97, %74, %cst_22 {dimension_numbers = #tpu.dot_dimension_numbers<[1], [0], [0], [1], [0, 0, 1, 1], [], []>} : vector<64x4xbf16>, vector<4x128xbf16>, vector<64x128xf32> -> vector<64x128xf32>
    %99 = vector.shape_cast %98 : vector<64x128xf32> to vector<2x32x128xf32>
    %100 = arith.mulf %99, %46 : vector<2x32x128xf32>
    %cst_23 = arith.constant dense<0.000000e+00> : vector<32x128xf32>
    %101 = vector.multi_reduction <add>, %100, %cst_23 [0] : vector<2x32x128xf32> to vector<32x128xf32>
    %c0_24 = arith.constant 0 : index
    %c0_25 = arith.constant 0 : index
    %c0_26 = arith.constant 0 : index
    %102 = vector.load %arg12[%c0_24, %c0_25, %c0_26] : memref<2x32x128xf32, #tpu.memory_space<vmem>>, vector<1x32x128xf32>
    %103 = vector.shape_cast %102 : vector<1x32x128xf32> to vector<32x128xf32>
    %104 = vector.shape_cast %101 : vector<32x128xf32> to vector<1x32x128xf32>
    tpu.vector_store %arg12[%c0_24, %c0_25, %c0_26], %104 {strides = array<i32>} : memref<2x32x128xf32, #tpu.memory_space<vmem>>, vector<1x32x128xf32>,
    %105 = vector.extract_strided_slice %44 {offsets = [1, 0, 0], sizes = [1, 32, 128], strides = [1, 1, 1]} : vector<2x32x128xf32> to vector<1x32x128xf32>
    %106 = vector.shape_cast %105 : vector<1x32x128xf32> to vector<32x128xf32>
    %107 = vector.shape_cast %106 : vector<32x128xf32> to vector<1x32x128xf32>
    %108 = vector.broadcast %107 : vector<1x32x128xf32> to vector<2x32x128xf32>
    %109 = arith.mulf %108, %45 : vector<2x32x128xf32>
    %110 = vector.shape_cast %109 : vector<2x32x128xf32> to vector<64x128xf32>
    %111 = arith.truncf %110 : vector<64x128xf32> to vector<64x128xbf16>
    %cst_27 = arith.constant dense<0.000000e+00> : vector<64x4xf32>
    %112 = tpu.matmul %111, %60, %cst_27 {dimension_numbers = #tpu.dot_dimension_numbers<[1], [0], [0], [1], [0, 0, 1, 1], [], []>} : vector<64x128xbf16>, vector<128x4xbf16>, vector<64x4xf32> -> vector<64x4xf32>
    %113 = vector.shape_cast %112 : vector<64x4xf32> to vector<2x32x4xf32>
    %cst_28 = arith.constant 0.176776692 : f32
    %114 = vector.broadcast %cst_28 : f32 to vector<2x32x4xf32>
    %115 = arith.mulf %113, %114 : vector<2x32x4xf32>
    %cst_29 = arith.constant dense<0xFF800000> : vector<32x4xf32>
    %116 = vector.multi_reduction <maximumf>, %115, %cst_29 [0] : vector<2x32x4xf32> to vector<32x4xf32>
    %117 = vector.shape_cast %116 : vector<32x4xf32> to vector<1x32x4xf32>
    %118 = vector.broadcast %117 : vector<1x32x4xf32> to vector<2x32x4xf32>
    %119 = arith.subf %115, %118 : vector<2x32x4xf32>
    %120 = math.exp %119 : vector<2x32x4xf32>
    %cst_30 = arith.constant dense<0.000000e+00> : vector<32x4xf32>
    %121 = vector.multi_reduction <add>, %120, %cst_30 [0] : vector<2x32x4xf32> to vector<32x4xf32>
    %122 = vector.shape_cast %121 : vector<32x4xf32> to vector<1x32x4xf32>
    %123 = tpu.reciprocal %122 {approx = true} : vector<1x32x4xf32> -> vector<1x32x4xf32>
    %124 = vector.broadcast %123 : vector<1x32x4xf32> to vector<2x32x4xf32>
    %125 = arith.mulf %120, %124 : vector<2x32x4xf32>
    %126 = vector.shape_cast %125 : vector<2x32x4xf32> to vector<64x4xf32>
    %127 = arith.truncf %126 : vector<64x4xf32> to vector<64x4xbf16>
    %cst_31 = arith.constant dense<0.000000e+00> : vector<64x128xf32>
    %128 = tpu.matmul %127, %74, %cst_31 {dimension_numbers = #tpu.dot_dimension_numbers<[1], [0], [0], [1], [0, 0, 1, 1], [], []>} : vector<64x4xbf16>, vector<4x128xbf16>, vector<64x128xf32> -> vector<64x128xf32>
    %129 = vector.shape_cast %128 : vector<64x128xf32> to vector<2x32x128xf32>
    %130 = arith.mulf %129, %46 : vector<2x32x128xf32>
    %cst_32 = arith.constant dense<0.000000e+00> : vector<32x128xf32>
    %131 = vector.multi_reduction <add>, %130, %cst_32 [0] : vector<2x32x128xf32> to vector<32x128xf32>
    %c1 = arith.constant 1 : index
    %c0_33 = arith.constant 0 : index
    %c0_34 = arith.constant 0 : index
    %132 = vector.load %arg12[%c1, %c0_33, %c0_34] : memref<2x32x128xf32, #tpu.memory_space<vmem>>, vector<1x32x128xf32>
    %133 = vector.shape_cast %132 : vector<1x32x128xf32> to vector<32x128xf32>
    %134 = vector.shape_cast %131 : vector<32x128xf32> to vector<1x32x128xf32>
    tpu.vector_store %arg12[%c1, %c0_33, %c0_34], %134 {strides = array<i32>} : memref<2x32x128xf32, #tpu.memory_space<vmem>>, vector<1x32x128xf32>,
    %c0_35 = arith.constant 0 : index
    %c0_36 = arith.constant 0 : index
    %c0_37 = arith.constant 0 : index
    %135 = vector.load %arg12[%c0_35, %c0_36, %c0_37] : memref<2x32x128xf32, #tpu.memory_space<vmem>>, vector<2x32x128xf32>
    %136 = vector.shape_cast %135 : vector<2x32x128xf32> to vector<64x128xf32>
    %137 = arith.truncf %136 : vector<64x128xf32> to vector<64x128xbf16>
    %c0_38 = arith.constant 0 : index
    %c0_39 = arith.constant 0 : index
    %138 = vector.load %arg5[%c0_38, %c0_39] : memref<128x128xbf16, #tpu.memory_space<vmem>>, vector<128x128xbf16>
    %cst_40 = arith.constant dense<0.000000e+00> : vector<64x128xf32>
    %139 = tpu.matmul %137, %138, %cst_40 {dimension_numbers = #tpu.dot_dimension_numbers<[1], [0], [0], [1], [0, 0, 1, 1], [], []>} : vector<64x128xbf16>, vector<128x128xbf16>, vector<64x128xf32> -> vector<64x128xf32>
    %c0_41 = arith.constant 0 : index
    %c0_42 = arith.constant 0 : index
    %140 = vector.load %arg6[%c0_41, %c0_42] : memref<1x128xf32, #tpu.memory_space<vmem>>, vector<1x128xf32>
    %141 = vector.broadcast %140 : vector<1x128xf32> to vector<64x128xf32>
    %142 = arith.addf %139, %141 : vector<64x128xf32>
    %143 = vector.shape_cast %142 : vector<64x128xf32> to vector<2x32x128xf32>
    %144 = vector.broadcast %6 : vector<2x1x128xf32> to vector<2x32x128xf32>
    %145 = arith.mulf %144, %143 : vector<2x32x128xf32>
    %146 = arith.addf %35, %145 : vector<2x32x128xf32>
    %cst_43 = arith.constant dense<0.000000e+00> : vector<2x32xf32>
    %147 = vector.multi_reduction <add>, %146, %cst_43 [2] : vector<2x32x128xf32> to vector<2x32xf32>
    %148 = vector.shape_cast %147 : vector<2x32xf32> to vector<2x32x1xf32>
    %cst_44 = arith.constant 1.280000e+02 : f32
    %149 = vector.broadcast %cst_44 : f32 to vector<2x32x1xf32>
    %150 = arith.divf %148, %149 : vector<2x32x1xf32>
    %151 = vector.broadcast %150 : vector<2x32x1xf32> to vector<2x32x128xf32>
    %152 = arith.subf %146, %151 : vector<2x32x128xf32>
    %153 = arith.mulf %152, %152 : vector<2x32x128xf32>
    %cst_45 = arith.constant dense<0.000000e+00> : vector<2x32xf32>
    %154 = vector.multi_reduction <add>, %153, %cst_45 [2] : vector<2x32x128xf32> to vector<2x32xf32>
    %155 = vector.shape_cast %154 : vector<2x32xf32> to vector<2x32x1xf32>
    %cst_46 = arith.constant 1.280000e+02 : f32
    %156 = vector.broadcast %cst_46 : f32 to vector<2x32x1xf32>
    %157 = arith.divf %155, %156 : vector<2x32x1xf32>
    %cst_47 = arith.constant 9.99999997E-7 : f32
    %158 = vector.broadcast %cst_47 : f32 to vector<2x32x1xf32>
    %159 = arith.addf %157, %158 : vector<2x32x1xf32>
    %160 = math.rsqrt %159 : vector<2x32x1xf32>
    %161 = vector.broadcast %160 : vector<2x32x1xf32> to vector<2x32x128xf32>
    %162 = arith.mulf %152, %161 : vector<2x32x128xf32>
    %cst_48 = arith.constant 1.000000e+00 : f32
    %163 = vector.broadcast %cst_48 : f32 to vector<2x1x128xf32>
    %164 = arith.addf %163, %10 : vector<2x1x128xf32>
    %165 = vector.broadcast %164 : vector<2x1x128xf32> to vector<2x32x128xf32>
    %166 = arith.mulf %162, %165 : vector<2x32x128xf32>
    %167 = vector.broadcast %8 : vector<2x1x128xf32> to vector<2x32x128xf32>
    %168 = arith.addf %166, %167 : vector<2x32x128xf32>
    %169 = vector.shape_cast %168 : vector<2x32x128xf32> to vector<64x128xf32>
    %170 = arith.truncf %169 : vector<64x128xf32> to vector<64x128xbf16>
    %cst_49 = arith.constant 0.000000e+00 : f32
    %171 = vector.broadcast %cst_49 : f32 to vector<64x128xf32>
    %c0_50 = arith.constant 0 : index
    %c0_51 = arith.constant 0 : index
    %172 = vector.load %arg7[%c0_50, %c0_51] : memref<128x512xbf16, #tpu.memory_space<vmem>>, vector<128x256xbf16>
    %cst_52 = arith.constant dense<0.000000e+00> : vector<64x256xf32>
    %173 = tpu.matmul %170, %172, %cst_52 {dimension_numbers = #tpu.dot_dimension_numbers<[1], [0], [0], [1], [0, 0, 1, 1], [], []>} : vector<64x128xbf16>, vector<128x256xbf16>, vector<64x256xf32> -> vector<64x256xf32>
    %c0_53 = arith.constant 0 : index
    %c0_54 = arith.constant 0 : index
    %174 = vector.load %arg8[%c0_53, %c0_54] : memref<1x512xf32, #tpu.memory_space<vmem>>, vector<1x256xf32>
    %175 = vector.broadcast %174 : vector<1x256xf32> to vector<64x256xf32>
    %176 = arith.addf %173, %175 : vector<64x256xf32>
    %cst_55 = arith.constant 5.000000e-01 : f32
    %177 = vector.broadcast %cst_55 : f32 to vector<64x256xf32>
    %178 = arith.mulf %177, %176 : vector<64x256xf32>
    %cst_56 = arith.constant 4.471500e-02 : f32
    %179 = vector.broadcast %cst_56 : f32 to vector<64x256xf32>
    %180 = arith.mulf %179, %176 : vector<64x256xf32>
    %181 = arith.mulf %180, %176 : vector<64x256xf32>
    %182 = arith.mulf %181, %176 : vector<64x256xf32>
    %183 = arith.addf %176, %182 : vector<64x256xf32>
    %cst_57 = arith.constant 0.797884583 : f32
    %184 = vector.broadcast %cst_57 : f32 to vector<64x256xf32>
    %185 = arith.mulf %184, %183 : vector<64x256xf32>
    %186 = math.tanh %185 : vector<64x256xf32>
    %cst_58 = arith.constant 1.000000e+00 : f32
    %187 = vector.broadcast %cst_58 : f32 to vector<64x256xf32>
    %188 = arith.addf %187, %186 : vector<64x256xf32>
    %189 = arith.mulf %178, %188 : vector<64x256xf32>
    %190 = arith.truncf %189 : vector<64x256xf32> to vector<64x256xbf16>
    %c0_59 = arith.constant 0 : index
    %c0_60 = arith.constant 0 : index
    %191 = vector.load %arg9[%c0_59, %c0_60] : memref<512x128xbf16, #tpu.memory_space<vmem>>, vector<256x128xbf16>
    %cst_61 = arith.constant dense<0.000000e+00> : vector<64x128xf32>
    %192 = tpu.matmul %190, %191, %cst_61 {dimension_numbers = #tpu.dot_dimension_numbers<[1], [0], [0], [1], [0, 0, 1, 1], [], []>} : vector<64x256xbf16>, vector<256x128xbf16>, vector<64x128xf32> -> vector<64x128xf32>
    %193 = arith.addf %171, %192 : vector<64x128xf32>
    %c0_62 = arith.constant 0 : index
    %c256 = arith.constant 256 : index
    %194 = vector.load %arg7[%c0_62, %c256] : memref<128x512xbf16, #tpu.memory_space<vmem>>, vector<128x256xbf16>
    %cst_63 = arith.constant dense<0.000000e+00> : vector<64x256xf32>
    %195 = tpu.matmul %170, %194, %cst_63 {dimension_numbers = #tpu.dot_dimension_numbers<[1], [0], [0], [1], [0, 0, 1, 1], [], []>} : vector<64x128xbf16>, vector<128x256xbf16>, vector<64x256xf32> -> vector<64x256xf32>
    %c0_64 = arith.constant 0 : index
    %c256_65 = arith.constant 256 : index
    %196 = vector.load %arg8[%c0_64, %c256_65] : memref<1x512xf32, #tpu.memory_space<vmem>>, vector<1x256xf32>
    %197 = vector.broadcast %196 : vector<1x256xf32> to vector<64x256xf32>
    %198 = arith.addf %195, %197 : vector<64x256xf32>
    %cst_66 = arith.constant 5.000000e-01 : f32
    %199 = vector.broadcast %cst_66 : f32 to vector<64x256xf32>
    %200 = arith.mulf %199, %198 : vector<64x256xf32>
    %cst_67 = arith.constant 4.471500e-02 : f32
    %201 = vector.broadcast %cst_67 : f32 to vector<64x256xf32>
    %202 = arith.mulf %201, %198 : vector<64x256xf32>
    %203 = arith.mulf %202, %198 : vector<64x256xf32>
    %204 = arith.mulf %203, %198 : vector<64x256xf32>
    %205 = arith.addf %198, %204 : vector<64x256xf32>
    %cst_68 = arith.constant 0.797884583 : f32
    %206 = vector.broadcast %cst_68 : f32 to vector<64x256xf32>
    %207 = arith.mulf %206, %205 : vector<64x256xf32>
    %208 = math.tanh %207 : vector<64x256xf32>
    %cst_69 = arith.constant 1.000000e+00 : f32
    %209 = vector.broadcast %cst_69 : f32 to vector<64x256xf32>
    %210 = arith.addf %209, %208 : vector<64x256xf32>
    %211 = arith.mulf %200, %210 : vector<64x256xf32>
    %212 = arith.truncf %211 : vector<64x256xf32> to vector<64x256xbf16>
    %c256_70 = arith.constant 256 : index
    %c0_71 = arith.constant 0 : index
    %213 = vector.load %arg9[%c256_70, %c0_71] : memref<512x128xbf16, #tpu.memory_space<vmem>>, vector<256x128xbf16>
    %cst_72 = arith.constant dense<0.000000e+00> : vector<64x128xf32>
    %214 = tpu.matmul %212, %213, %cst_72 {dimension_numbers = #tpu.dot_dimension_numbers<[1], [0], [0], [1], [0, 0, 1, 1], [], []>} : vector<64x256xbf16>, vector<256x128xbf16>, vector<64x128xf32> -> vector<64x128xf32>
    %215 = arith.addf %193, %214 : vector<64x128xf32>
    %c0_73 = arith.constant 0 : index
    %c0_74 = arith.constant 0 : index
    %216 = vector.load %arg10[%c0_73, %c0_74] : memref<1x128xf32, #tpu.memory_space<vmem>>, vector<1x128xf32>
    %217 = vector.broadcast %216 : vector<1x128xf32> to vector<64x128xf32>
    %218 = arith.addf %215, %217 : vector<64x128xf32>
    %219 = vector.shape_cast %218 : vector<64x128xf32> to vector<2x32x128xf32>
    %220 = vector.broadcast %12 : vector<2x1x128xf32> to vector<2x32x128xf32>
    %221 = arith.mulf %220, %219 : vector<2x32x128xf32>
    %222 = arith.addf %168, %221 : vector<2x32x128xf32>
    %c0_75 = arith.constant 0 : index
    %c0_76 = arith.constant 0 : index
    %c0_77 = arith.constant 0 : index
    %223 = vector.load %arg11[%c0_75, %c0_76, %c0_77] : memref<2x32x128xf32, #tpu.memory_space<vmem>>, vector<2x32x128xf32>
    tpu.vector_store %arg11[%c0_75, %c0_76, %c0_77], %222 {strides = array<i32>} : memref<2x32x128xf32, #tpu.memory_space<vmem>>, vector<2x32x128xf32>,
    return
  }
  func.func @transform_0(%arg0: i32) -> (i32, i32, i32) {
    %c0_i32 = arith.constant 0 : i32
    %c0_i32_0 = arith.constant 0 : i32
    %c0_i32_1 = arith.constant 0 : i32
    return %c0_i32, %arg0, %c0_i32_0 : i32, i32, i32
  }
  func.func @transform_1(%arg0: i32) -> (i32, i32) {
    %c0_i32 = arith.constant 0 : i32
    %c0_i32_0 = arith.constant 0 : i32
    %c0_i32_1 = arith.constant 0 : i32
    return %c0_i32, %c0_i32_0 : i32, i32
  }
  func.func @transform_2(%arg0: i32) -> (i32, i32) {
    %c0_i32 = arith.constant 0 : i32
    %c0_i32_0 = arith.constant 0 : i32
    %c0_i32_1 = arith.constant 0 : i32
    return %c0_i32, %c0_i32_0 : i32, i32
  }
  func.func @transform_3(%arg0: i32) -> (i32, i32) {
    %c0_i32 = arith.constant 0 : i32
    %c0_i32_0 = arith.constant 0 : i32
    %c0_i32_1 = arith.constant 0 : i32
    return %c0_i32, %c0_i32_0 : i32, i32
  }
  func.func @transform_4(%arg0: i32) -> (i32, i32) {
    %c0_i32 = arith.constant 0 : i32
    %c0_i32_0 = arith.constant 0 : i32
    %c0_i32_1 = arith.constant 0 : i32
    return %c0_i32, %c0_i32_0 : i32, i32
  }
  func.func @transform_5(%arg0: i32) -> (i32, i32) {
    %c0_i32 = arith.constant 0 : i32
    %c0_i32_0 = arith.constant 0 : i32
    %c0_i32_1 = arith.constant 0 : i32
    return %c0_i32, %c0_i32_0 : i32, i32
  }
  func.func @transform_6(%arg0: i32) -> (i32, i32) {
    %c0_i32 = arith.constant 0 : i32
    %c0_i32_0 = arith.constant 0 : i32
    %c0_i32_1 = arith.constant 0 : i32
    return %c0_i32, %c0_i32_0 : i32, i32
  }
  func.func @transform_7(%arg0: i32) -> (i32, i32) {
    %c0_i32 = arith.constant 0 : i32
    %c0_i32_0 = arith.constant 0 : i32
    %c0_i32_1 = arith.constant 0 : i32
    return %c0_i32, %c0_i32_0 : i32, i32
  }
  func.func @transform_8(%arg0: i32) -> (i32, i32) {
    %c0_i32 = arith.constant 0 : i32
    %c0_i32_0 = arith.constant 0 : i32
    %c0_i32_1 = arith.constant 0 : i32
    return %c0_i32, %c0_i32_0 : i32, i32
  }
  func.func @transform_9(%arg0: i32) -> (i32, i32) {
    %c0_i32 = arith.constant 0 : i32
    %c0_i32_0 = arith.constant 0 : i32
    %c0_i32_1 = arith.constant 0 : i32
    return %c0_i32, %c0_i32_0 : i32, i32
  }
  func.func @transform_10(%arg0: i32) -> (i32, i32, i32) {
    %c0_i32 = arith.constant 0 : i32
    %c0_i32_0 = arith.constant 0 : i32
    %c0_i32_1 = arith.constant 0 : i32
    return %c0_i32, %arg0, %c0_i32_0 : i32, i32, i32
  }
}

module attributes {stable_mosaic.version = 11 : i64} {
  func.func @dit_block_kernel(%arg0: i32, %arg1: memref<2x32x128xf32, #tpu.memory_space<vmem>>, %arg2: memref<2x768xf32, #tpu.memory_space<vmem>>, %arg3: memref<128x384xbf16, #tpu.memory_space<vmem>>, %arg4: memref<1x384xf32, #tpu.memory_space<vmem>>, %arg5: memref<128x128xbf16, #tpu.memory_space<vmem>>, %arg6: memref<1x128xf32, #tpu.memory_space<vmem>>, %arg7: memref<128x512xbf16, #tpu.memory_space<vmem>>, %arg8: memref<1x512xf32, #tpu.memory_space<vmem>>, %arg9: memref<512x128xbf16, #tpu.memory_space<vmem>>, %arg10: memref<1x128xf32, #tpu.memory_space<vmem>>, %arg11: memref<2x32x128xf32, #tpu.memory_space<vmem>>, %arg12: memref<2x32x128xf32, #tpu.memory_space<vmem>>) attributes {dimension_semantics = [#tpu.dimension_semantics<parallel>], iteration_bounds = array<i64: 2>, scalar_prefetch = 0 : i64, scratch_operands = 1 : i64, tpu.core_type = #tpu.core_type<tc>, window_params = [{transform_indices = @transform_0, window_bounds = array<i64: 2, 32, 128>}, {pipeline_mode = #tpu.pipeline_mode<synchronous>, transform_indices = @transform_1, window_bounds = array<i64: 2, 768>}, {pipeline_mode = #tpu.pipeline_mode<synchronous>, transform_indices = @transform_2, window_bounds = array<i64: 128, 384>}, {pipeline_mode = #tpu.pipeline_mode<synchronous>, transform_indices = @transform_3, window_bounds = array<i64: 1, 384>}, {pipeline_mode = #tpu.pipeline_mode<synchronous>, transform_indices = @transform_4, window_bounds = array<i64: 128, 128>}, {pipeline_mode = #tpu.pipeline_mode<synchronous>, transform_indices = @transform_5, window_bounds = array<i64: 1, 128>}, {pipeline_mode = #tpu.pipeline_mode<synchronous>, transform_indices = @transform_6, window_bounds = array<i64: 128, 512>}, {pipeline_mode = #tpu.pipeline_mode<synchronous>, transform_indices = @transform_7, window_bounds = array<i64: 1, 512>}, {pipeline_mode = #tpu.pipeline_mode<synchronous>, transform_indices = @transform_8, window_bounds = array<i64: 512, 128>}, {pipeline_mode = #tpu.pipeline_mode<synchronous>, transform_indices = @transform_9, window_bounds = array<i64: 1, 128>}, {transform_indices = @transform_10, window_bounds = array<i64: 2, 32, 128>}]} {
    %c0 = arith.constant 0 : index
    %c0_0 = arith.constant 0 : index
    %0 = vector.load %arg2[%c0, %c0_0] : memref<2x768xf32, #tpu.memory_space<vmem>>, vector<2x768xf32>
    %1 = vector.extract_strided_slice %0 {offsets = [0, 0], sizes = [2, 128], strides = [1, 1]} : vector<2x768xf32> to vector<2x128xf32>
    %2 = vector.shape_cast %1 : vector<2x128xf32> to vector<2x1x128xf32>
    %3 = vector.extract_strided_slice %0 {offsets = [0, 128], sizes = [2, 128], strides = [1, 1]} : vector<2x768xf32> to vector<2x128xf32>
    %4 = vector.shape_cast %3 : vector<2x128xf32> to vector<2x1x128xf32>
    %5 = vector.extract_strided_slice %0 {offsets = [0, 256], sizes = [2, 128], strides = [1, 1]} : vector<2x768xf32> to vector<2x128xf32>
    %6 = vector.shape_cast %5 : vector<2x128xf32> to vector<2x1x128xf32>
    %7 = vector.extract_strided_slice %0 {offsets = [0, 384], sizes = [2, 128], strides = [1, 1]} : vector<2x768xf32> to vector<2x128xf32>
    %8 = vector.shape_cast %7 : vector<2x128xf32> to vector<2x1x128xf32>
    %9 = vector.extract_strided_slice %0 {offsets = [0, 512], sizes = [2, 128], strides = [1, 1]} : vector<2x768xf32> to vector<2x128xf32>
    %10 = vector.shape_cast %9 : vector<2x128xf32> to vector<2x1x128xf32>
    %11 = vector.extract_strided_slice %0 {offsets = [0, 640], sizes = [2, 128], strides = [1, 1]} : vector<2x768xf32> to vector<2x128xf32>
    %12 = vector.shape_cast %11 : vector<2x128xf32> to vector<2x1x128xf32>
    %c0_1 = arith.constant 0 : index
    %c0_2 = arith.constant 0 : index
    %c0_3 = arith.constant 0 : index
    %13 = vector.load %arg1[%c0_1, %c0_2, %c0_3] : memref<2x32x128xf32, #tpu.memory_space<vmem>>, vector<2x32x128xf32>
    %cst = arith.constant dense<0.000000e+00> : vector<2x32xf32>
    %14 = vector.multi_reduction <add>, %13, %cst [2] : vector<2x32x128xf32> to vector<2x32xf32>
    %15 = vector.shape_cast %14 : vector<2x32xf32> to vector<2x32x1xf32>
    %cst_4 = arith.constant 1.280000e+02 : f32
    %16 = vector.broadcast %cst_4 : f32 to vector<2x32x1xf32>
    %17 = arith.divf %15, %16 : vector<2x32x1xf32>
    %18 = vector.broadcast %17 : vector<2x32x1xf32> to vector<2x32x128xf32>
    %19 = arith.subf %13, %18 : vector<2x32x128xf32>
    %20 = arith.mulf %19, %19 : vector<2x32x128xf32>
    %cst_5 = arith.constant dense<0.000000e+00> : vector<2x32xf32>
    %21 = vector.multi_reduction <add>, %20, %cst_5 [2] : vector<2x32x128xf32> to vector<2x32xf32>
    %22 = vector.shape_cast %21 : vector<2x32xf32> to vector<2x32x1xf32>
    %cst_6 = arith.constant 1.280000e+02 : f32
    %23 = vector.broadcast %cst_6 : f32 to vector<2x32x1xf32>
    %24 = arith.divf %22, %23 : vector<2x32x1xf32>
    %cst_7 = arith.constant 9.99999997E-7 : f32
    %25 = vector.broadcast %cst_7 : f32 to vector<2x32x1xf32>
    %26 = arith.addf %24, %25 : vector<2x32x1xf32>
    %27 = math.rsqrt %26 : vector<2x32x1xf32>
    %28 = vector.broadcast %27 : vector<2x32x1xf32> to vector<2x32x128xf32>
    %29 = arith.mulf %19, %28 : vector<2x32x128xf32>
    %cst_8 = arith.constant 1.000000e+00 : f32
    %30 = vector.broadcast %cst_8 : f32 to vector<2x1x128xf32>
    %31 = arith.addf %30, %4 : vector<2x1x128xf32>
    %32 = vector.broadcast %31 : vector<2x1x128xf32> to vector<2x32x128xf32>
    %33 = arith.mulf %29, %32 : vector<2x32x128xf32>
    %34 = vector.broadcast %2 : vector<2x1x128xf32> to vector<2x32x128xf32>
    %35 = arith.addf %33, %34 : vector<2x32x128xf32>
    %36 = vector.shape_cast %35 : vector<2x32x128xf32> to vector<64x128xf32>
    %37 = arith.truncf %36 : vector<64x128xf32> to vector<64x128xbf16>
    %c0_9 = arith.constant 0 : index
    %c0_10 = arith.constant 0 : index
    %38 = vector.load %arg3[%c0_9, %c0_10] : memref<128x384xbf16, #tpu.memory_space<vmem>>, vector<128x384xbf16>
    %cst_11 = arith.constant dense<0.000000e+00> : vector<64x384xf32>
    %39 = tpu.matmul %37, %38, %cst_11 {dimension_numbers = #tpu.dot_dimension_numbers<[1], [0], [0], [1], [0, 0, 1, 1], [], []>} : vector<64x128xbf16>, vector<128x384xbf16>, vector<64x384xf32> -> vector<64x384xf32>
    %c0_12 = arith.constant 0 : index
    %c0_13 = arith.constant 0 : index
    %40 = vector.load %arg4[%c0_12, %c0_13] : memref<1x384xf32, #tpu.memory_space<vmem>>, vector<1x384xf32>
    %41 = vector.broadcast %40 : vector<1x384xf32> to vector<64x384xf32>
    %42 = arith.addf %39, %41 : vector<64x384xf32>
    %43 = vector.shape_cast %42 : vector<64x384xf32> to vector<2x32x384xf32>
    %44 = vector.extract_strided_slice %43 {offsets = [0, 0, 0], sizes = [2, 32, 128], strides = [1, 1, 1]} : vector<2x32x384xf32> to vector<2x32x128xf32>
    %45 = vector.extract_strided_slice %43 {offsets = [0, 0, 128], sizes = [2, 32, 128], strides = [1, 1, 1]} : vector<2x32x384xf32> to vector<2x32x128xf32>
    %46 = vector.extract_strided_slice %43 {offsets = [0, 0, 256], sizes = [2, 32, 128], strides = [1, 1, 1]} : vector<2x32x384xf32> to vector<2x32x128xf32>
    %47 = tpu.iota {dimensions = array<i32: 0>} : vector<128x4xi32>
    %48 = tpu.iota {dimensions = array<i32: 1>} : vector<128x4xi32>
    %c32_i32 = arith.constant 32 : i32
    %49 = vector.broadcast %c32_i32 : i32 to vector<128x4xi32>
    %50 = arith.muli %48, %49 : vector<128x4xi32>
    %51 = arith.cmpi sge, %47, %50 : vector<128x4xi32>
    %c1_i32 = arith.constant 1 : i32
    %52 = vector.broadcast %c1_i32 : i32 to vector<128x4xi32>
    %53 = arith.addi %48, %52 : vector<128x4xi32>
    %c32_i32_14 = arith.constant 32 : i32
    %54 = vector.broadcast %c32_i32_14 : i32 to vector<128x4xi32>
    %55 = arith.muli %53, %54 : vector<128x4xi32>
    %56 = arith.cmpi slt, %47, %55 : vector<128x4xi32>
    %57 = arith.andi %51, %56 : vector<128x4xi1>
    %58 = arith.extui %57 : vector<128x4xi1> to vector<128x4xi32>
    %59 = arith.sitofp %58 : vector<128x4xi32> to vector<128x4xf32>
    %60 = arith.truncf %59 : vector<128x4xf32> to vector<128x4xbf16>
    %61 = tpu.iota {dimensions = array<i32: 0>} : vector<4x128xi32>
    %62 = tpu.iota {dimensions = array<i32: 1>} : vector<4x128xi32>
    %c32_i32_15 = arith.constant 32 : i32
    %63 = vector.broadcast %c32_i32_15 : i32 to vector<4x128xi32>
    %64 = arith.muli %61, %63 : vector<4x128xi32>
    %65 = arith.cmpi sge, %62, %64 : vector<4x128xi32>
    %c1_i32_16 = arith.constant 1 : i32
    %66 = vector.broadcast %c1_i32_16 : i32 to vector<4x128xi32>
    %67 = arith.addi %61, %66 : vector<4x128xi32>
    %c32_i32_17 = arith.constant 32 : i32
    %68 = vector.broadcast %c32_i32_17 : i32 to vector<4x128xi32>
    %69 = arith.muli %67, %68 : vector<4x128xi32>
    %70 = arith.cmpi slt, %62, %69 : vector<4x128xi32>
    %71 = arith.andi %65, %70 : vector<4x128xi1>
    %72 = arith.extui %71 : vector<4x128xi1> to vector<4x128xi32>
    %73 = arith.sitofp %72 : vector<4x128xi32> to vector<4x128xf32>
    %74 = arith.truncf %73 : vector<4x128xf32> to vector<4x128xbf16>
    %75 = vector.extract_strided_slice %44 {offsets = [0, 0, 0], sizes = [1, 32, 128], strides = [1, 1, 1]} : vector<2x32x128xf32> to vector<1x32x128xf32>
    %76 = vector.shape_cast %75 : vector<1x32x128xf32> to vector<32x128xf32>
    %77 = vector.shape_cast %76 : vector<32x128xf32> to vector<1x32x128xf32>
    %78 = vector.broadcast %77 : vector<1x32x128xf32> to vector<2x32x128xf32>
    %79 = arith.mulf %78, %45 : vector<2x32x128xf32>
    %80 = vector.shape_cast %79 : vector<2x32x128xf32> to vector<64x128xf32>
    %81 = arith.truncf %80 : vector<64x128xf32> to vector<64x128xbf16>
    %cst_18 = arith.constant dense<0.000000e+00> : vector<64x4xf32>
    %82 = tpu.matmul %81, %60, %cst_18 {dimension_numbers = #tpu.dot_dimension_numbers<[1], [0], [0], [1], [0, 0, 1, 1], [], []>} : vector<64x128xbf16>, vector<128x4xbf16>, vector<64x4xf32> -> vector<64x4xf32>
    %83 = vector.shape_cast %82 : vector<64x4xf32> to vector<2x32x4xf32>
    %cst_19 = arith.constant 0.176776692 : f32
    %84 = vector.broadcast %cst_19 : f32 to vector<2x32x4xf32>
    %85 = arith.mulf %83, %84 : vector<2x32x4xf32>
    %cst_20 = arith.constant dense<0xFF800000> : vector<32x4xf32>
    %86 = vector.multi_reduction <maximumf>, %85, %cst_20 [0] : vector<2x32x4xf32> to vector<32x4xf32>
    %87 = vector.shape_cast %86 : vector<32x4xf32> to vector<1x32x4xf32>
    %88 = vector.broadcast %87 : vector<1x32x4xf32> to vector<2x32x4xf32>
    %89 = arith.subf %85, %88 : vector<2x32x4xf32>
    %90 = math.exp %89 : vector<2x32x4xf32>
    %cst_21 = arith.constant dense<0.000000e+00> : vector<32x4xf32>
    %91 = vector.multi_reduction <add>, %90, %cst_21 [0] : vector<2x32x4xf32> to vector<32x4xf32>
    %92 = vector.shape_cast %91 : vector<32x4xf32> to vector<1x32x4xf32>
    %93 = tpu.reciprocal %92 {approx = true} : vector<1x32x4xf32> -> vector<1x32x4xf32>
    %94 = vector.broadcast %93 : vector<1x32x4xf32> to vector<2x32x4xf32>
    %95 = arith.mulf %90, %94 : vector<2x32x4xf32>
    %96 = vector.shape_cast %95 : vector<2x32x4xf32> to vector<64x4xf32>
    %97 = arith.truncf %96 : vector<64x4xf32> to vector<64x4xbf16>
    %cst_22 = arith.constant dense<0.000000e+00> : vector<64x128xf32>
    %98 = tpu.matmul %97, %74, %cst_22 {dimension_numbers = #tpu.dot_dimension_numbers<[1], [0], [0], [1], [0, 0, 1, 1], [], []>} : vector<64x4xbf16>, vector<4x128xbf16>, vector<64x128xf32> -> vector<64x128xf32>
    %99 = vector.shape_cast %98 : vector<64x128xf32> to vector<2x32x128xf32>
    %100 = arith.mulf %99, %46 : vector<2x32x128xf32>
    %cst_23 = arith.constant dense<0.000000e+00> : vector<32x128xf32>
    %101 = vector.multi_reduction <add>, %100, %cst_23 [0] : vector<2x32x128xf32> to vector<32x128xf32>
    %c0_24 = arith.constant 0 : index
    %c0_25 = arith.constant 0 : index
    %c0_26 = arith.constant 0 : index
    %102 = vector.load %arg12[%c0_24, %c0_25, %c0_26] : memref<2x32x128xf32, #tpu.memory_space<vmem>>, vector<1x32x128xf32>
    %103 = vector.shape_cast %102 : vector<1x32x128xf32> to vector<32x128xf32>
    %104 = vector.shape_cast %101 : vector<32x128xf32> to vector<1x32x128xf32>
    tpu.vector_store %arg12[%c0_24, %c0_25, %c0_26], %104 {strides = array<i32>} : memref<2x32x128xf32, #tpu.memory_space<vmem>>, vector<1x32x128xf32>,
    %105 = vector.extract_strided_slice %44 {offsets = [1, 0, 0], sizes = [1, 32, 128], strides = [1, 1, 1]} : vector<2x32x128xf32> to vector<1x32x128xf32>
    %106 = vector.shape_cast %105 : vector<1x32x128xf32> to vector<32x128xf32>
    %107 = vector.shape_cast %106 : vector<32x128xf32> to vector<1x32x128xf32>
    %108 = vector.broadcast %107 : vector<1x32x128xf32> to vector<2x32x128xf32>
    %109 = arith.mulf %108, %45 : vector<2x32x128xf32>
    %110 = vector.shape_cast %109 : vector<2x32x128xf32> to vector<64x128xf32>
    %111 = arith.truncf %110 : vector<64x128xf32> to vector<64x128xbf16>
    %cst_27 = arith.constant dense<0.000000e+00> : vector<64x4xf32>
    %112 = tpu.matmul %111, %60, %cst_27 {dimension_numbers = #tpu.dot_dimension_numbers<[1], [0], [0], [1], [0, 0, 1, 1], [], []>} : vector<64x128xbf16>, vector<128x4xbf16>, vector<64x4xf32> -> vector<64x4xf32>
    %113 = vector.shape_cast %112 : vector<64x4xf32> to vector<2x32x4xf32>
    %cst_28 = arith.constant 0.176776692 : f32
    %114 = vector.broadcast %cst_28 : f32 to vector<2x32x4xf32>
    %115 = arith.mulf %113, %114 : vector<2x32x4xf32>
    %cst_29 = arith.constant dense<0xFF800000> : vector<32x4xf32>
    %116 = vector.multi_reduction <maximumf>, %115, %cst_29 [0] : vector<2x32x4xf32> to vector<32x4xf32>
    %117 = vector.shape_cast %116 : vector<32x4xf32> to vector<1x32x4xf32>
    %118 = vector.broadcast %117 : vector<1x32x4xf32> to vector<2x32x4xf32>
    %119 = arith.subf %115, %118 : vector<2x32x4xf32>
    %120 = math.exp %119 : vector<2x32x4xf32>
    %cst_30 = arith.constant dense<0.000000e+00> : vector<32x4xf32>
    %121 = vector.multi_reduction <add>, %120, %cst_30 [0] : vector<2x32x4xf32> to vector<32x4xf32>
    %122 = vector.shape_cast %121 : vector<32x4xf32> to vector<1x32x4xf32>
    %123 = tpu.reciprocal %122 {approx = true} : vector<1x32x4xf32> -> vector<1x32x4xf32>
    %124 = vector.broadcast %123 : vector<1x32x4xf32> to vector<2x32x4xf32>
    %125 = arith.mulf %120, %124 : vector<2x32x4xf32>
    %126 = vector.shape_cast %125 : vector<2x32x4xf32> to vector<64x4xf32>
    %127 = arith.truncf %126 : vector<64x4xf32> to vector<64x4xbf16>
    %cst_31 = arith.constant dense<0.000000e+00> : vector<64x128xf32>
    %128 = tpu.matmul %127, %74, %cst_31 {dimension_numbers = #tpu.dot_dimension_numbers<[1], [0], [0], [1], [0, 0, 1, 1], [], []>} : vector<64x4xbf16>, vector<4x128xbf16>, vector<64x128xf32> -> vector<64x128xf32>
    %129 = vector.shape_cast %128 : vector<64x128xf32> to vector<2x32x128xf32>
    %130 = arith.mulf %129, %46 : vector<2x32x128xf32>
    %cst_32 = arith.constant dense<0.000000e+00> : vector<32x128xf32>
    %131 = vector.multi_reduction <add>, %130, %cst_32 [0] : vector<2x32x128xf32> to vector<32x128xf32>
    %c1 = arith.constant 1 : index
    %c0_33 = arith.constant 0 : index
    %c0_34 = arith.constant 0 : index
    %132 = vector.load %arg12[%c1, %c0_33, %c0_34] : memref<2x32x128xf32, #tpu.memory_space<vmem>>, vector<1x32x128xf32>
    %133 = vector.shape_cast %132 : vector<1x32x128xf32> to vector<32x128xf32>
    %134 = vector.shape_cast %131 : vector<32x128xf32> to vector<1x32x128xf32>
    tpu.vector_store %arg12[%c1, %c0_33, %c0_34], %134 {strides = array<i32>} : memref<2x32x128xf32, #tpu.memory_space<vmem>>, vector<1x32x128xf32>,
    %c0_35 = arith.constant 0 : index
    %c0_36 = arith.constant 0 : index
    %c0_37 = arith.constant 0 : index
    %135 = vector.load %arg12[%c0_35, %c0_36, %c0_37] : memref<2x32x128xf32, #tpu.memory_space<vmem>>, vector<2x32x128xf32>
    %136 = vector.shape_cast %135 : vector<2x32x128xf32> to vector<64x128xf32>
    %137 = arith.truncf %136 : vector<64x128xf32> to vector<64x128xbf16>
    %c0_38 = arith.constant 0 : index
    %c0_39 = arith.constant 0 : index
    %138 = vector.load %arg5[%c0_38, %c0_39] : memref<128x128xbf16, #tpu.memory_space<vmem>>, vector<128x128xbf16>
    %cst_40 = arith.constant dense<0.000000e+00> : vector<64x128xf32>
    %139 = tpu.matmul %137, %138, %cst_40 {dimension_numbers = #tpu.dot_dimension_numbers<[1], [0], [0], [1], [0, 0, 1, 1], [], []>} : vector<64x128xbf16>, vector<128x128xbf16>, vector<64x128xf32> -> vector<64x128xf32>
    %c0_41 = arith.constant 0 : index
    %c0_42 = arith.constant 0 : index
    %140 = vector.load %arg6[%c0_41, %c0_42] : memref<1x128xf32, #tpu.memory_space<vmem>>, vector<1x128xf32>
    %141 = vector.broadcast %140 : vector<1x128xf32> to vector<64x128xf32>
    %142 = arith.addf %139, %141 : vector<64x128xf32>
    %143 = vector.shape_cast %142 : vector<64x128xf32> to vector<2x32x128xf32>
    %144 = vector.broadcast %6 : vector<2x1x128xf32> to vector<2x32x128xf32>
    %145 = arith.mulf %144, %143 : vector<2x32x128xf32>
    %146 = arith.addf %35, %145 : vector<2x32x128xf32>
    %cst_43 = arith.constant dense<0.000000e+00> : vector<2x32xf32>
    %147 = vector.multi_reduction <add>, %146, %cst_43 [2] : vector<2x32x128xf32> to vector<2x32xf32>
    %148 = vector.shape_cast %147 : vector<2x32xf32> to vector<2x32x1xf32>
    %cst_44 = arith.constant 1.280000e+02 : f32
    %149 = vector.broadcast %cst_44 : f32 to vector<2x32x1xf32>
    %150 = arith.divf %148, %149 : vector<2x32x1xf32>
    %151 = vector.broadcast %150 : vector<2x32x1xf32> to vector<2x32x128xf32>
    %152 = arith.subf %146, %151 : vector<2x32x128xf32>
    %153 = arith.mulf %152, %152 : vector<2x32x128xf32>
    %cst_45 = arith.constant dense<0.000000e+00> : vector<2x32xf32>
    %154 = vector.multi_reduction <add>, %153, %cst_45 [2] : vector<2x32x128xf32> to vector<2x32xf32>
    %155 = vector.shape_cast %154 : vector<2x32xf32> to vector<2x32x1xf32>
    %cst_46 = arith.constant 1.280000e+02 : f32
    %156 = vector.broadcast %cst_46 : f32 to vector<2x32x1xf32>
    %157 = arith.divf %155, %156 : vector<2x32x1xf32>
    %cst_47 = arith.constant 9.99999997E-7 : f32
    %158 = vector.broadcast %cst_47 : f32 to vector<2x32x1xf32>
    %159 = arith.addf %157, %158 : vector<2x32x1xf32>
    %160 = math.rsqrt %159 : vector<2x32x1xf32>
    %161 = vector.broadcast %160 : vector<2x32x1xf32> to vector<2x32x128xf32>
    %162 = arith.mulf %152, %161 : vector<2x32x128xf32>
    %cst_48 = arith.constant 1.000000e+00 : f32
    %163 = vector.broadcast %cst_48 : f32 to vector<2x1x128xf32>
    %164 = arith.addf %163, %10 : vector<2x1x128xf32>
    %165 = vector.broadcast %164 : vector<2x1x128xf32> to vector<2x32x128xf32>
    %166 = arith.mulf %162, %165 : vector<2x32x128xf32>
    %167 = vector.broadcast %8 : vector<2x1x128xf32> to vector<2x32x128xf32>
    %168 = arith.addf %166, %167 : vector<2x32x128xf32>
    %169 = vector.shape_cast %168 : vector<2x32x128xf32> to vector<64x128xf32>
    %170 = arith.truncf %169 : vector<64x128xf32> to vector<64x128xbf16>
    %cst_49 = arith.constant 0.000000e+00 : f32
    %171 = vector.broadcast %cst_49 : f32 to vector<64x128xf32>
    %c0_50 = arith.constant 0 : index
    %c0_51 = arith.constant 0 : index
    %172 = vector.load %arg7[%c0_50, %c0_51] : memref<128x512xbf16, #tpu.memory_space<vmem>>, vector<128x256xbf16>
    %cst_52 = arith.constant dense<0.000000e+00> : vector<64x256xf32>
    %173 = tpu.matmul %170, %172, %cst_52 {dimension_numbers = #tpu.dot_dimension_numbers<[1], [0], [0], [1], [0, 0, 1, 1], [], []>} : vector<64x128xbf16>, vector<128x256xbf16>, vector<64x256xf32> -> vector<64x256xf32>
    %c0_53 = arith.constant 0 : index
    %c0_54 = arith.constant 0 : index
    %174 = vector.load %arg8[%c0_53, %c0_54] : memref<1x512xf32, #tpu.memory_space<vmem>>, vector<1x256xf32>
    %175 = vector.broadcast %174 : vector<1x256xf32> to vector<64x256xf32>
    %176 = arith.addf %173, %175 : vector<64x256xf32>
    %cst_55 = arith.constant 5.000000e-01 : f32
    %177 = vector.broadcast %cst_55 : f32 to vector<64x256xf32>
    %178 = arith.mulf %177, %176 : vector<64x256xf32>
    %cst_56 = arith.constant 4.471500e-02 : f32
    %179 = vector.broadcast %cst_56 : f32 to vector<64x256xf32>
    %180 = arith.mulf %179, %176 : vector<64x256xf32>
    %181 = arith.mulf %180, %176 : vector<64x256xf32>
    %182 = arith.mulf %181, %176 : vector<64x256xf32>
    %183 = arith.addf %176, %182 : vector<64x256xf32>
    %cst_57 = arith.constant 0.797884583 : f32
    %184 = vector.broadcast %cst_57 : f32 to vector<64x256xf32>
    %185 = arith.mulf %184, %183 : vector<64x256xf32>
    %186 = math.tanh %185 : vector<64x256xf32>
    %cst_58 = arith.constant 1.000000e+00 : f32
    %187 = vector.broadcast %cst_58 : f32 to vector<64x256xf32>
    %188 = arith.addf %187, %186 : vector<64x256xf32>
    %189 = arith.mulf %178, %188 : vector<64x256xf32>
    %190 = arith.truncf %189 : vector<64x256xf32> to vector<64x256xbf16>
    %c0_59 = arith.constant 0 : index
    %c0_60 = arith.constant 0 : index
    %191 = vector.load %arg9[%c0_59, %c0_60] : memref<512x128xbf16, #tpu.memory_space<vmem>>, vector<256x128xbf16>
    %cst_61 = arith.constant dense<0.000000e+00> : vector<64x128xf32>
    %192 = tpu.matmul %190, %191, %cst_61 {dimension_numbers = #tpu.dot_dimension_numbers<[1], [0], [0], [1], [0, 0, 1, 1], [], []>} : vector<64x256xbf16>, vector<256x128xbf16>, vector<64x128xf32> -> vector<64x128xf32>
    %193 = arith.addf %171, %192 : vector<64x128xf32>
    %c0_62 = arith.constant 0 : index
    %c256 = arith.constant 256 : index
    %194 = vector.load %arg7[%c0_62, %c256] : memref<128x512xbf16, #tpu.memory_space<vmem>>, vector<128x256xbf16>
    %cst_63 = arith.constant dense<0.000000e+00> : vector<64x256xf32>
    %195 = tpu.matmul %170, %194, %cst_63 {dimension_numbers = #tpu.dot_dimension_numbers<[1], [0], [0], [1], [0, 0, 1, 1], [], []>} : vector<64x128xbf16>, vector<128x256xbf16>, vector<64x256xf32> -> vector<64x256xf32>
    %c0_64 = arith.constant 0 : index
    %c256_65 = arith.constant 256 : index
    %196 = vector.load %arg8[%c0_64, %c256_65] : memref<1x512xf32, #tpu.memory_space<vmem>>, vector<1x256xf32>
    %197 = vector.broadcast %196 : vector<1x256xf32> to vector<64x256xf32>
    %198 = arith.addf %195, %197 : vector<64x256xf32>
    %cst_66 = arith.constant 5.000000e-01 : f32
    %199 = vector.broadcast %cst_66 : f32 to vector<64x256xf32>
    %200 = arith.mulf %199, %198 : vector<64x256xf32>
    %cst_67 = arith.constant 4.471500e-02 : f32
    %201 = vector.broadcast %cst_67 : f32 to vector<64x256xf32>
    %202 = arith.mulf %201, %198 : vector<64x256xf32>
    %203 = arith.mulf %202, %198 : vector<64x256xf32>
    %204 = arith.mulf %203, %198 : vector<64x256xf32>
    %205 = arith.addf %198, %204 : vector<64x256xf32>
    %cst_68 = arith.constant 0.797884583 : f32
    %206 = vector.broadcast %cst_68 : f32 to vector<64x256xf32>
    %207 = arith.mulf %206, %205 : vector<64x256xf32>
    %208 = math.tanh %207 : vector<64x256xf32>
    %cst_69 = arith.constant 1.000000e+00 : f32
    %209 = vector.broadcast %cst_69 : f32 to vector<64x256xf32>
    %210 = arith.addf %209, %208 : vector<64x256xf32>
    %211 = arith.mulf %200, %210 : vector<64x256xf32>
    %212 = arith.truncf %211 : vector<64x256xf32> to vector<64x256xbf16>
    %c256_70 = arith.constant 256 : index
    %c0_71 = arith.constant 0 : index
    %213 = vector.load %arg9[%c256_70, %c0_71] : memref<512x128xbf16, #tpu.memory_space<vmem>>, vector<256x128xbf16>
    %cst_72 = arith.constant dense<0.000000e+00> : vector<64x128xf32>
    %214 = tpu.matmul %212, %213, %cst_72 {dimension_numbers = #tpu.dot_dimension_numbers<[1], [0], [0], [1], [0, 0, 1, 1], [], []>} : vector<64x256xbf16>, vector<256x128xbf16>, vector<64x128xf32> -> vector<64x128xf32>
    %215 = arith.addf %193, %214 : vector<64x128xf32>
    %c0_73 = arith.constant 0 : index
    %c0_74 = arith.constant 0 : index
    %216 = vector.load %arg10[%c0_73, %c0_74] : memref<1x128xf32, #tpu.memory_space<vmem>>, vector<1x128xf32>
    %217 = vector.broadcast %216 : vector<1x128xf32> to vector<64x128xf32>
    %218 = arith.addf %215, %217 : vector<64x128xf32>
    %219 = vector.shape_cast %218 : vector<64x128xf32> to vector<2x32x128xf32>
    %220 = vector.broadcast %12 : vector<2x1x128xf32> to vector<2x32x128xf32>
    %221 = arith.mulf %220, %219 : vector<2x32x128xf32>
    %222 = arith.addf %168, %221 : vector<2x32x128xf32>
    %c0_75 = arith.constant 0 : index
    %c0_76 = arith.constant 0 : index
    %c0_77 = arith.constant 0 : index
    %223 = vector.load %arg11[%c0_75, %c0_76, %c0_77] : memref<2x32x128xf32, #tpu.memory_space<vmem>>, vector<2x32x128xf32>
    tpu.vector_store %arg11[%c0_75, %c0_76, %c0_77], %222 {strides = array<i32>} : memref<2x32x128xf32, #tpu.memory_space<vmem>>, vector<2x32x128xf32>,
    return
  }
  func.func @transform_0(%arg0: i32) -> (i32, i32, i32) {
    %c0_i32 = arith.constant 0 : i32
    %c0_i32_0 = arith.constant 0 : i32
    %c0_i32_1 = arith.constant 0 : i32
    return %c0_i32, %arg0, %c0_i32_0 : i32, i32, i32
  }
  func.func @transform_1(%arg0: i32) -> (i32, i32) {
    %c0_i32 = arith.constant 0 : i32
    %c0_i32_0 = arith.constant 0 : i32
    %c0_i32_1 = arith.constant 0 : i32
    return %c0_i32, %c0_i32_0 : i32, i32
  }
  func.func @transform_2(%arg0: i32) -> (i32, i32) {
    %c0_i32 = arith.constant 0 : i32
    %c0_i32_0 = arith.constant 0 : i32
    %c0_i32_1 = arith.constant 0 : i32
    return %c0_i32, %c0_i32_0 : i32, i32
  }
  func.func @transform_3(%arg0: i32) -> (i32, i32) {
    %c0_i32 = arith.constant 0 : i32
    %c0_i32_0 = arith.constant 0 : i32
    %c0_i32_1 = arith.constant 0 : i32
    return %c0_i32, %c0_i32_0 : i32, i32
  }
  func.func @transform_4(%arg0: i32) -> (i32, i32) {
    %c0_i32 = arith.constant 0 : i32
    %c0_i32_0 = arith.constant 0 : i32
    %c0_i32_1 = arith.constant 0 : i32
    return %c0_i32, %c0_i32_0 : i32, i32
  }
  func.func @transform_5(%arg0: i32) -> (i32, i32) {
    %c0_i32 = arith.constant 0 : i32
    %c0_i32_0 = arith.constant 0 : i32
    %c0_i32_1 = arith.constant 0 : i32
    return %c0_i32, %c0_i32_0 : i32, i32
  }
  func.func @transform_6(%arg0: i32) -> (i32, i32) {
    %c0_i32 = arith.constant 0 : i32
    %c0_i32_0 = arith.constant 0 : i32
    %c0_i32_1 = arith.constant 0 : i32
    return %c0_i32, %c0_i32_0 : i32, i32
  }
  func.func @transform_7(%arg0: i32) -> (i32, i32) {
    %c0_i32 = arith.constant 0 : i32
    %c0_i32_0 = arith.constant 0 : i32
    %c0_i32_1 = arith.constant 0 : i32
    return %c0_i32, %c0_i32_0 : i32, i32
  }
  func.func @transform_8(%arg0: i32) -> (i32, i32) {
    %c0_i32 = arith.constant 0 : i32
    %c0_i32_0 = arith.constant 0 : i32
    %c0_i32_1 = arith.constant 0 : i32
    return %c0_i32, %c0_i32_0 : i32, i32
  }
  func.func @transform_9(%arg0: i32) -> (i32, i32) {
    %c0_i32 = arith.constant 0 : i32
    %c0_i32_0 = arith.constant 0 : i32
    %c0_i32_1 = arith.constant 0 : i32
    return %c0_i32, %c0_i32_0 : i32, i32
  }
  func.func @transform_10(%arg0: i32) -> (i32, i32, i32) {
    %c0_i32 = arith.constant 0 : i32
    %c0_i32_0 = arith.constant 0 : i32
    %c0_i32_1 = arith.constant 0 : i32
    return %c0_i32, %arg0, %c0_i32_0 : i32, i32, i32
  }
}

</mosaic_0001>

<llo_original>
// kernel: tpu_custom_call.1
$region0: #{tpu_custom_call.1}
  #allocation0 [shape = 'u32[]', space=smem, size = 0x4, offset = 0x4, fixed_abs, tag = 'smem constant byte address 0x4 - core index']
  #allocation1 [shape = 'u32[144,128]{1,0:T(1,128)}', space=vmem, size = 0x12000, scoped, tag = 'internal scratch']
  #allocation2 [shape = 'f32[2,32,128]{2,1,0:T(8,128)}', space=vmem, size = 0x8000, scoped, tag = 'scratch operand']
  #allocation15 [shape = 's32[]', space=sflag, size = 0x4, offset = 0, fixed_abs, tag = 'sflag constant byte address 0x0 - dummy sync flag']
  #allocation17 [shape = 's32[]', space=sflag, size = 0x4, offset = 0, fixed_abs, tag = 'sflag constant byte address 0x0 - dummy sync flag']
  %s0 = inlined_call_operand.hbm [shape: f32[2,64,128], index: 0, kind: input, shape index: {}]
  %s1 = inlined_call_operand.hbm [shape: f32[2,768], index: 1, kind: input, shape index: {}]
  %s2 = inlined_call_operand.hbm [shape: bf16[128,384], index: 2, kind: input, shape index: {}]
  %s3 = inlined_call_operand.vmem [shape: f32[1,384], index: 3, kind: input, shape index: {}]
  %s4 = inlined_call_operand.hbm [shape: bf16[128,128], index: 4, kind: input, shape index: {}]
  %s5 = inlined_call_operand.vmem [shape: f32[1,128], index: 5, kind: input, shape index: {}]
  %s6 = inlined_call_operand.hbm [shape: bf16[128,512], index: 6, kind: input, shape index: {}]
  %s7 = inlined_call_operand.vmem [shape: f32[1,512], index: 7, kind: input, shape index: {}]
  %s8 = inlined_call_operand.hbm [shape: bf16[512,128], index: 8, kind: input, shape index: {}]
  %s9 = inlined_call_operand.vmem [shape: f32[1,128], index: 9, kind: input, shape index: {}]
  %s10 = inlined_call_operand.hbm [shape: f32[2,64,128], index: 10, kind: output, shape index: {}]
  %s11 = sld [smem:[#allocation0]]
  $region97: #{tpu_custom_call.1} parent=0
    _
  %s13 = ssub.s32 1, %s11
  %s14 = scalar_select 0, %s13, %s11
  $region1: #{tpu_custom_call.1} parent=0
    #allocation3 [shape = 'u8[65536]{0}', space=vmem, size = 0x10000, scoped, tag = 'input window, operand 0']
    #allocation4 [shape = 's32[2]{0}', space=sflag, size = 0x8, scoped, tag = 'scoped memory for tpu_custom_call.1']
    #allocation5 [shape = 's32[2]{0}', space=sflag, size = 0x8, scoped, tag = 'scoped memory for tpu_custom_call.1']
    #allocation6 [shape = 'u8[6144]{0}', space=vmem, size = 0x1800, scoped, tag = 'input window, operand 1, single buffered']
    #allocation7 [shape = 's32[1]{0}', space=sflag, size = 0x4, scoped, tag = 'scoped memory for tpu_custom_call.1']
    #allocation8 [shape = 'u8[98304]{0}', space=vmem, size = 0x18000, scoped, tag = 'input window, operand 2, single buffered']
    #allocation9 [shape = 'u8[32768]{0}', space=vmem, size = 0x8000, scoped, tag = 'input window, operand 4, single buffered']
    #allocation10 [shape = 's32[1]{0}', space=sflag, size = 0x4, scoped, tag = 'scoped memory for tpu_custom_call.1']
    #allocation11 [shape = 'u8[131072]{0}', space=vmem, size = 0x20000, scoped, tag = 'input window, operand 6, single buffered']
    #allocation12 [shape = 'u8[131072]{0}', space=vmem, size = 0x20000, scoped, tag = 'input window, operand 8, single buffered']
    #allocation13 [shape = 's32[1]{0}', space=sflag, size = 0x4, scoped, tag = 'scoped memory for tpu_custom_call.1']
    #allocation14 [shape = 'u8[65536]{0}', space=vmem, size = 0x10000, scoped, tag = 'output window, operand 0']
    %15 = vsyncpa [#allocation4], 0
    %s16 = scalar_lea.sflag [#allocation4], 1
    %17 = vsyncpa %s16, 0
    %18 = vsyncpa [#allocation7], 0
    %19 = vsyncpa [#allocation10], 0
    %20 = vsyncpa [#allocation13], 0
    %21 = vsyncpa [#allocation5], 0
    %s22 = scalar_lea.sflag [#allocation5], 1
    %23 = vsyncpa %s22, 0
    loop: start=0, step=1, limit=4
    $region2: #{tpu_custom_call.1} parent=1 // loop_pre_header
      _
    $region3: #{tpu_custom_call.1} parent=1 // loop_header
      %s25 = sphi 0, %s29
      %p26 = scmp.ge.s32.totalorder %s25, 4
      %s35 = sphi 0, %s37
      %s38 = sphi 0, %s35
      %s39 = sphi 0, %s38
      %s55 = sphi 0, %s39
      %s59 = sphi 0, %s59
      %s61 = sphi 0, %s59
      %s62 = sphi 0, %s61
      %s76 = sphi 0, %s62
      %s80 = sphi 0, %s80
      %s82 = sphi 0, %s80
      %s83 = sphi 0, %s82
      %s97 = sphi 0, %s83
      %s101 = sphi 0, %s101
      %s103 = sphi 0, %s101
      %s104 = sphi 0, %s103
      %s118 = sphi 0, %s104
      %s122 = sphi 0, %s122
      %s124 = sphi 0, %s122
      %s125 = sphi 0, %s124
      %s139 = sphi 0, %s125
      %s143 = sphi 0, %s143
      %s145 = sphi 0, %s143
      %s146 = sphi 0, %s145
      %s160 = sphi 0, %s146
      %s164 = sphi 0, %s164
      %s166 = sphi 0, %s164
      %s167 = sphi 0, %s166
      %s181 = sphi 0, %s167
      %s185 = sphi 0, %s185
      %s187 = sphi 0, %s185
      %s188 = sphi 0, %s187
      %s202 = sphi 0, %s188
      %s206 = sphi 0, %s206
      %s208 = sphi 0, %s206
      %s209 = sphi 0, %s208
      %s223 = sphi 0, %s209
      %s227 = sphi 0, %s227
      %s229 = sphi 0, %s227
      %s230 = sphi 0, %s229
      %s244 = sphi 0, %s230
      %s250 = sphi 0, %s252
      %s253 = sphi 0, %s250
      %s254 = sphi 0, %s253
      %s270 = sphi 0, %s254
    $region4: #{tpu_custom_call.1} parent=1 // loop_header_branch
      %28 = sbr.rel (%p26) target = $region8
    $region5: #{tpu_custom_call.1} parent=1 // loop_body
      %s30 = ssub.s32 %s25, 1
      %s31 = ssub.s32 %s25, 2
      %s32 = sadd.s32 %s25, 1
      %s33 = ssub.s32 %s25, %s32
      %p34 = scmp.eq.s32.totalorder %s33, 0
      %s36 = sadd.s32 %s35, 1
      %s37 = scalar_select %p34, %s35, %s36
      %p40 = pneg %p34
      %p41 = scmp.eq.s32.totalorder %s25, 1
      %p42 = por %p40, %p41
      %p43 = scmp.ne.s32.totalorder %s35, %s38
      %p44 = scmp.eq.s32.totalorder %s25, 0
      %p45 = por %p43, %p44
      %p46 = scmp.ne.s32.totalorder %s35, %s38
      %p47 = scmp.eq.s32.totalorder %s30, 1
      %p48 = por %p46, %p47
      %p49 = scmp.ne.s32.totalorder %s38, %s39
      %p50 = scmp.eq.s32.totalorder %s30, 0
      %p51 = por %p49, %p50
      %p52 = scmp.ne.s32.totalorder %s38, %s39
      %p53 = scmp.eq.s32.totalorder %s31, 1
      %p54 = por %p52, %p53
      %p56 = scmp.ne.s32.totalorder %s39, %s55
      %p57 = scmp.eq.s32.totalorder %s31, 0
      %p58 = por %p56, %p57
      %s60 = sadd.s32 %s59, 1
      %p63 = scmp.eq.s32.totalorder %s25, 1
      %p64 = scmp.ne.s32.totalorder %s59, %s61
      %p65 = scmp.eq.s32.totalorder %s25, 0
      %p66 = por %p64, %p65
      %p67 = scmp.ne.s32.totalorder %s59, %s61
      %p68 = scmp.eq.s32.totalorder %s30, 1
      %p69 = por %p67, %p68
      %p70 = scmp.ne.s32.totalorder %s61, %s62
      %p71 = scmp.eq.s32.totalorder %s30, 0
      %p72 = por %p70, %p71
      %p73 = scmp.ne.s32.totalorder %s61, %s62
      %p74 = scmp.eq.s32.totalorder %s31, 1
      %p75 = por %p73, %p74
      %p77 = scmp.ne.s32.totalorder %s62, %s76
      %p78 = scmp.eq.s32.totalorder %s31, 0
      %p79 = por %p77, %p78
      %s81 = sadd.s32 %s80, 1
      %p84 = scmp.eq.s32.totalorder %s25, 1
      %p85 = scmp.ne.s32.totalorder %s80, %s82
      %p86 = scmp.eq.s32.totalorder %s25, 0
      %p87 = por %p85, %p86
      %p88 = scmp.ne.s32.totalorder %s80, %s82
      %p89 = scmp.eq.s32.totalorder %s30, 1
      %p90 = por %p88, %p89
      %p91 = scmp.ne.s32.totalorder %s82, %s83
      %p92 = scmp.eq.s32.totalorder %s30, 0
      %p93 = por %p91, %p92
      %p94 = scmp.ne.s32.totalorder %s82, %s83
      %p95 = scmp.eq.s32.totalorder %s31, 1
      %p96 = por %p94, %p95
      %p98 = scmp.ne.s32.totalorder %s83, %s97
      %p99 = scmp.eq.s32.totalorder %s31, 0
      %p100 = por %p98, %p99
      %s102 = sadd.s32 %s101, 1
      %p105 = scmp.eq.s32.totalorder %s25, 1
      %p106 = scmp.ne.s32.totalorder %s101, %s103
      %p107 = scmp.eq.s32.totalorder %s25, 0
      %p108 = por %p106, %p107
      %p109 = scmp.ne.s32.totalorder %s101, %s103
      %p110 = scmp.eq.s32.totalorder %s30, 1
      %p111 = por %p109, %p110
      %p112 = scmp.ne.s32.totalorder %s103, %s104
      %p113 = scmp.eq.s32.totalorder %s30, 0
      %p114 = por %p112, %p113
      %p115 = scmp.ne.s32.totalorder %s103, %s104
      %p116 = scmp.eq.s32.totalorder %s31, 1
      %p117 = por %p115, %p116
      %p119 = scmp.ne.s32.totalorder %s104, %s118
      %p120 = scmp.eq.s32.totalorder %s31, 0
      %p121 = por %p119, %p120
      %s123 = sadd.s32 %s122, 1
      %p126 = scmp.eq.s32.totalorder %s25, 1
      %p127 = scmp.ne.s32.totalorder %s122, %s124
      %p128 = scmp.eq.s32.totalorder %s25, 0
      %p129 = por %p127, %p128
      %p130 = scmp.ne.s32.totalorder %s122, %s124
      %p131 = scmp.eq.s32.totalorder %s30, 1
      %p132 = por %p130, %p131
      %p133 = scmp.ne.s32.totalorder %s124, %s125
      %p134 = scmp.eq.s32.totalorder %s30, 0
      %p135 = por %p133, %p134
      %p136 = scmp.ne.s32.totalorder %s124, %s125
      %p137 = scmp.eq.s32.totalorder %s31, 1
      %p138 = por %p136, %p137
      %p140 = scmp.ne.s32.totalorder %s125, %s139
      %p141 = scmp.eq.s32.totalorder %s31, 0
      %p142 = por %p140, %p141
      %s144 = sadd.s32 %s143, 1
      %p147 = scmp.eq.s32.totalorder %s25, 1
      %p148 = scmp.ne.s32.totalorder %s143, %s145
      %p149 = scmp.eq.s32.totalorder %s25, 0
      %p150 = por %p148, %p149
      %p151 = scmp.ne.s32.totalorder %s143, %s145
      %p152 = scmp.eq.s32.totalorder %s30, 1
      %p153 = por %p151, %p152
      %p154 = scmp.ne.s32.totalorder %s145, %s146
      %p155 = scmp.eq.s32.totalorder %s30, 0
      %p156 = por %p154, %p155
      %p157 = scmp.ne.s32.totalorder %s145, %s146
      %p158 = scmp.eq.s32.totalorder %s31, 1
      %p159 = por %p157, %p158
      %p161 = scmp.ne.s32.totalorder %s146, %s160
      %p162 = scmp.eq.s32.totalorder %s31, 0
      %p163 = por %p161, %p162
      %s165 = sadd.s32 %s164, 1
      %p168 = scmp.eq.s32.totalorder %s25, 1
      %p169 = scmp.ne.s32.totalorder %s164, %s166
      %p170 = scmp.eq.s32.totalorder %s25, 0
      %p171 = por %p169, %p170
      %p172 = scmp.ne.s32.totalorder %s164, %s166
      %p173 = scmp.eq.s32.totalorder %s30, 1
      %p174 = por %p172, %p173
      %p175 = scmp.ne.s32.totalorder %s166, %s167
      %p176 = scmp.eq.s32.totalorder %s30, 0
      %p177 = por %p175, %p176
      %p178 = scmp.ne.s32.totalorder %s166, %s167
      %p179 = scmp.eq.s32.totalorder %s31, 1
      %p180 = por %p178, %p179
      %p182 = scmp.ne.s32.totalorder %s167, %s181
      %p183 = scmp.eq.s32.totalorder %s31, 0
      %p184 = por %p182, %p183
      %s186 = sadd.s32 %s185, 1
      %p189 = scmp.eq.s32.totalorder %s25, 1
      %p190 = scmp.ne.s32.totalorder %s185, %s187
      %p191 = scmp.eq.s32.totalorder %s25, 0
      %p192 = por %p190, %p191
      %p193 = scmp.ne.s32.totalorder %s185, %s187
      %p194 = scmp.eq.s32.totalorder %s30, 1
      %p195 = por %p193, %p194
      %p196 = scmp.ne.s32.totalorder %s187, %s188
      %p197 = scmp.eq.s32.totalorder %s30, 0
      %p198 = por %p196, %p197
      %p199 = scmp.ne.s32.totalorder %s187, %s188
      %p200 = scmp.eq.s32.totalorder %s31, 1
      %p201 = por %p199, %p200
      %p203 = scmp.ne.s32.totalorder %s188, %s202
      %p204 = scmp.eq.s32.totalorder %s31, 0
      %p205 = por %p203, %p204
      %s207 = sadd.s32 %s206, 1
      %p210 = scmp.eq.s32.totalorder %s25, 1
      %p211 = scmp.ne.s32.totalorder %s206, %s208
      %p212 = scmp.eq.s32.totalorder %s25, 0
      %p213 = por %p211, %p212
      %p214 = scmp.ne.s32.totalorder %s206, %s208
      %p215 = scmp.eq.s32.totalorder %s30, 1
      %p216 = por %p214, %p215
      %p217 = scmp.ne.s32.totalorder %s208, %s209
      %p218 = scmp.eq.s32.totalorder %s30, 0
      %p219 = por %p217, %p218
      %p220 = scmp.ne.s32.totalorder %s208, %s209
      %p221 = scmp.eq.s32.totalorder %s31, 1
      %p222 = por %p220, %p221
      %p224 = scmp.ne.s32.totalorder %s209, %s223
      %p225 = scmp.eq.s32.totalorder %s31, 0
      %p226 = por %p224, %p225
      %s228 = sadd.s32 %s227, 1
      %p231 = scmp.eq.s32.totalorder %s25, 1
      %p232 = scmp.ne.s32.totalorder %s227, %s229
      %p233 = scmp.eq.s32.totalorder %s25, 0
      %p234 = por %p232, %p233
      %p235 = scmp.ne.s32.totalorder %s227, %s229
      %p236 = scmp.eq.s32.totalorder %s30, 1
      %p237 = por %p235, %p236
      %p238 = scmp.ne.s32.totalorder %s229, %s230
      %p239 = scmp.eq.s32.totalorder %s30, 0
      %p240 = por %p238, %p239
      %p241 = scmp.ne.s32.totalorder %s229, %s230
      %p242 = scmp.eq.s32.totalorder %s31, 1
      %p243 = por %p241, %p242
      %p245 = scmp.ne.s32.totalorder %s230, %s244
      %p246 = scmp.eq.s32.totalorder %s31, 0
      %p247 = por %p245, %p246
      %s248 = ssub.s32 %s25, %s32
      %p249 = scmp.eq.s32.totalorder %s248, 0
      %s251 = sadd.s32 %s250, 1
      %s252 = scalar_select %p249, %s250, %s251
      %p255 = pneg %p249
      %p256 = scmp.eq.s32.totalorder %s25, 1
      %p257 = por %p255, %p256
      %p258 = scmp.ne.s32.totalorder %s250, %s253
      %p259 = scmp.eq.s32.totalorder %s25, 0
      %p260 = por %p258, %p259
      %p261 = scmp.ne.s32.totalorder %s250, %s253
      %p262 = scmp.eq.s32.totalorder %s30, 1
      %p263 = por %p261, %p262
      %p264 = scmp.ne.s32.totalorder %s253, %s254
      %p265 = scmp.eq.s32.totalorder %s30, 0
      %p266 = por %p264, %p265
      %p267 = scmp.ne.s32.totalorder %s253, %s254
      %p268 = scmp.eq.s32.totalorder %s31, 1
      %p269 = por %p267, %p268
      %p271 = scmp.ne.s32.totalorder %s254, %s270
      %p272 = scmp.eq.s32.totalorder %s31, 0
      %p273 = por %p271, %p272
      %p274 = scmp.le.s32.totalorder 1, %s25
      %p275 = scmp.lt.s32.totalorder %s25, 3
      %p276 = pnand %p274, %p275
      %p277 = pneg %p276
      // Predicated region
      $region9: #{tpu_custom_call.1} parent=5 // pred_check
        _
      $region10: #{tpu_custom_call.1} parent=5 // pred_check_branch
        %279 = sbr.rel (%p276) target = $region12
      $region11: #{tpu_custom_call.1} parent=5 // pred_region
        %s280 = ssub.s32 %s25, 1
        // Predicated region
        $region13: #{tpu_custom_call.1} parent=11 // pred_check
          %p281 = pneg %p72
        $region14: #{tpu_custom_call.1} parent=11 // pred_check_branch
          %283 = sbr.rel (%p281) target = $region16
        $region15: #{tpu_custom_call.1} parent=11 // pred_region
          %s285 = ssub.s32 192, 192
          %286 = vsyncadd [#allocation7], %s285
          %s288 = sshll.u32 [#allocation6], 4
          %s289 = int_to_ptr.vmem [resolvable:$true] %s288
          %291 = dma.hbm_to_vmem [thread:$0]  %s1, 192, %s289, [#allocation7]
        $region16: #{tpu_custom_call.1} parent=11 // pred_fallthru
          _
        // Predicated region
        $region17: #{tpu_custom_call.1} parent=11 // pred_check
          %p292 = pneg %p93
        $region18: #{tpu_custom_call.1} parent=11 // pred_check_branch
          %294 = sbr.rel (%p292) target = $region20
        $region19: #{tpu_custom_call.1} parent=11 // pred_region
          %s296 = ssub.s32 3072, 3072
          %297 = vsyncadd [#allocation7], %s296
          %s298 = sshll.u32 [#allocation8], 4
          %s299 = int_to_ptr.vmem [resolvable:$true] %s298
          %304 = dma.hbm_to_vmem [thread:$0]  %s2, 3072, %s299, [#allocation7], 192, 192, 12
        $region20: #{tpu_custom_call.1} parent=11 // pred_fallthru
          _
        // Predicated region
        $region21: #{tpu_custom_call.1} parent=11 // pred_check
          %p305 = pneg %p114
        $region22: #{tpu_custom_call.1} parent=11 // pred_check_branch
          %307 = sbr.rel (%p305) target = $region24
        $region23: #{tpu_custom_call.1} parent=11 // pred_region
          _
        $region24: #{tpu_custom_call.1} parent=11 // pred_fallthru
          _
        // Predicated region
        $region25: #{tpu_custom_call.1} parent=11 // pred_check
          %p308 = pneg %p135
        $region26: #{tpu_custom_call.1} parent=11 // pred_check_branch
          %310 = sbr.rel (%p308) target = $region28
        $region27: #{tpu_custom_call.1} parent=11 // pred_region
          %s312 = ssub.s32 1024, 1024
          %313 = vsyncadd [#allocation10], %s312
          %s314 = sshll.u32 [#allocation9], 4
          %s315 = int_to_ptr.vmem [resolvable:$true] %s314
          %320 = dma.hbm_to_vmem [thread:$0]  %s4, 1024, %s315, [#allocation10], 64, 64, 4
        $region28: #{tpu_custom_call.1} parent=11 // pred_fallthru
          _
        // Predicated region
        $region29: #{tpu_custom_call.1} parent=11 // pred_check
          %p321 = pneg %p156
        $region30: #{tpu_custom_call.1} parent=11 // pred_check_branch
          %323 = sbr.rel (%p321) target = $region32
        $region31: #{tpu_custom_call.1} parent=11 // pred_region
          _
        $region32: #{tpu_custom_call.1} parent=11 // pred_fallthru
          _
        // Predicated region
        $region33: #{tpu_custom_call.1} parent=11 // pred_check
          %p324 = pneg %p177
        $region34: #{tpu_custom_call.1} parent=11 // pred_check_branch
          %326 = sbr.rel (%p324) target = $region36
        $region35: #{tpu_custom_call.1} parent=11 // pred_region
          %s328 = ssub.s32 4096, 4096
          %329 = vsyncadd [#allocation10], %s328
          %s330 = sshll.u32 [#allocation11], 4
          %s331 = int_to_ptr.vmem [resolvable:$true] %s330
          %336 = dma.hbm_to_vmem [thread:$0]  %s6, 4096, %s331, [#allocation10], 256, 256, 16
        $region36: #{tpu_custom_call.1} parent=11 // pred_fallthru
          _
        // Predicated region
        $region37: #{tpu_custom_call.1} parent=11 // pred_check
          %p337 = pneg %p198
        $region38: #{tpu_custom_call.1} parent=11 // pred_check_branch
          %339 = sbr.rel (%p337) target = $region40
        $region39: #{tpu_custom_call.1} parent=11 // pred_region
          _
        $region40: #{tpu_custom_call.1} parent=11 // pred_fallthru
          _
        // Predicated region
        $region41: #{tpu_custom_call.1} parent=11 // pred_check
          %p340 = pneg %p219
        $region42: #{tpu_custom_call.1} parent=11 // pred_check_branch
          %342 = sbr.rel (%p340) target = $region44
        $region43: #{tpu_custom_call.1} parent=11 // pred_region
          %s344 = ssub.s32 4096, 4096
          %345 = vsyncadd [#allocation13], %s344
          %s346 = sshll.u32 [#allocation12], 4
          %s347 = int_to_ptr.vmem [resolvable:$true] %s346
          %352 = dma.hbm_to_vmem [thread:$0]  %s8, 4096, %s347, [#allocation13], 64, 64, 4
        $region44: #{tpu_custom_call.1} parent=11 // pred_fallthru
          _
        // Predicated region
        $region45: #{tpu_custom_call.1} parent=11 // pred_check
          %p353 = pneg %p240
        $region46: #{tpu_custom_call.1} parent=11 // pred_check_branch
          %355 = sbr.rel (%p353) target = $region48
        $region47: #{tpu_custom_call.1} parent=11 // pred_region
          _
        $region48: #{tpu_custom_call.1} parent=11 // pred_fallthru
          _
      $region12: #{tpu_custom_call.1} parent=5 // pred_fallthru
        _
      %p356 = scmp.lt.s32.totalorder %s25, 2
      // Predicated region
      $region49: #{tpu_custom_call.1} parent=5 // pred_check
        %p357 = pneg %p356
      $region50: #{tpu_custom_call.1} parent=5 // pred_check_branch
        %359 = sbr.rel (%p357) target = $region52
      $region51: #{tpu_custom_call.1} parent=5 // pred_region
        // Predicated region
        $region53: #{tpu_custom_call.1} parent=51 // pred_check
          %p360 = pneg %p45
        $region54: #{tpu_custom_call.1} parent=51 // pred_check_branch
          %362 = sbr.rel (%p360) target = $region56
        $region55: #{tpu_custom_call.1} parent=51 // pred_region
          #allocation16 [shape = 'u32[6]{0}', space=smem, size = 0x18, scoped, tag = 'DMA stride descriptor']
          %s363 = sand.u32 %s35, 1
          %s364 = scalar_lea.sflag [#allocation4], %s363
          %s365 = sand.u32 %s35, 1
          %s366 = smul.addr %s365, 64
          %s367 = scalar_lea.vmem [#allocation3], %s366
          %s368 = smul.u32 4, %s25
          %s370 = ssub.s32 1024, 1024
          %371 = vsyncadd %s364, %s370
          %s372 = smul.addr %s368, 128
          %s373 = scalar_lea.hbm %s0, %s372
          %s375 = sshll.u32 1, 14
          %s376 = sxor.u32 4294967295, %s375
          %s378 = sld [smem:[#allocation0]]
          %s379 = sadd.s32 2, %s378
          %s381 = sshll.u32 7, 26
          %s382 = sxor.u32 4294967295, %s381
          %s383 = sand.u32 0, %s382
          %s384 = sshll.u32 %s379, 26
          %s385 = sor.u32 %s383, %s384
          %s386 = sshll.u32 %s367, 4
          %s387 = int_to_ptr.vmem [resolvable:$true] %s386
          %393 = sst [smem:[#allocation16]] 1024
          %s394 = scalar_lea.smem [#allocation16], 1
          %395 = sst [smem:[%s394]] 512
          %s396 = scalar_lea.smem [#allocation16], 2
          %397 = sst [smem:[%s396]] 4
          %s398 = scalar_lea.smem [#allocation16], 3
          %399 = sst [smem:[%s398]] 128
          %s400 = scalar_lea.smem [#allocation16], 4
          %401 = sst [smem:[%s400]] 128
          %s402 = scalar_lea.smem [#allocation16], 5
          %403 = sst [smem:[%s402]] 8
          %405 = dma.general %s373, 1024, %s387, %s364, [#allocation15], [#allocation16], %s385, 0
        $region56: #{tpu_custom_call.1} parent=51 // pred_fallthru
          _
      $region52: #{tpu_custom_call.1} parent=5 // pred_fallthru
        _
      %p406 = scmp.le.s32.totalorder 1, %s25
      %p407 = scmp.lt.s32.totalorder %s25, 3
      %p408 = pnand %p406, %p407
      %p409 = pneg %p408
      // Predicated region
      $region57: #{tpu_custom_call.1} parent=5 // pred_check
        _
      $region58: #{tpu_custom_call.1} parent=5 // pred_check_branch
        %411 = sbr.rel (%p408) target = $region60
      $region59: #{tpu_custom_call.1} parent=5 // pred_region
        %s412 = ssub.s32 %s25, 1
        %s413 = sand.u32 %s38, 1
        %s414 = scalar_lea.sflag [#allocation4], %s413
        %s415 = sand.u32 %s38, 1
        %s416 = smul.addr %s415, 64
        %s417 = scalar_lea.vmem [#allocation3], %s416
        // Predicated region
        $region61: #{tpu_custom_call.1} parent=59 // pred_check
          %p418 = pneg %p51
        $region62: #{tpu_custom_call.1} parent=59 // pred_check_branch
          %420 = sbr.rel (%p418) target = $region64
        $region63: #{tpu_custom_call.1} parent=59 // pred_region
          %421 = dma.done %s414, 1024
        $region64: #{tpu_custom_call.1} parent=59 // pred_fallthru
          _
        // Predicated region
        $region65: #{tpu_custom_call.1} parent=59 // pred_check
          %p422 = pneg %p72
        $region66: #{tpu_custom_call.1} parent=59 // pred_check_branch
          %424 = sbr.rel (%p422) target = $region68
        $region67: #{tpu_custom_call.1} parent=59 // pred_region
          %425 = dma.done [#allocation7], 192
        $region68: #{tpu_custom_call.1} parent=59 // pred_fallthru
          _
        // Predicated region
        $region69: #{tpu_custom_call.1} parent=59 // pred_check
          %p426 = pneg %p93
        $region70: #{tpu_custom_call.1} parent=59 // pred_check_branch
          %428 = sbr.rel (%p426) target = $region72
        $region71: #{tpu_custom_call.1} parent=59 // pred_region
          %429 = dma.done [#allocation7], 3072
        $region72: #{tpu_custom_call.1} parent=59 // pred_fallthru
          _
        // Predicated region
        $region73: #{tpu_custom_call.1} parent=59 // pred_check
          %p430 = pneg %p135
        $region74: #{tpu_custom_call.1} parent=59 // pred_check_branch
          %432 = sbr.rel (%p430) target = $region76
        $region75: #{tpu_custom_call.1} parent=59 // pred_region
          %433 = dma.done [#allocation10], 1024
        $region76: #{tpu_custom_call.1} parent=59 // pred_fallthru
          _
        // Predicated region
        $region77: #{tpu_custom_call.1} parent=59 // pred_check
          %p434 = pneg %p177
        $region78: #{tpu_custom_call.1} parent=59 // pred_check_branch
          %436 = sbr.rel (%p434) target = $region80
        $region79: #{tpu_custom_call.1} parent=59 // pred_region
          %437 = dma.done [#allocation10], 4096
        $region80: #{tpu_custom_call.1} parent=59 // pred_fallthru
          _
        // Predicated region
        $region81: #{tpu_custom_call.1} parent=59 // pred_check
          %p438 = pneg %p219
        $region82: #{tpu_custom_call.1} parent=59 // pred_check_branch
          %440 = sbr.rel (%p438) target = $region84
        $region83: #{tpu_custom_call.1} parent=59 // pred_region
          %441 = dma.done [#allocation13], 4096
        $region84: #{tpu_custom_call.1} parent=59 // pred_fallthru
          _
        %s442 = sand.u32 %s38, 1
        %s443 = scalar_lea.sflag [#allocation4], %s442
        %s444 = sand.u32 %s38, 1
        %s445 = smul.addr %s444, 64
        %s446 = scalar_lea.vmem [#allocation3], %s445
        %p447 = pneg %p51
        %p448 = pneg %p48
        %p449 = pneg %p72
        %p450 = pneg %p69
        %p451 = pneg %p93
        %p452 = pneg %p90
        %p453 = pneg %p114
        %p454 = pneg %p111
        %p455 = pneg %p135
        %p456 = pneg %p132
        %p457 = pneg %p156
        %p458 = pneg %p153
        %p459 = pneg %p177
        %p460 = pneg %p174
        %p461 = pneg %p198
        %p462 = pneg %p195
        %p463 = pneg %p219
        %p464 = pneg %p216
        %p465 = pneg %p240
        %p466 = pneg %p237
        %p467 = pneg %p266
        %p468 = pneg %p263
        %s469 = sand.u32 %s253, 1
        %s470 = scalar_lea.sflag [#allocation5], %s469
        %s471 = sand.u32 %s253, 1
        %s472 = smul.addr %s471, 64
        %s473 = scalar_lea.vmem [#allocation14], %s472
        %s474 = smul.u32 4, %s30
        %s475 = smul.u32 4, %s30
        %v477 = vld [vmem:[#allocation6] sm:$0xff]
        %v478 = vld [vmem:[#allocation6 + $0x8] sm:$0xf]
        %v481 = vunpack.c.l.s4 1966171168
        %v482 = vunpack.c.0.s8 %v481
        %v483 = vlaneseq
        %v484 = vshrl.u32 %v483, 7
        %v485 = vsub.s32 %v482, %v484
        %v486 = vrot.slane %v477, %v485
        %v487 = vcombine.high %v486, %v486
        %v488 = vrot.slane %v486, 1
        %v489 = vrot.slane %v487, 1
        %v492 = vrot.slane %v486, 2
        %v493 = vrot.slane %v487, 2
        %v494 = vrot.slane %v486, 3
        %v495 = vrot.slane %v487, 3
        %v498 = vunpack.c.l.s4 1966171168
        %v499 = vunpack.c.0.s8 %v498
        %v500 = vlaneseq
        %v501 = vshrl.u32 %v500, 7
        %v502 = vsub.s32 %v499, %v501
        %v503 = vrot.slane %v478, %v502
        %v504 = vcombine.high %v503, %v503
        %v507 = vrot.slane %v503, 1
        %v508 = vrot.slane %v504, 1
        %v509 = vld [vmem:[%s417] sm:$0xff]
        %v510 = vld [vmem:[%s417 + $0x8] sm:$0xff]
        %v511 = vld [vmem:[%s417 + $0x10] sm:$0xff]
        %v512 = vld [vmem:[%s417 + $0x18] sm:$0xff]
        %v513 = vld [vmem:[%s417 + $0x20] sm:$0xff]
        %v514 = vld [vmem:[%s417 + $0x28] sm:$0xff]
        %v515 = vld [vmem:[%s417 + $0x30] sm:$0xff]
        %v516 = vld [vmem:[%s417 + $0x38] sm:$0xff]
        %517 = vadd.xlane.f32.xlu0 %v509
        %v518 = vpop.xlane.xlu0 %517
        %519 = vadd.xlane.f32.xlu0 %v510
        %v520 = vpop.xlane.xlu0 %519
        %521 = vadd.xlane.f32.xlu0 %v511
        %v522 = vpop.xlane.xlu0 %521
        %523 = vadd.xlane.f32.xlu0 %v512
        %v524 = vpop.xlane.xlu0 %523
        %525 = vadd.xlane.f32.xlu0 %v513
        %v526 = vpop.xlane.xlu0 %525
        %527 = vadd.xlane.f32.xlu0 %v514
        %v528 = vpop.xlane.xlu0 %527
        %529 = vadd.xlane.f32.xlu0 %v515
        %v530 = vpop.xlane.xlu0 %529
        %531 = vadd.xlane.f32.xlu0 %v516
        %v532 = vpop.xlane.xlu0 %531
        %v533 = vrcp.pop 128.0
        %v534 = vmul.f32 %v518, %v533
        %v535 = vmul.f32 %v520, %v533
        %v536 = vmul.f32 %v522, %v533
        %v537 = vmul.f32 %v524, %v533
        %v538 = vmul.f32 %v526, %v533
        %v539 = vmul.f32 %v528, %v533
        %v540 = vmul.f32 %v530, %v533
        %v541 = vmul.f32 %v532, %v533
        %v542 = vsub.f32 %v509, %v534
        %v543 = vsub.f32 %v510, %v535
        %v544 = vsub.f32 %v511, %v536
        %v545 = vsub.f32 %v512, %v537
        %v546 = vsub.f32 %v513, %v538
        %v547 = vsub.f32 %v514, %v539
        %v548 = vsub.f32 %v515, %v540
        %v549 = vsub.f32 %v516, %v541
        %v550 = vmul.f32 %v542, %v542
        %v551 = vmul.f32 %v543, %v543
        %v552 = vmul.f32 %v544, %v544
        %v553 = vmul.f32 %v545, %v545
        %v554 = vmul.f32 %v546, %v546
        %v555 = vmul.f32 %v547, %v547
        %v556 = vmul.f32 %v548, %v548
        %v557 = vmul.f32 %v549, %v549
        %558 = vadd.xlane.f32.xlu0 %v550
        %v559 = vpop.xlane.xlu0 %558
        %560 = vadd.xlane.f32.xlu0 %v551
        %v561 = vpop.xlane.xlu0 %560
        %562 = vadd.xlane.f32.xlu0 %v552
        %v563 = vpop.xlane.xlu0 %562
        %564 = vadd.xlane.f32.xlu0 %v553
        %v565 = vpop.xlane.xlu0 %564
        %566 = vadd.xlane.f32.xlu0 %v554
        %v567 = vpop.xlane.xlu0 %566
        %568 = vadd.xlane.f32.xlu0 %v555
        %v569 = vpop.xlane.xlu0 %568
        %570 = vadd.xlane.f32.xlu0 %v556
        %v571 = vpop.xlane.xlu0 %570
        %572 = vadd.xlane.f32.xlu0 %v557
        %v573 = vpop.xlane.xlu0 %572
        %v574 = vmul.f32 %v559, %v533
        %v575 = vmul.f32 %v561, %v533
        %v576 = vmul.f32 %v563, %v533
        %v577 = vmul.f32 %v565, %v533
        %v578 = vmul.f32 %v567, %v533
        %v579 = vmul.f32 %v569, %v533
        %v580 = vmul.f32 %v571, %v533
        %v581 = vmul.f32 %v573, %v533
        %v582 = vadd.f32 %v574, 1e-06
        %v583 = vadd.f32 %v575, 1e-06
        %v584 = vadd.f32 %v576, 1e-06
        %v585 = vadd.f32 %v577, 1e-06
        %v586 = vadd.f32 %v578, 1e-06
        %v587 = vadd.f32 %v579, 1e-06
        %v588 = vadd.f32 %v580, 1e-06
        %v589 = vadd.f32 %v581, 1e-06
        %v590 = vrsqrt.pop %v582
        %v591 = vrsqrt.pop %v583
        %v592 = vrsqrt.pop %v584
        %v593 = vrsqrt.pop %v585
        %v594 = vrsqrt.pop %v586
        %v595 = vrsqrt.pop %v587
        %v596 = vrsqrt.pop %v588
        %v597 = vrsqrt.pop %v589
        %v598 = vmul.f32 %v542, %v590
        %v599 = vmul.f32 %v543, %v591
        %v600 = vmul.f32 %v544, %v592
        %v601 = vmul.f32 %v545, %v593
        %v602 = vmul.f32 %v546, %v594
        %v603 = vmul.f32 %v547, %v595
        %v604 = vmul.f32 %v548, %v596
        %v605 = vmul.f32 %v549, %v597
        %v606 = vadd.f32 %v488, 1.0
        %v607 = vadd.f32 %v489, 1.0
        %v610 = vlaneseq
        %v611 = vshrl.u32 %v610, 7
        %v612 = vsub.s32 0, %v611
        %v613 = vrot.slane %v606, %v612
        %v614 = vlaneseq
        %v615 = vshrl.u32 %v614, 7
        %v616 = vsub.s32 0, %v615
        %v617 = vrot.slane %v607, %v616
        %v620 = vmul.f32 %v598, %v613
        %v621 = vmul.f32 %v599, %v613
        %v622 = vmul.f32 %v600, %v613
        %v623 = vmul.f32 %v601, %v613
        %v624 = vmul.f32 %v602, %v617
        %v625 = vmul.f32 %v603, %v617
        %v626 = vmul.f32 %v604, %v617
        %v627 = vmul.f32 %v605, %v617
        %v628 = vlaneseq
        %v629 = vshrl.u32 %v628, 7
        %v630 = vsub.s32 0, %v629
        %v631 = vrot.slane %v486, %v630
        %v632 = vlaneseq
        %v633 = vshrl.u32 %v632, 7
        %v634 = vsub.s32 0, %v633
        %v635 = vrot.slane %v487, %v634
        %v638 = vadd.f32 %v620, %v631
        %v639 = vadd.f32 %v621, %v631
        %v640 = vadd.f32 %v622, %v631
        %v641 = vadd.f32 %v623, %v631
        %v642 = vadd.f32 %v624, %v635
        %v643 = vadd.f32 %v625, %v635
        %v644 = vadd.f32 %v626, %v635
        %v645 = vadd.f32 %v627, %v635
        %v646 = vpack.c.bf16 %v639, %v638
        %v647 = vpack.c.bf16 %v641, %v640
        %v648 = vpack.c.bf16 %v643, %v642
        %v649 = vpack.c.bf16 %v645, %v644
        %v650 = vld [vmem:[#allocation8] sm:$0xff]
        %v651 = vld [vmem:[#allocation8 + $0x8] sm:$0xf]
        %v652 = vld [vmem:[#allocation8 + $0xc] sm:$0xff]
        %v653 = vld [vmem:[#allocation8 + $0x14] sm:$0xf]
        %v654 = vld [vmem:[#allocation8 + $0x18] sm:$0xff]
        %v655 = vld [vmem:[#allocation8 + $0x20] sm:$0xf]
        %v656 = vld [vmem:[#allocation8 + $0x24] sm:$0xff]
        %v657 = vld [vmem:[#allocation8 + $0x2c] sm:$0xf]
        %v658 = vld [vmem:[#allocation8 + $0x30] sm:$0xff]
        %v659 = vld [vmem:[#allocation8 + $0x38] sm:$0xf]
        %v660 = vld [vmem:[#allocation8 + $0x3c] sm:$0xff]
        %v661 = vld [vmem:[#allocation8 + $0x44] sm:$0xf]
        %v662 = vld [vmem:[#allocation8 + $0x48] sm:$0xff]
        %v663 = vld [vmem:[#allocation8 + $0x50] sm:$0xf]
        %v664 = vld [vmem:[#allocation8 + $0x54] sm:$0xff]
        %v665 = vld [vmem:[#allocation8 + $0x5c] sm:$0xf]
        %v666 = vld [vmem:[#allocation8 + $0x60] sm:$0xff]
        %v667 = vld [vmem:[#allocation8 + $0x68] sm:$0xf]
        %v668 = vld [vmem:[#allocation8 + $0x6c] sm:$0xff]
        %v669 = vld [vmem:[#allocation8 + $0x74] sm:$0xf]
        %v670 = vld [vmem:[#allocation8 + $0x78] sm:$0xff]
        %v671 = vld [vmem:[#allocation8 + $0x80] sm:$0xf]
        %v672 = vld [vmem:[#allocation8 + $0x84] sm:$0xff]
        %v673 = vld [vmem:[#allocation8 + $0x8c] sm:$0xf]
        %v674 = vld [vmem:[#allocation8 + $0x90] sm:$0xff]
        %v675 = vld [vmem:[#allocation8 + $0x98] sm:$0xf]
        %v676 = vld [vmem:[#allocation8 + $0x9c] sm:$0xff]
        %v677 = vld [vmem:[#allocation8 + $0xa4] sm:$0xf]
        %v678 = vld [vmem:[#allocation8 + $0xa8] sm:$0xff]
        %v679 = vld [vmem:[#allocation8 + $0xb0] sm:$0xf]
        %v680 = vld [vmem:[#allocation8 + $0xb4] sm:$0xff]
        %v681 = vld [vmem:[#allocation8 + $0xbc] sm:$0xf]
        %v682 = vld [vmem:[%s3] sm:$0x7]
        %v684 = vlaneseq
        %v685 = vshrl.u32 %v684, 7
        %v686 = vsub.s32 0, %v685
        %v687 = vrot.slane %v682, %v686
        %v688 = vlaneseq
        %v689 = vshrl.u32 %v688, 7
        %v690 = vsub.s32 1, %v689
        %v691 = vrot.slane %v682, %v690
        %v692 = vlaneseq
        %v693 = vshrl.u32 %v692, 7
        %v694 = vsub.s32 2, %v693
        %v695 = vrot.slane %v682, %v694
        %v731 = vunpack.c.l.b16 %v650
        %v732 = vunpack.c.h.b16 %v650
        %v733 = vunpack.c.l.b16 %v651
        %v734 = vunpack.c.l.b16 %v652
        %v735 = vunpack.c.h.b16 %v652
        %v736 = vunpack.c.l.b16 %v653
        %v737 = vunpack.c.l.b16 %v654
        %v738 = vunpack.c.h.b16 %v654
        %v739 = vunpack.c.l.b16 %v655
        %v740 = vunpack.c.l.b16 %v656
        %v741 = vunpack.c.h.b16 %v656
        %v742 = vunpack.c.l.b16 %v657
        %v743 = vunpack.c.l.b16 %v658
        %v744 = vunpack.c.h.b16 %v658
        %v745 = vunpack.c.l.b16 %v659
        %v746 = vunpack.c.l.b16 %v660
        %v747 = vunpack.c.h.b16 %v660
        %v748 = vunpack.c.l.b16 %v661
        %v749 = vunpack.c.l.b16 %v662
        %v750 = vunpack.c.h.b16 %v662
        %v751 = vunpack.c.l.b16 %v663
        %v752 = vunpack.c.l.b16 %v664
        %v753 = vunpack.c.h.b16 %v664
        %v754 = vunpack.c.l.b16 %v665
        %v755 = vunpack.c.l.b16 %v666
        %v756 = vunpack.c.h.b16 %v666
        %v757 = vunpack.c.l.b16 %v667
        %v758 = vunpack.c.l.b16 %v668
        %v759 = vunpack.c.h.b16 %v668
        %v760 = vunpack.c.l.b16 %v669
        %v761 = vunpack.c.l.b16 %v670
        %v762 = vunpack.c.h.b16 %v670
        %v763 = vunpack.c.l.b16 %v671
        %v764 = vunpack.c.l.b16 %v672
        %v765 = vunpack.c.h.b16 %v672
        %v766 = vunpack.c.l.b16 %v673
        %v767 = vunpack.c.l.b16 %v674
        %v768 = vunpack.c.h.b16 %v674
        %v769 = vunpack.c.l.b16 %v675
        %v770 = vunpack.c.l.b16 %v676
        %v771 = vunpack.c.h.b16 %v676
        %v772 = vunpack.c.l.b16 %v677
        %v773 = vunpack.c.l.b16 %v678
        %v774 = vunpack.c.h.b16 %v678
        %v775 = vunpack.c.l.b16 %v679
        %v776 = vunpack.c.l.b16 %v680
        %v777 = vunpack.c.h.b16 %v680
        %v778 = vunpack.c.l.b16 %v681
        %v779 = vpack.c.b16 %v734, %v731
        %v780 = vpack.c.b16 %v735, %v732
        %v781 = vpack.c.b16 %v736, %v733
        %v782 = vpack.c.b16 %v740, %v737
        %v783 = vpack.c.b16 %v741, %v738
        %v784 = vpack.c.b16 %v742, %v739
        %v785 = vpack.c.b16 %v746, %v743
        %v786 = vpack.c.b16 %v747, %v744
        %v787 = vpack.c.b16 %v748, %v745
        %v788 = vpack.c.b16 %v752, %v749
        %v789 = vpack.c.b16 %v753, %v750
        %v790 = vpack.c.b16 %v754, %v751
        %v791 = vpack.c.b16 %v758, %v755
        %v792 = vpack.c.b16 %v759, %v756
        %v793 = vpack.c.b16 %v760, %v757
        %v794 = vpack.c.b16 %v764, %v761
        %v795 = vpack.c.b16 %v765, %v762
        %v796 = vpack.c.b16 %v766, %v763
        %v797 = vpack.c.b16 %v770, %v767
        %v798 = vpack.c.b16 %v771, %v768
        %v799 = vpack.c.b16 %v772, %v769
        %v800 = vpack.c.b16 %v776, %v773
        %v801 = vpack.c.b16 %v777, %v774
        %v802 = vpack.c.b16 %v778, %v775
        %827 = vmatprep.subr.bf16.mxu0 %v780
        %828 = vmatpush1.bf16.msra.mxu0 %v779
        %829 = vmatprep.subr.bf16.mxu0 %v783
        %830 = vmatpush1.bf16.msra.mxu0 %v782
        %831 = vmatprep.subr.bf16.mxu0 %v786
        %832 = vmatpush1.bf16.msra.mxu0 %v785
        %833 = vmatprep.subr.bf16.mxu0 %v789
        %834 = vmatpush1.bf16.msra.mxu0 %v788
        %835 = vmatprep.subr.bf16.mxu0 %v792
        %836 = vmatpush1.bf16.msra.mxu0 %v791
        %837 = vmatprep.subr.bf16.mxu0 %v795
        %838 = vmatpush1.bf16.msra.mxu0 %v794
        %839 = vmatprep.subr.bf16.mxu0 %v798
        %840 = vmatpush1.bf16.msra.mxu0 %v797
        %841 = vmatprep.subr.bf16.mxu0 %v801
        %842 = vmatpush1.bf16.msra.mxu0 %v800
        %843 = vmatprep.subr.bf16.mxu0 0
        %844 = vmatpush1.bf16.msra.mxu0 0
        %845 = vmatprep.subr.bf16.mxu0 0
        %846 = vmatpush1.bf16.msra.mxu0 0
        %847 = vmatprep.subr.bf16.mxu0 0
        %848 = vmatpush1.bf16.msra.mxu0 0
        %849 = vmatprep.subr.bf16.mxu0 0
        %850 = vmatpush1.bf16.msra.mxu0 0
        %851 = vmatprep.subr.bf16.mxu0 0
        %852 = vmatpush1.bf16.msra.mxu0 0
        %853 = vmatprep.subr.bf16.mxu0 0
        %854 = vmatpush1.bf16.msra.mxu0 0
        %855 = vmatprep.subr.bf16.mxu0 0
        %856 = vmatpush1.bf16.msra.mxu0 0
        %857 = vmatprep.subr.bf16.mxu0 0
        %858 = vmatpush1.bf16.msra.mxu0 0
        %859 = vmatprep.mubr.bf16.mxu0 0
        %860 = vmatmul.mubr.bf16.gmra.mrb[0].mxu0 %v646
        %v861 = vpop.f32.mrb[0].mxu0
        %v862 = vadd.f32 %v687, %v861
        %v863 = vpop.f32.mrb[0].mxu0
        %v864 = vadd.f32 %v691, %v863
        %v865 = vpop.f32.mrb[0].mxu0
        %v866 = vadd.f32 %v687, %v865
        %v867 = vpop.f32.mrb[0].mxu0
        %v868 = vadd.f32 %v691, %v867
        %869 = vmatprep.mubr.bf16.mxu0 0
        %870 = vmatmul.mubr.bf16.gmra.mrb[0].mxu0 %v647
        %v871 = vpop.f32.mrb[0].mxu0
        %v872 = vadd.f32 %v687, %v871
        %v873 = vpop.f32.mrb[0].mxu0
        %v874 = vadd.f32 %v691, %v873
        %v875 = vpop.f32.mrb[0].mxu0
        %v876 = vadd.f32 %v687, %v875
        %v877 = vpop.f32.mrb[0].mxu0
        %v878 = vadd.f32 %v691, %v877
        %879 = vmatprep.mubr.bf16.mxu0 0
        %880 = vmatmul.mubr.bf16.gmra.mrb[0].mxu0 %v648
        %v881 = vpop.f32.mrb[0].mxu0
        %v882 = vadd.f32 %v687, %v881
        %v883 = vpop.f32.mrb[0].mxu0
        %v884 = vadd.f32 %v691, %v883
        %v885 = vpop.f32.mrb[0].mxu0
        %v886 = vadd.f32 %v687, %v885
        %v887 = vpop.f32.mrb[0].mxu0
        %v888 = vadd.f32 %v691, %v887
        %889 = vmatprep.mubr.bf16.mxu0 0
        %890 = vmatmul.mubr.bf16.gmra.mrb[0].mxu0 %v649
        %v891 = vpop.f32.mrb[0].mxu0
        %v892 = vadd.f32 %v687, %v891
        %v893 = vpop.f32.mrb[0].mxu0
        %v894 = vadd.f32 %v691, %v893
        %v895 = vpop.f32.mrb[0].mxu0
        %v896 = vadd.f32 %v687, %v895
        %v897 = vpop.f32.mrb[0].mxu0
        %v898 = vadd.f32 %v691, %v897
        %899 = vdwg.mxu0
        %900 = vmatprep.subr.bf16.mxu0 0
        %901 = vmatpush1.bf16.msra.mxu0 %v781
        %902 = vmatprep.subr.bf16.mxu0 0
        %903 = vmatpush1.bf16.msra.mxu0 %v784
        %904 = vmatprep.subr.bf16.mxu0 0
        %905 = vmatpush1.bf16.msra.mxu0 %v787
        %906 = vmatprep.subr.bf16.mxu0 0
        %907 = vmatpush1.bf16.msra.mxu0 %v790
        %908 = vmatprep.subr.bf16.mxu0 0
        %909 = vmatpush1.bf16.msra.mxu0 %v793
        %910 = vmatprep.subr.bf16.mxu0 0
        %911 = vmatpush1.bf16.msra.mxu0 %v796
        %912 = vmatprep.subr.bf16.mxu0 0
        %913 = vmatpush1.bf16.msra.mxu0 %v799
        %914 = vmatprep.subr.bf16.mxu0 0
        %915 = vmatpush1.bf16.msra.mxu0 %v802
        %916 = vmatprep.subr.bf16.mxu0 0
        %917 = vmatpush1.bf16.msra.mxu0 0
        %918 = vmatprep.subr.bf16.mxu0 0
        %919 = vmatpush1.bf16.msra.mxu0 0
        %920 = vmatprep.subr.bf16.mxu0 0
        %921 = vmatpush1.bf16.msra.mxu0 0
        %922 = vmatprep.subr.bf16.mxu0 0
        %923 = vmatpush1.bf16.msra.mxu0 0
        %924 = vmatprep.subr.bf16.mxu0 0
        %925 = vmatpush1.bf16.msra.mxu0 0
        %926 = vmatprep.subr.bf16.mxu0 0
        %927 = vmatpush1.bf16.msra.mxu0 0
        %928 = vmatprep.subr.bf16.mxu0 0
        %929 = vmatpush1.bf16.msra.mxu0 0
        %930 = vmatprep.subr.bf16.mxu0 0
        %931 = vmatpush1.bf16.msra.mxu0 0
        %932 = vmatprep.mubr.bf16.mxu0 0
        %933 = vmatmul.mubr.bf16.gmra.mrb[0].mxu0 %v646
        %v934 = vpop.f32.mrb[0].mxu0
        %v935 = vadd.f32 %v695, %v934
        %v936 = vpop.f32.mrb[0].mxu0
        %v937 = vpop.f32.mrb[0].mxu0
        %v938 = vadd.f32 %v695, %v937
        %v939 = vpop.f32.mrb[0].mxu0
        %940 = vmatprep.mubr.bf16.mxu0 0
        %941 = vmatmul.mubr.bf16.gmra.mrb[0].mxu0 %v647
        %v942 = vpop.f32.mrb[0].mxu0
        %v943 = vadd.f32 %v695, %v942
        %v944 = vpop.f32.mrb[0].mxu0
        %v945 = vpop.f32.mrb[0].mxu0
        %v946 = vadd.f32 %v695, %v945
        %v947 = vpop.f32.mrb[0].mxu0
        %948 = vmatprep.mubr.bf16.mxu0 0
        %949 = vmatmul.mubr.bf16.gmra.mrb[0].mxu0 %v648
        %v950 = vpop.f32.mrb[0].mxu0
        %v951 = vadd.f32 %v695, %v950
        %v952 = vpop.f32.mrb[0].mxu0
        %v953 = vpop.f32.mrb[0].mxu0
        %v954 = vadd.f32 %v695, %v953
        %v955 = vpop.f32.mrb[0].mxu0
        %956 = vmatprep.mubr.bf16.mxu0 0
        %957 = vmatmul.mubr.bf16.gmra.mrb[0].mxu0 %v649
        %v958 = vpop.f32.mrb[0].mxu0
        %v959 = vadd.f32 %v695, %v958
        %v960 = vpop.f32.mrb[0].mxu0
        %v961 = vpop.f32.mrb[0].mxu0
        %v962 = vadd.f32 %v695, %v961
        %v963 = vpop.f32.mrb[0].mxu0
        %964 = vdwg.mxu0
        %v965 = vlaneseq
        %v966 = vshrl.u32 %v965, 7
        %v967 = vadd.s32 %v966, 8
        %v968 = vadd.s32 %v966, 16
        %v969 = vadd.s32 %v966, 24
        %v970 = vadd.s32 %v966, 32
        %v971 = vadd.s32 %v966, 40
        %v972 = vadd.s32 %v966, 48
        %v973 = vadd.s32 %v966, 56
        %v974 = vadd.s32 %v966, 64
        %v975 = vadd.s32 %v966, 72
        %v976 = vadd.s32 %v966, 80
        %v977 = vadd.s32 %v966, 88
        %v978 = vadd.s32 %v966, 96
        %v979 = vadd.s32 %v966, 104
        %v980 = vadd.s32 %v966, 112
        %v981 = vadd.s32 %v966, 120
        %v982 = vlaneseq
        %v983 = vand.u32 %v982, 127
        %v984 = vmul.u32 %v983, 32
        %vm985 = vcmp.ge.s32.totalorder %v966, %v984
        %vm986 = vcmp.ge.s32.totalorder %v967, %v984
        %vm987 = vcmp.ge.s32.totalorder %v968, %v984
        %vm988 = vcmp.ge.s32.totalorder %v969, %v984
        %vm989 = vcmp.ge.s32.totalorder %v970, %v984
        %vm990 = vcmp.ge.s32.totalorder %v971, %v984
        %vm991 = vcmp.ge.s32.totalorder %v972, %v984
        %vm992 = vcmp.ge.s32.totalorder %v973, %v984
        %vm993 = vcmp.ge.s32.totalorder %v974, %v984
        %vm994 = vcmp.ge.s32.totalorder %v975, %v984
        %vm995 = vcmp.ge.s32.totalorder %v976, %v984
        %vm996 = vcmp.ge.s32.totalorder %v977, %v984
        %vm997 = vcmp.ge.s32.totalorder %v978, %v984
        %vm998 = vcmp.ge.s32.totalorder %v979, %v984
        %vm999 = vcmp.ge.s32.totalorder %v980, %v984
        %vm1000 = vcmp.ge.s32.totalorder %v981, %v984
        %v1001 = vadd.s32 %v983, 1
        %v1002 = vmul.u32 %v1001, 32
        %vm1003 = vcmp.lt.s32.totalorder %v966, %v1002
        %vm1004 = vcmp.lt.s32.totalorder %v967, %v1002
        %vm1005 = vcmp.lt.s32.totalorder %v968, %v1002
        %vm1006 = vcmp.lt.s32.totalorder %v969, %v1002
        %vm1007 = vcmp.lt.s32.totalorder %v970, %v1002
        %vm1008 = vcmp.lt.s32.totalorder %v971, %v1002
        %vm1009 = vcmp.lt.s32.totalorder %v972, %v1002
        %vm1010 = vcmp.lt.s32.totalorder %v973, %v1002
        %vm1011 = vcmp.lt.s32.totalorder %v974, %v1002
        %vm1012 = vcmp.lt.s32.totalorder %v975, %v1002
        %vm1013 = vcmp.lt.s32.totalorder %v976, %v1002
        %vm1014 = vcmp.lt.s32.totalorder %v977, %v1002
        %vm1015 = vcmp.lt.s32.totalorder %v978, %v1002
        %vm1016 = vcmp.lt.s32.totalorder %v979, %v1002
        %vm1017 = vcmp.lt.s32.totalorder %v980, %v1002
        %vm1018 = vcmp.lt.s32.totalorder %v981, %v1002
        %vm1019 = vmand %vm985, %vm1003
        %vm1020 = vmand %vm986, %vm1004
        %vm1021 = vmand %vm987, %vm1005
        %vm1022 = vmand %vm988, %vm1006
        %vm1023 = vmand %vm989, %vm1007
        %vm1024 = vmand %vm990, %vm1008
        %vm1025 = vmand %vm991, %vm1009
        %vm1026 = vmand %vm992, %vm1010
        %vm1027 = vmand %vm993, %vm1011
        %vm1028 = vmand %vm994, %vm1012
        %vm1029 = vmand %vm995, %vm1013
        %vm1030 = vmand %vm996, %vm1014
        %vm1031 = vmand %vm997, %vm1015
        %vm1032 = vmand %vm998, %vm1016
        %vm1033 = vmand %vm999, %vm1017
        %vm1034 = vmand %vm1000, %vm1018
        %v1035 = vsel %vm1019, 1, 0
        %v1036 = vsel %vm1020, 1, 0
        %v1037 = vsel %vm1021, 1, 0
        %v1038 = vsel %vm1022, 1, 0
        %v1039 = vsel %vm1023, 1, 0
        %v1040 = vsel %vm1024, 1, 0
        %v1041 = vsel %vm1025, 1, 0
        %v1042 = vsel %vm1026, 1, 0
        %v1043 = vsel %vm1027, 1, 0
        %v1044 = vsel %vm1028, 1, 0
        %v1045 = vsel %vm1029, 1, 0
        %v1046 = vsel %vm1030, 1, 0
        %v1047 = vsel %vm1031, 1, 0
        %v1048 = vsel %vm1032, 1, 0
        %v1049 = vsel %vm1033, 1, 0
        %v1050 = vsel %vm1034, 1, 0
        %v1051 = vcvt.s32.f32 %v1035
        %v1052 = vcvt.s32.f32 %v1036
        %v1053 = vcvt.s32.f32 %v1037
        %v1054 = vcvt.s32.f32 %v1038
        %v1055 = vcvt.s32.f32 %v1039
        %v1056 = vcvt.s32.f32 %v1040
        %v1057 = vcvt.s32.f32 %v1041
        %v1058 = vcvt.s32.f32 %v1042
        %v1059 = vcvt.s32.f32 %v1043
        %v1060 = vcvt.s32.f32 %v1044
        %v1061 = vcvt.s32.f32 %v1045
        %v1062 = vcvt.s32.f32 %v1046
        %v1063 = vcvt.s32.f32 %v1047
        %v1064 = vcvt.s32.f32 %v1048
        %v1065 = vcvt.s32.f32 %v1049
        %v1066 = vcvt.s32.f32 %v1050
        %v1067 = vpack.c.bf16 %v1052, %v1051
        %v1068 = vpack.c.bf16 %v1054, %v1053
        %v1069 = vpack.c.bf16 %v1056, %v1055
        %v1070 = vpack.c.bf16 %v1058, %v1057
        %v1071 = vpack.c.bf16 %v1060, %v1059
        %v1072 = vpack.c.bf16 %v1062, %v1061
        %v1073 = vpack.c.bf16 %v1064, %v1063
        %v1074 = vpack.c.bf16 %v1066, %v1065
        %v1075 = vmul.u32 %v966, 32
        %vm1076 = vcmp.ge.s32.totalorder %v983, %v1075
        %v1077 = vadd.s32 %v966, 1
        %v1078 = vmul.u32 %v1077, 32
        %vm1079 = vcmp.lt.s32.totalorder %v983, %v1078
        %vm1080 = vmand %vm1076, %vm1079
        %v1081 = vsel %vm1080, 1, 0
        %v1082 = vcvt.s32.f32 %v1081
        %v1083 = vpack.c.bf16 %v1082, %v1082
        %v1084 = vmul.f32 %v862, %v864
        %v1085 = vmul.f32 %v866, %v868
        %v1086 = vmul.f32 %v872, %v874
        %v1087 = vmul.f32 %v876, %v878
        %v1088 = vmul.f32 %v862, %v884
        %v1089 = vmul.f32 %v866, %v888
        %v1090 = vmul.f32 %v872, %v894
        %v1091 = vmul.f32 %v876, %v898
        %v1092 = vpack.c.bf16 %v1085, %v1084
        %v1093 = vpack.c.bf16 %v1087, %v1086
        %v1094 = vpack.c.bf16 %v1089, %v1088
        %v1095 = vpack.c.bf16 %v1091, %v1090
        %1096 = vmatprep.subr.bf16.mxu0 0
        %1097 = vmatpush1.bf16.msra.mxu0 %v1067
        %1098 = vmatprep.subr.bf16.mxu0 0
        %1099 = vmatpush1.bf16.msra.mxu0 %v1068
        %1100 = vmatprep.subr.bf16.mxu0 0
        %1101 = vmatpush1.bf16.msra.mxu0 %v1069
        %1102 = vmatprep.subr.bf16.mxu0 0
        %1103 = vmatpush1.bf16.msra.mxu0 %v1070
        %1104 = vmatprep.subr.bf16.mxu0 0
        %1105 = vmatpush1.bf16.msra.mxu0 %v1071
        %1106 = vmatprep.subr.bf16.mxu0 0
        %1107 = vmatpush1.bf16.msra.mxu0 %v1072
        %1108 = vmatprep.subr.bf16.mxu0 0
        %1109 = vmatpush1.bf16.msra.mxu0 %v1073
        %1110 = vmatprep.subr.bf16.mxu0 0
        %1111 = vmatpush1.bf16.msra.mxu0 %v1074
        %1112 = vmatprep.subr.bf16.mxu0 0
        %1113 = vmatpush1.bf16.msra.mxu0 0
        %1114 = vmatprep.subr.bf16.mxu0 0
        %1115 = vmatpush1.bf16.msra.mxu0 0
        %1116 = vmatprep.subr.bf16.mxu0 0
        %1117 = vmatpush1.bf16.msra.mxu0 0
        %1118 = vmatprep.subr.bf16.mxu0 0
        %1119 = vmatpush1.bf16.msra.mxu0 0
        %1120 = vmatprep.subr.bf16.mxu0 0
        %1121 = vmatpush1.bf16.msra.mxu0 0
        %1122 = vmatprep.subr.bf16.mxu0 0
        %1123 = vmatpush1.bf16.msra.mxu0 0
        %1124 = vmatprep.subr.bf16.mxu0 0
        %1125 = vmatpush1.bf16.msra.mxu0 0
        %1126 = vmatprep.subr.bf16.mxu0 0
        %1127 = vmatpush1.bf16.msra.mxu0 0
        %1128 = vmatprep.mubr.bf16.mxu0 0
        %1129 = vmatmul.mubr.bf16.gmra.mrb[0].mxu0 %v1092
        %v1130 = vpop.f32.mrb[0].mxu0
        %v1131 = vadd.f32 0.0, %v1130
        %v1132 = vpop.f32.mrb[0].mxu0
        %v1133 = vpop.f32.mrb[0].mxu0
        %v1134 = vadd.f32 0.0, %v1133
        %v1135 = vpop.f32.mrb[0].mxu0
        %1136 = vmatprep.mubr.bf16.mxu0 0
        %1137 = vmatmul.mubr.bf16.gmra.mrb[0].mxu0 %v1093
        %v1138 = vpop.f32.mrb[0].mxu0
        %v1139 = vadd.f32 0.0, %v1138
        %v1140 = vpop.f32.mrb[0].mxu0
        %v1141 = vpop.f32.mrb[0].mxu0
        %v1142 = vadd.f32 0.0, %v1141
        %v1143 = vpop.f32.mrb[0].mxu0
        %1144 = vmatprep.mubr.bf16.mxu0 0
        %1145 = vmatmul.mubr.bf16.gmra.mrb[0].mxu0 %v1094
        %v1146 = vpop.f32.mrb[0].mxu0
        %v1147 = vadd.f32 0.0, %v1146
        %v1148 = vpop.f32.mrb[0].mxu0
        %v1149 = vpop.f32.mrb[0].mxu0
        %v1150 = vadd.f32 0.0, %v1149
        %v1151 = vpop.f32.mrb[0].mxu0
        %1152 = vmatprep.mubr.bf16.mxu0 0
        %1153 = vmatmul.mubr.bf16.gmra.mrb[0].mxu0 %v1095
        %v1154 = vpop.f32.mrb[0].mxu0
        %v1155 = vadd.f32 0.0, %v1154
        %v1156 = vpop.f32.mrb[0].mxu0
        %v1157 = vpop.f32.mrb[0].mxu0
        %v1158 = vadd.f32 0.0, %v1157
        %v1159 = vpop.f32.mrb[0].mxu0
        %1160 = vdwg.mxu0
        %v1161 = vmul.f32 %v1131, 0.17677669
        %v1162 = vmul.f32 %v1134, 0.17677669
        %v1163 = vmul.f32 %v1139, 0.17677669
        %v1164 = vmul.f32 %v1142, 0.17677669
        %v1165 = vmul.f32 %v1147, 0.17677669
        %v1166 = vmul.f32 %v1150, 0.17677669
        %v1167 = vmul.f32 %v1155, 0.17677669
        %v1168 = vmul.f32 %v1158, 0.17677669
        %vm1169 = vcmask 31744
        %v1170 = vsel %vm1169, %v1161, -inf
        %v1171 = vsel %vm1169, %v1165, -inf
        %v1172 = vmax.f32 %v1170, %v1171
        %v1173 = vsel %vm1169, %v1162, -inf
        %v1174 = vsel %vm1169, %v1166, -inf
        %v1175 = vmax.f32 %v1173, %v1174
        %v1176 = vsel %vm1169, %v1163, -inf
        %v1177 = vsel %vm1169, %v1167, -inf
        %v1178 = vmax.f32 %v1176, %v1177
        %v1179 = vsel %vm1169, %v1164, -inf
        %v1180 = vsel %vm1169, %v1168, -inf
        %v1181 = vmax.f32 %v1179, %v1180
        %v1182 = vsub.f32 %v1161, %v1172
        %v1183 = vsub.f32 %v1162, %v1175
        %v1184 = vsub.f32 %v1163, %v1178
        %v1185 = vsub.f32 %v1164, %v1181
        %v1186 = vsub.f32 %v1165, %v1172
        %v1187 = vsub.f32 %v1166, %v1175
        %v1188 = vsub.f32 %v1167, %v1178
        %v1189 = vsub.f32 %v1168, %v1181
        %v1190 = vmul.f32 %v1182, 1.442695
        %v1191 = vpow.pop %v1190
        %v1192 = vmul.f32 %v1183, 1.442695
        %v1193 = vpow.pop %v1192
        %v1194 = vmul.f32 %v1184, 1.442695
        %v1195 = vpow.pop %v1194
        %v1196 = vmul.f32 %v1185, 1.442695
        %v1197 = vpow.pop %v1196
        %v1198 = vmul.f32 %v1186, 1.442695
        %v1199 = vpow.pop %v1198
        %v1200 = vmul.f32 %v1187, 1.442695
        %v1201 = vpow.pop %v1200
        %v1202 = vmul.f32 %v1188, 1.442695
        %v1203 = vpow.pop %v1202
        %v1204 = vmul.f32 %v1189, 1.442695
        %v1205 = vpow.pop %v1204
        %v1206 = vsel %vm1169, %v1191, 0.0
        %v1207 = vsel %vm1169, %v1199, 0.0
        %v1208 = vadd.f32 %v1206, %v1207
        %v1209 = vsel %vm1169, %v1193, 0.0
        %v1210 = vsel %vm1169, %v1201, 0.0
        %v1211 = vadd.f32 %v1209, %v1210
        %v1212 = vsel %vm1169, %v1195, 0.0
        %v1213 = vsel %vm1169, %v1203, 0.0
        %v1214 = vadd.f32 %v1212, %v1213
        %v1215 = vsel %vm1169, %v1197, 0.0
        %v1216 = vsel %vm1169, %v1205, 0.0
        %v1217 = vadd.f32 %v1215, %v1216
        %v1218 = vrcp.pop %v1208
        %v1219 = vrcp.pop %v1211
        %v1220 = vrcp.pop %v1214
        %v1221 = vrcp.pop %v1217
        %v1222 = vmul.f32 %v1191, %v1218
        %v1223 = vmul.f32 %v1193, %v1219
        %v1224 = vmul.f32 %v1195, %v1220
        %v1225 = vmul.f32 %v1197, %v1221
        %v1226 = vmul.f32 %v1199, %v1218
        %v1227 = vmul.f32 %v1201, %v1219
        %v1228 = vmul.f32 %v1203, %v1220
        %v1229 = vmul.f32 %v1205, %v1221
        %v1230 = vpack.c.bf16 %v1223, %v1222
        %v1231 = vpack.c.bf16 %v1225, %v1224
        %v1232 = vpack.c.bf16 %v1227, %v1226
        %v1233 = vpack.c.bf16 %v1229, %v1228
        %v1235 = vsel %vm1169, %v1230, 0
        %v1238 = vsel %vm1169, %v1231, 0
        %v1241 = vsel %vm1169, %v1232, 0
        %v1244 = vsel %vm1169, %v1233, 0
        %vm1246 = vcmask 1041408
        %v1248 = vsel %vm1246, %v1083, 0
        %1250 = vmatprep.subr.bf16.mxu0 0
        %1251 = vmatpush1.bf16.msra.mxu0 %v1248
        %1252 = vmatprep.subr.bf16.mxu0 0
        %1253 = vmatpush1.bf16.msra.mxu0 0
        %1254 = vmatprep.subr.bf16.mxu0 0
        %1255 = vmatpush1.bf16.msra.mxu0 0
        %1256 = vmatprep.subr.bf16.mxu0 0
        %1257 = vmatpush1.bf16.msra.mxu0 0
        %1258 = vmatprep.subr.bf16.mxu0 0
        %1259 = vmatpush1.bf16.msra.mxu0 0
        %1260 = vmatprep.subr.bf16.mxu0 0
        %1261 = vmatpush1.bf16.msra.mxu0 0
        %1262 = vmatprep.subr.bf16.mxu0 0
        %1263 = vmatpush1.bf16.msra.mxu0 0
        %1264 = vmatprep.subr.bf16.mxu0 0
        %1265 = vmatpush1.bf16.msra.mxu0 0
        %1266 = vmatprep.subr.bf16.mxu0 0
        %1267 = vmatpush1.bf16.msra.mxu0 0
        %1268 = vmatprep.subr.bf16.mxu0 0
        %1269 = vmatpush1.bf16.msra.mxu0 0
        %1270 = vmatprep.subr.bf16.mxu0 0
        %1271 = vmatpush1.bf16.msra.mxu0 0
        %1272 = vmatprep.subr.bf16.mxu0 0
        %1273 = vmatpush1.bf16.msra.mxu0 0
        %1274 = vmatprep.subr.bf16.mxu0 0
        %1275 = vmatpush1.bf16.msra.mxu0 0
        %1276 = vmatprep.subr.bf16.mxu0 0
        %1277 = vmatpush1.bf16.msra.mxu0 0
        %1278 = vmatprep.subr.bf16.mxu0 0
        %1279 = vmatpush1.bf16.msra.mxu0 0
        %1280 = vmatprep.subr.bf16.mxu0 0
        %1281 = vmatpush1.bf16.msra.mxu0 0
        %1282 = vmatprep.mubr.bf16.mxu0 0
        %1283 = vmatmul.mubr.bf16.gmra.mrb[0].mxu0 %v1235
        %v1284 = vpop.f32.mrb[0].mxu0
        %v1285 = vadd.f32 0.0, %v1284
        %v1286 = vpop.f32.mrb[0].mxu0
        %v1287 = vpop.f32.mrb[0].mxu0
        %v1288 = vadd.f32 0.0, %v1287
        %v1289 = vpop.f32.mrb[0].mxu0
        %1290 = vmatprep.mubr.bf16.mxu0 0
        %1291 = vmatmul.mubr.bf16.gmra.mrb[0].mxu0 %v1238
        %v1292 = vpop.f32.mrb[0].mxu0
        %v1293 = vadd.f32 0.0, %v1292
        %v1294 = vpop.f32.mrb[0].mxu0
        %v1295 = vpop.f32.mrb[0].mxu0
        %v1296 = vadd.f32 0.0, %v1295
        %v1297 = vpop.f32.mrb[0].mxu0
        %1298 = vmatprep.mubr.bf16.mxu0 0
        %1299 = vmatmul.mubr.bf16.gmra.mrb[0].mxu0 %v1241
        %v1300 = vpop.f32.mrb[0].mxu0
        %v1301 = vadd.f32 0.0, %v1300
        %v1302 = vpop.f32.mrb[0].mxu0
        %v1303 = vpop.f32.mrb[0].mxu0
        %v1304 = vadd.f32 0.0, %v1303
        %v1305 = vpop.f32.mrb[0].mxu0
        %1306 = vmatprep.mubr.bf16.mxu0 0
        %1307 = vmatmul.mubr.bf16.gmra.mrb[0].mxu0 %v1244
        %v1308 = vpop.f32.mrb[0].mxu0
        %v1309 = vadd.f32 0.0, %v1308
        %v1310 = vpop.f32.mrb[0].mxu0
        %v1311 = vpop.f32.mrb[0].mxu0
        %v1312 = vadd.f32 0.0, %v1311
        %v1313 = vpop.f32.mrb[0].mxu0
        %1314 = vdwg.mxu0
        %v1315 = vmul.f32 %v1285, %v935
        %v1316 = vmul.f32 %v1288, %v938
        %v1317 = vmul.f32 %v1293, %v943
        %v1318 = vmul.f32 %v1296, %v946
        %v1319 = vmul.f32 %v1301, %v951
        %v1320 = vmul.f32 %v1304, %v954
        %v1321 = vmul.f32 %v1309, %v959
        %v1322 = vmul.f32 %v1312, %v962
        %v1323 = vadd.f32 %v1315, %v1319
        %v1324 = vadd.f32 %v1316, %v1320
        %v1325 = vadd.f32 %v1317, %v1321
        %v1326 = vadd.f32 %v1318, %v1322
        %1327 = vst [vmem:[#allocation2] sm:$0xff] %v1323
        %1328 = vst [vmem:[#allocation2 + $0x8] sm:$0xff] %v1324
        %1329 = vst [vmem:[#allocation2 + $0x10] sm:$0xff] %v1325
        %1330 = vst [vmem:[#allocation2 + $0x18] sm:$0xff] %v1326
        %v1331 = vmul.f32 %v882, %v864
        %v1332 = vmul.f32 %v886, %v868
        %v1333 = vmul.f32 %v892, %v874
        %v1334 = vmul.f32 %v896, %v878
        %v1335 = vmul.f32 %v882, %v884
        %v1336 = vmul.f32 %v886, %v888
        %v1337 = vmul.f32 %v892, %v894
        %v1338 = vmul.f32 %v896, %v898
        %v1339 = vpack.c.bf16 %v1332, %v1331
        %v1340 = vpack.c.bf16 %v1334, %v1333
        %v1341 = vpack.c.bf16 %v1336, %v1335
        %v1342 = vpack.c.bf16 %v1338, %v1337
        %1343 = vmatprep.subr.bf16.mxu0 0
        %1344 = vmatpush1.bf16.msra.mxu0 %v1067
        %1345 = vmatprep.subr.bf16.mxu0 0
        %1346 = vmatpush1.bf16.msra.mxu0 %v1068
        %1347 = vmatprep.subr.bf16.mxu0 0
        %1348 = vmatpush1.bf16.msra.mxu0 %v1069
        %1349 = vmatprep.subr.bf16.mxu0 0
        %1350 = vmatpush1.bf16.msra.mxu0 %v1070
        %1351 = vmatprep.subr.bf16.mxu0 0
        %1352 = vmatpush1.bf16.msra.mxu0 %v1071
        %1353 = vmatprep.subr.bf16.mxu0 0
        %1354 = vmatpush1.bf16.msra.mxu0 %v1072
        %1355 = vmatprep.subr.bf16.mxu0 0
        %1356 = vmatpush1.bf16.msra.mxu0 %v1073
        %1357 = vmatprep.subr.bf16.mxu0 0
        %1358 = vmatpush1.bf16.msra.mxu0 %v1074
        %1359 = vmatprep.subr.bf16.mxu0 0
        %1360 = vmatpush1.bf16.msra.mxu0 0
        %1361 = vmatprep.subr.bf16.mxu0 0
        %1362 = vmatpush1.bf16.msra.mxu0 0
        %1363 = vmatprep.subr.bf16.mxu0 0
        %1364 = vmatpush1.bf16.msra.mxu0 0
        %1365 = vmatprep.subr.bf16.mxu0 0
        %1366 = vmatpush1.bf16.msra.mxu0 0
        %1367 = vmatprep.subr.bf16.mxu0 0
        %1368 = vmatpush1.bf16.msra.mxu0 0
        %1369 = vmatprep.subr.bf16.mxu0 0
        %1370 = vmatpush1.bf16.msra.mxu0 0
        %1371 = vmatprep.subr.bf16.mxu0 0
        %1372 = vmatpush1.bf16.msra.mxu0 0
        %1373 = vmatprep.subr.bf16.mxu0 0
        %1374 = vmatpush1.bf16.msra.mxu0 0
        %1375 = vmatprep.mubr.bf16.mxu0 0
        %1376 = vmatmul.mubr.bf16.gmra.mrb[0].mxu0 %v1339
        %v1377 = vpop.f32.mrb[0].mxu0
        %v1378 = vadd.f32 0.0, %v1377
        %v1379 = vpop.f32.mrb[0].mxu0
        %v1380 = vpop.f32.mrb[0].mxu0
        %v1381 = vadd.f32 0.0, %v1380
        %v1382 = vpop.f32.mrb[0].mxu0
        %1383 = vmatprep.mubr.bf16.mxu0 0
        %1384 = vmatmul.mubr.bf16.gmra.mrb[0].mxu0 %v1340
        %v1385 = vpop.f32.mrb[0].mxu0
        %v1386 = vadd.f32 0.0, %v1385
        %v1387 = vpop.f32.mrb[0].mxu0
        %v1388 = vpop.f32.mrb[0].mxu0
        %v1389 = vadd.f32 0.0, %v1388
        %v1390 = vpop.f32.mrb[0].mxu0
        %1391 = vmatprep.mubr.bf16.mxu0 0
        %1392 = vmatmul.mubr.bf16.gmra.mrb[0].mxu0 %v1341
        %v1393 = vpop.f32.mrb[0].mxu0
        %v1394 = vadd.f32 0.0, %v1393
        %v1395 = vpop.f32.mrb[0].mxu0
        %v1396 = vpop.f32.mrb[0].mxu0
        %v1397 = vadd.f32 0.0, %v1396
        %v1398 = vpop.f32.mrb[0].mxu0
        %1399 = vmatprep.mubr.bf16.mxu0 0
        %1400 = vmatmul.mubr.bf16.gmra.mrb[0].mxu0 %v1342
        %v1401 = vpop.f32.mrb[0].mxu0
        %v1402 = vadd.f32 0.0, %v1401
        %v1403 = vpop.f32.mrb[0].mxu0
        %v1404 = vpop.f32.mrb[0].mxu0
        %v1405 = vadd.f32 0.0, %v1404
        %v1406 = vpop.f32.mrb[0].mxu0
        %1407 = vdwg.mxu0
        %v1408 = vmul.f32 %v1378, 0.17677669
        %v1409 = vmul.f32 %v1381, 0.17677669
        %v1410 = vmul.f32 %v1386, 0.17677669
        %v1411 = vmul.f32 %v1389, 0.17677669
        %v1412 = vmul.f32 %v1394, 0.17677669
        %v1413 = vmul.f32 %v1397, 0.17677669
        %v1414 = vmul.f32 %v1402, 0.17677669
        %v1415 = vmul.f32 %v1405, 0.17677669
        %v1416 = vsel %vm1169, %v1408, -inf
        %v1417 = vsel %vm1169, %v1412, -inf
        %v1418 = vmax.f32 %v1416, %v1417
        %v1419 = vsel %vm1169, %v1409, -inf
        %v1420 = vsel %vm1169, %v1413, -inf
        %v1421 = vmax.f32 %v1419, %v1420
        %v1422 = vsel %vm1169, %v1410, -inf
        %v1423 = vsel %vm1169, %v1414, -inf
        %v1424 = vmax.f32 %v1422, %v1423
        %v1425 = vsel %vm1169, %v1411, -inf
        %v1426 = vsel %vm1169, %v1415, -inf
        %v1427 = vmax.f32 %v1425, %v1426
        %v1428 = vsub.f32 %v1408, %v1418
        %v1429 = vsub.f32 %v1409, %v1421
        %v1430 = vsub.f32 %v1410, %v1424
        %v1431 = vsub.f32 %v1411, %v1427
        %v1432 = vsub.f32 %v1412, %v1418
        %v1433 = vsub.f32 %v1413, %v1421
        %v1434 = vsub.f32 %v1414, %v1424
        %v1435 = vsub.f32 %v1415, %v1427
        %v1436 = vmul.f32 %v1428, 1.442695
        %v1437 = vpow.pop %v1436
        %v1438 = vmul.f32 %v1429, 1.442695
        %v1439 = vpow.pop %v1438
        %v1440 = vmul.f32 %v1430, 1.442695
        %v1441 = vpow.pop %v1440
        %v1442 = vmul.f32 %v1431, 1.442695
        %v1443 = vpow.pop %v1442
        %v1444 = vmul.f32 %v1432, 1.442695
        %v1445 = vpow.pop %v1444
        %v1446 = vmul.f32 %v1433, 1.442695
        %v1447 = vpow.pop %v1446
        %v1448 = vmul.f32 %v1434, 1.442695
        %v1449 = vpow.pop %v1448
        %v1450 = vmul.f32 %v1435, 1.442695
        %v1451 = vpow.pop %v1450
        %v1452 = vsel %vm1169, %v1437, 0.0
        %v1453 = vsel %vm1169, %v1445, 0.0
        %v1454 = vadd.f32 %v1452, %v1453
        %v1455 = vsel %vm1169, %v1439, 0.0
        %v1456 = vsel %vm1169, %v1447, 0.0
        %v1457 = vadd.f32 %v1455, %v1456
        %v1458 = vsel %vm1169, %v1441, 0.0
        %v1459 = vsel %vm1169, %v1449, 0.0
        %v1460 = vadd.f32 %v1458, %v1459
        %v1461 = vsel %vm1169, %v1443, 0.0
        %v1462 = vsel %vm1169, %v1451, 0.0
        %v1463 = vadd.f32 %v1461, %v1462
        %v1464 = vrcp.pop %v1454
        %v1465 = vrcp.pop %v1457
        %v1466 = vrcp.pop %v1460
        %v1467 = vrcp.pop %v1463
        %v1468 = vmul.f32 %v1437, %v1464
        %v1469 = vmul.f32 %v1439, %v1465
        %v1470 = vmul.f32 %v1441, %v1466
        %v1471 = vmul.f32 %v1443, %v1467
        %v1472 = vmul.f32 %v1445, %v1464
        %v1473 = vmul.f32 %v1447, %v1465
        %v1474 = vmul.f32 %v1449, %v1466
        %v1475 = vmul.f32 %v1451, %v1467
        %v1476 = vpack.c.bf16 %v1469, %v1468
        %v1477 = vpack.c.bf16 %v1471, %v1470
        %v1478 = vpack.c.bf16 %v1473, %v1472
        %v1479 = vpack.c.bf16 %v1475, %v1474
        %v1481 = vsel %vm1169, %v1476, 0
        %v1484 = vsel %vm1169, %v1477, 0
        %v1487 = vsel %vm1169, %v1478, 0
        %v1490 = vsel %vm1169, %v1479, 0
        %1492 = vmatprep.subr.bf16.mxu0 0
        %1493 = vmatpush1.bf16.msra.mxu0 %v1248
        %1494 = vmatprep.subr.bf16.mxu0 0
        %1495 = vmatpush1.bf16.msra.mxu0 0
        %1496 = vmatprep.subr.bf16.mxu0 0
        %1497 = vmatpush1.bf16.msra.mxu0 0
        %1498 = vmatprep.subr.bf16.mxu0 0
        %1499 = vmatpush1.bf16.msra.mxu0 0
        %1500 = vmatprep.subr.bf16.mxu0 0
        %1501 = vmatpush1.bf16.msra.mxu0 0
        %1502 = vmatprep.subr.bf16.mxu0 0
        %1503 = vmatpush1.bf16.msra.mxu0 0
        %1504 = vmatprep.subr.bf16.mxu0 0
        %1505 = vmatpush1.bf16.msra.mxu0 0
        %1506 = vmatprep.subr.bf16.mxu0 0
        %1507 = vmatpush1.bf16.msra.mxu0 0
        %1508 = vmatprep.subr.bf16.mxu0 0
        %1509 = vmatpush1.bf16.msra.mxu0 0
        %1510 = vmatprep.subr.bf16.mxu0 0
        %1511 = vmatpush1.bf16.msra.mxu0 0
        %1512 = vmatprep.subr.bf16.mxu0 0
        %1513 = vmatpush1.bf16.msra.mxu0 0
        %1514 = vmatprep.subr.bf16.mxu0 0
        %1515 = vmatpush1.bf16.msra.mxu0 0
        %1516 = vmatprep.subr.bf16.mxu0 0
        %1517 = vmatpush1.bf16.msra.mxu0 0
        %1518 = vmatprep.subr.bf16.mxu0 0
        %1519 = vmatpush1.bf16.msra.mxu0 0
        %1520 = vmatprep.subr.bf16.mxu0 0
        %1521 = vmatpush1.bf16.msra.mxu0 0
        %1522 = vmatprep.subr.bf16.mxu0 0
        %1523 = vmatpush1.bf16.msra.mxu0 0
        %1524 = vmatprep.mubr.bf16.mxu0 0
        %1525 = vmatmul.mubr.bf16.gmra.mrb[0].mxu0 %v1481
        %v1526 = vpop.f32.mrb[0].mxu0
        %v1527 = vadd.f32 0.0, %v1526
        %v1528 = vpop.f32.mrb[0].mxu0
        %v1529 = vpop.f32.mrb[0].mxu0
        %v1530 = vadd.f32 0.0, %v1529
        %v1531 = vpop.f32.mrb[0].mxu0
        %1532 = vmatprep.mubr.bf16.mxu0 0
        %1533 = vmatmul.mubr.bf16.gmra.mrb[0].mxu0 %v1484
        %v1534 = vpop.f32.mrb[0].mxu0
        %v1535 = vadd.f32 0.0, %v1534
        %v1536 = vpop.f32.mrb[0].mxu0
        %v1537 = vpop.f32.mrb[0].mxu0
        %v1538 = vadd.f32 0.0, %v1537
        %v1539 = vpop.f32.mrb[0].mxu0
        %1540 = vmatprep.mubr.bf16.mxu0 0
        %1541 = vmatmul.mubr.bf16.gmra.mrb[0].mxu0 %v1487
        %v1542 = vpop.f32.mrb[0].mxu0
        %v1543 = vadd.f32 0.0, %v1542
        %v1544 = vpop.f32.mrb[0].mxu0
        %v1545 = vpop.f32.mrb[0].mxu0
        %v1546 = vadd.f32 0.0, %v1545
        %v1547 = vpop.f32.mrb[0].mxu0
        %1548 = vmatprep.mubr.bf16.mxu0 0
        %1549 = vmatmul.mubr.bf16.gmra.mrb[0].mxu0 %v1490
        %v1550 = vpop.f32.mrb[0].mxu0
        %v1551 = vadd.f32 0.0, %v1550
        %v1552 = vpop.f32.mrb[0].mxu0
        %v1553 = vpop.f32.mrb[0].mxu0
        %v1554 = vadd.f32 0.0, %v1553
        %v1555 = vpop.f32.mrb[0].mxu0
        %1556 = vdwg.mxu0
        %v1557 = vmul.f32 %v1527, %v935
        %v1558 = vmul.f32 %v1530, %v938
        %v1559 = vmul.f32 %v1535, %v943
        %v1560 = vmul.f32 %v1538, %v946
        %v1561 = vmul.f32 %v1543, %v951
        %v1562 = vmul.f32 %v1546, %v954
        %v1563 = vmul.f32 %v1551, %v959
        %v1564 = vmul.f32 %v1554, %v962
        %v1565 = vadd.f32 %v1557, %v1561
        %v1566 = vadd.f32 %v1558, %v1562
        %v1567 = vadd.f32 %v1559, %v1563
        %v1568 = vadd.f32 %v1560, %v1564
        %s1569 = scalar_lea.vmem [#allocation2], 32
        %1570 = vst [vmem:[%s1569] sm:$0xff] %v1565
        %1571 = vst [vmem:[%s1569 + $0x8] sm:$0xff] %v1566
        %1572 = vst [vmem:[%s1569 + $0x10] sm:$0xff] %v1567
        %1573 = vst [vmem:[%s1569 + $0x18] sm:$0xff] %v1568
        %v1574 = vld [vmem:[#allocation2] sm:$0xff]
        %v1575 = vld [vmem:[#allocation2 + $0x8] sm:$0xff]
        %v1576 = vld [vmem:[#allocation2 + $0x10] sm:$0xff]
        %v1577 = vld [vmem:[#allocation2 + $0x18] sm:$0xff]
        %v1578 = vld [vmem:[#allocation2 + $0x20] sm:$0xff]
        %v1579 = vld [vmem:[#allocation2 + $0x28] sm:$0xff]
        %v1580 = vld [vmem:[#allocation2 + $0x30] sm:$0xff]
        %v1581 = vld [vmem:[#allocation2 + $0x38] sm:$0xff]
        %v1582 = vpack.c.bf16 %v1575, %v1574
        %v1583 = vpack.c.bf16 %v1577, %v1576
        %v1584 = vpack.c.bf16 %v1579, %v1578
        %v1585 = vpack.c.bf16 %v1581, %v1580
        %v1586 = vld [vmem:[#allocation9] sm:$0xf]
        %v1587 = vld [vmem:[#allocation9 + $0x4] sm:$0xf]
        %v1588 = vld [vmem:[#allocation9 + $0x8] sm:$0xf]
        %v1589 = vld [vmem:[#allocation9 + $0xc] sm:$0xf]
        %v1590 = vld [vmem:[#allocation9 + $0x10] sm:$0xf]
        %v1591 = vld [vmem:[#allocation9 + $0x14] sm:$0xf]
        %v1592 = vld [vmem:[#allocation9 + $0x18] sm:$0xf]
        %v1593 = vld [vmem:[#allocation9 + $0x1c] sm:$0xf]
        %v1594 = vld [vmem:[#allocation9 + $0x20] sm:$0xf]
        %v1595 = vld [vmem:[#allocation9 + $0x24] sm:$0xf]
        %v1596 = vld [vmem:[#allocation9 + $0x28] sm:$0xf]
        %v1597 = vld [vmem:[#allocation9 + $0x2c] sm:$0xf]
        %v1598 = vld [vmem:[#allocation9 + $0x30] sm:$0xf]
        %v1599 = vld [vmem:[#allocation9 + $0x34] sm:$0xf]
        %v1600 = vld [vmem:[#allocation9 + $0x38] sm:$0xf]
        %v1601 = vld [vmem:[#allocation9 + $0x3c] sm:$0xf]
        %v1602 = vld [vmem:[%s5] sm:$0x1]
        %v1604 = vlaneseq
        %v1605 = vshrl.u32 %v1604, 7
        %v1606 = vsub.s32 0, %v1605
        %v1607 = vrot.slane %v1602, %v1606
        %v1625 = vunpack.c.l.b16 %v1586
        %v1626 = vunpack.c.l.b16 %v1587
        %v1627 = vunpack.c.l.b16 %v1588
        %v1628 = vunpack.c.l.b16 %v1589
        %v1629 = vunpack.c.l.b16 %v1590
        %v1630 = vunpack.c.l.b16 %v1591
        %v1631 = vunpack.c.l.b16 %v1592
        %v1632 = vunpack.c.l.b16 %v1593
        %v1633 = vunpack.c.l.b16 %v1594
        %v1634 = vunpack.c.l.b16 %v1595
        %v1635 = vunpack.c.l.b16 %v1596
        %v1636 = vunpack.c.l.b16 %v1597
        %v1637 = vunpack.c.l.b16 %v1598
        %v1638 = vunpack.c.l.b16 %v1599
        %v1639 = vunpack.c.l.b16 %v1600
        %v1640 = vunpack.c.l.b16 %v1601
        %v1641 = vpack.c.b16 %v1626, %v1625
        %v1642 = vpack.c.b16 %v1628, %v1627
        %v1643 = vpack.c.b16 %v1630, %v1629
        %v1644 = vpack.c.b16 %v1632, %v1631
        %v1645 = vpack.c.b16 %v1634, %v1633
        %v1646 = vpack.c.b16 %v1636, %v1635
        %v1647 = vpack.c.b16 %v1638, %v1637
        %v1648 = vpack.c.b16 %v1640, %v1639
        %1657 = vmatprep.subr.bf16.mxu0 0
        %1658 = vmatpush1.bf16.msra.mxu0 %v1641
        %1659 = vmatprep.subr.bf16.mxu0 0
        %1660 = vmatpush1.bf16.msra.mxu0 %v1642
        %1661 = vmatprep.subr.bf16.mxu0 0
        %1662 = vmatpush1.bf16.msra.mxu0 %v1643
        %1663 = vmatprep.subr.bf16.mxu0 0
        %1664 = vmatpush1.bf16.msra.mxu0 %v1644
        %1665 = vmatprep.subr.bf16.mxu0 0
        %1666 = vmatpush1.bf16.msra.mxu0 %v1645
        %1667 = vmatprep.subr.bf16.mxu0 0
        %1668 = vmatpush1.bf16.msra.mxu0 %v1646
        %1669 = vmatprep.subr.bf16.mxu0 0
        %1670 = vmatpush1.bf16.msra.mxu0 %v1647
        %1671 = vmatprep.subr.bf16.mxu0 0
        %1672 = vmatpush1.bf16.msra.mxu0 %v1648
        %1673 = vmatprep.subr.bf16.mxu0 0
        %1674 = vmatpush1.bf16.msra.mxu0 0
        %1675 = vmatprep.subr.bf16.mxu0 0
        %1676 = vmatpush1.bf16.msra.mxu0 0
        %1677 = vmatprep.subr.bf16.mxu0 0
        %1678 = vmatpush1.bf16.msra.mxu0 0
        %1679 = vmatprep.subr.bf16.mxu0 0
        %1680 = vmatpush1.bf16.msra.mxu0 0
        %1681 = vmatprep.subr.bf16.mxu0 0
        %1682 = vmatpush1.bf16.msra.mxu0 0
        %1683 = vmatprep.subr.bf16.mxu0 0
        %1684 = vmatpush1.bf16.msra.mxu0 0
        %1685 = vmatprep.subr.bf16.mxu0 0
        %1686 = vmatpush1.bf16.msra.mxu0 0
        %1687 = vmatprep.subr.bf16.mxu0 0
        %1688 = vmatpush1.bf16.msra.mxu0 0
        %1689 = vmatprep.mubr.bf16.mxu0 0
        %1690 = vmatmul.mubr.bf16.gmra.mrb[0].mxu0 %v1582
        %v1691 = vpop.f32.mrb[0].mxu0
        %v1692 = vadd.f32 %v1607, %v1691
        %v1693 = vpop.f32.mrb[0].mxu0
        %v1694 = vpop.f32.mrb[0].mxu0
        %v1695 = vadd.f32 %v1607, %v1694
        %v1696 = vpop.f32.mrb[0].mxu0
        %1697 = vmatprep.mubr.bf16.mxu0 0
        %1698 = vmatmul.mubr.bf16.gmra.mrb[0].mxu0 %v1583
        %v1699 = vpop.f32.mrb[0].mxu0
        %v1700 = vadd.f32 %v1607, %v1699
        %v1701 = vpop.f32.mrb[0].mxu0
        %v1702 = vpop.f32.mrb[0].mxu0
        %v1703 = vadd.f32 %v1607, %v1702
        %v1704 = vpop.f32.mrb[0].mxu0
        %1705 = vmatprep.mubr.bf16.mxu0 0
        %1706 = vmatmul.mubr.bf16.gmra.mrb[0].mxu0 %v1584
        %v1707 = vpop.f32.mrb[0].mxu0
        %v1708 = vadd.f32 %v1607, %v1707
        %v1709 = vpop.f32.mrb[0].mxu0
        %v1710 = vpop.f32.mrb[0].mxu0
        %v1711 = vadd.f32 %v1607, %v1710
        %v1712 = vpop.f32.mrb[0].mxu0
        %1713 = vmatprep.mubr.bf16.mxu0 0
        %1714 = vmatmul.mubr.bf16.gmra.mrb[0].mxu0 %v1585
        %v1715 = vpop.f32.mrb[0].mxu0
        %v1716 = vadd.f32 %v1607, %v1715
        %v1717 = vpop.f32.mrb[0].mxu0
        %v1718 = vpop.f32.mrb[0].mxu0
        %v1719 = vadd.f32 %v1607, %v1718
        %v1720 = vpop.f32.mrb[0].mxu0
        %1721 = vdwg.mxu0
        %v1722 = vlaneseq
        %v1723 = vshrl.u32 %v1722, 7
        %v1724 = vsub.s32 0, %v1723
        %v1725 = vrot.slane %v492, %v1724
        %v1726 = vlaneseq
        %v1727 = vshrl.u32 %v1726, 7
        %v1728 = vsub.s32 0, %v1727
        %v1729 = vrot.slane %v493, %v1728
        %v1732 = vmul.f32 %v1725, %v1692
        %v1733 = vmul.f32 %v1725, %v1695
        %v1734 = vmul.f32 %v1725, %v1700
        %v1735 = vmul.f32 %v1725, %v1703
        %v1736 = vmul.f32 %v1729, %v1708
        %v1737 = vmul.f32 %v1729, %v1711
        %v1738 = vmul.f32 %v1729, %v1716
        %v1739 = vmul.f32 %v1729, %v1719
        %v1740 = vadd.f32 %v638, %v1732
        %v1741 = vadd.f32 %v639, %v1733
        %v1742 = vadd.f32 %v640, %v1734
        %v1743 = vadd.f32 %v641, %v1735
        %v1744 = vadd.f32 %v642, %v1736
        %v1745 = vadd.f32 %v643, %v1737
        %v1746 = vadd.f32 %v644, %v1738
        %v1747 = vadd.f32 %v645, %v1739
        %1748 = vadd.xlane.f32.xlu0 %v1740
        %v1749 = vpop.xlane.xlu0 %1748
        %1750 = vadd.xlane.f32.xlu0 %v1741
        %v1751 = vpop.xlane.xlu0 %1750
        %1752 = vadd.xlane.f32.xlu0 %v1742
        %v1753 = vpop.xlane.xlu0 %1752
        %1754 = vadd.xlane.f32.xlu0 %v1743
        %v1755 = vpop.xlane.xlu0 %1754
        %1756 = vadd.xlane.f32.xlu0 %v1744
        %v1757 = vpop.xlane.xlu0 %1756
        %1758 = vadd.xlane.f32.xlu0 %v1745
        %v1759 = vpop.xlane.xlu0 %1758
        %1760 = vadd.xlane.f32.xlu0 %v1746
        %v1761 = vpop.xlane.xlu0 %1760
        %1762 = vadd.xlane.f32.xlu0 %v1747
        %v1763 = vpop.xlane.xlu0 %1762
        %v1764 = vmul.f32 %v1749, %v533
        %v1765 = vmul.f32 %v1751, %v533
        %v1766 = vmul.f32 %v1753, %v533
        %v1767 = vmul.f32 %v1755, %v533
        %v1768 = vmul.f32 %v1757, %v533
        %v1769 = vmul.f32 %v1759, %v533
        %v1770 = vmul.f32 %v1761, %v533
        %v1771 = vmul.f32 %v1763, %v533
        %v1772 = vsub.f32 %v1740, %v1764
        %v1773 = vsub.f32 %v1741, %v1765
        %v1774 = vsub.f32 %v1742, %v1766
        %v1775 = vsub.f32 %v1743, %v1767
        %v1776 = vsub.f32 %v1744, %v1768
        %v1777 = vsub.f32 %v1745, %v1769
        %v1778 = vsub.f32 %v1746, %v1770
        %v1779 = vsub.f32 %v1747, %v1771
        %v1780 = vmul.f32 %v1772, %v1772
        %v1781 = vmul.f32 %v1773, %v1773
        %v1782 = vmul.f32 %v1774, %v1774
        %v1783 = vmul.f32 %v1775, %v1775
        %v1784 = vmul.f32 %v1776, %v1776
        %v1785 = vmul.f32 %v1777, %v1777
        %v1786 = vmul.f32 %v1778, %v1778
        %v1787 = vmul.f32 %v1779, %v1779
        %1788 = vadd.xlane.f32.xlu0 %v1780
        %v1789 = vpop.xlane.xlu0 %1788
        %1790 = vadd.xlane.f32.xlu0 %v1781
        %v1791 = vpop.xlane.xlu0 %1790
        %1792 = vadd.xlane.f32.xlu0 %v1782
        %v1793 = vpop.xlane.xlu0 %1792
        %1794 = vadd.xlane.f32.xlu0 %v1783
        %v1795 = vpop.xlane.xlu0 %1794
        %1796 = vadd.xlane.f32.xlu0 %v1784
        %v1797 = vpop.xlane.xlu0 %1796
        %1798 = vadd.xlane.f32.xlu0 %v1785
        %v1799 = vpop.xlane.xlu0 %1798
        %1800 = vadd.xlane.f32.xlu0 %v1786
        %v1801 = vpop.xlane.xlu0 %1800
        %1802 = vadd.xlane.f32.xlu0 %v1787
        %v1803 = vpop.xlane.xlu0 %1802
        %v1804 = vmul.f32 %v1789, %v533
        %v1805 = vmul.f32 %v1791, %v533
        %v1806 = vmul.f32 %v1793, %v533
        %v1807 = vmul.f32 %v1795, %v533
        %v1808 = vmul.f32 %v1797, %v533
        %v1809 = vmul.f32 %v1799, %v533
        %v1810 = vmul.f32 %v1801, %v533
        %v1811 = vmul.f32 %v1803, %v533
        %v1812 = vadd.f32 %v1804, 1e-06
        %v1813 = vadd.f32 %v1805, 1e-06
        %v1814 = vadd.f32 %v1806, 1e-06
        %v1815 = vadd.f32 %v1807, 1e-06
        %v1816 = vadd.f32 %v1808, 1e-06
        %v1817 = vadd.f32 %v1809, 1e-06
        %v1818 = vadd.f32 %v1810, 1e-06
        %v1819 = vadd.f32 %v1811, 1e-06
        %v1820 = vrsqrt.pop %v1812
        %v1821 = vrsqrt.pop %v1813
        %v1822 = vrsqrt.pop %v1814
        %v1823 = vrsqrt.pop %v1815
        %v1824 = vrsqrt.pop %v1816
        %v1825 = vrsqrt.pop %v1817
        %v1826 = vrsqrt.pop %v1818
        %v1827 = vrsqrt.pop %v1819
        %v1828 = vmul.f32 %v1772, %v1820
        %v1829 = vmul.f32 %v1773, %v1821
        %v1830 = vmul.f32 %v1774, %v1822
        %v1831 = vmul.f32 %v1775, %v1823
        %v1832 = vmul.f32 %v1776, %v1824
        %v1833 = vmul.f32 %v1777, %v1825
        %v1834 = vmul.f32 %v1778, %v1826
        %v1835 = vmul.f32 %v1779, %v1827
        %v1836 = vadd.f32 %v503, 1.0
        %v1837 = vadd.f32 %v504, 1.0
        %v1840 = vlaneseq
        %v1841 = vshrl.u32 %v1840, 7
        %v1842 = vsub.s32 0, %v1841
        %v1843 = vrot.slane %v1836, %v1842
        %v1844 = vlaneseq
        %v1845 = vshrl.u32 %v1844, 7
        %v1846 = vsub.s32 0, %v1845
        %v1847 = vrot.slane %v1837, %v1846
        %v1850 = vmul.f32 %v1828, %v1843
        %v1851 = vmul.f32 %v1829, %v1843
        %v1852 = vmul.f32 %v1830, %v1843
        %v1853 = vmul.f32 %v1831, %v1843
        %v1854 = vmul.f32 %v1832, %v1847
        %v1855 = vmul.f32 %v1833, %v1847
        %v1856 = vmul.f32 %v1834, %v1847
        %v1857 = vmul.f32 %v1835, %v1847
        %v1858 = vlaneseq
        %v1859 = vshrl.u32 %v1858, 7
        %v1860 = vsub.s32 0, %v1859
        %v1861 = vrot.slane %v494, %v1860
        %v1862 = vlaneseq
        %v1863 = vshrl.u32 %v1862, 7
        %v1864 = vsub.s32 0, %v1863
        %v1865 = vrot.slane %v495, %v1864
        %v1868 = vadd.f32 %v1850, %v1861
        %v1869 = vadd.f32 %v1851, %v1861
        %v1870 = vadd.f32 %v1852, %v1861
        %v1871 = vadd.f32 %v1853, %v1861
        %v1872 = vadd.f32 %v1854, %v1865
        %v1873 = vadd.f32 %v1855, %v1865
        %v1874 = vadd.f32 %v1856, %v1865
        %v1875 = vadd.f32 %v1857, %v1865
        %v1876 = vpack.c.bf16 %v1869, %v1868
        %v1877 = vpack.c.bf16 %v1871, %v1870
        %v1878 = vpack.c.bf16 %v1873, %v1872
        %v1879 = vpack.c.bf16 %v1875, %v1874
        %v1880 = vld [vmem:[#allocation11] sm:$0xff]
        %v1881 = vld [vmem:[#allocation11 + $0x10] sm:$0xff]
        %v1882 = vld [vmem:[#allocation11 + $0x20] sm:$0xff]
        %v1883 = vld [vmem:[#allocation11 + $0x30] sm:$0xff]
        %v1884 = vld [vmem:[#allocation11 + $0x40] sm:$0xff]
        %v1885 = vld [vmem:[#allocation11 + $0x50] sm:$0xff]
        %v1886 = vld [vmem:[#allocation11 + $0x60] sm:$0xff]
        %v1887 = vld [vmem:[#allocation11 + $0x70] sm:$0xff]
        %v1888 = vld [vmem:[#allocation11 + $0x80] sm:$0xff]
        %v1889 = vld [vmem:[#allocation11 + $0x90] sm:$0xff]
        %v1890 = vld [vmem:[#allocation11 + $0xa0] sm:$0xff]
        %v1891 = vld [vmem:[#allocation11 + $0xb0] sm:$0xff]
        %v1892 = vld [vmem:[#allocation11 + $0xc0] sm:$0xff]
        %v1893 = vld [vmem:[#allocation11 + $0xd0] sm:$0xff]
        %v1894 = vld [vmem:[#allocation11 + $0xe0] sm:$0xff]
        %v1895 = vld [vmem:[#allocation11 + $0xf0] sm:$0xff]
        %v1896 = vld [vmem:[%s7] sm:$0x3]
        %v1898 = vlaneseq
        %v1899 = vshrl.u32 %v1898, 7
        %v1900 = vsub.s32 0, %v1899
        %v1901 = vrot.slane %v1896, %v1900
        %v1902 = vlaneseq
        %v1903 = vshrl.u32 %v1902, 7
        %v1904 = vsub.s32 1, %v1903
        %v1905 = vrot.slane %v1896, %v1904
        %v1924 = vunpack.c.l.b16 %v1880
        %v1925 = vunpack.c.h.b16 %v1880
        %v1926 = vunpack.c.l.b16 %v1881
        %v1927 = vunpack.c.h.b16 %v1881
        %v1928 = vunpack.c.l.b16 %v1882
        %v1929 = vunpack.c.h.b16 %v1882
        %v1930 = vunpack.c.l.b16 %v1883
        %v1931 = vunpack.c.h.b16 %v1883
        %v1932 = vunpack.c.l.b16 %v1884
        %v1933 = vunpack.c.h.b16 %v1884
        %v1934 = vunpack.c.l.b16 %v1885
        %v1935 = vunpack.c.h.b16 %v1885
        %v1936 = vunpack.c.l.b16 %v1886
        %v1937 = vunpack.c.h.b16 %v1886
        %v1938 = vunpack.c.l.b16 %v1887
        %v1939 = vunpack.c.h.b16 %v1887
        %v1940 = vunpack.c.l.b16 %v1888
        %v1941 = vunpack.c.h.b16 %v1888
        %v1942 = vunpack.c.l.b16 %v1889
        %v1943 = vunpack.c.h.b16 %v1889
        %v1944 = vunpack.c.l.b16 %v1890
        %v1945 = vunpack.c.h.b16 %v1890
        %v1946 = vunpack.c.l.b16 %v1891
        %v1947 = vunpack.c.h.b16 %v1891
        %v1948 = vunpack.c.l.b16 %v1892
        %v1949 = vunpack.c.h.b16 %v1892
        %v1950 = vunpack.c.l.b16 %v1893
        %v1951 = vunpack.c.h.b16 %v1893
        %v1952 = vunpack.c.l.b16 %v1894
        %v1953 = vunpack.c.h.b16 %v1894
        %v1954 = vunpack.c.l.b16 %v1895
        %v1955 = vunpack.c.h.b16 %v1895
        %v1956 = vpack.c.b16 %v1926, %v1924
        %v1957 = vpack.c.b16 %v1927, %v1925
        %v1958 = vpack.c.b16 %v1930, %v1928
        %v1959 = vpack.c.b16 %v1931, %v1929
        %v1960 = vpack.c.b16 %v1934, %v1932
        %v1961 = vpack.c.b16 %v1935, %v1933
        %v1962 = vpack.c.b16 %v1938, %v1936
        %v1963 = vpack.c.b16 %v1939, %v1937
        %v1964 = vpack.c.b16 %v1942, %v1940
        %v1965 = vpack.c.b16 %v1943, %v1941
        %v1966 = vpack.c.b16 %v1946, %v1944
        %v1967 = vpack.c.b16 %v1947, %v1945
        %v1968 = vpack.c.b16 %v1950, %v1948
        %v1969 = vpack.c.b16 %v1951, %v1949
        %v1970 = vpack.c.b16 %v1954, %v1952
        %v1971 = vpack.c.b16 %v1955, %v1953
        %1988 = vmatprep.subr.bf16.mxu0 %v1957
        %1989 = vmatpush1.bf16.msra.mxu0 %v1956
        %1990 = vmatprep.subr.bf16.mxu0 %v1959
        %1991 = vmatpush1.bf16.msra.mxu0 %v1958
        %1992 = vmatprep.subr.bf16.mxu0 %v1961
        %1993 = vmatpush1.bf16.msra.mxu0 %v1960
        %1994 = vmatprep.subr.bf16.mxu0 %v1963
        %1995 = vmatpush1.bf16.msra.mxu0 %v1962
        %1996 = vmatprep.subr.bf16.mxu0 %v1965
        %1997 = vmatpush1.bf16.msra.mxu0 %v1964
        %1998 = vmatprep.subr.bf16.mxu0 %v1967
        %1999 = vmatpush1.bf16.msra.mxu0 %v1966
        %2000 = vmatprep.subr.bf16.mxu0 %v1969
        %2001 = vmatpush1.bf16.msra.mxu0 %v1968
        %2002 = vmatprep.subr.bf16.mxu0 %v1971
        %2003 = vmatpush1.bf16.msra.mxu0 %v1970
        %2004 = vmatprep.subr.bf16.mxu0 0
        %2005 = vmatpush1.bf16.msra.mxu0 0
        %2006 = vmatprep.subr.bf16.mxu0 0
        %2007 = vmatpush1.bf16.msra.mxu0 0
        %2008 = vmatprep.subr.bf16.mxu0 0
        %2009 = vmatpush1.bf16.msra.mxu0 0
        %2010 = vmatprep.subr.bf16.mxu0 0
        %2011 = vmatpush1.bf16.msra.mxu0 0
        %2012 = vmatprep.subr.bf16.mxu0 0
        %2013 = vmatpush1.bf16.msra.mxu0 0
        %2014 = vmatprep.subr.bf16.mxu0 0
        %2015 = vmatpush1.bf16.msra.mxu0 0
        %2016 = vmatprep.subr.bf16.mxu0 0
        %2017 = vmatpush1.bf16.msra.mxu0 0
        %2018 = vmatprep.subr.bf16.mxu0 0
        %2019 = vmatpush1.bf16.msra.mxu0 0
        %2020 = vmatprep.mubr.bf16.mxu0 0
        %2021 = vmatmul.mubr.bf16.gmra.mrb[0].mxu0 %v1876
        %v2022 = vpop.f32.mrb[0].mxu0
        %v2023 = vadd.f32 %v1901, %v2022
        %v2024 = vpop.f32.mrb[0].mxu0
        %v2025 = vadd.f32 %v1905, %v2024
        %v2026 = vpop.f32.mrb[0].mxu0
        %v2027 = vadd.f32 %v1901, %v2026
        %v2028 = vpop.f32.mrb[0].mxu0
        %v2029 = vadd.f32 %v1905, %v2028
        %2030 = vmatprep.mubr.bf16.mxu0 0
        %2031 = vmatmul.mubr.bf16.gmra.mrb[0].mxu0 %v1877
        %v2032 = vpop.f32.mrb[0].mxu0
        %v2033 = vadd.f32 %v1901, %v2032
        %v2034 = vpop.f32.mrb[0].mxu0
        %v2035 = vadd.f32 %v1905, %v2034
        %v2036 = vpop.f32.mrb[0].mxu0
        %v2037 = vadd.f32 %v1901, %v2036
        %v2038 = vpop.f32.mrb[0].mxu0
        %v2039 = vadd.f32 %v1905, %v2038
        %2040 = vmatprep.mubr.bf16.mxu0 0
        %2041 = vmatmul.mubr.bf16.gmra.mrb[0].mxu0 %v1878
        %v2042 = vpop.f32.mrb[0].mxu0
        %v2043 = vadd.f32 %v1901, %v2042
        %v2044 = vpop.f32.mrb[0].mxu0
        %v2045 = vadd.f32 %v1905, %v2044
        %v2046 = vpop.f32.mrb[0].mxu0
        %v2047 = vadd.f32 %v1901, %v2046
        %v2048 = vpop.f32.mrb[0].mxu0
        %v2049 = vadd.f32 %v1905, %v2048
        %2050 = vmatprep.mubr.bf16.mxu0 0
        %2051 = vmatmul.mubr.bf16.gmra.mrb[0].mxu0 %v1879
        %v2052 = vpop.f32.mrb[0].mxu0
        %v2053 = vadd.f32 %v1901, %v2052
        %v2054 = vpop.f32.mrb[0].mxu0
        %v2055 = vadd.f32 %v1905, %v2054
        %v2056 = vpop.f32.mrb[0].mxu0
        %v2057 = vadd.f32 %v1901, %v2056
        %v2058 = vpop.f32.mrb[0].mxu0
        %v2059 = vadd.f32 %v1905, %v2058
        %2060 = vdwg.mxu0
        %v2061 = vmul.f32 %v2023, 0.5
        %v2062 = vmul.f32 %v2025, 0.5
        %v2063 = vmul.f32 %v2027, 0.5
        %v2064 = vmul.f32 %v2029, 0.5
        %v2065 = vmul.f32 %v2033, 0.5
        %v2066 = vmul.f32 %v2035, 0.5
        %v2067 = vmul.f32 %v2037, 0.5
        %v2068 = vmul.f32 %v2039, 0.5
        %v2069 = vmul.f32 %v2043, 0.5
        %v2070 = vmul.f32 %v2045, 0.5
        %v2071 = vmul.f32 %v2047, 0.5
        %v2072 = vmul.f32 %v2049, 0.5
        %v2073 = vmul.f32 %v2053, 0.5
        %v2074 = vmul.f32 %v2055, 0.5
        %v2075 = vmul.f32 %v2057, 0.5
        %v2076 = vmul.f32 %v2059, 0.5
        %v2077 = vmul.f32 %v2023, 0.044715
        %v2078 = vmul.f32 %v2025, 0.044715
        %v2079 = vmul.f32 %v2027, 0.044715
        %v2080 = vmul.f32 %v2029, 0.044715
        %v2081 = vmul.f32 %v2033, 0.044715
        %v2082 = vmul.f32 %v2035, 0.044715
        %v2083 = vmul.f32 %v2037, 0.044715
        %v2084 = vmul.f32 %v2039, 0.044715
        %v2085 = vmul.f32 %v2043, 0.044715
        %v2086 = vmul.f32 %v2045, 0.044715
        %v2087 = vmul.f32 %v2047, 0.044715
        %v2088 = vmul.f32 %v2049, 0.044715
        %v2089 = vmul.f32 %v2053, 0.044715
        %v2090 = vmul.f32 %v2055, 0.044715
        %v2091 = vmul.f32 %v2057, 0.044715
        %v2092 = vmul.f32 %v2059, 0.044715
        %v2093 = vmul.f32 %v2077, %v2023
        %v2094 = vmul.f32 %v2078, %v2025
        %v2095 = vmul.f32 %v2079, %v2027
        %v2096 = vmul.f32 %v2080, %v2029
        %v2097 = vmul.f32 %v2081, %v2033
        %v2098 = vmul.f32 %v2082, %v2035
        %v2099 = vmul.f32 %v2083, %v2037
        %v2100 = vmul.f32 %v2084, %v2039
        %v2101 = vmul.f32 %v2085, %v2043
        %v2102 = vmul.f32 %v2086, %v2045
        %v2103 = vmul.f32 %v2087, %v2047
        %v2104 = vmul.f32 %v2088, %v2049
        %v2105 = vmul.f32 %v2089, %v2053
        %v2106 = vmul.f32 %v2090, %v2055
        %v2107 = vmul.f32 %v2091, %v2057
        %v2108 = vmul.f32 %v2092, %v2059
        %v2109 = vmul.f32 %v2093, %v2023
        %v2110 = vmul.f32 %v2094, %v2025
        %v2111 = vmul.f32 %v2095, %v2027
        %v2112 = vmul.f32 %v2096, %v2029
        %v2113 = vmul.f32 %v2097, %v2033
        %v2114 = vmul.f32 %v2098, %v2035
        %v2115 = vmul.f32 %v2099, %v2037
        %v2116 = vmul.f32 %v2100, %v2039
        %v2117 = vmul.f32 %v2101, %v2043
        %v2118 = vmul.f32 %v2102, %v2045
        %v2119 = vmul.f32 %v2103, %v2047
        %v2120 = vmul.f32 %v2104, %v2049
        %v2121 = vmul.f32 %v2105, %v2053
        %v2122 = vmul.f32 %v2106, %v2055
        %v2123 = vmul.f32 %v2107, %v2057
        %v2124 = vmul.f32 %v2108, %v2059
        %v2125 = vadd.f32 %v2023, %v2109
        %v2126 = vadd.f32 %v2025, %v2110
        %v2127 = vadd.f32 %v2027, %v2111
        %v2128 = vadd.f32 %v2029, %v2112
        %v2129 = vadd.f32 %v2033, %v2113
        %v2130 = vadd.f32 %v2035, %v2114
        %v2131 = vadd.f32 %v2037, %v2115
        %v2132 = vadd.f32 %v2039, %v2116
        %v2133 = vadd.f32 %v2043, %v2117
        %v2134 = vadd.f32 %v2045, %v2118
        %v2135 = vadd.f32 %v2047, %v2119
        %v2136 = vadd.f32 %v2049, %v2120
        %v2137 = vadd.f32 %v2053, %v2121
        %v2138 = vadd.f32 %v2055, %v2122
        %v2139 = vadd.f32 %v2057, %v2123
        %v2140 = vadd.f32 %v2059, %v2124
        %v2141 = vmul.f32 %v2125, 0.7978846
        %v2142 = vmul.f32 %v2126, 0.7978846
        %v2143 = vmul.f32 %v2127, 0.7978846
        %v2144 = vmul.f32 %v2128, 0.7978846
        %v2145 = vmul.f32 %v2129, 0.7978846
        %v2146 = vmul.f32 %v2130, 0.7978846
        %v2147 = vmul.f32 %v2131, 0.7978846
        %v2148 = vmul.f32 %v2132, 0.7978846
        %v2149 = vmul.f32 %v2133, 0.7978846
        %v2150 = vmul.f32 %v2134, 0.7978846
        %v2151 = vmul.f32 %v2135, 0.7978846
        %v2152 = vmul.f32 %v2136, 0.7978846
        %v2153 = vmul.f32 %v2137, 0.7978846
        %v2154 = vmul.f32 %v2138, 0.7978846
        %v2155 = vmul.f32 %v2139, 0.7978846
        %v2156 = vmul.f32 %v2140, 0.7978846
        %v2157 = vtanh.pop %v2141
        %v2158 = vtanh.pop %v2142
        %v2159 = vtanh.pop %v2143
        %v2160 = vtanh.pop %v2144
        %v2161 = vtanh.pop %v2145
        %v2162 = vtanh.pop %v2146
        %v2163 = vtanh.pop %v2147
        %v2164 = vtanh.pop %v2148
        %v2165 = vtanh.pop %v2149
        %v2166 = vtanh.pop %v2150
        %v2167 = vtanh.pop %v2151
        %v2168 = vtanh.pop %v2152
        %v2169 = vtanh.pop %v2153
        %v2170 = vtanh.pop %v2154
        %v2171 = vtanh.pop %v2155
        %v2172 = vtanh.pop %v2156
        %v2173 = vadd.f32 %v2157, 1.0
        %v2174 = vadd.f32 %v2158, 1.0
        %v2175 = vadd.f32 %v2159, 1.0
        %v2176 = vadd.f32 %v2160, 1.0
        %v2177 = vadd.f32 %v2161, 1.0
        %v2178 = vadd.f32 %v2162, 1.0
        %v2179 = vadd.f32 %v2163, 1.0
        %v2180 = vadd.f32 %v2164, 1.0
        %v2181 = vadd.f32 %v2165, 1.0
        %v2182 = vadd.f32 %v2166, 1.0
        %v2183 = vadd.f32 %v2167, 1.0
        %v2184 = vadd.f32 %v2168, 1.0
        %v2185 = vadd.f32 %v2169, 1.0
        %v2186 = vadd.f32 %v2170, 1.0
        %v2187 = vadd.f32 %v2171, 1.0
        %v2188 = vadd.f32 %v2172, 1.0
        %v2189 = vmul.f32 %v2061, %v2173
        %v2190 = vmul.f32 %v2062, %v2174
        %v2191 = vmul.f32 %v2063, %v2175
        %v2192 = vmul.f32 %v2064, %v2176
        %v2193 = vmul.f32 %v2065, %v2177
        %v2194 = vmul.f32 %v2066, %v2178
        %v2195 = vmul.f32 %v2067, %v2179
        %v2196 = vmul.f32 %v2068, %v2180
        %v2197 = vmul.f32 %v2069, %v2181
        %v2198 = vmul.f32 %v2070, %v2182
        %v2199 = vmul.f32 %v2071, %v2183
        %v2200 = vmul.f32 %v2072, %v2184
        %v2201 = vmul.f32 %v2073, %v2185
        %v2202 = vmul.f32 %v2074, %v2186
        %v2203 = vmul.f32 %v2075, %v2187
        %v2204 = vmul.f32 %v2076, %v2188
        %v2205 = vpack.c.bf16 %v2191, %v2189
        %v2206 = vpack.c.bf16 %v2192, %v2190
        %v2207 = vpack.c.bf16 %v2195, %v2193
        %v2208 = vpack.c.bf16 %v2196, %v2194
        %v2209 = vpack.c.bf16 %v2199, %v2197
        %v2210 = vpack.c.bf16 %v2200, %v2198
        %v2211 = vpack.c.bf16 %v2203, %v2201
        %v2212 = vpack.c.bf16 %v2204, %v2202
        %v2213 = vld [vmem:[#allocation12] sm:$0xf]
        %v2214 = vld [vmem:[#allocation12 + $0x4] sm:$0xf]
        %v2215 = vld [vmem:[#allocation12 + $0x8] sm:$0xf]
        %v2216 = vld [vmem:[#allocation12 + $0xc] sm:$0xf]
        %v2217 = vld [vmem:[#allocation12 + $0x10] sm:$0xf]
        %v2218 = vld [vmem:[#allocation12 + $0x14] sm:$0xf]
        %v2219 = vld [vmem:[#allocation12 + $0x18] sm:$0xf]
        %v2220 = vld [vmem:[#allocation12 + $0x1c] sm:$0xf]
        %v2221 = vld [vmem:[#allocation12 + $0x20] sm:$0xf]
        %v2222 = vld [vmem:[#allocation12 + $0x24] sm:$0xf]
        %v2223 = vld [vmem:[#allocation12 + $0x28] sm:$0xf]
        %v2224 = vld [vmem:[#allocation12 + $0x2c] sm:$0xf]
        %v2225 = vld [vmem:[#allocation12 + $0x30] sm:$0xf]
        %v2226 = vld [vmem:[#allocation12 + $0x34] sm:$0xf]
        %v2227 = vld [vmem:[#allocation12 + $0x38] sm:$0xf]
        %v2228 = vld [vmem:[#allocation12 + $0x3c] sm:$0xf]
        %v2229 = vld [vmem:[#allocation12 + $0x40] sm:$0xf]
        %v2230 = vld [vmem:[#allocation12 + $0x44] sm:$0xf]
        %v2231 = vld [vmem:[#allocation12 + $0x48] sm:$0xf]
        %v2232 = vld [vmem:[#allocation12 + $0x4c] sm:$0xf]
        %v2233 = vld [vmem:[#allocation12 + $0x50] sm:$0xf]
        %v2234 = vld [vmem:[#allocation12 + $0x54] sm:$0xf]
        %v2235 = vld [vmem:[#allocation12 + $0x58] sm:$0xf]
        %v2236 = vld [vmem:[#allocation12 + $0x5c] sm:$0xf]
        %v2237 = vld [vmem:[#allocation12 + $0x60] sm:$0xf]
        %v2238 = vld [vmem:[#allocation12 + $0x64] sm:$0xf]
        %v2239 = vld [vmem:[#allocation12 + $0x68] sm:$0xf]
        %v2240 = vld [vmem:[#allocation12 + $0x6c] sm:$0xf]
        %v2241 = vld [vmem:[#allocation12 + $0x70] sm:$0xf]
        %v2242 = vld [vmem:[#allocation12 + $0x74] sm:$0xf]
        %v2243 = vld [vmem:[#allocation12 + $0x78] sm:$0xf]
        %v2244 = vld [vmem:[#allocation12 + $0x7c] sm:$0xf]
        %v2245 = vld [vmem:[#allocation11 + $0x8] sm:$0xff]
        %v2246 = vld [vmem:[#allocation11 + $0x18] sm:$0xff]
        %v2247 = vld [vmem:[#allocation11 + $0x28] sm:$0xff]
        %v2248 = vld [vmem:[#allocation11 + $0x38] sm:$0xff]
        %v2249 = vld [vmem:[#allocation11 + $0x48] sm:$0xff]
        %v2250 = vld [vmem:[#allocation11 + $0x58] sm:$0xff]
        %v2251 = vld [vmem:[#allocation11 + $0x68] sm:$0xff]
        %v2252 = vld [vmem:[#allocation11 + $0x78] sm:$0xff]
        %v2253 = vld [vmem:[#allocation11 + $0x88] sm:$0xff]
        %v2254 = vld [vmem:[#allocation11 + $0x98] sm:$0xff]
        %v2255 = vld [vmem:[#allocation11 + $0xa8] sm:$0xff]
        %v2256 = vld [vmem:[#allocation11 + $0xb8] sm:$0xff]
        %v2257 = vld [vmem:[#allocation11 + $0xc8] sm:$0xff]
        %v2258 = vld [vmem:[#allocation11 + $0xd8] sm:$0xff]
        %v2259 = vld [vmem:[#allocation11 + $0xe8] sm:$0xff]
        %v2260 = vld [vmem:[#allocation11 + $0xf8] sm:$0xff]
        %v2261 = vld [vmem:[%s7 + $0x2] sm:$0x3]
        %v2263 = vlaneseq
        %v2264 = vshrl.u32 %v2263, 7
        %v2265 = vsub.s32 0, %v2264
        %v2266 = vrot.slane %v2261, %v2265
        %v2267 = vlaneseq
        %v2268 = vshrl.u32 %v2267, 7
        %v2269 = vsub.s32 1, %v2268
        %v2270 = vrot.slane %v2261, %v2269
        %v2289 = vunpack.c.l.b16 %v2245
        %v2290 = vunpack.c.h.b16 %v2245
        %v2291 = vunpack.c.l.b16 %v2246
        %v2292 = vunpack.c.h.b16 %v2246
        %v2293 = vunpack.c.l.b16 %v2247
        %v2294 = vunpack.c.h.b16 %v2247
        %v2295 = vunpack.c.l.b16 %v2248
        %v2296 = vunpack.c.h.b16 %v2248
        %v2297 = vunpack.c.l.b16 %v2249
        %v2298 = vunpack.c.h.b16 %v2249
        %v2299 = vunpack.c.l.b16 %v2250
        %v2300 = vunpack.c.h.b16 %v2250
        %v2301 = vunpack.c.l.b16 %v2251
        %v2302 = vunpack.c.h.b16 %v2251
        %v2303 = vunpack.c.l.b16 %v2252
        %v2304 = vunpack.c.h.b16 %v2252
        %v2305 = vunpack.c.l.b16 %v2253
        %v2306 = vunpack.c.h.b16 %v2253
        %v2307 = vunpack.c.l.b16 %v2254
        %v2308 = vunpack.c.h.b16 %v2254
        %v2309 = vunpack.c.l.b16 %v2255
        %v2310 = vunpack.c.h.b16 %v2255
        %v2311 = vunpack.c.l.b16 %v2256
        %v2312 = vunpack.c.h.b16 %v2256
        %v2313 = vunpack.c.l.b16 %v2257
        %v2314 = vunpack.c.h.b16 %v2257
        %v2315 = vunpack.c.l.b16 %v2258
        %v2316 = vunpack.c.h.b16 %v2258
        %v2317 = vunpack.c.l.b16 %v2259
        %v2318 = vunpack.c.h.b16 %v2259
        %v2319 = vunpack.c.l.b16 %v2260
        %v2320 = vunpack.c.h.b16 %v2260
        %v2321 = vpack.c.b16 %v2291, %v2289
        %v2322 = vpack.c.b16 %v2292, %v2290
        %v2323 = vpack.c.b16 %v2295, %v2293
        %v2324 = vpack.c.b16 %v2296, %v2294
        %v2325 = vpack.c.b16 %v2299, %v2297
        %v2326 = vpack.c.b16 %v2300, %v2298
        %v2327 = vpack.c.b16 %v2303, %v2301
        %v2328 = vpack.c.b16 %v2304, %v2302
        %v2329 = vpack.c.b16 %v2307, %v2305
        %v2330 = vpack.c.b16 %v2308, %v2306
        %v2331 = vpack.c.b16 %v2311, %v2309
        %v2332 = vpack.c.b16 %v2312, %v2310
        %v2333 = vpack.c.b16 %v2315, %v2313
        %v2334 = vpack.c.b16 %v2316, %v2314
        %v2335 = vpack.c.b16 %v2319, %v2317
        %v2336 = vpack.c.b16 %v2320, %v2318
        %2353 = vmatprep.subr.bf16.mxu0 %v2322
        %2354 = vmatpush1.bf16.msra.mxu0 %v2321
        %2355 = vmatprep.subr.bf16.mxu0 %v2324
        %2356 = vmatpush1.bf16.msra.mxu0 %v2323
        %2357 = vmatprep.subr.bf16.mxu0 %v2326
        %2358 = vmatpush1.bf16.msra.mxu0 %v2325
        %2359 = vmatprep.subr.bf16.mxu0 %v2328
        %2360 = vmatpush1.bf16.msra.mxu0 %v2327
        %2361 = vmatprep.subr.bf16.mxu0 %v2330
        %2362 = vmatpush1.bf16.msra.mxu0 %v2329
        %2363 = vmatprep.subr.bf16.mxu0 %v2332
        %2364 = vmatpush1.bf16.msra.mxu0 %v2331
        %2365 = vmatprep.subr.bf16.mxu0 %v2334
        %2366 = vmatpush1.bf16.msra.mxu0 %v2333
        %2367 = vmatprep.subr.bf16.mxu0 %v2336
        %2368 = vmatpush1.bf16.msra.mxu0 %v2335
        %2369 = vmatprep.subr.bf16.mxu0 0
        %2370 = vmatpush1.bf16.msra.mxu0 0
        %2371 = vmatprep.subr.bf16.mxu0 0
        %2372 = vmatpush1.bf16.msra.mxu0 0
        %2373 = vmatprep.subr.bf16.mxu0 0
        %2374 = vmatpush1.bf16.msra.mxu0 0
        %2375 = vmatprep.subr.bf16.mxu0 0
        %2376 = vmatpush1.bf16.msra.mxu0 0
        %2377 = vmatprep.subr.bf16.mxu0 0
        %2378 = vmatpush1.bf16.msra.mxu0 0
        %2379 = vmatprep.subr.bf16.mxu0 0
        %2380 = vmatpush1.bf16.msra.mxu0 0
        %2381 = vmatprep.subr.bf16.mxu0 0
        %2382 = vmatpush1.bf16.msra.mxu0 0
        %2383 = vmatprep.subr.bf16.mxu0 0
        %2384 = vmatpush1.bf16.msra.mxu0 0
        %2385 = vmatprep.mubr.bf16.mxu0 0
        %2386 = vmatmul.mubr.bf16.gmra.mrb[0].mxu0 %v1876
        %v2387 = vpop.f32.mrb[0].mxu0
        %v2388 = vadd.f32 %v2266, %v2387
        %v2389 = vpop.f32.mrb[0].mxu0
        %v2390 = vadd.f32 %v2270, %v2389
        %v2391 = vpop.f32.mrb[0].mxu0
        %v2392 = vadd.f32 %v2266, %v2391
        %v2393 = vpop.f32.mrb[0].mxu0
        %v2394 = vadd.f32 %v2270, %v2393
        %2395 = vmatprep.mubr.bf16.mxu0 0
        %2396 = vmatmul.mubr.bf16.gmra.mrb[0].mxu0 %v1877
        %v2397 = vpop.f32.mrb[0].mxu0
        %v2398 = vadd.f32 %v2266, %v2397
        %v2399 = vpop.f32.mrb[0].mxu0
        %v2400 = vadd.f32 %v2270, %v2399
        %v2401 = vpop.f32.mrb[0].mxu0
        %v2402 = vadd.f32 %v2266, %v2401
        %v2403 = vpop.f32.mrb[0].mxu0
        %v2404 = vadd.f32 %v2270, %v2403
        %2405 = vmatprep.mubr.bf16.mxu0 0
        %2406 = vmatmul.mubr.bf16.gmra.mrb[0].mxu0 %v1878
        %v2407 = vpop.f32.mrb[0].mxu0
        %v2408 = vadd.f32 %v2266, %v2407
        %v2409 = vpop.f32.mrb[0].mxu0
        %v2410 = vadd.f32 %v2270, %v2409
        %v2411 = vpop.f32.mrb[0].mxu0
        %v2412 = vadd.f32 %v2266, %v2411
        %v2413 = vpop.f32.mrb[0].mxu0
        %v2414 = vadd.f32 %v2270, %v2413
        %2415 = vmatprep.mubr.bf16.mxu0 0
        %2416 = vmatmul.mubr.bf16.gmra.mrb[0].mxu0 %v1879
        %v2417 = vpop.f32.mrb[0].mxu0
        %v2418 = vadd.f32 %v2266, %v2417
        %v2419 = vpop.f32.mrb[0].mxu0
        %v2420 = vadd.f32 %v2270, %v2419
        %v2421 = vpop.f32.mrb[0].mxu0
        %v2422 = vadd.f32 %v2266, %v2421
        %v2423 = vpop.f32.mrb[0].mxu0
        %v2424 = vadd.f32 %v2270, %v2423
        %2425 = vdwg.mxu0
        %v2426 = vmul.f32 %v2388, 0.5
        %v2427 = vmul.f32 %v2390, 0.5
        %v2428 = vmul.f32 %v2392, 0.5
        %v2429 = vmul.f32 %v2394, 0.5
        %v2430 = vmul.f32 %v2398, 0.5
        %v2431 = vmul.f32 %v2400, 0.5
        %v2432 = vmul.f32 %v2402, 0.5
        %v2433 = vmul.f32 %v2404, 0.5
        %v2434 = vmul.f32 %v2408, 0.5
        %v2435 = vmul.f32 %v2410, 0.5
        %v2436 = vmul.f32 %v2412, 0.5
        %v2437 = vmul.f32 %v2414, 0.5
        %v2438 = vmul.f32 %v2418, 0.5
        %v2439 = vmul.f32 %v2420, 0.5
        %v2440 = vmul.f32 %v2422, 0.5
        %v2441 = vmul.f32 %v2424, 0.5
        %v2442 = vmul.f32 %v2388, 0.044715
        %v2443 = vmul.f32 %v2390, 0.044715
        %v2444 = vmul.f32 %v2392, 0.044715
        %v2445 = vmul.f32 %v2394, 0.044715
        %v2446 = vmul.f32 %v2398, 0.044715
        %v2447 = vmul.f32 %v2400, 0.044715
        %v2448 = vmul.f32 %v2402, 0.044715
        %v2449 = vmul.f32 %v2404, 0.044715
        %v2450 = vmul.f32 %v2408, 0.044715
        %v2451 = vmul.f32 %v2410, 0.044715
        %v2452 = vmul.f32 %v2412, 0.044715
        %v2453 = vmul.f32 %v2414, 0.044715
        %v2454 = vmul.f32 %v2418, 0.044715
        %v2455 = vmul.f32 %v2420, 0.044715
        %v2456 = vmul.f32 %v2422, 0.044715
        %v2457 = vmul.f32 %v2424, 0.044715
        %v2458 = vmul.f32 %v2442, %v2388
        %v2459 = vmul.f32 %v2443, %v2390
        %v2460 = vmul.f32 %v2444, %v2392
        %v2461 = vmul.f32 %v2445, %v2394
        %v2462 = vmul.f32 %v2446, %v2398
        %v2463 = vmul.f32 %v2447, %v2400
        %v2464 = vmul.f32 %v2448, %v2402
        %v2465 = vmul.f32 %v2449, %v2404
        %v2466 = vmul.f32 %v2450, %v2408
        %v2467 = vmul.f32 %v2451, %v2410
        %v2468 = vmul.f32 %v2452, %v2412
        %v2469 = vmul.f32 %v2453, %v2414
        %v2470 = vmul.f32 %v2454, %v2418
        %v2471 = vmul.f32 %v2455, %v2420
        %v2472 = vmul.f32 %v2456, %v2422
        %v2473 = vmul.f32 %v2457, %v2424
        %v2474 = vmul.f32 %v2458, %v2388
        %v2475 = vmul.f32 %v2459, %v2390
        %v2476 = vmul.f32 %v2460, %v2392
        %v2477 = vmul.f32 %v2461, %v2394
        %v2478 = vmul.f32 %v2462, %v2398
        %v2479 = vmul.f32 %v2463, %v2400
        %v2480 = vmul.f32 %v2464, %v2402
        %v2481 = vmul.f32 %v2465, %v2404
        %v2482 = vmul.f32 %v2466, %v2408
        %v2483 = vmul.f32 %v2467, %v2410
        %v2484 = vmul.f32 %v2468, %v2412
        %v2485 = vmul.f32 %v2469, %v2414
        %v2486 = vmul.f32 %v2470, %v2418
        %v2487 = vmul.f32 %v2471, %v2420
        %v2488 = vmul.f32 %v2472, %v2422
        %v2489 = vmul.f32 %v2473, %v2424
        %v2490 = vadd.f32 %v2388, %v2474
        %v2491 = vadd.f32 %v2390, %v2475
        %v2492 = vadd.f32 %v2392, %v2476
        %v2493 = vadd.f32 %v2394, %v2477
        %v2494 = vadd.f32 %v2398, %v2478
        %v2495 = vadd.f32 %v2400, %v2479
        %v2496 = vadd.f32 %v2402, %v2480
        %v2497 = vadd.f32 %v2404, %v2481
        %v2498 = vadd.f32 %v2408, %v2482
        %v2499 = vadd.f32 %v2410, %v2483
        %v2500 = vadd.f32 %v2412, %v2484
        %v2501 = vadd.f32 %v2414, %v2485
        %v2502 = vadd.f32 %v2418, %v2486
        %v2503 = vadd.f32 %v2420, %v2487
        %v2504 = vadd.f32 %v2422, %v2488
        %v2505 = vadd.f32 %v2424, %v2489
        %v2506 = vmul.f32 %v2490, 0.7978846
        %v2507 = vmul.f32 %v2491, 0.7978846
        %v2508 = vmul.f32 %v2492, 0.7978846
        %v2509 = vmul.f32 %v2493, 0.7978846
        %v2510 = vmul.f32 %v2494, 0.7978846
        %v2511 = vmul.f32 %v2495, 0.7978846
        %v2512 = vmul.f32 %v2496, 0.7978846
        %v2513 = vmul.f32 %v2497, 0.7978846
        %v2514 = vmul.f32 %v2498, 0.7978846
        %v2515 = vmul.f32 %v2499, 0.7978846
        %v2516 = vmul.f32 %v2500, 0.7978846
        %v2517 = vmul.f32 %v2501, 0.7978846
        %v2518 = vmul.f32 %v2502, 0.7978846
        %v2519 = vmul.f32 %v2503, 0.7978846
        %v2520 = vmul.f32 %v2504, 0.7978846
        %v2521 = vmul.f32 %v2505, 0.7978846
        %v2522 = vtanh.pop %v2506
        %v2523 = vtanh.pop %v2507
        %v2524 = vtanh.pop %v2508
        %v2525 = vtanh.pop %v2509
        %v2526 = vtanh.pop %v2510
        %v2527 = vtanh.pop %v2511
        %v2528 = vtanh.pop %v2512
        %v2529 = vtanh.pop %v2513
        %v2530 = vtanh.pop %v2514
        %v2531 = vtanh.pop %v2515
        %v2532 = vtanh.pop %v2516
        %v2533 = vtanh.pop %v2517
        %v2534 = vtanh.pop %v2518
        %v2535 = vtanh.pop %v2519
        %v2536 = vtanh.pop %v2520
        %v2537 = vtanh.pop %v2521
        %v2538 = vadd.f32 %v2522, 1.0
        %v2539 = vadd.f32 %v2523, 1.0
        %v2540 = vadd.f32 %v2524, 1.0
        %v2541 = vadd.f32 %v2525, 1.0
        %v2542 = vadd.f32 %v2526, 1.0
        %v2543 = vadd.f32 %v2527, 1.0
        %v2544 = vadd.f32 %v2528, 1.0
        %v2545 = vadd.f32 %v2529, 1.0
        %v2546 = vadd.f32 %v2530, 1.0
        %v2547 = vadd.f32 %v2531, 1.0
        %v2548 = vadd.f32 %v2532, 1.0
        %v2549 = vadd.f32 %v2533, 1.0
        %v2550 = vadd.f32 %v2534, 1.0
        %v2551 = vadd.f32 %v2535, 1.0
        %v2552 = vadd.f32 %v2536, 1.0
        %v2553 = vadd.f32 %v2537, 1.0
        %v2554 = vmul.f32 %v2426, %v2538
        %v2555 = vmul.f32 %v2427, %v2539
        %v2556 = vmul.f32 %v2428, %v2540
        %v2557 = vmul.f32 %v2429, %v2541
        %v2558 = vmul.f32 %v2430, %v2542
        %v2559 = vmul.f32 %v2431, %v2543
        %v2560 = vmul.f32 %v2432, %v2544
        %v2561 = vmul.f32 %v2433, %v2545
        %v2562 = vmul.f32 %v2434, %v2546
        %v2563 = vmul.f32 %v2435, %v2547
        %v2564 = vmul.f32 %v2436, %v2548
        %v2565 = vmul.f32 %v2437, %v2549
        %v2566 = vmul.f32 %v2438, %v2550
        %v2567 = vmul.f32 %v2439, %v2551
        %v2568 = vmul.f32 %v2440, %v2552
        %v2569 = vmul.f32 %v2441, %v2553
        %v2570 = vpack.c.bf16 %v2556, %v2554
        %v2571 = vpack.c.bf16 %v2557, %v2555
        %v2572 = vpack.c.bf16 %v2560, %v2558
        %v2573 = vpack.c.bf16 %v2561, %v2559
        %v2574 = vpack.c.bf16 %v2564, %v2562
        %v2575 = vpack.c.bf16 %v2565, %v2563
        %v2576 = vpack.c.bf16 %v2568, %v2566
        %v2577 = vpack.c.bf16 %v2569, %v2567
        %v2578 = vld [vmem:[#allocation12 + $0x80] sm:$0xf]
        %v2579 = vld [vmem:[#allocation12 + $0x84] sm:$0xf]
        %v2580 = vld [vmem:[#allocation12 + $0x88] sm:$0xf]
        %v2581 = vld [vmem:[#allocation12 + $0x8c] sm:$0xf]
        %v2582 = vld [vmem:[#allocation12 + $0x90] sm:$0xf]
        %v2583 = vld [vmem:[#allocation12 + $0x94] sm:$0xf]
        %v2584 = vld [vmem:[#allocation12 + $0x98] sm:$0xf]
        %v2585 = vld [vmem:[#allocation12 + $0x9c] sm:$0xf]
        %v2586 = vld [vmem:[#allocation12 + $0xa0] sm:$0xf]
        %v2587 = vld [vmem:[#allocation12 + $0xa4] sm:$0xf]
        %v2588 = vld [vmem:[#allocation12 + $0xa8] sm:$0xf]
        %v2589 = vld [vmem:[#allocation12 + $0xac] sm:$0xf]
        %v2590 = vld [vmem:[#allocation12 + $0xb0] sm:$0xf]
        %v2591 = vld [vmem:[#allocation12 + $0xb4] sm:$0xf]
        %v2592 = vld [vmem:[#allocation12 + $0xb8] sm:$0xf]
        %v2593 = vld [vmem:[#allocation12 + $0xbc] sm:$0xf]
        %v2594 = vld [vmem:[#allocation12 + $0xc0] sm:$0xf]
        %v2595 = vld [vmem:[#allocation12 + $0xc4] sm:$0xf]
        %v2596 = vld [vmem:[#allocation12 + $0xc8] sm:$0xf]
        %v2597 = vld [vmem:[#allocation12 + $0xcc] sm:$0xf]
        %v2598 = vld [vmem:[#allocation12 + $0xd0] sm:$0xf]
        %v2599 = vld [vmem:[#allocation12 + $0xd4] sm:$0xf]
        %v2600 = vld [vmem:[#allocation12 + $0xd8] sm:$0xf]
        %v2601 = vld [vmem:[#allocation12 + $0xdc] sm:$0xf]
        %v2602 = vld [vmem:[#allocation12 + $0xe0] sm:$0xf]
        %v2603 = vld [vmem:[#allocation12 + $0xe4] sm:$0xf]
        %v2604 = vld [vmem:[#allocation12 + $0xe8] sm:$0xf]
        %v2605 = vld [vmem:[#allocation12 + $0xec] sm:$0xf]
        %v2606 = vld [vmem:[#allocation12 + $0xf0] sm:$0xf]
        %v2607 = vld [vmem:[#allocation12 + $0xf4] sm:$0xf]
        %v2608 = vld [vmem:[#allocation12 + $0xf8] sm:$0xf]
        %v2609 = vld [vmem:[#allocation12 + $0xfc] sm:$0xf]
        %v2642 = vunpack.c.l.b16 %v2578
        %v2643 = vunpack.c.l.b16 %v2579
        %v2644 = vunpack.c.l.b16 %v2580
        %v2645 = vunpack.c.l.b16 %v2581
        %v2646 = vunpack.c.l.b16 %v2582
        %v2647 = vunpack.c.l.b16 %v2583
        %v2648 = vunpack.c.l.b16 %v2584
        %v2649 = vunpack.c.l.b16 %v2585
        %v2650 = vunpack.c.l.b16 %v2586
        %v2651 = vunpack.c.l.b16 %v2587
        %v2652 = vunpack.c.l.b16 %v2588
        %v2653 = vunpack.c.l.b16 %v2589
        %v2654 = vunpack.c.l.b16 %v2590
        %v2655 = vunpack.c.l.b16 %v2591
        %v2656 = vunpack.c.l.b16 %v2592
        %v2657 = vunpack.c.l.b16 %v2593
        %v2658 = vunpack.c.l.b16 %v2594
        %v2659 = vunpack.c.l.b16 %v2595
        %v2660 = vunpack.c.l.b16 %v2596
        %v2661 = vunpack.c.l.b16 %v2597
        %v2662 = vunpack.c.l.b16 %v2598
        %v2663 = vunpack.c.l.b16 %v2599
        %v2664 = vunpack.c.l.b16 %v2600
        %v2665 = vunpack.c.l.b16 %v2601
        %v2666 = vunpack.c.l.b16 %v2602
        %v2667 = vunpack.c.l.b16 %v2603
        %v2668 = vunpack.c.l.b16 %v2604
        %v2669 = vunpack.c.l.b16 %v2605
        %v2670 = vunpack.c.l.b16 %v2606
        %v2671 = vunpack.c.l.b16 %v2607
        %v2672 = vunpack.c.l.b16 %v2608
        %v2673 = vunpack.c.l.b16 %v2609
        %v2674 = vpack.c.b16 %v2643, %v2642
        %v2675 = vpack.c.b16 %v2645, %v2644
        %v2676 = vpack.c.b16 %v2647, %v2646
        %v2677 = vpack.c.b16 %v2649, %v2648
        %v2678 = vpack.c.b16 %v2651, %v2650
        %v2679 = vpack.c.b16 %v2653, %v2652
        %v2680 = vpack.c.b16 %v2655, %v2654
        %v2681 = vpack.c.b16 %v2657, %v2656
        %v2682 = vpack.c.b16 %v2659, %v2658
        %v2683 = vpack.c.b16 %v2661, %v2660
        %v2684 = vpack.c.b16 %v2663, %v2662
        %v2685 = vpack.c.b16 %v2665, %v2664
        %v2686 = vpack.c.b16 %v2667, %v2666
        %v2687 = vpack.c.b16 %v2669, %v2668
        %v2688 = vpack.c.b16 %v2671, %v2670
        %v2689 = vpack.c.b16 %v2673, %v2672
        %2706 = vmatprep.subr.bf16.mxu0 0
        %2707 = vmatpush1.bf16.msra.mxu0 %v2674
        %2708 = vmatprep.subr.bf16.mxu0 0
        %2709 = vmatpush1.bf16.msra.mxu0 %v2675
        %2710 = vmatprep.subr.bf16.mxu0 0
        %2711 = vmatpush1.bf16.msra.mxu0 %v2676
        %2712 = vmatprep.subr.bf16.mxu0 0
        %2713 = vmatpush1.bf16.msra.mxu0 %v2677
        %2714 = vmatprep.subr.bf16.mxu0 0
        %2715 = vmatpush1.bf16.msra.mxu0 %v2678
        %2716 = vmatprep.subr.bf16.mxu0 0
        %2717 = vmatpush1.bf16.msra.mxu0 %v2679
        %2718 = vmatprep.subr.bf16.mxu0 0
        %2719 = vmatpush1.bf16.msra.mxu0 %v2680
        %2720 = vmatprep.subr.bf16.mxu0 0
        %2721 = vmatpush1.bf16.msra.mxu0 %v2681
        %2722 = vmatprep.subr.bf16.mxu0 0
        %2723 = vmatpush1.bf16.msra.mxu0 %v2682
        %2724 = vmatprep.subr.bf16.mxu0 0
        %2725 = vmatpush1.bf16.msra.mxu0 %v2683
        %2726 = vmatprep.subr.bf16.mxu0 0
        %2727 = vmatpush1.bf16.msra.mxu0 %v2684
        %2728 = vmatprep.subr.bf16.mxu0 0
        %2729 = vmatpush1.bf16.msra.mxu0 %v2685
        %2730 = vmatprep.subr.bf16.mxu0 0
        %2731 = vmatpush1.bf16.msra.mxu0 %v2686
        %2732 = vmatprep.subr.bf16.mxu0 0
        %2733 = vmatpush1.bf16.msra.mxu0 %v2687
        %2734 = vmatprep.subr.bf16.mxu0 0
        %2735 = vmatpush1.bf16.msra.mxu0 %v2688
        %2736 = vmatprep.subr.bf16.mxu0 0
        %2737 = vmatpush1.bf16.msra.mxu0 %v2689
        %2738 = vmatprep.mubr.bf16.mxu0 %v2571
        %2739 = vmatmul.mubr.bf16.gmra.mrb[0].mxu0 %v2570
        %v2740 = vpop.f32.mrb[0].mxu0
        %v2741 = vadd.f32 0.0, %v2740
        %v2742 = vpop.f32.mrb[0].mxu0
        %v2743 = vpop.f32.mrb[0].mxu0
        %v2744 = vadd.f32 0.0, %v2743
        %v2745 = vpop.f32.mrb[0].mxu0
        %2746 = vmatprep.mubr.bf16.mxu0 %v2573
        %2747 = vmatmul.mubr.bf16.gmra.mrb[0].mxu0 %v2572
        %v2748 = vpop.f32.mrb[0].mxu0
        %v2749 = vadd.f32 0.0, %v2748
        %v2750 = vpop.f32.mrb[0].mxu0
        %v2751 = vpop.f32.mrb[0].mxu0
        %v2752 = vadd.f32 0.0, %v2751
        %v2753 = vpop.f32.mrb[0].mxu0
        %2754 = vmatprep.mubr.bf16.mxu0 %v2575
        %2755 = vmatmul.mubr.bf16.gmra.mrb[0].mxu0 %v2574
        %v2756 = vpop.f32.mrb[0].mxu0
        %v2757 = vadd.f32 0.0, %v2756
        %v2758 = vpop.f32.mrb[0].mxu0
        %v2759 = vpop.f32.mrb[0].mxu0
        %v2760 = vadd.f32 0.0, %v2759
        %v2761 = vpop.f32.mrb[0].mxu0
        %2762 = vmatprep.mubr.bf16.mxu0 %v2577
        %2763 = vmatmul.mubr.bf16.gmra.mrb[0].mxu0 %v2576
        %v2764 = vpop.f32.mrb[0].mxu0
        %v2765 = vadd.f32 0.0, %v2764
        %v2766 = vpop.f32.mrb[0].mxu0
        %v2767 = vpop.f32.mrb[0].mxu0
        %v2768 = vadd.f32 0.0, %v2767
        %v2769 = vpop.f32.mrb[0].mxu0
        %2770 = vdwg.mxu0
        %v2803 = vunpack.c.l.b16 %v2213
        %v2804 = vunpack.c.l.b16 %v2214
        %v2805 = vunpack.c.l.b16 %v2215
        %v2806 = vunpack.c.l.b16 %v2216
        %v2807 = vunpack.c.l.b16 %v2217
        %v2808 = vunpack.c.l.b16 %v2218
        %v2809 = vunpack.c.l.b16 %v2219
        %v2810 = vunpack.c.l.b16 %v2220
        %v2811 = vunpack.c.l.b16 %v2221
        %v2812 = vunpack.c.l.b16 %v2222
        %v2813 = vunpack.c.l.b16 %v2223
        %v2814 = vunpack.c.l.b16 %v2224
        %v2815 = vunpack.c.l.b16 %v2225
        %v2816 = vunpack.c.l.b16 %v2226
        %v2817 = vunpack.c.l.b16 %v2227
        %v2818 = vunpack.c.l.b16 %v2228
        %v2819 = vunpack.c.l.b16 %v2229
        %v2820 = vunpack.c.l.b16 %v2230
        %v2821 = vunpack.c.l.b16 %v2231
        %v2822 = vunpack.c.l.b16 %v2232
        %v2823 = vunpack.c.l.b16 %v2233
        %v2824 = vunpack.c.l.b16 %v2234
        %v2825 = vunpack.c.l.b16 %v2235
        %v2826 = vunpack.c.l.b16 %v2236
        %v2827 = vunpack.c.l.b16 %v2237
        %v2828 = vunpack.c.l.b16 %v2238
        %v2829 = vunpack.c.l.b16 %v2239
        %v2830 = vunpack.c.l.b16 %v2240
        %v2831 = vunpack.c.l.b16 %v2241
        %v2832 = vunpack.c.l.b16 %v2242
        %v2833 = vunpack.c.l.b16 %v2243
        %v2834 = vunpack.c.l.b16 %v2244
        %v2835 = vpack.c.b16 %v2804, %v2803
        %v2836 = vpack.c.b16 %v2806, %v2805
        %v2837 = vpack.c.b16 %v2808, %v2807
        %v2838 = vpack.c.b16 %v2810, %v2809
        %v2839 = vpack.c.b16 %v2812, %v2811
        %v2840 = vpack.c.b16 %v2814, %v2813
        %v2841 = vpack.c.b16 %v2816, %v2815
        %v2842 = vpack.c.b16 %v2818, %v2817
        %v2843 = vpack.c.b16 %v2820, %v2819
        %v2844 = vpack.c.b16 %v2822, %v2821
        %v2845 = vpack.c.b16 %v2824, %v2823
        %v2846 = vpack.c.b16 %v2826, %v2825
        %v2847 = vpack.c.b16 %v2828, %v2827
        %v2848 = vpack.c.b16 %v2830, %v2829
        %v2849 = vpack.c.b16 %v2832, %v2831
        %v2850 = vpack.c.b16 %v2834, %v2833
        %2867 = vmatprep.subr.bf16.mxu0 0
        %2868 = vmatpush1.bf16.msra.mxu0 %v2835
        %2869 = vmatprep.subr.bf16.mxu0 0
        %2870 = vmatpush1.bf16.msra.mxu0 %v2836
        %2871 = vmatprep.subr.bf16.mxu0 0
        %2872 = vmatpush1.bf16.msra.mxu0 %v2837
        %2873 = vmatprep.subr.bf16.mxu0 0
        %2874 = vmatpush1.bf16.msra.mxu0 %v2838
        %2875 = vmatprep.subr.bf16.mxu0 0
        %2876 = vmatpush1.bf16.msra.mxu0 %v2839
        %2877 = vmatprep.subr.bf16.mxu0 0
        %2878 = vmatpush1.bf16.msra.mxu0 %v2840
        %2879 = vmatprep.subr.bf16.mxu0 0
        %2880 = vmatpush1.bf16.msra.mxu0 %v2841
        %2881 = vmatprep.subr.bf16.mxu0 0
        %2882 = vmatpush1.bf16.msra.mxu0 %v2842
        %2883 = vmatprep.subr.bf16.mxu0 0
        %2884 = vmatpush1.bf16.msra.mxu0 %v2843
        %2885 = vmatprep.subr.bf16.mxu0 0
        %2886 = vmatpush1.bf16.msra.mxu0 %v2844
        %2887 = vmatprep.subr.bf16.mxu0 0
        %2888 = vmatpush1.bf16.msra.mxu0 %v2845
        %2889 = vmatprep.subr.bf16.mxu0 0
        %2890 = vmatpush1.bf16.msra.mxu0 %v2846
        %2891 = vmatprep.subr.bf16.mxu0 0
        %2892 = vmatpush1.bf16.msra.mxu0 %v2847
        %2893 = vmatprep.subr.bf16.mxu0 0
        %2894 = vmatpush1.bf16.msra.mxu0 %v2848
        %2895 = vmatprep.subr.bf16.mxu0 0
        %2896 = vmatpush1.bf16.msra.mxu0 %v2849
        %2897 = vmatprep.subr.bf16.mxu0 0
        %2898 = vmatpush1.bf16.msra.mxu0 %v2850
        %2899 = vmatprep.mubr.bf16.mxu0 %v2206
        %2900 = vmatmul.mubr.bf16.gmra.mrb[0].mxu0 %v2205
        %v2901 = vpop.f32.mrb[0].mxu0
        %v2902 = vadd.f32 %v2741, %v2901
        %v2903 = vpop.f32.mrb[0].mxu0
        %v2904 = vpop.f32.mrb[0].mxu0
        %v2905 = vadd.f32 %v2744, %v2904
        %v2906 = vpop.f32.mrb[0].mxu0
        %2907 = vmatprep.mubr.bf16.mxu0 %v2208
        %2908 = vmatmul.mubr.bf16.gmra.mrb[0].mxu0 %v2207
        %v2909 = vpop.f32.mrb[0].mxu0
        %v2910 = vadd.f32 %v2749, %v2909
        %v2911 = vpop.f32.mrb[0].mxu0
        %v2912 = vpop.f32.mrb[0].mxu0
        %v2913 = vadd.f32 %v2752, %v2912
        %v2914 = vpop.f32.mrb[0].mxu0
        %2915 = vmatprep.mubr.bf16.mxu0 %v2210
        %2916 = vmatmul.mubr.bf16.gmra.mrb[0].mxu0 %v2209
        %v2917 = vpop.f32.mrb[0].mxu0
        %v2918 = vadd.f32 %v2757, %v2917
        %v2919 = vpop.f32.mrb[0].mxu0
        %v2920 = vpop.f32.mrb[0].mxu0
        %v2921 = vadd.f32 %v2760, %v2920
        %v2922 = vpop.f32.mrb[0].mxu0
        %2923 = vmatprep.mubr.bf16.mxu0 %v2212
        %2924 = vmatmul.mubr.bf16.gmra.mrb[0].mxu0 %v2211
        %v2925 = vpop.f32.mrb[0].mxu0
        %v2926 = vadd.f32 %v2765, %v2925
        %v2927 = vpop.f32.mrb[0].mxu0
        %v2928 = vpop.f32.mrb[0].mxu0
        %v2929 = vadd.f32 %v2768, %v2928
        %v2930 = vpop.f32.mrb[0].mxu0
        %2931 = vdwg.mxu0
        %v2932 = vld [vmem:[%s9] sm:$0x1]
        %v2934 = vlaneseq
        %v2935 = vshrl.u32 %v2934, 7
        %v2936 = vsub.s32 0, %v2935
        %v2937 = vrot.slane %v2932, %v2936
        %v2939 = vadd.f32 %v2902, %v2937
        %v2940 = vadd.f32 %v2905, %v2937
        %v2941 = vadd.f32 %v2910, %v2937
        %v2942 = vadd.f32 %v2913, %v2937
        %v2943 = vadd.f32 %v2918, %v2937
        %v2944 = vadd.f32 %v2921, %v2937
        %v2945 = vadd.f32 %v2926, %v2937
        %v2946 = vadd.f32 %v2929, %v2937
        %v2947 = vlaneseq
        %v2948 = vshrl.u32 %v2947, 7
        %v2949 = vsub.s32 0, %v2948
        %v2950 = vrot.slane %v507, %v2949
        %v2951 = vlaneseq
        %v2952 = vshrl.u32 %v2951, 7
        %v2953 = vsub.s32 0, %v2952
        %v2954 = vrot.slane %v508, %v2953
        %v2957 = vmul.f32 %v2950, %v2939
        %v2958 = vmul.f32 %v2950, %v2940
        %v2959 = vmul.f32 %v2950, %v2941
        %v2960 = vmul.f32 %v2950, %v2942
        %v2961 = vmul.f32 %v2954, %v2943
        %v2962 = vmul.f32 %v2954, %v2944
        %v2963 = vmul.f32 %v2954, %v2945
        %v2964 = vmul.f32 %v2954, %v2946
        %v2965 = vadd.f32 %v1868, %v2957
        %v2966 = vadd.f32 %v1869, %v2958
        %v2967 = vadd.f32 %v1870, %v2959
        %v2968 = vadd.f32 %v1871, %v2960
        %v2969 = vadd.f32 %v1872, %v2961
        %v2970 = vadd.f32 %v1873, %v2962
        %v2971 = vadd.f32 %v1874, %v2963
        %v2972 = vadd.f32 %v1875, %v2964
        %2973 = vst [vmem:[%s473] sm:$0xff] %v2965
        %2974 = vst [vmem:[%s473 + $0x8] sm:$0xff] %v2966
        %2975 = vst [vmem:[%s473 + $0x10] sm:$0xff] %v2967
        %2976 = vst [vmem:[%s473 + $0x18] sm:$0xff] %v2968
        %2977 = vst [vmem:[%s473 + $0x20] sm:$0xff] %v2969
        %2978 = vst [vmem:[%s473 + $0x28] sm:$0xff] %v2970
        %2979 = vst [vmem:[%s473 + $0x30] sm:$0xff] %v2971
        %2980 = vst [vmem:[%s473 + $0x38] sm:$0xff] %v2972
        %s2981 = sand.u32 %s253, 1
        %s2982 = scalar_lea.sflag [#allocation5], %s2981
        %s2983 = sand.u32 %s253, 1
        %s2984 = smul.addr %s2983, 64
        %s2985 = scalar_lea.vmem [#allocation14], %s2984
        // Predicated region
        $region85: #{tpu_custom_call.1} parent=59 // pred_check
          %p2986 = pneg %p263
        $region86: #{tpu_custom_call.1} parent=59 // pred_check_branch
          %2988 = sbr.rel (%p2986) target = $region88
        $region87: #{tpu_custom_call.1} parent=59 // pred_region
          #allocation18 [shape = 'u32[6]{0}', space=smem, size = 0x18, scoped, tag = 'DMA stride descriptor']
          %s2989 = smul.u32 4, %s30
          %s2991 = ssub.s32 1024, 1024
          %2992 = vsyncadd %s2982, %s2991
          %s2993 = smul.addr %s2989, 128
          %s2994 = scalar_lea.hbm %s10, %s2993
          %s2996 = sshll.u32 1, 14
          %s2997 = sxor.u32 4294967295, %s2996
          %s3000 = sshll.u32 7, 18
          %s3001 = sxor.u32 4294967295, %s3000
          %s3002 = sand.u32 0, %s3001
          %s3004 = sor.u32 %s3002, 0
          %s3006 = sshll.u32 3, 24
          %s3007 = sxor.u32 4294967295, %s3006
          %s3008 = sand.u32 %s3004, %s3007
          %s3010 = sor.u32 %s3008, 0
          %s3011 = sshll.u32 %s2985, 4
          %s3012 = int_to_ptr.vmem [resolvable:$true] %s3011
          %3018 = sst [smem:[#allocation18]] 512
          %s3019 = scalar_lea.smem [#allocation18], 1
          %3020 = sst [smem:[%s3019]] 1024
          %s3021 = scalar_lea.smem [#allocation18], 2
          %3022 = sst [smem:[%s3021]] 4
          %s3023 = scalar_lea.smem [#allocation18], 3
          %3024 = sst [smem:[%s3023]] 128
          %s3025 = scalar_lea.smem [#allocation18], 4
          %3026 = sst [smem:[%s3025]] 128
          %s3027 = scalar_lea.smem [#allocation18], 5
          %3028 = sst [smem:[%s3027]] 8
          %3030 = dma.general %s3012, 1024, %s2994, %s2982, [#allocation17], [#allocation18], %s3010, 0
        $region88: #{tpu_custom_call.1} parent=59 // pred_fallthru
          _
      $region60: #{tpu_custom_call.1} parent=5 // pred_fallthru
        _
      %p3031 = scmp.le.s32.totalorder 2, %s25
      // Predicated region
      $region89: #{tpu_custom_call.1} parent=5 // pred_check
        %p3032 = pneg %p3031
      $region90: #{tpu_custom_call.1} parent=5 // pred_check_branch
        %3034 = sbr.rel (%p3032) target = $region92
      $region91: #{tpu_custom_call.1} parent=5 // pred_region
        %s3035 = ssub.s32 %s25, 2
        // Predicated region
        $region93: #{tpu_custom_call.1} parent=91 // pred_check
          %p3036 = pneg %p269
        $region94: #{tpu_custom_call.1} parent=91 // pred_check_branch
          %3038 = sbr.rel (%p3036) target = $region96
        $region95: #{tpu_custom_call.1} parent=91 // pred_region
          %s3039 = sand.u32 %s254, 1
          %s3040 = scalar_lea.sflag [#allocation5], %s3039
          %s3041 = sand.u32 %s254, 1
          %s3042 = smul.addr %s3041, 64
          %s3043 = scalar_lea.vmem [#allocation14], %s3042
          %3044 = dma.done %s3040, 1024
        $region96: #{tpu_custom_call.1} parent=91 // pred_fallthru
          _
      $region92: #{tpu_custom_call.1} parent=5 // pred_fallthru
        _
    $region6: #{tpu_custom_call.1} parent=1 // loop_footer
      %s29 = sadd.s32 1, %s25
    $region7: #{tpu_custom_call.1} parent=1 // loop_footer_branch
      %24 = sbr.rel target = $region3
    $region8: #{tpu_custom_call.1} parent=1 // loop_exit
      _
    %3045 = vsyncpa [#allocation4], 1
    %s3046 = scalar_lea.sflag [#allocation4], 1
    %3047 = vsyncpa %s3046, 1
    %3048 = vsyncpa [#allocation7], 1
    %3049 = vsyncpa [#allocation10], 1
    %3050 = vsyncpa [#allocation13], 1
    %3051 = vsyncpa [#allocation5], 1
    %s3052 = scalar_lea.sflag [#allocation5], 1
    %3053 = vsyncpa %s3052, 1

// kernel: tpu_custom_call.1
$region0: #{tpu_custom_call.1}
  #allocation0 [shape = 'u32[]', space=smem, size = 0x4, offset = 0x4, fixed_abs, tag = 'smem constant byte address 0x4 - core index']
  #allocation1 [shape = 'u32[144,128]{1,0:T(1,128)}', space=vmem, size = 0x12000, scoped, tag = 'internal scratch']
  #allocation2 [shape = 'f32[2,32,128]{2,1,0:T(8,128)}', space=vmem, size = 0x8000, scoped, tag = 'scratch operand']
  #allocation15 [shape = 's32[]', space=sflag, size = 0x4, offset = 0, fixed_abs, tag = 'sflag constant byte address 0x0 - dummy sync flag']
  #allocation17 [shape = 's32[]', space=sflag, size = 0x4, offset = 0, fixed_abs, tag = 'sflag constant byte address 0x0 - dummy sync flag']
  %s0 = inlined_call_operand.hbm [shape: f32[2,64,128], index: 0, kind: input, shape index: {}]
  %s1 = inlined_call_operand.hbm [shape: f32[2,768], index: 1, kind: input, shape index: {}]
  %s2 = inlined_call_operand.hbm [shape: bf16[128,384], index: 2, kind: input, shape index: {}]
  %s3 = inlined_call_operand.vmem [shape: f32[1,384], index: 3, kind: input, shape index: {}]
  %s4 = inlined_call_operand.hbm [shape: bf16[128,128], index: 4, kind: input, shape index: {}]
  %s5 = inlined_call_operand.vmem [shape: f32[1,128], index: 5, kind: input, shape index: {}]
  %s6 = inlined_call_operand.hbm [shape: bf16[128,512], index: 6, kind: input, shape index: {}]
  %s7 = inlined_call_operand.vmem [shape: f32[1,512], index: 7, kind: input, shape index: {}]
  %s8 = inlined_call_operand.hbm [shape: bf16[512,128], index: 8, kind: input, shape index: {}]
  %s9 = inlined_call_operand.vmem [shape: f32[1,128], index: 9, kind: input, shape index: {}]
  %s10 = inlined_call_operand.hbm [shape: f32[2,64,128], index: 10, kind: output, shape index: {}]
  %s11 = sld [smem:[#allocation0]]
  $region97: #{tpu_custom_call.1} parent=0
    _
  %s13 = ssub.s32 1, %s11
  %s14 = scalar_select 0, %s13, %s11
  $region1: #{tpu_custom_call.1} parent=0
    #allocation3 [shape = 'u8[65536]{0}', space=vmem, size = 0x10000, scoped, tag = 'input window, operand 0']
    #allocation4 [shape = 's32[2]{0}', space=sflag, size = 0x8, scoped, tag = 'scoped memory for tpu_custom_call.1']
    #allocation5 [shape = 's32[2]{0}', space=sflag, size = 0x8, scoped, tag = 'scoped memory for tpu_custom_call.1']
    #allocation6 [shape = 'u8[6144]{0}', space=vmem, size = 0x1800, scoped, tag = 'input window, operand 1, single buffered']
    #allocation7 [shape = 's32[1]{0}', space=sflag, size = 0x4, scoped, tag = 'scoped memory for tpu_custom_call.1']
    #allocation8 [shape = 'u8[98304]{0}', space=vmem, size = 0x18000, scoped, tag = 'input window, operand 2, single buffered']
    #allocation9 [shape = 'u8[32768]{0}', space=vmem, size = 0x8000, scoped, tag = 'input window, operand 4, single buffered']
    #allocation10 [shape = 's32[1]{0}', space=sflag, size = 0x4, scoped, tag = 'scoped memory for tpu_custom_call.1']
    #allocation11 [shape = 'u8[131072]{0}', space=vmem, size = 0x20000, scoped, tag = 'input window, operand 6, single buffered']
    #allocation12 [shape = 'u8[131072]{0}', space=vmem, size = 0x20000, scoped, tag = 'input window, operand 8, single buffered']
    #allocation13 [shape = 's32[1]{0}', space=sflag, size = 0x4, scoped, tag = 'scoped memory for tpu_custom_call.1']
    #allocation14 [shape = 'u8[65536]{0}', space=vmem, size = 0x10000, scoped, tag = 'output window, operand 0']
    %15 = vsyncpa [#allocation4], 0
    %s16 = scalar_lea.sflag [#allocation4], 1
    %17 = vsyncpa %s16, 0
    %18 = vsyncpa [#allocation7], 0
    %19 = vsyncpa [#allocation10], 0
    %20 = vsyncpa [#allocation13], 0
    %21 = vsyncpa [#allocation5], 0
    %s22 = scalar_lea.sflag [#allocation5], 1
    %23 = vsyncpa %s22, 0
    loop: start=0, step=1, limit=4
    $region2: #{tpu_custom_call.1} parent=1 // loop_pre_header
      _
    $region3: #{tpu_custom_call.1} parent=1 // loop_header
      %s25 = sphi 0, %s29
      %p26 = scmp.ge.s32.totalorder %s25, 4
      %s35 = sphi 0, %s37
      %s38 = sphi 0, %s35
      %s39 = sphi 0, %s38
      %s55 = sphi 0, %s39
      %s59 = sphi 0, %s59
      %s61 = sphi 0, %s59
      %s62 = sphi 0, %s61
      %s76 = sphi 0, %s62
      %s80 = sphi 0, %s80
      %s82 = sphi 0, %s80
      %s83 = sphi 0, %s82
      %s97 = sphi 0, %s83
      %s101 = sphi 0, %s101
      %s103 = sphi 0, %s101
      %s104 = sphi 0, %s103
      %s118 = sphi 0, %s104
      %s122 = sphi 0, %s122
      %s124 = sphi 0, %s122
      %s125 = sphi 0, %s124
      %s139 = sphi 0, %s125
      %s143 = sphi 0, %s143
      %s145 = sphi 0, %s143
      %s146 = sphi 0, %s145
      %s160 = sphi 0, %s146
      %s164 = sphi 0, %s164
      %s166 = sphi 0, %s164
      %s167 = sphi 0, %s166
      %s181 = sphi 0, %s167
      %s185 = sphi 0, %s185
      %s187 = sphi 0, %s185
      %s188 = sphi 0, %s187
      %s202 = sphi 0, %s188
      %s206 = sphi 0, %s206
      %s208 = sphi 0, %s206
      %s209 = sphi 0, %s208
      %s223 = sphi 0, %s209
      %s227 = sphi 0, %s227
      %s229 = sphi 0, %s227
      %s230 = sphi 0, %s229
      %s244 = sphi 0, %s230
      %s250 = sphi 0, %s252
      %s253 = sphi 0, %s250
      %s254 = sphi 0, %s253
      %s270 = sphi 0, %s254
    $region4: #{tpu_custom_call.1} parent=1 // loop_header_branch
      %28 = sbr.rel (%p26) target = $region8
    $region5: #{tpu_custom_call.1} parent=1 // loop_body
      %s30 = ssub.s32 %s25, 1
      %s31 = ssub.s32 %s25, 2
      %s32 = sadd.s32 %s25, 1
      %s33 = ssub.s32 %s25, %s32
      %p34 = scmp.eq.s32.totalorder %s33, 0
      %s36 = sadd.s32 %s35, 1
      %s37 = scalar_select %p34, %s35, %s36
      %p40 = pneg %p34
      %p41 = scmp.eq.s32.totalorder %s25, 1
      %p42 = por %p40, %p41
      %p43 = scmp.ne.s32.totalorder %s35, %s38
      %p44 = scmp.eq.s32.totalorder %s25, 0
      %p45 = por %p43, %p44
      %p46 = scmp.ne.s32.totalorder %s35, %s38
      %p47 = scmp.eq.s32.totalorder %s30, 1
      %p48 = por %p46, %p47
      %p49 = scmp.ne.s32.totalorder %s38, %s39
      %p50 = scmp.eq.s32.totalorder %s30, 0
      %p51 = por %p49, %p50
      %p52 = scmp.ne.s32.totalorder %s38, %s39
      %p53 = scmp.eq.s32.totalorder %s31, 1
      %p54 = por %p52, %p53
      %p56 = scmp.ne.s32.totalorder %s39, %s55
      %p57 = scmp.eq.s32.totalorder %s31, 0
      %p58 = por %p56, %p57
      %s60 = sadd.s32 %s59, 1
      %p63 = scmp.eq.s32.totalorder %s25, 1
      %p64 = scmp.ne.s32.totalorder %s59, %s61
      %p65 = scmp.eq.s32.totalorder %s25, 0
      %p66 = por %p64, %p65
      %p67 = scmp.ne.s32.totalorder %s59, %s61
      %p68 = scmp.eq.s32.totalorder %s30, 1
      %p69 = por %p67, %p68
      %p70 = scmp.ne.s32.totalorder %s61, %s62
      %p71 = scmp.eq.s32.totalorder %s30, 0
      %p72 = por %p70, %p71
      %p73 = scmp.ne.s32.totalorder %s61, %s62
      %p74 = scmp.eq.s32.totalorder %s31, 1
      %p75 = por %p73, %p74
      %p77 = scmp.ne.s32.totalorder %s62, %s76
      %p78 = scmp.eq.s32.totalorder %s31, 0
      %p79 = por %p77, %p78
      %s81 = sadd.s32 %s80, 1
      %p84 = scmp.eq.s32.totalorder %s25, 1
      %p85 = scmp.ne.s32.totalorder %s80, %s82
      %p86 = scmp.eq.s32.totalorder %s25, 0
      %p87 = por %p85, %p86
      %p88 = scmp.ne.s32.totalorder %s80, %s82
      %p89 = scmp.eq.s32.totalorder %s30, 1
      %p90 = por %p88, %p89
      %p91 = scmp.ne.s32.totalorder %s82, %s83
      %p92 = scmp.eq.s32.totalorder %s30, 0
      %p93 = por %p91, %p92
      %p94 = scmp.ne.s32.totalorder %s82, %s83
      %p95 = scmp.eq.s32.totalorder %s31, 1
      %p96 = por %p94, %p95
      %p98 = scmp.ne.s32.totalorder %s83, %s97
      %p99 = scmp.eq.s32.totalorder %s31, 0
      %p100 = por %p98, %p99
      %s102 = sadd.s32 %s101, 1
      %p105 = scmp.eq.s32.totalorder %s25, 1
      %p106 = scmp.ne.s32.totalorder %s101, %s103
      %p107 = scmp.eq.s32.totalorder %s25, 0
      %p108 = por %p106, %p107
      %p109 = scmp.ne.s32.totalorder %s101, %s103
      %p110 = scmp.eq.s32.totalorder %s30, 1
      %p111 = por %p109, %p110
      %p112 = scmp.ne.s32.totalorder %s103, %s104
      %p113 = scmp.eq.s32.totalorder %s30, 0
      %p114 = por %p112, %p113
      %p115 = scmp.ne.s32.totalorder %s103, %s104
      %p116 = scmp.eq.s32.totalorder %s31, 1
      %p117 = por %p115, %p116
      %p119 = scmp.ne.s32.totalorder %s104, %s118
      %p120 = scmp.eq.s32.totalorder %s31, 0
      %p121 = por %p119, %p120
      %s123 = sadd.s32 %s122, 1
      %p126 = scmp.eq.s32.totalorder %s25, 1
      %p127 = scmp.ne.s32.totalorder %s122, %s124
      %p128 = scmp.eq.s32.totalorder %s25, 0
      %p129 = por %p127, %p128
      %p130 = scmp.ne.s32.totalorder %s122, %s124
      %p131 = scmp.eq.s32.totalorder %s30, 1
      %p132 = por %p130, %p131
      %p133 = scmp.ne.s32.totalorder %s124, %s125
      %p134 = scmp.eq.s32.totalorder %s30, 0
      %p135 = por %p133, %p134
      %p136 = scmp.ne.s32.totalorder %s124, %s125
      %p137 = scmp.eq.s32.totalorder %s31, 1
      %p138 = por %p136, %p137
      %p140 = scmp.ne.s32.totalorder %s125, %s139
      %p141 = scmp.eq.s32.totalorder %s31, 0
      %p142 = por %p140, %p141
      %s144 = sadd.s32 %s143, 1
      %p147 = scmp.eq.s32.totalorder %s25, 1
      %p148 = scmp.ne.s32.totalorder %s143, %s145
      %p149 = scmp.eq.s32.totalorder %s25, 0
      %p150 = por %p148, %p149
      %p151 = scmp.ne.s32.totalorder %s143, %s145
      %p152 = scmp.eq.s32.totalorder %s30, 1
      %p153 = por %p151, %p152
      %p154 = scmp.ne.s32.totalorder %s145, %s146
      %p155 = scmp.eq.s32.totalorder %s30, 0
      %p156 = por %p154, %p155
      %p157 = scmp.ne.s32.totalorder %s145, %s146
      %p158 = scmp.eq.s32.totalorder %s31, 1
      %p159 = por %p157, %p158
      %p161 = scmp.ne.s32.totalorder %s146, %s160
      %p162 = scmp.eq.s32.totalorder %s31, 0
      %p163 = por %p161, %p162
      %s165 = sadd.s32 %s164, 1
      %p168 = scmp.eq.s32.totalorder %s25, 1
      %p169 = scmp.ne.s32.totalorder %s164, %s166
      %p170 = scmp.eq.s32.totalorder %s25, 0
      %p171 = por %p169, %p170
      %p172 = scmp.ne.s32.totalorder %s164, %s166
      %p173 = scmp.eq.s32.totalorder %s30, 1
      %p174 = por %p172, %p173
      %p175 = scmp.ne.s32.totalorder %s166, %s167
      %p176 = scmp.eq.s32.totalorder %s30, 0
      %p177 = por %p175, %p176
      %p178 = scmp.ne.s32.totalorder %s166, %s167
      %p179 = scmp.eq.s32.totalorder %s31, 1
      %p180 = por %p178, %p179
      %p182 = scmp.ne.s32.totalorder %s167, %s181
      %p183 = scmp.eq.s32.totalorder %s31, 0
      %p184 = por %p182, %p183
      %s186 = sadd.s32 %s185, 1
      %p189 = scmp.eq.s32.totalorder %s25, 1
      %p190 = scmp.ne.s32.totalorder %s185, %s187
      %p191 = scmp.eq.s32.totalorder %s25, 0
      %p192 = por %p190, %p191
      %p193 = scmp.ne.s32.totalorder %s185, %s187
      %p194 = scmp.eq.s32.totalorder %s30, 1
      %p195 = por %p193, %p194
      %p196 = scmp.ne.s32.totalorder %s187, %s188
      %p197 = scmp.eq.s32.totalorder %s30, 0
      %p198 = por %p196, %p197
      %p199 = scmp.ne.s32.totalorder %s187, %s188
      %p200 = scmp.eq.s32.totalorder %s31, 1
      %p201 = por %p199, %p200
      %p203 = scmp.ne.s32.totalorder %s188, %s202
      %p204 = scmp.eq.s32.totalorder %s31, 0
      %p205 = por %p203, %p204
      %s207 = sadd.s32 %s206, 1
      %p210 = scmp.eq.s32.totalorder %s25, 1
      %p211 = scmp.ne.s32.totalorder %s206, %s208
      %p212 = scmp.eq.s32.totalorder %s25, 0
      %p213 = por %p211, %p212
      %p214 = scmp.ne.s32.totalorder %s206, %s208
      %p215 = scmp.eq.s32.totalorder %s30, 1
      %p216 = por %p214, %p215
      %p217 = scmp.ne.s32.totalorder %s208, %s209
      %p218 = scmp.eq.s32.totalorder %s30, 0
      %p219 = por %p217, %p218
      %p220 = scmp.ne.s32.totalorder %s208, %s209
      %p221 = scmp.eq.s32.totalorder %s31, 1
      %p222 = por %p220, %p221
      %p224 = scmp.ne.s32.totalorder %s209, %s223
      %p225 = scmp.eq.s32.totalorder %s31, 0
      %p226 = por %p224, %p225
      %s228 = sadd.s32 %s227, 1
      %p231 = scmp.eq.s32.totalorder %s25, 1
      %p232 = scmp.ne.s32.totalorder %s227, %s229
      %p233 = scmp.eq.s32.totalorder %s25, 0
      %p234 = por %p232, %p233
      %p235 = scmp.ne.s32.totalorder %s227, %s229
      %p236 = scmp.eq.s32.totalorder %s30, 1
      %p237 = por %p235, %p236
      %p238 = scmp.ne.s32.totalorder %s229, %s230
      %p239 = scmp.eq.s32.totalorder %s30, 0
      %p240 = por %p238, %p239
      %p241 = scmp.ne.s32.totalorder %s229, %s230
      %p242 = scmp.eq.s32.totalorder %s31, 1
      %p243 = por %p241, %p242
      %p245 = scmp.ne.s32.totalorder %s230, %s244
      %p246 = scmp.eq.s32.totalorder %s31, 0
      %p247 = por %p245, %p246
      %s248 = ssub.s32 %s25, %s32
      %p249 = scmp.eq.s32.totalorder %s248, 0
      %s251 = sadd.s32 %s250, 1
      %s252 = scalar_select %p249, %s250, %s251
      %p255 = pneg %p249
      %p256 = scmp.eq.s32.totalorder %s25, 1
      %p257 = por %p255, %p256
      %p258 = scmp.ne.s32.totalorder %s250, %s253
      %p259 = scmp.eq.s32.totalorder %s25, 0
      %p260 = por %p258, %p259
      %p261 = scmp.ne.s32.totalorder %s250, %s253
      %p262 = scmp.eq.s32.totalorder %s30, 1
      %p263 = por %p261, %p262
      %p264 = scmp.ne.s32.totalorder %s253, %s254
      %p265 = scmp.eq.s32.totalorder %s30, 0
      %p266 = por %p264, %p265
      %p267 = scmp.ne.s32.totalorder %s253, %s254
      %p268 = scmp.eq.s32.totalorder %s31, 1
      %p269 = por %p267, %p268
      %p271 = scmp.ne.s32.totalorder %s254, %s270
      %p272 = scmp.eq.s32.totalorder %s31, 0
      %p273 = por %p271, %p272
      %p274 = scmp.le.s32.totalorder 1, %s25
      %p275 = scmp.lt.s32.totalorder %s25, 3
      %p276 = pnand %p274, %p275
      %p277 = pneg %p276
      // Predicated region
      $region9: #{tpu_custom_call.1} parent=5 // pred_check
        _
      $region10: #{tpu_custom_call.1} parent=5 // pred_check_branch
        %279 = sbr.rel (%p276) target = $region12
      $region11: #{tpu_custom_call.1} parent=5 // pred_region
        %s280 = ssub.s32 %s25, 1
        // Predicated region
        $region13: #{tpu_custom_call.1} parent=11 // pred_check
          %p281 = pneg %p72
        $region14: #{tpu_custom_call.1} parent=11 // pred_check_branch
          %283 = sbr.rel (%p281) target = $region16
        $region15: #{tpu_custom_call.1} parent=11 // pred_region
          %s285 = ssub.s32 192, 192
          %286 = vsyncadd [#allocation7], %s285
          %s288 = sshll.u32 [#allocation6], 4
          %s289 = int_to_ptr.vmem [resolvable:$true] %s288
          %291 = dma.hbm_to_vmem [thread:$0]  %s1, 192, %s289, [#allocation7]
        $region16: #{tpu_custom_call.1} parent=11 // pred_fallthru
          _
        // Predicated region
        $region17: #{tpu_custom_call.1} parent=11 // pred_check
          %p292 = pneg %p93
        $region18: #{tpu_custom_call.1} parent=11 // pred_check_branch
          %294 = sbr.rel (%p292) target = $region20
        $region19: #{tpu_custom_call.1} parent=11 // pred_region
          %s296 = ssub.s32 3072, 3072
          %297 = vsyncadd [#allocation7], %s296
          %s298 = sshll.u32 [#allocation8], 4
          %s299 = int_to_ptr.vmem [resolvable:$true] %s298
          %304 = dma.hbm_to_vmem [thread:$0]  %s2, 3072, %s299, [#allocation7], 192, 192, 12
        $region20: #{tpu_custom_call.1} parent=11 // pred_fallthru
          _
        // Predicated region
        $region21: #{tpu_custom_call.1} parent=11 // pred_check
          %p305 = pneg %p114
        $region22: #{tpu_custom_call.1} parent=11 // pred_check_branch
          %307 = sbr.rel (%p305) target = $region24
        $region23: #{tpu_custom_call.1} parent=11 // pred_region
          _
        $region24: #{tpu_custom_call.1} parent=11 // pred_fallthru
          _
        // Predicated region
        $region25: #{tpu_custom_call.1} parent=11 // pred_check
          %p308 = pneg %p135
        $region26: #{tpu_custom_call.1} parent=11 // pred_check_branch
          %310 = sbr.rel (%p308) target = $region28
        $region27: #{tpu_custom_call.1} parent=11 // pred_region
          %s312 = ssub.s32 1024, 1024
          %313 = vsyncadd [#allocation10], %s312
          %s314 = sshll.u32 [#allocation9], 4
          %s315 = int_to_ptr.vmem [resolvable:$true] %s314
          %320 = dma.hbm_to_vmem [thread:$0]  %s4, 1024, %s315, [#allocation10], 64, 64, 4
        $region28: #{tpu_custom_call.1} parent=11 // pred_fallthru
          _
        // Predicated region
        $region29: #{tpu_custom_call.1} parent=11 // pred_check
          %p321 = pneg %p156
        $region30: #{tpu_custom_call.1} parent=11 // pred_check_branch
          %323 = sbr.rel (%p321) target = $region32
        $region31: #{tpu_custom_call.1} parent=11 // pred_region
          _
        $region32: #{tpu_custom_call.1} parent=11 // pred_fallthru
          _
        // Predicated region
        $region33: #{tpu_custom_call.1} parent=11 // pred_check
          %p324 = pneg %p177
        $region34: #{tpu_custom_call.1} parent=11 // pred_check_branch
          %326 = sbr.rel (%p324) target = $region36
        $region35: #{tpu_custom_call.1} parent=11 // pred_region
          %s328 = ssub.s32 4096, 4096
          %329 = vsyncadd [#allocation10], %s328
          %s330 = sshll.u32 [#allocation11], 4
          %s331 = int_to_ptr.vmem [resolvable:$true] %s330
          %336 = dma.hbm_to_vmem [thread:$0]  %s6, 4096, %s331, [#allocation10], 256, 256, 16
        $region36: #{tpu_custom_call.1} parent=11 // pred_fallthru
          _
        // Predicated region
        $region37: #{tpu_custom_call.1} parent=11 // pred_check
          %p337 = pneg %p198
        $region38: #{tpu_custom_call.1} parent=11 // pred_check_branch
          %339 = sbr.rel (%p337) target = $region40
        $region39: #{tpu_custom_call.1} parent=11 // pred_region
          _
        $region40: #{tpu_custom_call.1} parent=11 // pred_fallthru
          _
        // Predicated region
        $region41: #{tpu_custom_call.1} parent=11 // pred_check
          %p340 = pneg %p219
        $region42: #{tpu_custom_call.1} parent=11 // pred_check_branch
          %342 = sbr.rel (%p340) target = $region44
        $region43: #{tpu_custom_call.1} parent=11 // pred_region
          %s344 = ssub.s32 4096, 4096
          %345 = vsyncadd [#allocation13], %s344
          %s346 = sshll.u32 [#allocation12], 4
          %s347 = int_to_ptr.vmem [resolvable:$true] %s346
          %352 = dma.hbm_to_vmem [thread:$0]  %s8, 4096, %s347, [#allocation13], 64, 64, 4
        $region44: #{tpu_custom_call.1} parent=11 // pred_fallthru
          _
        // Predicated region
        $region45: #{tpu_custom_call.1} parent=11 // pred_check
          %p353 = pneg %p240
        $region46: #{tpu_custom_call.1} parent=11 // pred_check_branch
          %355 = sbr.rel (%p353) target = $region48
        $region47: #{tpu_custom_call.1} parent=11 // pred_region
          _
        $region48: #{tpu_custom_call.1} parent=11 // pred_fallthru
          _
      $region12: #{tpu_custom_call.1} parent=5 // pred_fallthru
        _
      %p356 = scmp.lt.s32.totalorder %s25, 2
      // Predicated region
      $region49: #{tpu_custom_call.1} parent=5 // pred_check
        %p357 = pneg %p356
      $region50: #{tpu_custom_call.1} parent=5 // pred_check_branch
        %359 = sbr.rel (%p357) target = $region52
      $region51: #{tpu_custom_call.1} parent=5 // pred_region
        // Predicated region
        $region53: #{tpu_custom_call.1} parent=51 // pred_check
          %p360 = pneg %p45
        $region54: #{tpu_custom_call.1} parent=51 // pred_check_branch
          %362 = sbr.rel (%p360) target = $region56
        $region55: #{tpu_custom_call.1} parent=51 // pred_region
          #allocation16 [shape = 'u32[6]{0}', space=smem, size = 0x18, scoped, tag = 'DMA stride descriptor']
          %s363 = sand.u32 %s35, 1
          %s364 = scalar_lea.sflag [#allocation4], %s363
          %s365 = sand.u32 %s35, 1
          %s366 = smul.addr %s365, 64
          %s367 = scalar_lea.vmem [#allocation3], %s366
          %s368 = smul.u32 4, %s25
          %s370 = ssub.s32 1024, 1024
          %371 = vsyncadd %s364, %s370
          %s372 = smul.addr %s368, 128
          %s373 = scalar_lea.hbm %s0, %s372
          %s375 = sshll.u32 1, 14
          %s376 = sxor.u32 4294967295, %s375
          %s378 = sld [smem:[#allocation0]]
          %s379 = sadd.s32 2, %s378
          %s381 = sshll.u32 7, 26
          %s382 = sxor.u32 4294967295, %s381
          %s383 = sand.u32 0, %s382
          %s384 = sshll.u32 %s379, 26
          %s385 = sor.u32 %s383, %s384
          %s386 = sshll.u32 %s367, 4
          %s387 = int_to_ptr.vmem [resolvable:$true] %s386
          %393 = sst [smem:[#allocation16]] 1024
          %s394 = scalar_lea.smem [#allocation16], 1
          %395 = sst [smem:[%s394]] 512
          %s396 = scalar_lea.smem [#allocation16], 2
          %397 = sst [smem:[%s396]] 4
          %s398 = scalar_lea.smem [#allocation16], 3
          %399 = sst [smem:[%s398]] 128
          %s400 = scalar_lea.smem [#allocation16], 4
          %401 = sst [smem:[%s400]] 128
          %s402 = scalar_lea.smem [#allocation16], 5
          %403 = sst [smem:[%s402]] 8
          %405 = dma.general %s373, 1024, %s387, %s364, [#allocation15], [#allocation16], %s385, 0
        $region56: #{tpu_custom_call.1} parent=51 // pred_fallthru
          _
      $region52: #{tpu_custom_call.1} parent=5 // pred_fallthru
        _
      %p406 = scmp.le.s32.totalorder 1, %s25
      %p407 = scmp.lt.s32.totalorder %s25, 3
      %p408 = pnand %p406, %p407
      %p409 = pneg %p408
      // Predicated region
      $region57: #{tpu_custom_call.1} parent=5 // pred_check
        _
      $region58: #{tpu_custom_call.1} parent=5 // pred_check_branch
        %411 = sbr.rel (%p408) target = $region60
      $region59: #{tpu_custom_call.1} parent=5 // pred_region
        %s412 = ssub.s32 %s25, 1
        %s413 = sand.u32 %s38, 1
        %s414 = scalar_lea.sflag [#allocation4], %s413
        %s415 = sand.u32 %s38, 1
        %s416 = smul.addr %s415, 64
        %s417 = scalar_lea.vmem [#allocation3], %s416
        // Predicated region
        $region61: #{tpu_custom_call.1} parent=59 // pred_check
          %p418 = pneg %p51
        $region62: #{tpu_custom_call.1} parent=59 // pred_check_branch
          %420 = sbr.rel (%p418) target = $region64
        $region63: #{tpu_custom_call.1} parent=59 // pred_region
          %421 = dma.done %s414, 1024
        $region64: #{tpu_custom_call.1} parent=59 // pred_fallthru
          _
        // Predicated region
        $region65: #{tpu_custom_call.1} parent=59 // pred_check
          %p422 = pneg %p72
        $region66: #{tpu_custom_call.1} parent=59 // pred_check_branch
          %424 = sbr.rel (%p422) target = $region68
        $region67: #{tpu_custom_call.1} parent=59 // pred_region
          %425 = dma.done [#allocation7], 192
        $region68: #{tpu_custom_call.1} parent=59 // pred_fallthru
          _
        // Predicated region
        $region69: #{tpu_custom_call.1} parent=59 // pred_check
          %p426 = pneg %p93
        $region70: #{tpu_custom_call.1} parent=59 // pred_check_branch
          %428 = sbr.rel (%p426) target = $region72
        $region71: #{tpu_custom_call.1} parent=59 // pred_region
          %429 = dma.done [#allocation7], 3072
        $region72: #{tpu_custom_call.1} parent=59 // pred_fallthru
          _
        // Predicated region
        $region73: #{tpu_custom_call.1} parent=59 // pred_check
          %p430 = pneg %p135
        $region74: #{tpu_custom_call.1} parent=59 // pred_check_branch
          %432 = sbr.rel (%p430) target = $region76
        $region75: #{tpu_custom_call.1} parent=59 // pred_region
          %433 = dma.done [#allocation10], 1024
        $region76: #{tpu_custom_call.1} parent=59 // pred_fallthru
          _
        // Predicated region
        $region77: #{tpu_custom_call.1} parent=59 // pred_check
          %p434 = pneg %p177
        $region78: #{tpu_custom_call.1} parent=59 // pred_check_branch
          %436 = sbr.rel (%p434) target = $region80
        $region79: #{tpu_custom_call.1} parent=59 // pred_region
          %437 = dma.done [#allocation10], 4096
        $region80: #{tpu_custom_call.1} parent=59 // pred_fallthru
          _
        // Predicated region
        $region81: #{tpu_custom_call.1} parent=59 // pred_check
          %p438 = pneg %p219
        $region82: #{tpu_custom_call.1} parent=59 // pred_check_branch
          %440 = sbr.rel (%p438) target = $region84
        $region83: #{tpu_custom_call.1} parent=59 // pred_region
          %441 = dma.done [#allocation13], 4096
        $region84: #{tpu_custom_call.1} parent=59 // pred_fallthru
          _
        %s442 = sand.u32 %s38, 1
        %s443 = scalar_lea.sflag [#allocation4], %s442
        %s444 = sand.u32 %s38, 1
        %s445 = smul.addr %s444, 64
        %s446 = scalar_lea.vmem [#allocation3], %s445
        %p447 = pneg %p51
        %p448 = pneg %p48
        %p449 = pneg %p72
        %p450 = pneg %p69
        %p451 = pneg %p93
        %p452 = pneg %p90
        %p453 = pneg %p114
        %p454 = pneg %p111
        %p455 = pneg %p135
        %p456 = pneg %p132
        %p457 = pneg %p156
        %p458 = pneg %p153
        %p459 = pneg %p177
        %p460 = pneg %p174
        %p461 = pneg %p198
        %p462 = pneg %p195
        %p463 = pneg %p219
        %p464 = pneg %p216
        %p465 = pneg %p240
        %p466 = pneg %p237
        %p467 = pneg %p266
        %p468 = pneg %p263
        %s469 = sand.u32 %s253, 1
        %s470 = scalar_lea.sflag [#allocation5], %s469
        %s471 = sand.u32 %s253, 1
        %s472 = smul.addr %s471, 64
        %s473 = scalar_lea.vmem [#allocation14], %s472
        %s474 = smul.u32 4, %s30
        %s475 = smul.u32 4, %s30
        %v477 = vld [vmem:[#allocation6] sm:$0xff]
        %v478 = vld [vmem:[#allocation6 + $0x8] sm:$0xf]
        %v481 = vunpack.c.l.s4 1966171168
        %v482 = vunpack.c.0.s8 %v481
        %v483 = vlaneseq
        %v484 = vshrl.u32 %v483, 7
        %v485 = vsub.s32 %v482, %v484
        %v486 = vrot.slane %v477, %v485
        %v487 = vcombine.high %v486, %v486
        %v488 = vrot.slane %v486, 1
        %v489 = vrot.slane %v487, 1
        %v492 = vrot.slane %v486, 2
        %v493 = vrot.slane %v487, 2
        %v494 = vrot.slane %v486, 3
        %v495 = vrot.slane %v487, 3
        %v498 = vunpack.c.l.s4 1966171168
        %v499 = vunpack.c.0.s8 %v498
        %v500 = vlaneseq
        %v501 = vshrl.u32 %v500, 7
        %v502 = vsub.s32 %v499, %v501
        %v503 = vrot.slane %v478, %v502
        %v504 = vcombine.high %v503, %v503
        %v507 = vrot.slane %v503, 1
        %v508 = vrot.slane %v504, 1
        %v509 = vld [vmem:[%s417] sm:$0xff]
        %v510 = vld [vmem:[%s417 + $0x8] sm:$0xff]
        %v511 = vld [vmem:[%s417 + $0x10] sm:$0xff]
        %v512 = vld [vmem:[%s417 + $0x18] sm:$0xff]
        %v513 = vld [vmem:[%s417 + $0x20] sm:$0xff]
        %v514 = vld [vmem:[%s417 + $0x28] sm:$0xff]
        %v515 = vld [vmem:[%s417 + $0x30] sm:$0xff]
        %v516 = vld [vmem:[%s417 + $0x38] sm:$0xff]
        %517 = vadd.xlane.f32.xlu0 %v509
        %v518 = vpop.xlane.xlu0 %517
        %519 = vadd.xlane.f32.xlu0 %v510
        %v520 = vpop.xlane.xlu0 %519
        %521 = vadd.xlane.f32.xlu0 %v511
        %v522 = vpop.xlane.xlu0 %521
        %523 = vadd.xlane.f32.xlu0 %v512
        %v524 = vpop.xlane.xlu0 %523
        %525 = vadd.xlane.f32.xlu0 %v513
        %v526 = vpop.xlane.xlu0 %525
        %527 = vadd.xlane.f32.xlu0 %v514
        %v528 = vpop.xlane.xlu0 %527
        %529 = vadd.xlane.f32.xlu0 %v515
        %v530 = vpop.xlane.xlu0 %529
        %531 = vadd.xlane.f32.xlu0 %v516
        %v532 = vpop.xlane.xlu0 %531
        %v533 = vrcp.pop 128.0
        %v534 = vmul.f32 %v518, %v533
        %v535 = vmul.f32 %v520, %v533
        %v536 = vmul.f32 %v522, %v533
        %v537 = vmul.f32 %v524, %v533
        %v538 = vmul.f32 %v526, %v533
        %v539 = vmul.f32 %v528, %v533
        %v540 = vmul.f32 %v530, %v533
        %v541 = vmul.f32 %v532, %v533
        %v542 = vsub.f32 %v509, %v534
        %v543 = vsub.f32 %v510, %v535
        %v544 = vsub.f32 %v511, %v536
        %v545 = vsub.f32 %v512, %v537
        %v546 = vsub.f32 %v513, %v538
        %v547 = vsub.f32 %v514, %v539
        %v548 = vsub.f32 %v515, %v540
        %v549 = vsub.f32 %v516, %v541
        %v550 = vmul.f32 %v542, %v542
        %v551 = vmul.f32 %v543, %v543
        %v552 = vmul.f32 %v544, %v544
        %v553 = vmul.f32 %v545, %v545
        %v554 = vmul.f32 %v546, %v546
        %v555 = vmul.f32 %v547, %v547
        %v556 = vmul.f32 %v548, %v548
        %v557 = vmul.f32 %v549, %v549
        %558 = vadd.xlane.f32.xlu0 %v550
        %v559 = vpop.xlane.xlu0 %558
        %560 = vadd.xlane.f32.xlu0 %v551
        %v561 = vpop.xlane.xlu0 %560
        %562 = vadd.xlane.f32.xlu0 %v552
        %v563 = vpop.xlane.xlu0 %562
        %564 = vadd.xlane.f32.xlu0 %v553
        %v565 = vpop.xlane.xlu0 %564
        %566 = vadd.xlane.f32.xlu0 %v554
        %v567 = vpop.xlane.xlu0 %566
        %568 = vadd.xlane.f32.xlu0 %v555
        %v569 = vpop.xlane.xlu0 %568
        %570 = vadd.xlane.f32.xlu0 %v556
        %v571 = vpop.xlane.xlu0 %570
        %572 = vadd.xlane.f32.xlu0 %v557
        %v573 = vpop.xlane.xlu0 %572
        %v574 = vmul.f32 %v559, %v533
        %v575 = vmul.f32 %v561, %v533
        %v576 = vmul.f32 %v563, %v533
        %v577 = vmul.f32 %v565, %v533
        %v578 = vmul.f32 %v567, %v533
        %v579 = vmul.f32 %v569, %v533
        %v580 = vmul.f32 %v571, %v533
        %v581 = vmul.f32 %v573, %v533
        %v582 = vadd.f32 %v574, 1e-06
        %v583 = vadd.f32 %v575, 1e-06
        %v584 = vadd.f32 %v576, 1e-06
        %v585 = vadd.f32 %v577, 1e-06
        %v586 = vadd.f32 %v578, 1e-06
        %v587 = vadd.f32 %v579, 1e-06
        %v588 = vadd.f32 %v580, 1e-06
        %v589 = vadd.f32 %v581, 1e-06
        %v590 = vrsqrt.pop %v582
        %v591 = vrsqrt.pop %v583
        %v592 = vrsqrt.pop %v584
        %v593 = vrsqrt.pop %v585
        %v594 = vrsqrt.pop %v586
        %v595 = vrsqrt.pop %v587
        %v596 = vrsqrt.pop %v588
        %v597 = vrsqrt.pop %v589
        %v598 = vmul.f32 %v542, %v590
        %v599 = vmul.f32 %v543, %v591
        %v600 = vmul.f32 %v544, %v592
        %v601 = vmul.f32 %v545, %v593
        %v602 = vmul.f32 %v546, %v594
        %v603 = vmul.f32 %v547, %v595
        %v604 = vmul.f32 %v548, %v596
        %v605 = vmul.f32 %v549, %v597
        %v606 = vadd.f32 %v488, 1.0
        %v607 = vadd.f32 %v489, 1.0
        %v610 = vlaneseq
        %v611 = vshrl.u32 %v610, 7
        %v612 = vsub.s32 0, %v611
        %v613 = vrot.slane %v606, %v612
        %v614 = vlaneseq
        %v615 = vshrl.u32 %v614, 7
        %v616 = vsub.s32 0, %v615
        %v617 = vrot.slane %v607, %v616
        %v620 = vmul.f32 %v598, %v613
        %v621 = vmul.f32 %v599, %v613
        %v622 = vmul.f32 %v600, %v613
        %v623 = vmul.f32 %v601, %v613
        %v624 = vmul.f32 %v602, %v617
        %v625 = vmul.f32 %v603, %v617
        %v626 = vmul.f32 %v604, %v617
        %v627 = vmul.f32 %v605, %v617
        %v628 = vlaneseq
        %v629 = vshrl.u32 %v628, 7
        %v630 = vsub.s32 0, %v629
        %v631 = vrot.slane %v486, %v630
        %v632 = vlaneseq
        %v633 = vshrl.u32 %v632, 7
        %v634 = vsub.s32 0, %v633
        %v635 = vrot.slane %v487, %v634
        %v638 = vadd.f32 %v620, %v631
        %v639 = vadd.f32 %v621, %v631
        %v640 = vadd.f32 %v622, %v631
        %v641 = vadd.f32 %v623, %v631
        %v642 = vadd.f32 %v624, %v635
        %v643 = vadd.f32 %v625, %v635
        %v644 = vadd.f32 %v626, %v635
        %v645 = vadd.f32 %v627, %v635
        %v646 = vpack.c.bf16 %v639, %v638
        %v647 = vpack.c.bf16 %v641, %v640
        %v648 = vpack.c.bf16 %v643, %v642
        %v649 = vpack.c.bf16 %v645, %v644
        %v650 = vld [vmem:[#allocation8] sm:$0xff]
        %v651 = vld [vmem:[#allocation8 + $0x8] sm:$0xf]
        %v652 = vld [vmem:[#allocation8 + $0xc] sm:$0xff]
        %v653 = vld [vmem:[#allocation8 + $0x14] sm:$0xf]
        %v654 = vld [vmem:[#allocation8 + $0x18] sm:$0xff]
        %v655 = vld [vmem:[#allocation8 + $0x20] sm:$0xf]
        %v656 = vld [vmem:[#allocation8 + $0x24] sm:$0xff]
        %v657 = vld [vmem:[#allocation8 + $0x2c] sm:$0xf]
        %v658 = vld [vmem:[#allocation8 + $0x30] sm:$0xff]
        %v659 = vld [vmem:[#allocation8 + $0x38] sm:$0xf]
        %v660 = vld [vmem:[#allocation8 + $0x3c] sm:$0xff]
        %v661 = vld [vmem:[#allocation8 + $0x44] sm:$0xf]
        %v662 = vld [vmem:[#allocation8 + $0x48] sm:$0xff]
        %v663 = vld [vmem:[#allocation8 + $0x50] sm:$0xf]
        %v664 = vld [vmem:[#allocation8 + $0x54] sm:$0xff]
        %v665 = vld [vmem:[#allocation8 + $0x5c] sm:$0xf]
        %v666 = vld [vmem:[#allocation8 + $0x60] sm:$0xff]
        %v667 = vld [vmem:[#allocation8 + $0x68] sm:$0xf]
        %v668 = vld [vmem:[#allocation8 + $0x6c] sm:$0xff]
        %v669 = vld [vmem:[#allocation8 + $0x74] sm:$0xf]
        %v670 = vld [vmem:[#allocation8 + $0x78] sm:$0xff]
        %v671 = vld [vmem:[#allocation8 + $0x80] sm:$0xf]
        %v672 = vld [vmem:[#allocation8 + $0x84] sm:$0xff]
        %v673 = vld [vmem:[#allocation8 + $0x8c] sm:$0xf]
        %v674 = vld [vmem:[#allocation8 + $0x90] sm:$0xff]
        %v675 = vld [vmem:[#allocation8 + $0x98] sm:$0xf]
        %v676 = vld [vmem:[#allocation8 + $0x9c] sm:$0xff]
        %v677 = vld [vmem:[#allocation8 + $0xa4] sm:$0xf]
        %v678 = vld [vmem:[#allocation8 + $0xa8] sm:$0xff]
        %v679 = vld [vmem:[#allocation8 + $0xb0] sm:$0xf]
        %v680 = vld [vmem:[#allocation8 + $0xb4] sm:$0xff]
        %v681 = vld [vmem:[#allocation8 + $0xbc] sm:$0xf]
        %v682 = vld [vmem:[%s3] sm:$0x7]
        %v684 = vlaneseq
        %v685 = vshrl.u32 %v684, 7
        %v686 = vsub.s32 0, %v685
        %v687 = vrot.slane %v682, %v686
        %v688 = vlaneseq
        %v689 = vshrl.u32 %v688, 7
        %v690 = vsub.s32 1, %v689
        %v691 = vrot.slane %v682, %v690
        %v692 = vlaneseq
        %v693 = vshrl.u32 %v692, 7
        %v694 = vsub.s32 2, %v693
        %v695 = vrot.slane %v682, %v694
        %v731 = vunpack.c.l.b16 %v650
        %v732 = vunpack.c.h.b16 %v650
        %v733 = vunpack.c.l.b16 %v651
        %v734 = vunpack.c.l.b16 %v652
        %v735 = vunpack.c.h.b16 %v652
        %v736 = vunpack.c.l.b16 %v653
        %v737 = vunpack.c.l.b16 %v654
        %v738 = vunpack.c.h.b16 %v654
        %v739 = vunpack.c.l.b16 %v655
        %v740 = vunpack.c.l.b16 %v656
        %v741 = vunpack.c.h.b16 %v656
        %v742 = vunpack.c.l.b16 %v657
        %v743 = vunpack.c.l.b16 %v658
        %v744 = vunpack.c.h.b16 %v658
        %v745 = vunpack.c.l.b16 %v659
        %v746 = vunpack.c.l.b16 %v660
        %v747 = vunpack.c.h.b16 %v660
        %v748 = vunpack.c.l.b16 %v661
        %v749 = vunpack.c.l.b16 %v662
        %v750 = vunpack.c.h.b16 %v662
        %v751 = vunpack.c.l.b16 %v663
        %v752 = vunpack.c.l.b16 %v664
        %v753 = vunpack.c.h.b16 %v664
        %v754 = vunpack.c.l.b16 %v665
        %v755 = vunpack.c.l.b16 %v666
        %v756 = vunpack.c.h.b16 %v666
        %v757 = vunpack.c.l.b16 %v667
        %v758 = vunpack.c.l.b16 %v668
        %v759 = vunpack.c.h.b16 %v668
        %v760 = vunpack.c.l.b16 %v669
        %v761 = vunpack.c.l.b16 %v670
        %v762 = vunpack.c.h.b16 %v670
        %v763 = vunpack.c.l.b16 %v671
        %v764 = vunpack.c.l.b16 %v672
        %v765 = vunpack.c.h.b16 %v672
        %v766 = vunpack.c.l.b16 %v673
        %v767 = vunpack.c.l.b16 %v674
        %v768 = vunpack.c.h.b16 %v674
        %v769 = vunpack.c.l.b16 %v675
        %v770 = vunpack.c.l.b16 %v676
        %v771 = vunpack.c.h.b16 %v676
        %v772 = vunpack.c.l.b16 %v677
        %v773 = vunpack.c.l.b16 %v678
        %v774 = vunpack.c.h.b16 %v678
        %v775 = vunpack.c.l.b16 %v679
        %v776 = vunpack.c.l.b16 %v680
        %v777 = vunpack.c.h.b16 %v680
        %v778 = vunpack.c.l.b16 %v681
        %v779 = vpack.c.b16 %v734, %v731
        %v780 = vpack.c.b16 %v735, %v732
        %v781 = vpack.c.b16 %v736, %v733
        %v782 = vpack.c.b16 %v740, %v737
        %v783 = vpack.c.b16 %v741, %v738
        %v784 = vpack.c.b16 %v742, %v739
        %v785 = vpack.c.b16 %v746, %v743
        %v786 = vpack.c.b16 %v747, %v744
        %v787 = vpack.c.b16 %v748, %v745
        %v788 = vpack.c.b16 %v752, %v749
        %v789 = vpack.c.b16 %v753, %v750
        %v790 = vpack.c.b16 %v754, %v751
        %v791 = vpack.c.b16 %v758, %v755
        %v792 = vpack.c.b16 %v759, %v756
        %v793 = vpack.c.b16 %v760, %v757
        %v794 = vpack.c.b16 %v764, %v761
        %v795 = vpack.c.b16 %v765, %v762
        %v796 = vpack.c.b16 %v766, %v763
        %v797 = vpack.c.b16 %v770, %v767
        %v798 = vpack.c.b16 %v771, %v768
        %v799 = vpack.c.b16 %v772, %v769
        %v800 = vpack.c.b16 %v776, %v773
        %v801 = vpack.c.b16 %v777, %v774
        %v802 = vpack.c.b16 %v778, %v775
        %827 = vmatprep.subr.bf16.mxu0 %v780
        %828 = vmatpush1.bf16.msra.mxu0 %v779
        %829 = vmatprep.subr.bf16.mxu0 %v783
        %830 = vmatpush1.bf16.msra.mxu0 %v782
        %831 = vmatprep.subr.bf16.mxu0 %v786
        %832 = vmatpush1.bf16.msra.mxu0 %v785
        %833 = vmatprep.subr.bf16.mxu0 %v789
        %834 = vmatpush1.bf16.msra.mxu0 %v788
        %835 = vmatprep.subr.bf16.mxu0 %v792
        %836 = vmatpush1.bf16.msra.mxu0 %v791
        %837 = vmatprep.subr.bf16.mxu0 %v795
        %838 = vmatpush1.bf16.msra.mxu0 %v794
        %839 = vmatprep.subr.bf16.mxu0 %v798
        %840 = vmatpush1.bf16.msra.mxu0 %v797
        %841 = vmatprep.subr.bf16.mxu0 %v801
        %842 = vmatpush1.bf16.msra.mxu0 %v800
        %843 = vmatprep.subr.bf16.mxu0 0
        %844 = vmatpush1.bf16.msra.mxu0 0
        %845 = vmatprep.subr.bf16.mxu0 0
        %846 = vmatpush1.bf16.msra.mxu0 0
        %847 = vmatprep.subr.bf16.mxu0 0
        %848 = vmatpush1.bf16.msra.mxu0 0
        %849 = vmatprep.subr.bf16.mxu0 0
        %850 = vmatpush1.bf16.msra.mxu0 0
        %851 = vmatprep.subr.bf16.mxu0 0
        %852 = vmatpush1.bf16.msra.mxu0 0
        %853 = vmatprep.subr.bf16.mxu0 0
        %854 = vmatpush1.bf16.msra.mxu0 0
        %855 = vmatprep.subr.bf16.mxu0 0
        %856 = vmatpush1.bf16.msra.mxu0 0
        %857 = vmatprep.subr.bf16.mxu0 0
        %858 = vmatpush1.bf16.msra.mxu0 0
        %859 = vmatprep.mubr.bf16.mxu0 0
        %860 = vmatmul.mubr.bf16.gmra.mrb[0].mxu0 %v646
        %v861 = vpop.f32.mrb[0].mxu0
        %v862 = vadd.f32 %v687, %v861
        %v863 = vpop.f32.mrb[0].mxu0
        %v864 = vadd.f32 %v691, %v863
        %v865 = vpop.f32.mrb[0].mxu0
        %v866 = vadd.f32 %v687, %v865
        %v867 = vpop.f32.mrb[0].mxu0
        %v868 = vadd.f32 %v691, %v867
        %869 = vmatprep.mubr.bf16.mxu0 0
        %870 = vmatmul.mubr.bf16.gmra.mrb[0].mxu0 %v647
        %v871 = vpop.f32.mrb[0].mxu0
        %v872 = vadd.f32 %v687, %v871
        %v873 = vpop.f32.mrb[0].mxu0
        %v874 = vadd.f32 %v691, %v873
        %v875 = vpop.f32.mrb[0].mxu0
        %v876 = vadd.f32 %v687, %v875
        %v877 = vpop.f32.mrb[0].mxu0
        %v878 = vadd.f32 %v691, %v877
        %879 = vmatprep.mubr.bf16.mxu0 0
        %880 = vmatmul.mubr.bf16.gmra.mrb[0].mxu0 %v648
        %v881 = vpop.f32.mrb[0].mxu0
        %v882 = vadd.f32 %v687, %v881
        %v883 = vpop.f32.mrb[0].mxu0
        %v884 = vadd.f32 %v691, %v883
        %v885 = vpop.f32.mrb[0].mxu0
        %v886 = vadd.f32 %v687, %v885
        %v887 = vpop.f32.mrb[0].mxu0
        %v888 = vadd.f32 %v691, %v887
        %889 = vmatprep.mubr.bf16.mxu0 0
        %890 = vmatmul.mubr.bf16.gmra.mrb[0].mxu0 %v649
        %v891 = vpop.f32.mrb[0].mxu0
        %v892 = vadd.f32 %v687, %v891
        %v893 = vpop.f32.mrb[0].mxu0
        %v894 = vadd.f32 %v691, %v893
        %v895 = vpop.f32.mrb[0].mxu0
        %v896 = vadd.f32 %v687, %v895
        %v897 = vpop.f32.mrb[0].mxu0
        %v898 = vadd.f32 %v691, %v897
        %899 = vdwg.mxu0
        %900 = vmatprep.subr.bf16.mxu0 0
        %901 = vmatpush1.bf16.msra.mxu0 %v781
        %902 = vmatprep.subr.bf16.mxu0 0
        %903 = vmatpush1.bf16.msra.mxu0 %v784
        %904 = vmatprep.subr.bf16.mxu0 0
        %905 = vmatpush1.bf16.msra.mxu0 %v787
        %906 = vmatprep.subr.bf16.mxu0 0
        %907 = vmatpush1.bf16.msra.mxu0 %v790
        %908 = vmatprep.subr.bf16.mxu0 0
        %909 = vmatpush1.bf16.msra.mxu0 %v793
        %910 = vmatprep.subr.bf16.mxu0 0
        %911 = vmatpush1.bf16.msra.mxu0 %v796
        %912 = vmatprep.subr.bf16.mxu0 0
        %913 = vmatpush1.bf16.msra.mxu0 %v799
        %914 = vmatprep.subr.bf16.mxu0 0
        %915 = vmatpush1.bf16.msra.mxu0 %v802
        %916 = vmatprep.subr.bf16.mxu0 0
        %917 = vmatpush1.bf16.msra.mxu0 0
        %918 = vmatprep.subr.bf16.mxu0 0
        %919 = vmatpush1.bf16.msra.mxu0 0
        %920 = vmatprep.subr.bf16.mxu0 0
        %921 = vmatpush1.bf16.msra.mxu0 0
        %922 = vmatprep.subr.bf16.mxu0 0
        %923 = vmatpush1.bf16.msra.mxu0 0
        %924 = vmatprep.subr.bf16.mxu0 0
        %925 = vmatpush1.bf16.msra.mxu0 0
        %926 = vmatprep.subr.bf16.mxu0 0
        %927 = vmatpush1.bf16.msra.mxu0 0
        %928 = vmatprep.subr.bf16.mxu0 0
        %929 = vmatpush1.bf16.msra.mxu0 0
        %930 = vmatprep.subr.bf16.mxu0 0
        %931 = vmatpush1.bf16.msra.mxu0 0
        %932 = vmatprep.mubr.bf16.mxu0 0
        %933 = vmatmul.mubr.bf16.gmra.mrb[0].mxu0 %v646
        %v934 = vpop.f32.mrb[0].mxu0
        %v935 = vadd.f32 %v695, %v934
        %v936 = vpop.f32.mrb[0].mxu0
        %v937 = vpop.f32.mrb[0].mxu0
        %v938 = vadd.f32 %v695, %v937
        %v939 = vpop.f32.mrb[0].mxu0
        %940 = vmatprep.mubr.bf16.mxu0 0
        %941 = vmatmul.mubr.bf16.gmra.mrb[0].mxu0 %v647
        %v942 = vpop.f32.mrb[0].mxu0
        %v943 = vadd.f32 %v695, %v942
        %v944 = vpop.f32.mrb[0].mxu0
        %v945 = vpop.f32.mrb[0].mxu0
        %v946 = vadd.f32 %v695, %v945
        %v947 = vpop.f32.mrb[0].mxu0
        %948 = vmatprep.mubr.bf16.mxu0 0
        %949 = vmatmul.mubr.bf16.gmra.mrb[0].mxu0 %v648
        %v950 = vpop.f32.mrb[0].mxu0
        %v951 = vadd.f32 %v695, %v950
        %v952 = vpop.f32.mrb[0].mxu0
        %v953 = vpop.f32.mrb[0].mxu0
        %v954 = vadd.f32 %v695, %v953
        %v955 = vpop.f32.mrb[0].mxu0
        %956 = vmatprep.mubr.bf16.mxu0 0
        %957 = vmatmul.mubr.bf16.gmra.mrb[0].mxu0 %v649
        %v958 = vpop.f32.mrb[0].mxu0
        %v959 = vadd.f32 %v695, %v958
        %v960 = vpop.f32.mrb[0].mxu0
        %v961 = vpop.f32.mrb[0].mxu0
        %v962 = vadd.f32 %v695, %v961
        %v963 = vpop.f32.mrb[0].mxu0
        %964 = vdwg.mxu0
        %v965 = vlaneseq
        %v966 = vshrl.u32 %v965, 7
        %v967 = vadd.s32 %v966, 8
        %v968 = vadd.s32 %v966, 16
        %v969 = vadd.s32 %v966, 24
        %v970 = vadd.s32 %v966, 32
        %v971 = vadd.s32 %v966, 40
        %v972 = vadd.s32 %v966, 48
        %v973 = vadd.s32 %v966, 56
        %v974 = vadd.s32 %v966, 64
        %v975 = vadd.s32 %v966, 72
        %v976 = vadd.s32 %v966, 80
        %v977 = vadd.s32 %v966, 88
        %v978 = vadd.s32 %v966, 96
        %v979 = vadd.s32 %v966, 104
        %v980 = vadd.s32 %v966, 112
        %v981 = vadd.s32 %v966, 120
        %v982 = vlaneseq
        %v983 = vand.u32 %v982, 127
        %v984 = vmul.u32 %v983, 32
        %vm985 = vcmp.ge.s32.totalorder %v966, %v984
        %vm986 = vcmp.ge.s32.totalorder %v967, %v984
        %vm987 = vcmp.ge.s32.totalorder %v968, %v984
        %vm988 = vcmp.ge.s32.totalorder %v969, %v984
        %vm989 = vcmp.ge.s32.totalorder %v970, %v984
        %vm990 = vcmp.ge.s32.totalorder %v971, %v984
        %vm991 = vcmp.ge.s32.totalorder %v972, %v984
        %vm992 = vcmp.ge.s32.totalorder %v973, %v984
        %vm993 = vcmp.ge.s32.totalorder %v974, %v984
        %vm994 = vcmp.ge.s32.totalorder %v975, %v984
        %vm995 = vcmp.ge.s32.totalorder %v976, %v984
        %vm996 = vcmp.ge.s32.totalorder %v977, %v984
        %vm997 = vcmp.ge.s32.totalorder %v978, %v984
        %vm998 = vcmp.ge.s32.totalorder %v979, %v984
        %vm999 = vcmp.ge.s32.totalorder %v980, %v984
        %vm1000 = vcmp.ge.s32.totalorder %v981, %v984
        %v1001 = vadd.s32 %v983, 1
        %v1002 = vmul.u32 %v1001, 32
        %vm1003 = vcmp.lt.s32.totalorder %v966, %v1002
        %vm1004 = vcmp.lt.s32.totalorder %v967, %v1002
        %vm1005 = vcmp.lt.s32.totalorder %v968, %v1002
        %vm1006 = vcmp.lt.s32.totalorder %v969, %v1002
        %vm1007 = vcmp.lt.s32.totalorder %v970, %v1002
        %vm1008 = vcmp.lt.s32.totalorder %v971, %v1002
        %vm1009 = vcmp.lt.s32.totalorder %v972, %v1002
        %vm1010 = vcmp.lt.s32.totalorder %v973, %v1002
        %vm1011 = vcmp.lt.s32.totalorder %v974, %v1002
        %vm1012 = vcmp.lt.s32.totalorder %v975, %v1002
        %vm1013 = vcmp.lt.s32.totalorder %v976, %v1002
        %vm1014 = vcmp.lt.s32.totalorder %v977, %v1002
        %vm1015 = vcmp.lt.s32.totalorder %v978, %v1002
        %vm1016 = vcmp.lt.s32.totalorder %v979, %v1002
        %vm1017 = vcmp.lt.s32.totalorder %v980, %v1002
        %vm1018 = vcmp.lt.s32.totalorder %v981, %v1002
        %vm1019 = vmand %vm985, %vm1003
        %vm1020 = vmand %vm986, %vm1004
        %vm1021 = vmand %vm987, %vm1005
        %vm1022 = vmand %vm988, %vm1006
        %vm1023 = vmand %vm989, %vm1007
        %vm1024 = vmand %vm990, %vm1008
        %vm1025 = vmand %vm991, %vm1009
        %vm1026 = vmand %vm992, %vm1010
        %vm1027 = vmand %vm993, %vm1011
        %vm1028 = vmand %vm994, %vm1012
        %vm1029 = vmand %vm995, %vm1013
        %vm1030 = vmand %vm996, %vm1014
        %vm1031 = vmand %vm997, %vm1015
        %vm1032 = vmand %vm998, %vm1016
        %vm1033 = vmand %vm999, %vm1017
        %vm1034 = vmand %vm1000, %vm1018
        %v1035 = vsel %vm1019, 1, 0
        %v1036 = vsel %vm1020, 1, 0
        %v1037 = vsel %vm1021, 1, 0
        %v1038 = vsel %vm1022, 1, 0
        %v1039 = vsel %vm1023, 1, 0
        %v1040 = vsel %vm1024, 1, 0
        %v1041 = vsel %vm1025, 1, 0
        %v1042 = vsel %vm1026, 1, 0
        %v1043 = vsel %vm1027, 1, 0
        %v1044 = vsel %vm1028, 1, 0
        %v1045 = vsel %vm1029, 1, 0
        %v1046 = vsel %vm1030, 1, 0
        %v1047 = vsel %vm1031, 1, 0
        %v1048 = vsel %vm1032, 1, 0
        %v1049 = vsel %vm1033, 1, 0
        %v1050 = vsel %vm1034, 1, 0
        %v1051 = vcvt.s32.f32 %v1035
        %v1052 = vcvt.s32.f32 %v1036
        %v1053 = vcvt.s32.f32 %v1037
        %v1054 = vcvt.s32.f32 %v1038
        %v1055 = vcvt.s32.f32 %v1039
        %v1056 = vcvt.s32.f32 %v1040
        %v1057 = vcvt.s32.f32 %v1041
        %v1058 = vcvt.s32.f32 %v1042
        %v1059 = vcvt.s32.f32 %v1043
        %v1060 = vcvt.s32.f32 %v1044
        %v1061 = vcvt.s32.f32 %v1045
        %v1062 = vcvt.s32.f32 %v1046
        %v1063 = vcvt.s32.f32 %v1047
        %v1064 = vcvt.s32.f32 %v1048
        %v1065 = vcvt.s32.f32 %v1049
        %v1066 = vcvt.s32.f32 %v1050
        %v1067 = vpack.c.bf16 %v1052, %v1051
        %v1068 = vpack.c.bf16 %v1054, %v1053
        %v1069 = vpack.c.bf16 %v1056, %v1055
        %v1070 = vpack.c.bf16 %v1058, %v1057
        %v1071 = vpack.c.bf16 %v1060, %v1059
        %v1072 = vpack.c.bf16 %v1062, %v1061
        %v1073 = vpack.c.bf16 %v1064, %v1063
        %v1074 = vpack.c.bf16 %v1066, %v1065
        %v1075 = vmul.u32 %v966, 32
        %vm1076 = vcmp.ge.s32.totalorder %v983, %v1075
        %v1077 = vadd.s32 %v966, 1
        %v1078 = vmul.u32 %v1077, 32
        %vm1079 = vcmp.lt.s32.totalorder %v983, %v1078
        %vm1080 = vmand %vm1076, %vm1079
        %v1081 = vsel %vm1080, 1, 0
        %v1082 = vcvt.s32.f32 %v1081
        %v1083 = vpack.c.bf16 %v1082, %v1082
        %v1084 = vmul.f32 %v862, %v864
        %v1085 = vmul.f32 %v866, %v868
        %v1086 = vmul.f32 %v872, %v874
        %v1087 = vmul.f32 %v876, %v878
        %v1088 = vmul.f32 %v862, %v884
        %v1089 = vmul.f32 %v866, %v888
        %v1090 = vmul.f32 %v872, %v894
        %v1091 = vmul.f32 %v876, %v898
        %v1092 = vpack.c.bf16 %v1085, %v1084
        %v1093 = vpack.c.bf16 %v1087, %v1086
        %v1094 = vpack.c.bf16 %v1089, %v1088
        %v1095 = vpack.c.bf16 %v1091, %v1090
        %1096 = vmatprep.subr.bf16.mxu0 0
        %1097 = vmatpush1.bf16.msra.mxu0 %v1067
        %1098 = vmatprep.subr.bf16.mxu0 0
        %1099 = vmatpush1.bf16.msra.mxu0 %v1068
        %1100 = vmatprep.subr.bf16.mxu0 0
        %1101 = vmatpush1.bf16.msra.mxu0 %v1069
        %1102 = vmatprep.subr.bf16.mxu0 0
        %1103 = vmatpush1.bf16.msra.mxu0 %v1070
        %1104 = vmatprep.subr.bf16.mxu0 0
        %1105 = vmatpush1.bf16.msra.mxu0 %v1071
        %1106 = vmatprep.subr.bf16.mxu0 0
        %1107 = vmatpush1.bf16.msra.mxu0 %v1072
        %1108 = vmatprep.subr.bf16.mxu0 0
        %1109 = vmatpush1.bf16.msra.mxu0 %v1073
        %1110 = vmatprep.subr.bf16.mxu0 0
        %1111 = vmatpush1.bf16.msra.mxu0 %v1074
        %1112 = vmatprep.subr.bf16.mxu0 0
        %1113 = vmatpush1.bf16.msra.mxu0 0
        %1114 = vmatprep.subr.bf16.mxu0 0
        %1115 = vmatpush1.bf16.msra.mxu0 0
        %1116 = vmatprep.subr.bf16.mxu0 0
        %1117 = vmatpush1.bf16.msra.mxu0 0
        %1118 = vmatprep.subr.bf16.mxu0 0
        %1119 = vmatpush1.bf16.msra.mxu0 0
        %1120 = vmatprep.subr.bf16.mxu0 0
        %1121 = vmatpush1.bf16.msra.mxu0 0
        %1122 = vmatprep.subr.bf16.mxu0 0
        %1123 = vmatpush1.bf16.msra.mxu0 0
        %1124 = vmatprep.subr.bf16.mxu0 0
        %1125 = vmatpush1.bf16.msra.mxu0 0
        %1126 = vmatprep.subr.bf16.mxu0 0
        %1127 = vmatpush1.bf16.msra.mxu0 0
        %1128 = vmatprep.mubr.bf16.mxu0 0
        %1129 = vmatmul.mubr.bf16.gmra.mrb[0].mxu0 %v1092
        %v1130 = vpop.f32.mrb[0].mxu0
        %v1131 = vadd.f32 0.0, %v1130
        %v1132 = vpop.f32.mrb[0].mxu0
        %v1133 = vpop.f32.mrb[0].mxu0
        %v1134 = vadd.f32 0.0, %v1133
        %v1135 = vpop.f32.mrb[0].mxu0
        %1136 = vmatprep.mubr.bf16.mxu0 0
        %1137 = vmatmul.mubr.bf16.gmra.mrb[0].mxu0 %v1093
        %v1138 = vpop.f32.mrb[0].mxu0
        %v1139 = vadd.f32 0.0, %v1138
        %v1140 = vpop.f32.mrb[0].mxu0
        %v1141 = vpop.f32.mrb[0].mxu0
        %v1142 = vadd.f32 0.0, %v1141
        %v1143 = vpop.f32.mrb[0].mxu0
        %1144 = vmatprep.mubr.bf16.mxu0 0
        %1145 = vmatmul.mubr.bf16.gmra.mrb[0].mxu0 %v1094
        %v1146 = vpop.f32.mrb[0].mxu0
        %v1147 = vadd.f32 0.0, %v1146
        %v1148 = vpop.f32.mrb[0].mxu0
        %v1149 = vpop.f32.mrb[0].mxu0
        %v1150 = vadd.f32 0.0, %v1149
        %v1151 = vpop.f32.mrb[0].mxu0
        %1152 = vmatprep.mubr.bf16.mxu0 0
        %1153 = vmatmul.mubr.bf16.gmra.mrb[0].mxu0 %v1095
        %v1154 = vpop.f32.mrb[0].mxu0
        %v1155 = vadd.f32 0.0, %v1154
        %v1156 = vpop.f32.mrb[0].mxu0
        %v1157 = vpop.f32.mrb[0].mxu0
        %v1158 = vadd.f32 0.0, %v1157
        %v1159 = vpop.f32.mrb[0].mxu0
        %1160 = vdwg.mxu0
        %v1161 = vmul.f32 %v1131, 0.17677669
        %v1162 = vmul.f32 %v1134, 0.17677669
        %v1163 = vmul.f32 %v1139, 0.17677669
        %v1164 = vmul.f32 %v1142, 0.17677669
        %v1165 = vmul.f32 %v1147, 0.17677669
        %v1166 = vmul.f32 %v1150, 0.17677669
        %v1167 = vmul.f32 %v1155, 0.17677669
        %v1168 = vmul.f32 %v1158, 0.17677669
        %vm1169 = vcmask 31744
        %v1170 = vsel %vm1169, %v1161, -inf
        %v1171 = vsel %vm1169, %v1165, -inf
        %v1172 = vmax.f32 %v1170, %v1171
        %v1173 = vsel %vm1169, %v1162, -inf
        %v1174 = vsel %vm1169, %v1166, -inf
        %v1175 = vmax.f32 %v1173, %v1174
        %v1176 = vsel %vm1169, %v1163, -inf
        %v1177 = vsel %vm1169, %v1167, -inf
        %v1178 = vmax.f32 %v1176, %v1177
        %v1179 = vsel %vm1169, %v1164, -inf
        %v1180 = vsel %vm1169, %v1168, -inf
        %v1181 = vmax.f32 %v1179, %v1180
        %v1182 = vsub.f32 %v1161, %v1172
        %v1183 = vsub.f32 %v1162, %v1175
        %v1184 = vsub.f32 %v1163, %v1178
        %v1185 = vsub.f32 %v1164, %v1181
        %v1186 = vsub.f32 %v1165, %v1172
        %v1187 = vsub.f32 %v1166, %v1175
        %v1188 = vsub.f32 %v1167, %v1178
        %v1189 = vsub.f32 %v1168, %v1181
        %v1190 = vmul.f32 %v1182, 1.442695
        %v1191 = vpow.pop %v1190
        %v1192 = vmul.f32 %v1183, 1.442695
        %v1193 = vpow.pop %v1192
        %v1194 = vmul.f32 %v1184, 1.442695
        %v1195 = vpow.pop %v1194
        %v1196 = vmul.f32 %v1185, 1.442695
        %v1197 = vpow.pop %v1196
        %v1198 = vmul.f32 %v1186, 1.442695
        %v1199 = vpow.pop %v1198
        %v1200 = vmul.f32 %v1187, 1.442695
        %v1201 = vpow.pop %v1200
        %v1202 = vmul.f32 %v1188, 1.442695
        %v1203 = vpow.pop %v1202
        %v1204 = vmul.f32 %v1189, 1.442695
        %v1205 = vpow.pop %v1204
        %v1206 = vsel %vm1169, %v1191, 0.0
        %v1207 = vsel %vm1169, %v1199, 0.0
        %v1208 = vadd.f32 %v1206, %v1207
        %v1209 = vsel %vm1169, %v1193, 0.0
        %v1210 = vsel %vm1169, %v1201, 0.0
        %v1211 = vadd.f32 %v1209, %v1210
        %v1212 = vsel %vm1169, %v1195, 0.0
        %v1213 = vsel %vm1169, %v1203, 0.0
        %v1214 = vadd.f32 %v1212, %v1213
        %v1215 = vsel %vm1169, %v1197, 0.0
        %v1216 = vsel %vm1169, %v1205, 0.0
        %v1217 = vadd.f32 %v1215, %v1216
        %v1218 = vrcp.pop %v1208
        %v1219 = vrcp.pop %v1211
        %v1220 = vrcp.pop %v1214
        %v1221 = vrcp.pop %v1217
        %v1222 = vmul.f32 %v1191, %v1218
        %v1223 = vmul.f32 %v1193, %v1219
        %v1224 = vmul.f32 %v1195, %v1220
        %v1225 = vmul.f32 %v1197, %v1221
        %v1226 = vmul.f32 %v1199, %v1218
        %v1227 = vmul.f32 %v1201, %v1219
        %v1228 = vmul.f32 %v1203, %v1220
        %v1229 = vmul.f32 %v1205, %v1221
        %v1230 = vpack.c.bf16 %v1223, %v1222
        %v1231 = vpack.c.bf16 %v1225, %v1224
        %v1232 = vpack.c.bf16 %v1227, %v1226
        %v1233 = vpack.c.bf16 %v1229, %v1228
        %v1235 = vsel %vm1169, %v1230, 0
        %v1238 = vsel %vm1169, %v1231, 0
        %v1241 = vsel %vm1169, %v1232, 0
        %v1244 = vsel %vm1169, %v1233, 0
        %vm1246 = vcmask 1041408
        %v1248 = vsel %vm1246, %v1083, 0
        %1250 = vmatprep.subr.bf16.mxu0 0
        %1251 = vmatpush1.bf16.msra.mxu0 %v1248
        %1252 = vmatprep.subr.bf16.mxu0 0
        %1253 = vmatpush1.bf16.msra.mxu0 0
        %1254 = vmatprep.subr.bf16.mxu0 0
        %1255 = vmatpush1.bf16.msra.mxu0 0
        %1256 = vmatprep.subr.bf16.mxu0 0
        %1257 = vmatpush1.bf16.msra.mxu0 0
        %1258 = vmatprep.subr.bf16.mxu0 0
        %1259 = vmatpush1.bf16.msra.mxu0 0
        %1260 = vmatprep.subr.bf16.mxu0 0
        %1261 = vmatpush1.bf16.msra.mxu0 0
        %1262 = vmatprep.subr.bf16.mxu0 0
        %1263 = vmatpush1.bf16.msra.mxu0 0
        %1264 = vmatprep.subr.bf16.mxu0 0
        %1265 = vmatpush1.bf16.msra.mxu0 0
        %1266 = vmatprep.subr.bf16.mxu0 0
        %1267 = vmatpush1.bf16.msra.mxu0 0
        %1268 = vmatprep.subr.bf16.mxu0 0
        %1269 = vmatpush1.bf16.msra.mxu0 0
        %1270 = vmatprep.subr.bf16.mxu0 0
        %1271 = vmatpush1.bf16.msra.mxu0 0
        %1272 = vmatprep.subr.bf16.mxu0 0
        %1273 = vmatpush1.bf16.msra.mxu0 0
        %1274 = vmatprep.subr.bf16.mxu0 0
        %1275 = vmatpush1.bf16.msra.mxu0 0
        %1276 = vmatprep.subr.bf16.mxu0 0
        %1277 = vmatpush1.bf16.msra.mxu0 0
        %1278 = vmatprep.subr.bf16.mxu0 0
        %1279 = vmatpush1.bf16.msra.mxu0 0
        %1280 = vmatprep.subr.bf16.mxu0 0
        %1281 = vmatpush1.bf16.msra.mxu0 0
        %1282 = vmatprep.mubr.bf16.mxu0 0
        %1283 = vmatmul.mubr.bf16.gmra.mrb[0].mxu0 %v1235
        %v1284 = vpop.f32.mrb[0].mxu0
        %v1285 = vadd.f32 0.0, %v1284
        %v1286 = vpop.f32.mrb[0].mxu0
        %v1287 = vpop.f32.mrb[0].mxu0
        %v1288 = vadd.f32 0.0, %v1287
        %v1289 = vpop.f32.mrb[0].mxu0
        %1290 = vmatprep.mubr.bf16.mxu0 0
        %1291 = vmatmul.mubr.bf16.gmra.mrb[0].mxu0 %v1238
        %v1292 = vpop.f32.mrb[0].mxu0
        %v1293 = vadd.f32 0.0, %v1292
        %v1294 = vpop.f32.mrb[0].mxu0
        %v1295 = vpop.f32.mrb[0].mxu0
        %v1296 = vadd.f32 0.0, %v1295
        %v1297 = vpop.f32.mrb[0].mxu0
        %1298 = vmatprep.mubr.bf16.mxu0 0
        %1299 = vmatmul.mubr.bf16.gmra.mrb[0].mxu0 %v1241
        %v1300 = vpop.f32.mrb[0].mxu0
        %v1301 = vadd.f32 0.0, %v1300
        %v1302 = vpop.f32.mrb[0].mxu0
        %v1303 = vpop.f32.mrb[0].mxu0
        %v1304 = vadd.f32 0.0, %v1303
        %v1305 = vpop.f32.mrb[0].mxu0
        %1306 = vmatprep.mubr.bf16.mxu0 0
        %1307 = vmatmul.mubr.bf16.gmra.mrb[0].mxu0 %v1244
        %v1308 = vpop.f32.mrb[0].mxu0
        %v1309 = vadd.f32 0.0, %v1308
        %v1310 = vpop.f32.mrb[0].mxu0
        %v1311 = vpop.f32.mrb[0].mxu0
        %v1312 = vadd.f32 0.0, %v1311
        %v1313 = vpop.f32.mrb[0].mxu0
        %1314 = vdwg.mxu0
        %v1315 = vmul.f32 %v1285, %v935
        %v1316 = vmul.f32 %v1288, %v938
        %v1317 = vmul.f32 %v1293, %v943
        %v1318 = vmul.f32 %v1296, %v946
        %v1319 = vmul.f32 %v1301, %v951
        %v1320 = vmul.f32 %v1304, %v954
        %v1321 = vmul.f32 %v1309, %v959
        %v1322 = vmul.f32 %v1312, %v962
        %v1323 = vadd.f32 %v1315, %v1319
        %v1324 = vadd.f32 %v1316, %v1320
        %v1325 = vadd.f32 %v1317, %v1321
        %v1326 = vadd.f32 %v1318, %v1322
        %1327 = vst [vmem:[#allocation2] sm:$0xff] %v1323
        %1328 = vst [vmem:[#allocation2 + $0x8] sm:$0xff] %v1324
        %1329 = vst [vmem:[#allocation2 + $0x10] sm:$0xff] %v1325
        %1330 = vst [vmem:[#allocation2 + $0x18] sm:$0xff] %v1326
        %v1331 = vmul.f32 %v882, %v864
        %v1332 = vmul.f32 %v886, %v868
        %v1333 = vmul.f32 %v892, %v874
        %v1334 = vmul.f32 %v896, %v878
        %v1335 = vmul.f32 %v882, %v884
        %v1336 = vmul.f32 %v886, %v888
        %v1337 = vmul.f32 %v892, %v894
        %v1338 = vmul.f32 %v896, %v898
        %v1339 = vpack.c.bf16 %v1332, %v1331
        %v1340 = vpack.c.bf16 %v1334, %v1333
        %v1341 = vpack.c.bf16 %v1336, %v1335
        %v1342 = vpack.c.bf16 %v1338, %v1337
        %1343 = vmatprep.subr.bf16.mxu0 0
        %1344 = vmatpush1.bf16.msra.mxu0 %v1067
        %1345 = vmatprep.subr.bf16.mxu0 0
        %1346 = vmatpush1.bf16.msra.mxu0 %v1068
        %1347 = vmatprep.subr.bf16.mxu0 0
        %1348 = vmatpush1.bf16.msra.mxu0 %v1069
        %1349 = vmatprep.subr.bf16.mxu0 0
        %1350 = vmatpush1.bf16.msra.mxu0 %v1070
        %1351 = vmatprep.subr.bf16.mxu0 0
        %1352 = vmatpush1.bf16.msra.mxu0 %v1071
        %1353 = vmatprep.subr.bf16.mxu0 0
        %1354 = vmatpush1.bf16.msra.mxu0 %v1072
        %1355 = vmatprep.subr.bf16.mxu0 0
        %1356 = vmatpush1.bf16.msra.mxu0 %v1073
        %1357 = vmatprep.subr.bf16.mxu0 0
        %1358 = vmatpush1.bf16.msra.mxu0 %v1074
        %1359 = vmatprep.subr.bf16.mxu0 0
        %1360 = vmatpush1.bf16.msra.mxu0 0
        %1361 = vmatprep.subr.bf16.mxu0 0
        %1362 = vmatpush1.bf16.msra.mxu0 0
        %1363 = vmatprep.subr.bf16.mxu0 0
        %1364 = vmatpush1.bf16.msra.mxu0 0
        %1365 = vmatprep.subr.bf16.mxu0 0
        %1366 = vmatpush1.bf16.msra.mxu0 0
        %1367 = vmatprep.subr.bf16.mxu0 0
        %1368 = vmatpush1.bf16.msra.mxu0 0
        %1369 = vmatprep.subr.bf16.mxu0 0
        %1370 = vmatpush1.bf16.msra.mxu0 0
        %1371 = vmatprep.subr.bf16.mxu0 0
        %1372 = vmatpush1.bf16.msra.mxu0 0
        %1373 = vmatprep.subr.bf16.mxu0 0
        %1374 = vmatpush1.bf16.msra.mxu0 0
        %1375 = vmatprep.mubr.bf16.mxu0 0
        %1376 = vmatmul.mubr.bf16.gmra.mrb[0].mxu0 %v1339
        %v1377 = vpop.f32.mrb[0].mxu0
        %v1378 = vadd.f32 0.0, %v1377
        %v1379 = vpop.f32.mrb[0].mxu0
        %v1380 = vpop.f32.mrb[0].mxu0
        %v1381 = vadd.f32 0.0, %v1380
        %v1382 = vpop.f32.mrb[0].mxu0
        %1383 = vmatprep.mubr.bf16.mxu0 0
        %1384 = vmatmul.mubr.bf16.gmra.mrb[0].mxu0 %v1340
        %v1385 = vpop.f32.mrb[0].mxu0
        %v1386 = vadd.f32 0.0, %v1385
        %v1387 = vpop.f32.mrb[0].mxu0
        %v1388 = vpop.f32.mrb[0].mxu0
        %v1389 = vadd.f32 0.0, %v1388
        %v1390 = vpop.f32.mrb[0].mxu0
        %1391 = vmatprep.mubr.bf16.mxu0 0
        %1392 = vmatmul.mubr.bf16.gmra.mrb[0].mxu0 %v1341
        %v1393 = vpop.f32.mrb[0].mxu0
        %v1394 = vadd.f32 0.0, %v1393
        %v1395 = vpop.f32.mrb[0].mxu0
        %v1396 = vpop.f32.mrb[0].mxu0
        %v1397 = vadd.f32 0.0, %v1396
        %v1398 = vpop.f32.mrb[0].mxu0
        %1399 = vmatprep.mubr.bf16.mxu0 0
        %1400 = vmatmul.mubr.bf16.gmra.mrb[0].mxu0 %v1342
        %v1401 = vpop.f32.mrb[0].mxu0
        %v1402 = vadd.f32 0.0, %v1401
        %v1403 = vpop.f32.mrb[0].mxu0
        %v1404 = vpop.f32.mrb[0].mxu0
        %v1405 = vadd.f32 0.0, %v1404
        %v1406 = vpop.f32.mrb[0].mxu0
        %1407 = vdwg.mxu0
        %v1408 = vmul.f32 %v1378, 0.17677669
        %v1409 = vmul.f32 %v1381, 0.17677669
        %v1410 = vmul.f32 %v1386, 0.17677669
        %v1411 = vmul.f32 %v1389, 0.17677669
        %v1412 = vmul.f32 %v1394, 0.17677669
        %v1413 = vmul.f32 %v1397, 0.17677669
        %v1414 = vmul.f32 %v1402, 0.17677669
        %v1415 = vmul.f32 %v1405, 0.17677669
        %v1416 = vsel %vm1169, %v1408, -inf
        %v1417 = vsel %vm1169, %v1412, -inf
        %v1418 = vmax.f32 %v1416, %v1417
        %v1419 = vsel %vm1169, %v1409, -inf
        %v1420 = vsel %vm1169, %v1413, -inf
        %v1421 = vmax.f32 %v1419, %v1420
        %v1422 = vsel %vm1169, %v1410, -inf
        %v1423 = vsel %vm1169, %v1414, -inf
        %v1424 = vmax.f32 %v1422, %v1423
        %v1425 = vsel %vm1169, %v1411, -inf
        %v1426 = vsel %vm1169, %v1415, -inf
        %v1427 = vmax.f32 %v1425, %v1426
        %v1428 = vsub.f32 %v1408, %v1418
        %v1429 = vsub.f32 %v1409, %v1421
        %v1430 = vsub.f32 %v1410, %v1424
        %v1431 = vsub.f32 %v1411, %v1427
        %v1432 = vsub.f32 %v1412, %v1418
        %v1433 = vsub.f32 %v1413, %v1421
        %v1434 = vsub.f32 %v1414, %v1424
        %v1435 = vsub.f32 %v1415, %v1427
        %v1436 = vmul.f32 %v1428, 1.442695
        %v1437 = vpow.pop %v1436
        %v1438 = vmul.f32 %v1429, 1.442695
        %v1439 = vpow.pop %v1438
        %v1440 = vmul.f32 %v1430, 1.442695
        %v1441 = vpow.pop %v1440
        %v1442 = vmul.f32 %v1431, 1.442695
        %v1443 = vpow.pop %v1442
        %v1444 = vmul.f32 %v1432, 1.442695
        %v1445 = vpow.pop %v1444
        %v1446 = vmul.f32 %v1433, 1.442695
        %v1447 = vpow.pop %v1446
        %v1448 = vmul.f32 %v1434, 1.442695
        %v1449 = vpow.pop %v1448
        %v1450 = vmul.f32 %v1435, 1.442695
        %v1451 = vpow.pop %v1450
        %v1452 = vsel %vm1169, %v1437, 0.0
        %v1453 = vsel %vm1169, %v1445, 0.0
        %v1454 = vadd.f32 %v1452, %v1453
        %v1455 = vsel %vm1169, %v1439, 0.0
        %v1456 = vsel %vm1169, %v1447, 0.0
        %v1457 = vadd.f32 %v1455, %v1456
        %v1458 = vsel %vm1169, %v1441, 0.0
        %v1459 = vsel %vm1169, %v1449, 0.0
        %v1460 = vadd.f32 %v1458, %v1459
        %v1461 = vsel %vm1169, %v1443, 0.0
        %v1462 = vsel %vm1169, %v1451, 0.0
        %v1463 = vadd.f32 %v1461, %v1462
        %v1464 = vrcp.pop %v1454
        %v1465 = vrcp.pop %v1457
        %v1466 = vrcp.pop %v1460
        %v1467 = vrcp.pop %v1463
        %v1468 = vmul.f32 %v1437, %v1464
        %v1469 = vmul.f32 %v1439, %v1465
        %v1470 = vmul.f32 %v1441, %v1466
        %v1471 = vmul.f32 %v1443, %v1467
        %v1472 = vmul.f32 %v1445, %v1464
        %v1473 = vmul.f32 %v1447, %v1465
        %v1474 = vmul.f32 %v1449, %v1466
        %v1475 = vmul.f32 %v1451, %v1467
        %v1476 = vpack.c.bf16 %v1469, %v1468
        %v1477 = vpack.c.bf16 %v1471, %v1470
        %v1478 = vpack.c.bf16 %v1473, %v1472
        %v1479 = vpack.c.bf16 %v1475, %v1474
        %v1481 = vsel %vm1169, %v1476, 0
        %v1484 = vsel %vm1169, %v1477, 0
        %v1487 = vsel %vm1169, %v1478, 0
        %v1490 = vsel %vm1169, %v1479, 0
        %1492 = vmatprep.subr.bf16.mxu0 0
        %1493 = vmatpush1.bf16.msra.mxu0 %v1248
        %1494 = vmatprep.subr.bf16.mxu0 0
        %1495 = vmatpush1.bf16.msra.mxu0 0
        %1496 = vmatprep.subr.bf16.mxu0 0
        %1497 = vmatpush1.bf16.msra.mxu0 0
        %1498 = vmatprep.subr.bf16.mxu0 0
        %1499 = vmatpush1.bf16.msra.mxu0 0
        %1500 = vmatprep.subr.bf16.mxu0 0
        %1501 = vmatpush1.bf16.msra.mxu0 0
        %1502 = vmatprep.subr.bf16.mxu0 0
        %1503 = vmatpush1.bf16.msra.mxu0 0
        %1504 = vmatprep.subr.bf16.mxu0 0
        %1505 = vmatpush1.bf16.msra.mxu0 0
        %1506 = vmatprep.subr.bf16.mxu0 0
        %1507 = vmatpush1.bf16.msra.mxu0 0
        %1508 = vmatprep.subr.bf16.mxu0 0
        %1509 = vmatpush1.bf16.msra.mxu0 0
        %1510 = vmatprep.subr.bf16.mxu0 0
        %1511 = vmatpush1.bf16.msra.mxu0 0
        %1512 = vmatprep.subr.bf16.mxu0 0
        %1513 = vmatpush1.bf16.msra.mxu0 0
        %1514 = vmatprep.subr.bf16.mxu0 0
        %1515 = vmatpush1.bf16.msra.mxu0 0
        %1516 = vmatprep.subr.bf16.mxu0 0
        %1517 = vmatpush1.bf16.msra.mxu0 0
        %1518 = vmatprep.subr.bf16.mxu0 0
        %1519 = vmatpush1.bf16.msra.mxu0 0
        %1520 = vmatprep.subr.bf16.mxu0 0
        %1521 = vmatpush1.bf16.msra.mxu0 0
        %1522 = vmatprep.subr.bf16.mxu0 0
        %1523 = vmatpush1.bf16.msra.mxu0 0
        %1524 = vmatprep.mubr.bf16.mxu0 0
        %1525 = vmatmul.mubr.bf16.gmra.mrb[0].mxu0 %v1481
        %v1526 = vpop.f32.mrb[0].mxu0
        %v1527 = vadd.f32 0.0, %v1526
        %v1528 = vpop.f32.mrb[0].mxu0
        %v1529 = vpop.f32.mrb[0].mxu0
        %v1530 = vadd.f32 0.0, %v1529
        %v1531 = vpop.f32.mrb[0].mxu0
        %1532 = vmatprep.mubr.bf16.mxu0 0
        %1533 = vmatmul.mubr.bf16.gmra.mrb[0].mxu0 %v1484
        %v1534 = vpop.f32.mrb[0].mxu0
        %v1535 = vadd.f32 0.0, %v1534
        %v1536 = vpop.f32.mrb[0].mxu0
        %v1537 = vpop.f32.mrb[0].mxu0
        %v1538 = vadd.f32 0.0, %v1537
        %v1539 = vpop.f32.mrb[0].mxu0
        %1540 = vmatprep.mubr.bf16.mxu0 0
        %1541 = vmatmul.mubr.bf16.gmra.mrb[0].mxu0 %v1487
        %v1542 = vpop.f32.mrb[0].mxu0
        %v1543 = vadd.f32 0.0, %v1542
        %v1544 = vpop.f32.mrb[0].mxu0
        %v1545 = vpop.f32.mrb[0].mxu0
        %v1546 = vadd.f32 0.0, %v1545
        %v1547 = vpop.f32.mrb[0].mxu0
        %1548 = vmatprep.mubr.bf16.mxu0 0
        %1549 = vmatmul.mubr.bf16.gmra.mrb[0].mxu0 %v1490
        %v1550 = vpop.f32.mrb[0].mxu0
        %v1551 = vadd.f32 0.0, %v1550
        %v1552 = vpop.f32.mrb[0].mxu0
        %v1553 = vpop.f32.mrb[0].mxu0
        %v1554 = vadd.f32 0.0, %v1553
        %v1555 = vpop.f32.mrb[0].mxu0
        %1556 = vdwg.mxu0
        %v1557 = vmul.f32 %v1527, %v935
        %v1558 = vmul.f32 %v1530, %v938
        %v1559 = vmul.f32 %v1535, %v943
        %v1560 = vmul.f32 %v1538, %v946
        %v1561 = vmul.f32 %v1543, %v951
        %v1562 = vmul.f32 %v1546, %v954
        %v1563 = vmul.f32 %v1551, %v959
        %v1564 = vmul.f32 %v1554, %v962
        %v1565 = vadd.f32 %v1557, %v1561
        %v1566 = vadd.f32 %v1558, %v1562
        %v1567 = vadd.f32 %v1559, %v1563
        %v1568 = vadd.f32 %v1560, %v1564
        %s1569 = scalar_lea.vmem [#allocation2], 32
        %1570 = vst [vmem:[%s1569] sm:$0xff] %v1565
        %1571 = vst [vmem:[%s1569 + $0x8] sm:$0xff] %v1566
        %1572 = vst [vmem:[%s1569 + $0x10] sm:$0xff] %v1567
        %1573 = vst [vmem:[%s1569 + $0x18] sm:$0xff] %v1568
        %v1574 = vld [vmem:[#allocation2] sm:$0xff]
        %v1575 = vld [vmem:[#allocation2 + $0x8] sm:$0xff]
        %v1576 = vld [vmem:[#allocation2 + $0x10] sm:$0xff]
        %v1577 = vld [vmem:[#allocation2 + $0x18] sm:$0xff]
        %v1578 = vld [vmem:[#allocation2 + $0x20] sm:$0xff]
        %v1579 = vld [vmem:[#allocation2 + $0x28] sm:$0xff]
        %v1580 = vld [vmem:[#allocation2 + $0x30] sm:$0xff]
        %v1581 = vld [vmem:[#allocation2 + $0x38] sm:$0xff]
        %v1582 = vpack.c.bf16 %v1575, %v1574
        %v1583 = vpack.c.bf16 %v1577, %v1576
        %v1584 = vpack.c.bf16 %v1579, %v1578
        %v1585 = vpack.c.bf16 %v1581, %v1580
        %v1586 = vld [vmem:[#allocation9] sm:$0xf]
        %v1587 = vld [vmem:[#allocation9 + $0x4] sm:$0xf]
        %v1588 = vld [vmem:[#allocation9 + $0x8] sm:$0xf]
        %v1589 = vld [vmem:[#allocation9 + $0xc] sm:$0xf]
        %v1590 = vld [vmem:[#allocation9 + $0x10] sm:$0xf]
        %v1591 = vld [vmem:[#allocation9 + $0x14] sm:$0xf]
        %v1592 = vld [vmem:[#allocation9 + $0x18] sm:$0xf]
        %v1593 = vld [vmem:[#allocation9 + $0x1c] sm:$0xf]
        %v1594 = vld [vmem:[#allocation9 + $0x20] sm:$0xf]
        %v1595 = vld [vmem:[#allocation9 + $0x24] sm:$0xf]
        %v1596 = vld [vmem:[#allocation9 + $0x28] sm:$0xf]
        %v1597 = vld [vmem:[#allocation9 + $0x2c] sm:$0xf]
        %v1598 = vld [vmem:[#allocation9 + $0x30] sm:$0xf]
        %v1599 = vld [vmem:[#allocation9 + $0x34] sm:$0xf]
        %v1600 = vld [vmem:[#allocation9 + $0x38] sm:$0xf]
        %v1601 = vld [vmem:[#allocation9 + $0x3c] sm:$0xf]
        %v1602 = vld [vmem:[%s5] sm:$0x1]
        %v1604 = vlaneseq
        %v1605 = vshrl.u32 %v1604, 7
        %v1606 = vsub.s32 0, %v1605
        %v1607 = vrot.slane %v1602, %v1606
        %v1625 = vunpack.c.l.b16 %v1586
        %v1626 = vunpack.c.l.b16 %v1587
        %v1627 = vunpack.c.l.b16 %v1588
        %v1628 = vunpack.c.l.b16 %v1589
        %v1629 = vunpack.c.l.b16 %v1590
        %v1630 = vunpack.c.l.b16 %v1591
        %v1631 = vunpack.c.l.b16 %v1592
        %v1632 = vunpack.c.l.b16 %v1593
        %v1633 = vunpack.c.l.b16 %v1594
        %v1634 = vunpack.c.l.b16 %v1595
        %v1635 = vunpack.c.l.b16 %v1596
        %v1636 = vunpack.c.l.b16 %v1597
        %v1637 = vunpack.c.l.b16 %v1598
        %v1638 = vunpack.c.l.b16 %v1599
        %v1639 = vunpack.c.l.b16 %v1600
        %v1640 = vunpack.c.l.b16 %v1601
        %v1641 = vpack.c.b16 %v1626, %v1625
        %v1642 = vpack.c.b16 %v1628, %v1627
        %v1643 = vpack.c.b16 %v1630, %v1629
        %v1644 = vpack.c.b16 %v1632, %v1631
        %v1645 = vpack.c.b16 %v1634, %v1633
        %v1646 = vpack.c.b16 %v1636, %v1635
        %v1647 = vpack.c.b16 %v1638, %v1637
        %v1648 = vpack.c.b16 %v1640, %v1639
        %1657 = vmatprep.subr.bf16.mxu0 0
        %1658 = vmatpush1.bf16.msra.mxu0 %v1641
        %1659 = vmatprep.subr.bf16.mxu0 0
        %1660 = vmatpush1.bf16.msra.mxu0 %v1642
        %1661 = vmatprep.subr.bf16.mxu0 0
        %1662 = vmatpush1.bf16.msra.mxu0 %v1643
        %1663 = vmatprep.subr.bf16.mxu0 0
        %1664 = vmatpush1.bf16.msra.mxu0 %v1644
        %1665 = vmatprep.subr.bf16.mxu0 0
        %1666 = vmatpush1.bf16.msra.mxu0 %v1645
        %1667 = vmatprep.subr.bf16.mxu0 0
        %1668 = vmatpush1.bf16.msra.mxu0 %v1646
        %1669 = vmatprep.subr.bf16.mxu0 0
        %1670 = vmatpush1.bf16.msra.mxu0 %v1647
        %1671 = vmatprep.subr.bf16.mxu0 0
        %1672 = vmatpush1.bf16.msra.mxu0 %v1648
        %1673 = vmatprep.subr.bf16.mxu0 0
        %1674 = vmatpush1.bf16.msra.mxu0 0
        %1675 = vmatprep.subr.bf16.mxu0 0
        %1676 = vmatpush1.bf16.msra.mxu0 0
        %1677 = vmatprep.subr.bf16.mxu0 0
        %1678 = vmatpush1.bf16.msra.mxu0 0
        %1679 = vmatprep.subr.bf16.mxu0 0
        %1680 = vmatpush1.bf16.msra.mxu0 0
        %1681 = vmatprep.subr.bf16.mxu0 0
        %1682 = vmatpush1.bf16.msra.mxu0 0
        %1683 = vmatprep.subr.bf16.mxu0 0
        %1684 = vmatpush1.bf16.msra.mxu0 0
        %1685 = vmatprep.subr.bf16.mxu0 0
        %1686 = vmatpush1.bf16.msra.mxu0 0
        %1687 = vmatprep.subr.bf16.mxu0 0
        %1688 = vmatpush1.bf16.msra.mxu0 0
        %1689 = vmatprep.mubr.bf16.mxu0 0
        %1690 = vmatmul.mubr.bf16.gmra.mrb[0].mxu0 %v1582
        %v1691 = vpop.f32.mrb[0].mxu0
        %v1692 = vadd.f32 %v1607, %v1691
        %v1693 = vpop.f32.mrb[0].mxu0
        %v1694 = vpop.f32.mrb[0].mxu0
        %v1695 = vadd.f32 %v1607, %v1694
        %v1696 = vpop.f32.mrb[0].mxu0
        %1697 = vmatprep.mubr.bf16.mxu0 0
        %1698 = vmatmul.mubr.bf16.gmra.mrb[0].mxu0 %v1583
        %v1699 = vpop.f32.mrb[0].mxu0
        %v1700 = vadd.f32 %v1607, %v1699
        %v1701 = vpop.f32.mrb[0].mxu0
        %v1702 = vpop.f32.mrb[0].mxu0
        %v1703 = vadd.f32 %v1607, %v1702
        %v1704 = vpop.f32.mrb[0].mxu0
        %1705 = vmatprep.mubr.bf16.mxu0 0
        %1706 = vmatmul.mubr.bf16.gmra.mrb[0].mxu0 %v1584
        %v1707 = vpop.f32.mrb[0].mxu0
        %v1708 = vadd.f32 %v1607, %v1707
        %v1709 = vpop.f32.mrb[0].mxu0
        %v1710 = vpop.f32.mrb[0].mxu0
        %v1711 = vadd.f32 %v1607, %v1710
        %v1712 = vpop.f32.mrb[0].mxu0
        %1713 = vmatprep.mubr.bf16.mxu0 0
        %1714 = vmatmul.mubr.bf16.gmra.mrb[0].mxu0 %v1585
        %v1715 = vpop.f32.mrb[0].mxu0
        %v1716 = vadd.f32 %v1607, %v1715
        %v1717 = vpop.f32.mrb[0].mxu0
        %v1718 = vpop.f32.mrb[0].mxu0
        %v1719 = vadd.f32 %v1607, %v1718
        %v1720 = vpop.f32.mrb[0].mxu0
        %1721 = vdwg.mxu0
        %v1722 = vlaneseq
        %v1723 = vshrl.u32 %v1722, 7
        %v1724 = vsub.s32 0, %v1723
        %v1725 = vrot.slane %v492, %v1724
        %v1726 = vlaneseq
        %v1727 = vshrl.u32 %v1726, 7
        %v1728 = vsub.s32 0, %v1727
        %v1729 = vrot.slane %v493, %v1728
        %v1732 = vmul.f32 %v1725, %v1692
        %v1733 = vmul.f32 %v1725, %v1695
        %v1734 = vmul.f32 %v1725, %v1700
        %v1735 = vmul.f32 %v1725, %v1703
        %v1736 = vmul.f32 %v1729, %v1708
        %v1737 = vmul.f32 %v1729, %v1711
        %v1738 = vmul.f32 %v1729, %v1716
        %v1739 = vmul.f32 %v1729, %v1719
        %v1740 = vadd.f32 %v638, %v1732
        %v1741 = vadd.f32 %v639, %v1733
        %v1742 = vadd.f32 %v640, %v1734
        %v1743 = vadd.f32 %v641, %v1735
        %v1744 = vadd.f32 %v642, %v1736
        %v1745 = vadd.f32 %v643, %v1737
        %v1746 = vadd.f32 %v644, %v1738
        %v1747 = vadd.f32 %v645, %v1739
        %1748 = vadd.xlane.f32.xlu0 %v1740
        %v1749 = vpop.xlane.xlu0 %1748
        %1750 = vadd.xlane.f32.xlu0 %v1741
        %v1751 = vpop.xlane.xlu0 %1750
        %1752 = vadd.xlane.f32.xlu0 %v1742
        %v1753 = vpop.xlane.xlu0 %1752
        %1754 = vadd.xlane.f32.xlu0 %v1743
        %v1755 = vpop.xlane.xlu0 %1754
        %1756 = vadd.xlane.f32.xlu0 %v1744
        %v1757 = vpop.xlane.xlu0 %1756
        %1758 = vadd.xlane.f32.xlu0 %v1745
        %v1759 = vpop.xlane.xlu0 %1758
        %1760 = vadd.xlane.f32.xlu0 %v1746
        %v1761 = vpop.xlane.xlu0 %1760
        %1762 = vadd.xlane.f32.xlu0 %v1747
        %v1763 = vpop.xlane.xlu0 %1762
        %v1764 = vmul.f32 %v1749, %v533
        %v1765 = vmul.f32 %v1751, %v533
        %v1766 = vmul.f32 %v1753, %v533
        %v1767 = vmul.f32 %v1755, %v533
        %v1768 = vmul.f32 %v1757, %v533
        %v1769 = vmul.f32 %v1759, %v533
        %v1770 = vmul.f32 %v1761, %v533
        %v1771 = vmul.f32 %v1763, %v533
        %v1772 = vsub.f32 %v1740, %v1764
        %v1773 = vsub.f32 %v1741, %v1765
        %v1774 = vsub.f32 %v1742, %v1766
        %v1775 = vsub.f32 %v1743, %v1767
        %v1776 = vsub.f32 %v1744, %v1768
        %v1777 = vsub.f32 %v1745, %v1769
        %v1778 = vsub.f32 %v1746, %v1770
        %v1779 = vsub.f32 %v1747, %v1771
        %v1780 = vmul.f32 %v1772, %v1772
        %v1781 = vmul.f32 %v1773, %v1773
        %v1782 = vmul.f32 %v1774, %v1774
        %v1783 = vmul.f32 %v1775, %v1775
        %v1784 = vmul.f32 %v1776, %v1776
        %v1785 = vmul.f32 %v1777, %v1777
        %v1786 = vmul.f32 %v1778, %v1778
        %v1787 = vmul.f32 %v1779, %v1779
        %1788 = vadd.xlane.f32.xlu0 %v1780
        %v1789 = vpop.xlane.xlu0 %1788
        %1790 = vadd.xlane.f32.xlu0 %v1781
        %v1791 = vpop.xlane.xlu0 %1790
        %1792 = vadd.xlane.f32.xlu0 %v1782
        %v1793 = vpop.xlane.xlu0 %1792
        %1794 = vadd.xlane.f32.xlu0 %v1783
        %v1795 = vpop.xlane.xlu0 %1794
        %1796 = vadd.xlane.f32.xlu0 %v1784
        %v1797 = vpop.xlane.xlu0 %1796
        %1798 = vadd.xlane.f32.xlu0 %v1785
        %v1799 = vpop.xlane.xlu0 %1798
        %1800 = vadd.xlane.f32.xlu0 %v1786
        %v1801 = vpop.xlane.xlu0 %1800
        %1802 = vadd.xlane.f32.xlu0 %v1787
        %v1803 = vpop.xlane.xlu0 %1802
        %v1804 = vmul.f32 %v1789, %v533
        %v1805 = vmul.f32 %v1791, %v533
        %v1806 = vmul.f32 %v1793, %v533
        %v1807 = vmul.f32 %v1795, %v533
        %v1808 = vmul.f32 %v1797, %v533
        %v1809 = vmul.f32 %v1799, %v533
        %v1810 = vmul.f32 %v1801, %v533
        %v1811 = vmul.f32 %v1803, %v533
        %v1812 = vadd.f32 %v1804, 1e-06
        %v1813 = vadd.f32 %v1805, 1e-06
        %v1814 = vadd.f32 %v1806, 1e-06
        %v1815 = vadd.f32 %v1807, 1e-06
        %v1816 = vadd.f32 %v1808, 1e-06
        %v1817 = vadd.f32 %v1809, 1e-06
        %v1818 = vadd.f32 %v1810, 1e-06
        %v1819 = vadd.f32 %v1811, 1e-06
        %v1820 = vrsqrt.pop %v1812
        %v1821 = vrsqrt.pop %v1813
        %v1822 = vrsqrt.pop %v1814
        %v1823 = vrsqrt.pop %v1815
        %v1824 = vrsqrt.pop %v1816
        %v1825 = vrsqrt.pop %v1817
        %v1826 = vrsqrt.pop %v1818
        %v1827 = vrsqrt.pop %v1819
        %v1828 = vmul.f32 %v1772, %v1820
        %v1829 = vmul.f32 %v1773, %v1821
        %v1830 = vmul.f32 %v1774, %v1822
        %v1831 = vmul.f32 %v1775, %v1823
        %v1832 = vmul.f32 %v1776, %v1824
        %v1833 = vmul.f32 %v1777, %v1825
        %v1834 = vmul.f32 %v1778, %v1826
        %v1835 = vmul.f32 %v1779, %v1827
        %v1836 = vadd.f32 %v503, 1.0
        %v1837 = vadd.f32 %v504, 1.0
        %v1840 = vlaneseq
        %v1841 = vshrl.u32 %v1840, 7
        %v1842 = vsub.s32 0, %v1841
        %v1843 = vrot.slane %v1836, %v1842
        %v1844 = vlaneseq
        %v1845 = vshrl.u32 %v1844, 7
        %v1846 = vsub.s32 0, %v1845
        %v1847 = vrot.slane %v1837, %v1846
        %v1850 = vmul.f32 %v1828, %v1843
        %v1851 = vmul.f32 %v1829, %v1843
        %v1852 = vmul.f32 %v1830, %v1843
        %v1853 = vmul.f32 %v1831, %v1843
        %v1854 = vmul.f32 %v1832, %v1847
        %v1855 = vmul.f32 %v1833, %v1847
        %v1856 = vmul.f32 %v1834, %v1847
        %v1857 = vmul.f32 %v1835, %v1847
        %v1858 = vlaneseq
        %v1859 = vshrl.u32 %v1858, 7
        %v1860 = vsub.s32 0, %v1859
        %v1861 = vrot.slane %v494, %v1860
        %v1862 = vlaneseq
        %v1863 = vshrl.u32 %v1862, 7
        %v1864 = vsub.s32 0, %v1863
        %v1865 = vrot.slane %v495, %v1864
        %v1868 = vadd.f32 %v1850, %v1861
        %v1869 = vadd.f32 %v1851, %v1861
        %v1870 = vadd.f32 %v1852, %v1861
        %v1871 = vadd.f32 %v1853, %v1861
        %v1872 = vadd.f32 %v1854, %v1865
        %v1873 = vadd.f32 %v1855, %v1865
        %v1874 = vadd.f32 %v1856, %v1865
        %v1875 = vadd.f32 %v1857, %v1865
        %v1876 = vpack.c.bf16 %v1869, %v1868
        %v1877 = vpack.c.bf16 %v1871, %v1870
        %v1878 = vpack.c.bf16 %v1873, %v1872
        %v1879 = vpack.c.bf16 %v1875, %v1874
        %v1880 = vld [vmem:[#allocation11] sm:$0xff]
        %v1881 = vld [vmem:[#allocation11 + $0x10] sm:$0xff]
        %v1882 = vld [vmem:[#allocation11 + $0x20] sm:$0xff]
        %v1883 = vld [vmem:[#allocation11 + $0x30] sm:$0xff]
        %v1884 = vld [vmem:[#allocation11 + $0x40] sm:$0xff]
        %v1885 = vld [vmem:[#allocation11 + $0x50] sm:$0xff]
        %v1886 = vld [vmem:[#allocation11 + $0x60] sm:$0xff]
        %v1887 = vld [vmem:[#allocation11 + $0x70] sm:$0xff]
        %v1888 = vld [vmem:[#allocation11 + $0x80] sm:$0xff]
        %v1889 = vld [vmem:[#allocation11 + $0x90] sm:$0xff]
        %v1890 = vld [vmem:[#allocation11 + $0xa0] sm:$0xff]
        %v1891 = vld [vmem:[#allocation11 + $0xb0] sm:$0xff]
        %v1892 = vld [vmem:[#allocation11 + $0xc0] sm:$0xff]
        %v1893 = vld [vmem:[#allocation11 + $0xd0] sm:$0xff]
        %v1894 = vld [vmem:[#allocation11 + $0xe0] sm:$0xff]
        %v1895 = vld [vmem:[#allocation11 + $0xf0] sm:$0xff]
        %v1896 = vld [vmem:[%s7] sm:$0x3]
        %v1898 = vlaneseq
        %v1899 = vshrl.u32 %v1898, 7
        %v1900 = vsub.s32 0, %v1899
        %v1901 = vrot.slane %v1896, %v1900
        %v1902 = vlaneseq
        %v1903 = vshrl.u32 %v1902, 7
        %v1904 = vsub.s32 1, %v1903
        %v1905 = vrot.slane %v1896, %v1904
        %v1924 = vunpack.c.l.b16 %v1880
        %v1925 = vunpack.c.h.b16 %v1880
        %v1926 = vunpack.c.l.b16 %v1881
        %v1927 = vunpack.c.h.b16 %v1881
        %v1928 = vunpack.c.l.b16 %v1882
        %v1929 = vunpack.c.h.b16 %v1882
        %v1930 = vunpack.c.l.b16 %v1883
        %v1931 = vunpack.c.h.b16 %v1883
        %v1932 = vunpack.c.l.b16 %v1884
        %v1933 = vunpack.c.h.b16 %v1884
        %v1934 = vunpack.c.l.b16 %v1885
        %v1935 = vunpack.c.h.b16 %v1885
        %v1936 = vunpack.c.l.b16 %v1886
        %v1937 = vunpack.c.h.b16 %v1886
        %v1938 = vunpack.c.l.b16 %v1887
        %v1939 = vunpack.c.h.b16 %v1887
        %v1940 = vunpack.c.l.b16 %v1888
        %v1941 = vunpack.c.h.b16 %v1888
        %v1942 = vunpack.c.l.b16 %v1889
        %v1943 = vunpack.c.h.b16 %v1889
        %v1944 = vunpack.c.l.b16 %v1890
        %v1945 = vunpack.c.h.b16 %v1890
        %v1946 = vunpack.c.l.b16 %v1891
        %v1947 = vunpack.c.h.b16 %v1891
        %v1948 = vunpack.c.l.b16 %v1892
        %v1949 = vunpack.c.h.b16 %v1892
        %v1950 = vunpack.c.l.b16 %v1893
        %v1951 = vunpack.c.h.b16 %v1893
        %v1952 = vunpack.c.l.b16 %v1894
        %v1953 = vunpack.c.h.b16 %v1894
        %v1954 = vunpack.c.l.b16 %v1895
        %v1955 = vunpack.c.h.b16 %v1895
        %v1956 = vpack.c.b16 %v1926, %v1924
        %v1957 = vpack.c.b16 %v1927, %v1925
        %v1958 = vpack.c.b16 %v1930, %v1928
        %v1959 = vpack.c.b16 %v1931, %v1929
        %v1960 = vpack.c.b16 %v1934, %v1932
        %v1961 = vpack.c.b16 %v1935, %v1933
        %v1962 = vpack.c.b16 %v1938, %v1936
        %v1963 = vpack.c.b16 %v1939, %v1937
        %v1964 = vpack.c.b16 %v1942, %v1940
        %v1965 = vpack.c.b16 %v1943, %v1941
        %v1966 = vpack.c.b16 %v1946, %v1944
        %v1967 = vpack.c.b16 %v1947, %v1945
        %v1968 = vpack.c.b16 %v1950, %v1948
        %v1969 = vpack.c.b16 %v1951, %v1949
        %v1970 = vpack.c.b16 %v1954, %v1952
        %v1971 = vpack.c.b16 %v1955, %v1953
        %1988 = vmatprep.subr.bf16.mxu0 %v1957
        %1989 = vmatpush1.bf16.msra.mxu0 %v1956
        %1990 = vmatprep.subr.bf16.mxu0 %v1959
        %1991 = vmatpush1.bf16.msra.mxu0 %v1958
        %1992 = vmatprep.subr.bf16.mxu0 %v1961
        %1993 = vmatpush1.bf16.msra.mxu0 %v1960
        %1994 = vmatprep.subr.bf16.mxu0 %v1963
        %1995 = vmatpush1.bf16.msra.mxu0 %v1962
        %1996 = vmatprep.subr.bf16.mxu0 %v1965
        %1997 = vmatpush1.bf16.msra.mxu0 %v1964
        %1998 = vmatprep.subr.bf16.mxu0 %v1967
        %1999 = vmatpush1.bf16.msra.mxu0 %v1966
        %2000 = vmatprep.subr.bf16.mxu0 %v1969
        %2001 = vmatpush1.bf16.msra.mxu0 %v1968
        %2002 = vmatprep.subr.bf16.mxu0 %v1971
        %2003 = vmatpush1.bf16.msra.mxu0 %v1970
        %2004 = vmatprep.subr.bf16.mxu0 0
        %2005 = vmatpush1.bf16.msra.mxu0 0
        %2006 = vmatprep.subr.bf16.mxu0 0
        %2007 = vmatpush1.bf16.msra.mxu0 0
        %2008 = vmatprep.subr.bf16.mxu0 0
        %2009 = vmatpush1.bf16.msra.mxu0 0
        %2010 = vmatprep.subr.bf16.mxu0 0
        %2011 = vmatpush1.bf16.msra.mxu0 0
        %2012 = vmatprep.subr.bf16.mxu0 0
        %2013 = vmatpush1.bf16.msra.mxu0 0
        %2014 = vmatprep.subr.bf16.mxu0 0
        %2015 = vmatpush1.bf16.msra.mxu0 0
        %2016 = vmatprep.subr.bf16.mxu0 0
        %2017 = vmatpush1.bf16.msra.mxu0 0
        %2018 = vmatprep.subr.bf16.mxu0 0
        %2019 = vmatpush1.bf16.msra.mxu0 0
        %2020 = vmatprep.mubr.bf16.mxu0 0
        %2021 = vmatmul.mubr.bf16.gmra.mrb[0].mxu0 %v1876
        %v2022 = vpop.f32.mrb[0].mxu0
        %v2023 = vadd.f32 %v1901, %v2022
        %v2024 = vpop.f32.mrb[0].mxu0
        %v2025 = vadd.f32 %v1905, %v2024
        %v2026 = vpop.f32.mrb[0].mxu0
        %v2027 = vadd.f32 %v1901, %v2026
        %v2028 = vpop.f32.mrb[0].mxu0
        %v2029 = vadd.f32 %v1905, %v2028
        %2030 = vmatprep.mubr.bf16.mxu0 0
        %2031 = vmatmul.mubr.bf16.gmra.mrb[0].mxu0 %v1877
        %v2032 = vpop.f32.mrb[0].mxu0
        %v2033 = vadd.f32 %v1901, %v2032
        %v2034 = vpop.f32.mrb[0].mxu0
        %v2035 = vadd.f32 %v1905, %v2034
        %v2036 = vpop.f32.mrb[0].mxu0
        %v2037 = vadd.f32 %v1901, %v2036
        %v2038 = vpop.f32.mrb[0].mxu0
        %v2039 = vadd.f32 %v1905, %v2038
        %2040 = vmatprep.mubr.bf16.mxu0 0
        %2041 = vmatmul.mubr.bf16.gmra.mrb[0].mxu0 %v1878
        %v2042 = vpop.f32.mrb[0].mxu0
        %v2043 = vadd.f32 %v1901, %v2042
        %v2044 = vpop.f32.mrb[0].mxu0
        %v2045 = vadd.f32 %v1905, %v2044
        %v2046 = vpop.f32.mrb[0].mxu0
        %v2047 = vadd.f32 %v1901, %v2046
        %v2048 = vpop.f32.mrb[0].mxu0
        %v2049 = vadd.f32 %v1905, %v2048
        %2050 = vmatprep.mubr.bf16.mxu0 0
        %2051 = vmatmul.mubr.bf16.gmra.mrb[0].mxu0 %v1879
        %v2052 = vpop.f32.mrb[0].mxu0
        %v2053 = vadd.f32 %v1901, %v2052
        %v2054 = vpop.f32.mrb[0].mxu0
        %v2055 = vadd.f32 %v1905, %v2054
        %v2056 = vpop.f32.mrb[0].mxu0
        %v2057 = vadd.f32 %v1901, %v2056
        %v2058 = vpop.f32.mrb[0].mxu0
        %v2059 = vadd.f32 %v1905, %v2058
        %2060 = vdwg.mxu0
        %v2061 = vmul.f32 %v2023, 0.5
        %v2062 = vmul.f32 %v2025, 0.5
        %v2063 = vmul.f32 %v2027, 0.5
        %v2064 = vmul.f32 %v2029, 0.5
        %v2065 = vmul.f32 %v2033, 0.5
        %v2066 = vmul.f32 %v2035, 0.5
        %v2067 = vmul.f32 %v2037, 0.5
        %v2068 = vmul.f32 %v2039, 0.5
        %v2069 = vmul.f32 %v2043, 0.5
        %v2070 = vmul.f32 %v2045, 0.5
        %v2071 = vmul.f32 %v2047, 0.5
        %v2072 = vmul.f32 %v2049, 0.5
        %v2073 = vmul.f32 %v2053, 0.5
        %v2074 = vmul.f32 %v2055, 0.5
        %v2075 = vmul.f32 %v2057, 0.5
        %v2076 = vmul.f32 %v2059, 0.5
        %v2077 = vmul.f32 %v2023, 0.044715
        %v2078 = vmul.f32 %v2025, 0.044715
        %v2079 = vmul.f32 %v2027, 0.044715
        %v2080 = vmul.f32 %v2029, 0.044715
        %v2081 = vmul.f32 %v2033, 0.044715
        %v2082 = vmul.f32 %v2035, 0.044715
        %v2083 = vmul.f32 %v2037, 0.044715
        %v2084 = vmul.f32 %v2039, 0.044715
        %v2085 = vmul.f32 %v2043, 0.044715
        %v2086 = vmul.f32 %v2045, 0.044715
        %v2087 = vmul.f32 %v2047, 0.044715
        %v2088 = vmul.f32 %v2049, 0.044715
        %v2089 = vmul.f32 %v2053, 0.044715
        %v2090 = vmul.f32 %v2055, 0.044715
        %v2091 = vmul.f32 %v2057, 0.044715
        %v2092 = vmul.f32 %v2059, 0.044715
        %v2093 = vmul.f32 %v2077, %v2023
        %v2094 = vmul.f32 %v2078, %v2025
        %v2095 = vmul.f32 %v2079, %v2027
        %v2096 = vmul.f32 %v2080, %v2029
        %v2097 = vmul.f32 %v2081, %v2033
        %v2098 = vmul.f32 %v2082, %v2035
        %v2099 = vmul.f32 %v2083, %v2037
        %v2100 = vmul.f32 %v2084, %v2039
        %v2101 = vmul.f32 %v2085, %v2043
        %v2102 = vmul.f32 %v2086, %v2045
        %v2103 = vmul.f32 %v2087, %v2047
        %v2104 = vmul.f32 %v2088, %v2049
        %v2105 = vmul.f32 %v2089, %v2053
        %v2106 = vmul.f32 %v2090, %v2055
        %v2107 = vmul.f32 %v2091, %v2057
        %v2108 = vmul.f32 %v2092, %v2059
        %v2109 = vmul.f32 %v2093, %v2023
        %v2110 = vmul.f32 %v2094, %v2025
        %v2111 = vmul.f32 %v2095, %v2027
        %v2112 = vmul.f32 %v2096, %v2029
        %v2113 = vmul.f32 %v2097, %v2033
        %v2114 = vmul.f32 %v2098, %v2035
        %v2115 = vmul.f32 %v2099, %v2037
        %v2116 = vmul.f32 %v2100, %v2039
        %v2117 = vmul.f32 %v2101, %v2043
        %v2118 = vmul.f32 %v2102, %v2045
        %v2119 = vmul.f32 %v2103, %v2047
        %v2120 = vmul.f32 %v2104, %v2049
        %v2121 = vmul.f32 %v2105, %v2053
        %v2122 = vmul.f32 %v2106, %v2055
        %v2123 = vmul.f32 %v2107, %v2057
        %v2124 = vmul.f32 %v2108, %v2059
        %v2125 = vadd.f32 %v2023, %v2109
        %v2126 = vadd.f32 %v2025, %v2110
        %v2127 = vadd.f32 %v2027, %v2111
        %v2128 = vadd.f32 %v2029, %v2112
        %v2129 = vadd.f32 %v2033, %v2113
        %v2130 = vadd.f32 %v2035, %v2114
        %v2131 = vadd.f32 %v2037, %v2115
        %v2132 = vadd.f32 %v2039, %v2116
        %v2133 = vadd.f32 %v2043, %v2117
        %v2134 = vadd.f32 %v2045, %v2118
        %v2135 = vadd.f32 %v2047, %v2119
        %v2136 = vadd.f32 %v2049, %v2120
        %v2137 = vadd.f32 %v2053, %v2121
        %v2138 = vadd.f32 %v2055, %v2122
        %v2139 = vadd.f32 %v2057, %v2123
        %v2140 = vadd.f32 %v2059, %v2124
        %v2141 = vmul.f32 %v2125, 0.7978846
        %v2142 = vmul.f32 %v2126, 0.7978846
        %v2143 = vmul.f32 %v2127, 0.7978846
        %v2144 = vmul.f32 %v2128, 0.7978846
        %v2145 = vmul.f32 %v2129, 0.7978846
        %v2146 = vmul.f32 %v2130, 0.7978846
        %v2147 = vmul.f32 %v2131, 0.7978846
        %v2148 = vmul.f32 %v2132, 0.7978846
        %v2149 = vmul.f32 %v2133, 0.7978846
        %v2150 = vmul.f32 %v2134, 0.7978846
        %v2151 = vmul.f32 %v2135, 0.7978846
        %v2152 = vmul.f32 %v2136, 0.7978846
        %v2153 = vmul.f32 %v2137, 0.7978846
        %v2154 = vmul.f32 %v2138, 0.7978846
        %v2155 = vmul.f32 %v2139, 0.7978846
        %v2156 = vmul.f32 %v2140, 0.7978846
        %v2157 = vtanh.pop %v2141
        %v2158 = vtanh.pop %v2142
        %v2159 = vtanh.pop %v2143
        %v2160 = vtanh.pop %v2144
        %v2161 = vtanh.pop %v2145
        %v2162 = vtanh.pop %v2146
        %v2163 = vtanh.pop %v2147
        %v2164 = vtanh.pop %v2148
        %v2165 = vtanh.pop %v2149
        %v2166 = vtanh.pop %v2150
        %v2167 = vtanh.pop %v2151
        %v2168 = vtanh.pop %v2152
        %v2169 = vtanh.pop %v2153
        %v2170 = vtanh.pop %v2154
        %v2171 = vtanh.pop %v2155
        %v2172 = vtanh.pop %v2156
        %v2173 = vadd.f32 %v2157, 1.0
        %v2174 = vadd.f32 %v2158, 1.0
        %v2175 = vadd.f32 %v2159, 1.0
        %v2176 = vadd.f32 %v2160, 1.0
        %v2177 = vadd.f32 %v2161, 1.0
        %v2178 = vadd.f32 %v2162, 1.0
        %v2179 = vadd.f32 %v2163, 1.0
        %v2180 = vadd.f32 %v2164, 1.0
        %v2181 = vadd.f32 %v2165, 1.0
        %v2182 = vadd.f32 %v2166, 1.0
        %v2183 = vadd.f32 %v2167, 1.0
        %v2184 = vadd.f32 %v2168, 1.0
        %v2185 = vadd.f32 %v2169, 1.0
        %v2186 = vadd.f32 %v2170, 1.0
        %v2187 = vadd.f32 %v2171, 1.0
        %v2188 = vadd.f32 %v2172, 1.0
        %v2189 = vmul.f32 %v2061, %v2173
        %v2190 = vmul.f32 %v2062, %v2174
        %v2191 = vmul.f32 %v2063, %v2175
        %v2192 = vmul.f32 %v2064, %v2176
        %v2193 = vmul.f32 %v2065, %v2177
        %v2194 = vmul.f32 %v2066, %v2178
        %v2195 = vmul.f32 %v2067, %v2179
        %v2196 = vmul.f32 %v2068, %v2180
        %v2197 = vmul.f32 %v2069, %v2181
        %v2198 = vmul.f32 %v2070, %v2182
        %v2199 = vmul.f32 %v2071, %v2183
        %v2200 = vmul.f32 %v2072, %v2184
        %v2201 = vmul.f32 %v2073, %v2185
        %v2202 = vmul.f32 %v2074, %v2186
        %v2203 = vmul.f32 %v2075, %v2187
        %v2204 = vmul.f32 %v2076, %v2188
        %v2205 = vpack.c.bf16 %v2191, %v2189
        %v2206 = vpack.c.bf16 %v2192, %v2190
        %v2207 = vpack.c.bf16 %v2195, %v2193
        %v2208 = vpack.c.bf16 %v2196, %v2194
        %v2209 = vpack.c.bf16 %v2199, %v2197
        %v2210 = vpack.c.bf16 %v2200, %v2198
        %v2211 = vpack.c.bf16 %v2203, %v2201
        %v2212 = vpack.c.bf16 %v2204, %v2202
        %v2213 = vld [vmem:[#allocation12] sm:$0xf]
        %v2214 = vld [vmem:[#allocation12 + $0x4] sm:$0xf]
        %v2215 = vld [vmem:[#allocation12 + $0x8] sm:$0xf]
        %v2216 = vld [vmem:[#allocation12 + $0xc] sm:$0xf]
        %v2217 = vld [vmem:[#allocation12 + $0x10] sm:$0xf]
        %v2218 = vld [vmem:[#allocation12 + $0x14] sm:$0xf]
        %v2219 = vld [vmem:[#allocation12 + $0x18] sm:$0xf]
        %v2220 = vld [vmem:[#allocation12 + $0x1c] sm:$0xf]
        %v2221 = vld [vmem:[#allocation12 + $0x20] sm:$0xf]
        %v2222 = vld [vmem:[#allocation12 + $0x24] sm:$0xf]
        %v2223 = vld [vmem:[#allocation12 + $0x28] sm:$0xf]
        %v2224 = vld [vmem:[#allocation12 + $0x2c] sm:$0xf]
        %v2225 = vld [vmem:[#allocation12 + $0x30] sm:$0xf]
        %v2226 = vld [vmem:[#allocation12 + $0x34] sm:$0xf]
        %v2227 = vld [vmem:[#allocation12 + $0x38] sm:$0xf]
        %v2228 = vld [vmem:[#allocation12 + $0x3c] sm:$0xf]
        %v2229 = vld [vmem:[#allocation12 + $0x40] sm:$0xf]
        %v2230 = vld [vmem:[#allocation12 + $0x44] sm:$0xf]
        %v2231 = vld [vmem:[#allocation12 + $0x48] sm:$0xf]
        %v2232 = vld [vmem:[#allocation12 + $0x4c] sm:$0xf]
        %v2233 = vld [vmem:[#allocation12 + $0x50] sm:$0xf]
        %v2234 = vld [vmem:[#allocation12 + $0x54] sm:$0xf]
        %v2235 = vld [vmem:[#allocation12 + $0x58] sm:$0xf]
        %v2236 = vld [vmem:[#allocation12 + $0x5c] sm:$0xf]
        %v2237 = vld [vmem:[#allocation12 + $0x60] sm:$0xf]
        %v2238 = vld [vmem:[#allocation12 + $0x64] sm:$0xf]
        %v2239 = vld [vmem:[#allocation12 + $0x68] sm:$0xf]
        %v2240 = vld [vmem:[#allocation12 + $0x6c] sm:$0xf]
        %v2241 = vld [vmem:[#allocation12 + $0x70] sm:$0xf]
        %v2242 = vld [vmem:[#allocation12 + $0x74] sm:$0xf]
        %v2243 = vld [vmem:[#allocation12 + $0x78] sm:$0xf]
        %v2244 = vld [vmem:[#allocation12 + $0x7c] sm:$0xf]
        %v2245 = vld [vmem:[#allocation11 + $0x8] sm:$0xff]
        %v2246 = vld [vmem:[#allocation11 + $0x18] sm:$0xff]
        %v2247 = vld [vmem:[#allocation11 + $0x28] sm:$0xff]
        %v2248 = vld [vmem:[#allocation11 + $0x38] sm:$0xff]
        %v2249 = vld [vmem:[#allocation11 + $0x48] sm:$0xff]
        %v2250 = vld [vmem:[#allocation11 + $0x58] sm:$0xff]
        %v2251 = vld [vmem:[#allocation11 + $0x68] sm:$0xff]
        %v2252 = vld [vmem:[#allocation11 + $0x78] sm:$0xff]
        %v2253 = vld [vmem:[#allocation11 + $0x88] sm:$0xff]
        %v2254 = vld [vmem:[#allocation11 + $0x98] sm:$0xff]
        %v2255 = vld [vmem:[#allocation11 + $0xa8] sm:$0xff]
        %v2256 = vld [vmem:[#allocation11 + $0xb8] sm:$0xff]
        %v2257 = vld [vmem:[#allocation11 + $0xc8] sm:$0xff]
        %v2258 = vld [vmem:[#allocation11 + $0xd8] sm:$0xff]
        %v2259 = vld [vmem:[#allocation11 + $0xe8] sm:$0xff]
        %v2260 = vld [vmem:[#allocation11 + $0xf8] sm:$0xff]
        %v2261 = vld [vmem:[%s7 + $0x2] sm:$0x3]
        %v2263 = vlaneseq
        %v2264 = vshrl.u32 %v2263, 7
        %v2265 = vsub.s32 0, %v2264
        %v2266 = vrot.slane %v2261, %v2265
        %v2267 = vlaneseq
        %v2268 = vshrl.u32 %v2267, 7
        %v2269 = vsub.s32 1, %v2268
        %v2270 = vrot.slane %v2261, %v2269
        %v2289 = vunpack.c.l.b16 %v2245
        %v2290 = vunpack.c.h.b16 %v2245
        %v2291 = vunpack.c.l.b16 %v2246
        %v2292 = vunpack.c.h.b16 %v2246
        %v2293 = vunpack.c.l.b16 %v2247
        %v2294 = vunpack.c.h.b16 %v2247
        %v2295 = vunpack.c.l.b16 %v2248
        %v2296 = vunpack.c.h.b16 %v2248
        %v2297 = vunpack.c.l.b16 %v2249
        %v2298 = vunpack.c.h.b16 %v2249
        %v2299 = vunpack.c.l.b16 %v2250
        %v2300 = vunpack.c.h.b16 %v2250
        %v2301 = vunpack.c.l.b16 %v2251
        %v2302 = vunpack.c.h.b16 %v2251
        %v2303 = vunpack.c.l.b16 %v2252
        %v2304 = vunpack.c.h.b16 %v2252
        %v2305 = vunpack.c.l.b16 %v2253
        %v2306 = vunpack.c.h.b16 %v2253
        %v2307 = vunpack.c.l.b16 %v2254
        %v2308 = vunpack.c.h.b16 %v2254
        %v2309 = vunpack.c.l.b16 %v2255
        %v2310 = vunpack.c.h.b16 %v2255
        %v2311 = vunpack.c.l.b16 %v2256
        %v2312 = vunpack.c.h.b16 %v2256
        %v2313 = vunpack.c.l.b16 %v2257
        %v2314 = vunpack.c.h.b16 %v2257
        %v2315 = vunpack.c.l.b16 %v2258
        %v2316 = vunpack.c.h.b16 %v2258
        %v2317 = vunpack.c.l.b16 %v2259
        %v2318 = vunpack.c.h.b16 %v2259
        %v2319 = vunpack.c.l.b16 %v2260
        %v2320 = vunpack.c.h.b16 %v2260
        %v2321 = vpack.c.b16 %v2291, %v2289
        %v2322 = vpack.c.b16 %v2292, %v2290
        %v2323 = vpack.c.b16 %v2295, %v2293
        %v2324 = vpack.c.b16 %v2296, %v2294
        %v2325 = vpack.c.b16 %v2299, %v2297
        %v2326 = vpack.c.b16 %v2300, %v2298
        %v2327 = vpack.c.b16 %v2303, %v2301
        %v2328 = vpack.c.b16 %v2304, %v2302
        %v2329 = vpack.c.b16 %v2307, %v2305
        %v2330 = vpack.c.b16 %v2308, %v2306
        %v2331 = vpack.c.b16 %v2311, %v2309
        %v2332 = vpack.c.b16 %v2312, %v2310
        %v2333 = vpack.c.b16 %v2315, %v2313
        %v2334 = vpack.c.b16 %v2316, %v2314
        %v2335 = vpack.c.b16 %v2319, %v2317
        %v2336 = vpack.c.b16 %v2320, %v2318
        %2353 = vmatprep.subr.bf16.mxu0 %v2322
        %2354 = vmatpush1.bf16.msra.mxu0 %v2321
        %2355 = vmatprep.subr.bf16.mxu0 %v2324
        %2356 = vmatpush1.bf16.msra.mxu0 %v2323
        %2357 = vmatprep.subr.bf16.mxu0 %v2326
        %2358 = vmatpush1.bf16.msra.mxu0 %v2325
        %2359 = vmatprep.subr.bf16.mxu0 %v2328
        %2360 = vmatpush1.bf16.msra.mxu0 %v2327
        %2361 = vmatprep.subr.bf16.mxu0 %v2330
        %2362 = vmatpush1.bf16.msra.mxu0 %v2329
        %2363 = vmatprep.subr.bf16.mxu0 %v2332
        %2364 = vmatpush1.bf16.msra.mxu0 %v2331
        %2365 = vmatprep.subr.bf16.mxu0 %v2334
        %2366 = vmatpush1.bf16.msra.mxu0 %v2333
        %2367 = vmatprep.subr.bf16.mxu0 %v2336
        %2368 = vmatpush1.bf16.msra.mxu0 %v2335
        %2369 = vmatprep.subr.bf16.mxu0 0
        %2370 = vmatpush1.bf16.msra.mxu0 0
        %2371 = vmatprep.subr.bf16.mxu0 0
        %2372 = vmatpush1.bf16.msra.mxu0 0
        %2373 = vmatprep.subr.bf16.mxu0 0
        %2374 = vmatpush1.bf16.msra.mxu0 0
        %2375 = vmatprep.subr.bf16.mxu0 0
        %2376 = vmatpush1.bf16.msra.mxu0 0
        %2377 = vmatprep.subr.bf16.mxu0 0
        %2378 = vmatpush1.bf16.msra.mxu0 0
        %2379 = vmatprep.subr.bf16.mxu0 0
        %2380 = vmatpush1.bf16.msra.mxu0 0
        %2381 = vmatprep.subr.bf16.mxu0 0
        %2382 = vmatpush1.bf16.msra.mxu0 0
        %2383 = vmatprep.subr.bf16.mxu0 0
        %2384 = vmatpush1.bf16.msra.mxu0 0
        %2385 = vmatprep.mubr.bf16.mxu0 0
        %2386 = vmatmul.mubr.bf16.gmra.mrb[0].mxu0 %v1876
        %v2387 = vpop.f32.mrb[0].mxu0
        %v2388 = vadd.f32 %v2266, %v2387
        %v2389 = vpop.f32.mrb[0].mxu0
        %v2390 = vadd.f32 %v2270, %v2389
        %v2391 = vpop.f32.mrb[0].mxu0
        %v2392 = vadd.f32 %v2266, %v2391
        %v2393 = vpop.f32.mrb[0].mxu0
        %v2394 = vadd.f32 %v2270, %v2393
        %2395 = vmatprep.mubr.bf16.mxu0 0
        %2396 = vmatmul.mubr.bf16.gmra.mrb[0].mxu0 %v1877
        %v2397 = vpop.f32.mrb[0].mxu0
        %v2398 = vadd.f32 %v2266, %v2397
        %v2399 = vpop.f32.mrb[0].mxu0
        %v2400 = vadd.f32 %v2270, %v2399
        %v2401 = vpop.f32.mrb[0].mxu0
        %v2402 = vadd.f32 %v2266, %v2401
        %v2403 = vpop.f32.mrb[0].mxu0
        %v2404 = vadd.f32 %v2270, %v2403
        %2405 = vmatprep.mubr.bf16.mxu0 0
        %2406 = vmatmul.mubr.bf16.gmra.mrb[0].mxu0 %v1878
        %v2407 = vpop.f32.mrb[0].mxu0
        %v2408 = vadd.f32 %v2266, %v2407
        %v2409 = vpop.f32.mrb[0].mxu0
        %v2410 = vadd.f32 %v2270, %v2409
        %v2411 = vpop.f32.mrb[0].mxu0
        %v2412 = vadd.f32 %v2266, %v2411
        %v2413 = vpop.f32.mrb[0].mxu0
        %v2414 = vadd.f32 %v2270, %v2413
        %2415 = vmatprep.mubr.bf16.mxu0 0
        %2416 = vmatmul.mubr.bf16.gmra.mrb[0].mxu0 %v1879
        %v2417 = vpop.f32.mrb[0].mxu0
        %v2418 = vadd.f32 %v2266, %v2417
        %v2419 = vpop.f32.mrb[0].mxu0
        %v2420 = vadd.f32 %v2270, %v2419
        %v2421 = vpop.f32.mrb[0].mxu0
        %v2422 = vadd.f32 %v2266, %v2421
        %v2423 = vpop.f32.mrb[0].mxu0
        %v2424 = vadd.f32 %v2270, %v2423
        %2425 = vdwg.mxu0
        %v2426 = vmul.f32 %v2388, 0.5
        %v2427 = vmul.f32 %v2390, 0.5
        %v2428 = vmul.f32 %v2392, 0.5
        %v2429 = vmul.f32 %v2394, 0.5
        %v2430 = vmul.f32 %v2398, 0.5
        %v2431 = vmul.f32 %v2400, 0.5
        %v2432 = vmul.f32 %v2402, 0.5
        %v2433 = vmul.f32 %v2404, 0.5
        %v2434 = vmul.f32 %v2408, 0.5
        %v2435 = vmul.f32 %v2410, 0.5
        %v2436 = vmul.f32 %v2412, 0.5
        %v2437 = vmul.f32 %v2414, 0.5
        %v2438 = vmul.f32 %v2418, 0.5
        %v2439 = vmul.f32 %v2420, 0.5
        %v2440 = vmul.f32 %v2422, 0.5
        %v2441 = vmul.f32 %v2424, 0.5
        %v2442 = vmul.f32 %v2388, 0.044715
        %v2443 = vmul.f32 %v2390, 0.044715
        %v2444 = vmul.f32 %v2392, 0.044715
        %v2445 = vmul.f32 %v2394, 0.044715
        %v2446 = vmul.f32 %v2398, 0.044715
        %v2447 = vmul.f32 %v2400, 0.044715
        %v2448 = vmul.f32 %v2402, 0.044715
        %v2449 = vmul.f32 %v2404, 0.044715
        %v2450 = vmul.f32 %v2408, 0.044715
        %v2451 = vmul.f32 %v2410, 0.044715
        %v2452 = vmul.f32 %v2412, 0.044715
        %v2453 = vmul.f32 %v2414, 0.044715
        %v2454 = vmul.f32 %v2418, 0.044715
        %v2455 = vmul.f32 %v2420, 0.044715
        %v2456 = vmul.f32 %v2422, 0.044715
        %v2457 = vmul.f32 %v2424, 0.044715
        %v2458 = vmul.f32 %v2442, %v2388
        %v2459 = vmul.f32 %v2443, %v2390
        %v2460 = vmul.f32 %v2444, %v2392
        %v2461 = vmul.f32 %v2445, %v2394
        %v2462 = vmul.f32 %v2446, %v2398
        %v2463 = vmul.f32 %v2447, %v2400
        %v2464 = vmul.f32 %v2448, %v2402
        %v2465 = vmul.f32 %v2449, %v2404
        %v2466 = vmul.f32 %v2450, %v2408
        %v2467 = vmul.f32 %v2451, %v2410
        %v2468 = vmul.f32 %v2452, %v2412
        %v2469 = vmul.f32 %v2453, %v2414
        %v2470 = vmul.f32 %v2454, %v2418
        %v2471 = vmul.f32 %v2455, %v2420
        %v2472 = vmul.f32 %v2456, %v2422
        %v2473 = vmul.f32 %v2457, %v2424
        %v2474 = vmul.f32 %v2458, %v2388
        %v2475 = vmul.f32 %v2459, %v2390
        %v2476 = vmul.f32 %v2460, %v2392
        %v2477 = vmul.f32 %v2461, %v2394
        %v2478 = vmul.f32 %v2462, %v2398
        %v2479 = vmul.f32 %v2463, %v2400
        %v2480 = vmul.f32 %v2464, %v2402
        %v2481 = vmul.f32 %v2465, %v2404
        %v2482 = vmul.f32 %v2466, %v2408
        %v2483 = vmul.f32 %v2467, %v2410
        %v2484 = vmul.f32 %v2468, %v2412
        %v2485 = vmul.f32 %v2469, %v2414
        %v2486 = vmul.f32 %v2470, %v2418
        %v2487 = vmul.f32 %v2471, %v2420
        %v2488 = vmul.f32 %v2472, %v2422
        %v2489 = vmul.f32 %v2473, %v2424
        %v2490 = vadd.f32 %v2388, %v2474
        %v2491 = vadd.f32 %v2390, %v2475
        %v2492 = vadd.f32 %v2392, %v2476
        %v2493 = vadd.f32 %v2394, %v2477
        %v2494 = vadd.f32 %v2398, %v2478
        %v2495 = vadd.f32 %v2400, %v2479
        %v2496 = vadd.f32 %v2402, %v2480
        %v2497 = vadd.f32 %v2404, %v2481
        %v2498 = vadd.f32 %v2408, %v2482
        %v2499 = vadd.f32 %v2410, %v2483
        %v2500 = vadd.f32 %v2412, %v2484
        %v2501 = vadd.f32 %v2414, %v2485
        %v2502 = vadd.f32 %v2418, %v2486
        %v2503 = vadd.f32 %v2420, %v2487
        %v2504 = vadd.f32 %v2422, %v2488
        %v2505 = vadd.f32 %v2424, %v2489
        %v2506 = vmul.f32 %v2490, 0.7978846
        %v2507 = vmul.f32 %v2491, 0.7978846
        %v2508 = vmul.f32 %v2492, 0.7978846
        %v2509 = vmul.f32 %v2493, 0.7978846
        %v2510 = vmul.f32 %v2494, 0.7978846
        %v2511 = vmul.f32 %v2495, 0.7978846
        %v2512 = vmul.f32 %v2496, 0.7978846
        %v2513 = vmul.f32 %v2497, 0.7978846
        %v2514 = vmul.f32 %v2498, 0.7978846
        %v2515 = vmul.f32 %v2499, 0.7978846
        %v2516 = vmul.f32 %v2500, 0.7978846
        %v2517 = vmul.f32 %v2501, 0.7978846
        %v2518 = vmul.f32 %v2502, 0.7978846
        %v2519 = vmul.f32 %v2503, 0.7978846
        %v2520 = vmul.f32 %v2504, 0.7978846
        %v2521 = vmul.f32 %v2505, 0.7978846
        %v2522 = vtanh.pop %v2506
        %v2523 = vtanh.pop %v2507
        %v2524 = vtanh.pop %v2508
        %v2525 = vtanh.pop %v2509
        %v2526 = vtanh.pop %v2510
        %v2527 = vtanh.pop %v2511
        %v2528 = vtanh.pop %v2512
        %v2529 = vtanh.pop %v2513
        %v2530 = vtanh.pop %v2514
        %v2531 = vtanh.pop %v2515
        %v2532 = vtanh.pop %v2516
        %v2533 = vtanh.pop %v2517
        %v2534 = vtanh.pop %v2518
        %v2535 = vtanh.pop %v2519
        %v2536 = vtanh.pop %v2520
        %v2537 = vtanh.pop %v2521
        %v2538 = vadd.f32 %v2522, 1.0
        %v2539 = vadd.f32 %v2523, 1.0
        %v2540 = vadd.f32 %v2524, 1.0
        %v2541 = vadd.f32 %v2525, 1.0
        %v2542 = vadd.f32 %v2526, 1.0
        %v2543 = vadd.f32 %v2527, 1.0
        %v2544 = vadd.f32 %v2528, 1.0
        %v2545 = vadd.f32 %v2529, 1.0
        %v2546 = vadd.f32 %v2530, 1.0
        %v2547 = vadd.f32 %v2531, 1.0
        %v2548 = vadd.f32 %v2532, 1.0
        %v2549 = vadd.f32 %v2533, 1.0
        %v2550 = vadd.f32 %v2534, 1.0
        %v2551 = vadd.f32 %v2535, 1.0
        %v2552 = vadd.f32 %v2536, 1.0
        %v2553 = vadd.f32 %v2537, 1.0
        %v2554 = vmul.f32 %v2426, %v2538
        %v2555 = vmul.f32 %v2427, %v2539
        %v2556 = vmul.f32 %v2428, %v2540
        %v2557 = vmul.f32 %v2429, %v2541
        %v2558 = vmul.f32 %v2430, %v2542
        %v2559 = vmul.f32 %v2431, %v2543
        %v2560 = vmul.f32 %v2432, %v2544
        %v2561 = vmul.f32 %v2433, %v2545
        %v2562 = vmul.f32 %v2434, %v2546
        %v2563 = vmul.f32 %v2435, %v2547
        %v2564 = vmul.f32 %v2436, %v2548
        %v2565 = vmul.f32 %v2437, %v2549
        %v2566 = vmul.f32 %v2438, %v2550
        %v2567 = vmul.f32 %v2439, %v2551
        %v2568 = vmul.f32 %v2440, %v2552
        %v2569 = vmul.f32 %v2441, %v2553
        %v2570 = vpack.c.bf16 %v2556, %v2554
        %v2571 = vpack.c.bf16 %v2557, %v2555
        %v2572 = vpack.c.bf16 %v2560, %v2558
        %v2573 = vpack.c.bf16 %v2561, %v2559
        %v2574 = vpack.c.bf16 %v2564, %v2562
        %v2575 = vpack.c.bf16 %v2565, %v2563
        %v2576 = vpack.c.bf16 %v2568, %v2566
        %v2577 = vpack.c.bf16 %v2569, %v2567
        %v2578 = vld [vmem:[#allocation12 + $0x80] sm:$0xf]
        %v2579 = vld [vmem:[#allocation12 + $0x84] sm:$0xf]
        %v2580 = vld [vmem:[#allocation12 + $0x88] sm:$0xf]
        %v2581 = vld [vmem:[#allocation12 + $0x8c] sm:$0xf]
        %v2582 = vld [vmem:[#allocation12 + $0x90] sm:$0xf]
        %v2583 = vld [vmem:[#allocation12 + $0x94] sm:$0xf]
        %v2584 = vld [vmem:[#allocation12 + $0x98] sm:$0xf]
        %v2585 = vld [vmem:[#allocation12 + $0x9c] sm:$0xf]
        %v2586 = vld [vmem:[#allocation12 + $0xa0] sm:$0xf]
        %v2587 = vld [vmem:[#allocation12 + $0xa4] sm:$0xf]
        %v2588 = vld [vmem:[#allocation12 + $0xa8] sm:$0xf]
        %v2589 = vld [vmem:[#allocation12 + $0xac] sm:$0xf]
        %v2590 = vld [vmem:[#allocation12 + $0xb0] sm:$0xf]
        %v2591 = vld [vmem:[#allocation12 + $0xb4] sm:$0xf]
        %v2592 = vld [vmem:[#allocation12 + $0xb8] sm:$0xf]
        %v2593 = vld [vmem:[#allocation12 + $0xbc] sm:$0xf]
        %v2594 = vld [vmem:[#allocation12 + $0xc0] sm:$0xf]
        %v2595 = vld [vmem:[#allocation12 + $0xc4] sm:$0xf]
        %v2596 = vld [vmem:[#allocation12 + $0xc8] sm:$0xf]
        %v2597 = vld [vmem:[#allocation12 + $0xcc] sm:$0xf]
        %v2598 = vld [vmem:[#allocation12 + $0xd0] sm:$0xf]
        %v2599 = vld [vmem:[#allocation12 + $0xd4] sm:$0xf]
        %v2600 = vld [vmem:[#allocation12 + $0xd8] sm:$0xf]
        %v2601 = vld [vmem:[#allocation12 + $0xdc] sm:$0xf]
        %v2602 = vld [vmem:[#allocation12 + $0xe0] sm:$0xf]
        %v2603 = vld [vmem:[#allocation12 + $0xe4] sm:$0xf]
        %v2604 = vld [vmem:[#allocation12 + $0xe8] sm:$0xf]
        %v2605 = vld [vmem:[#allocation12 + $0xec] sm:$0xf]
        %v2606 = vld [vmem:[#allocation12 + $0xf0] sm:$0xf]
        %v2607 = vld [vmem:[#allocation12 + $0xf4] sm:$0xf]
        %v2608 = vld [vmem:[#allocation12 + $0xf8] sm:$0xf]
        %v2609 = vld [vmem:[#allocation12 + $0xfc] sm:$0xf]
        %v2642 = vunpack.c.l.b16 %v2578
        %v2643 = vunpack.c.l.b16 %v2579
        %v2644 = vunpack.c.l.b16 %v2580
        %v2645 = vunpack.c.l.b16 %v2581
        %v2646 = vunpack.c.l.b16 %v2582
        %v2647 = vunpack.c.l.b16 %v2583
        %v2648 = vunpack.c.l.b16 %v2584
        %v2649 = vunpack.c.l.b16 %v2585
        %v2650 = vunpack.c.l.b16 %v2586
        %v2651 = vunpack.c.l.b16 %v2587
        %v2652 = vunpack.c.l.b16 %v2588
        %v2653 = vunpack.c.l.b16 %v2589
        %v2654 = vunpack.c.l.b16 %v2590
        %v2655 = vunpack.c.l.b16 %v2591
        %v2656 = vunpack.c.l.b16 %v2592
        %v2657 = vunpack.c.l.b16 %v2593
        %v2658 = vunpack.c.l.b16 %v2594
        %v2659 = vunpack.c.l.b16 %v2595
        %v2660 = vunpack.c.l.b16 %v2596
        %v2661 = vunpack.c.l.b16 %v2597
        %v2662 = vunpack.c.l.b16 %v2598
        %v2663 = vunpack.c.l.b16 %v2599
        %v2664 = vunpack.c.l.b16 %v2600
        %v2665 = vunpack.c.l.b16 %v2601
        %v2666 = vunpack.c.l.b16 %v2602
        %v2667 = vunpack.c.l.b16 %v2603
        %v2668 = vunpack.c.l.b16 %v2604
        %v2669 = vunpack.c.l.b16 %v2605
        %v2670 = vunpack.c.l.b16 %v2606
        %v2671 = vunpack.c.l.b16 %v2607
        %v2672 = vunpack.c.l.b16 %v2608
        %v2673 = vunpack.c.l.b16 %v2609
        %v2674 = vpack.c.b16 %v2643, %v2642
        %v2675 = vpack.c.b16 %v2645, %v2644
        %v2676 = vpack.c.b16 %v2647, %v2646
        %v2677 = vpack.c.b16 %v2649, %v2648
        %v2678 = vpack.c.b16 %v2651, %v2650
        %v2679 = vpack.c.b16 %v2653, %v2652
        %v2680 = vpack.c.b16 %v2655, %v2654
        %v2681 = vpack.c.b16 %v2657, %v2656
        %v2682 = vpack.c.b16 %v2659, %v2658
        %v2683 = vpack.c.b16 %v2661, %v2660
        %v2684 = vpack.c.b16 %v2663, %v2662
        %v2685 = vpack.c.b16 %v2665, %v2664
        %v2686 = vpack.c.b16 %v2667, %v2666
        %v2687 = vpack.c.b16 %v2669, %v2668
        %v2688 = vpack.c.b16 %v2671, %v2670
        %v2689 = vpack.c.b16 %v2673, %v2672
        %2706 = vmatprep.subr.bf16.mxu0 0
        %2707 = vmatpush1.bf16.msra.mxu0 %v2674
        %2708 = vmatprep.subr.bf16.mxu0 0
        %2709 = vmatpush1.bf16.msra.mxu0 %v2675
        %2710 = vmatprep.subr.bf16.mxu0 0
        %2711 = vmatpush1.bf16.msra.mxu0 %v2676
        %2712 = vmatprep.subr.bf16.mxu0 0
        %2713 = vmatpush1.bf16.msra.mxu0 %v2677
        %2714 = vmatprep.subr.bf16.mxu0 0
        %2715 = vmatpush1.bf16.msra.mxu0 %v2678
        %2716 = vmatprep.subr.bf16.mxu0 0
        %2717 = vmatpush1.bf16.msra.mxu0 %v2679
        %2718 = vmatprep.subr.bf16.mxu0 0
        %2719 = vmatpush1.bf16.msra.mxu0 %v2680
        %2720 = vmatprep.subr.bf16.mxu0 0
        %2721 = vmatpush1.bf16.msra.mxu0 %v2681
        %2722 = vmatprep.subr.bf16.mxu0 0
        %2723 = vmatpush1.bf16.msra.mxu0 %v2682
        %2724 = vmatprep.subr.bf16.mxu0 0
        %2725 = vmatpush1.bf16.msra.mxu0 %v2683
        %2726 = vmatprep.subr.bf16.mxu0 0
        %2727 = vmatpush1.bf16.msra.mxu0 %v2684
        %2728 = vmatprep.subr.bf16.mxu0 0
        %2729 = vmatpush1.bf16.msra.mxu0 %v2685
        %2730 = vmatprep.subr.bf16.mxu0 0
        %2731 = vmatpush1.bf16.msra.mxu0 %v2686
        %2732 = vmatprep.subr.bf16.mxu0 0
        %2733 = vmatpush1.bf16.msra.mxu0 %v2687
        %2734 = vmatprep.subr.bf16.mxu0 0
        %2735 = vmatpush1.bf16.msra.mxu0 %v2688
        %2736 = vmatprep.subr.bf16.mxu0 0
        %2737 = vmatpush1.bf16.msra.mxu0 %v2689
        %2738 = vmatprep.mubr.bf16.mxu0 %v2571
        %2739 = vmatmul.mubr.bf16.gmra.mrb[0].mxu0 %v2570
        %v2740 = vpop.f32.mrb[0].mxu0
        %v2741 = vadd.f32 0.0, %v2740
        %v2742 = vpop.f32.mrb[0].mxu0
        %v2743 = vpop.f32.mrb[0].mxu0
        %v2744 = vadd.f32 0.0, %v2743
        %v2745 = vpop.f32.mrb[0].mxu0
        %2746 = vmatprep.mubr.bf16.mxu0 %v2573
        %2747 = vmatmul.mubr.bf16.gmra.mrb[0].mxu0 %v2572
        %v2748 = vpop.f32.mrb[0].mxu0
        %v2749 = vadd.f32 0.0, %v2748
        %v2750 = vpop.f32.mrb[0].mxu0
        %v2751 = vpop.f32.mrb[0].mxu0
        %v2752 = vadd.f32 0.0, %v2751
        %v2753 = vpop.f32.mrb[0].mxu0
        %2754 = vmatprep.mubr.bf16.mxu0 %v2575
        %2755 = vmatmul.mubr.bf16.gmra.mrb[0].mxu0 %v2574
        %v2756 = vpop.f32.mrb[0].mxu0
        %v2757 = vadd.f32 0.0, %v2756
        %v2758 = vpop.f32.mrb[0].mxu0
        %v2759 = vpop.f32.mrb[0].mxu0
        %v2760 = vadd.f32 0.0, %v2759
        %v2761 = vpop.f32.mrb[0].mxu0
        %2762 = vmatprep.mubr.bf16.mxu0 %v2577
        %2763 = vmatmul.mubr.bf16.gmra.mrb[0].mxu0 %v2576
        %v2764 = vpop.f32.mrb[0].mxu0
        %v2765 = vadd.f32 0.0, %v2764
        %v2766 = vpop.f32.mrb[0].mxu0
        %v2767 = vpop.f32.mrb[0].mxu0
        %v2768 = vadd.f32 0.0, %v2767
        %v2769 = vpop.f32.mrb[0].mxu0
        %2770 = vdwg.mxu0
        %v2803 = vunpack.c.l.b16 %v2213
        %v2804 = vunpack.c.l.b16 %v2214
        %v2805 = vunpack.c.l.b16 %v2215
        %v2806 = vunpack.c.l.b16 %v2216
        %v2807 = vunpack.c.l.b16 %v2217
        %v2808 = vunpack.c.l.b16 %v2218
        %v2809 = vunpack.c.l.b16 %v2219
        %v2810 = vunpack.c.l.b16 %v2220
        %v2811 = vunpack.c.l.b16 %v2221
        %v2812 = vunpack.c.l.b16 %v2222
        %v2813 = vunpack.c.l.b16 %v2223
        %v2814 = vunpack.c.l.b16 %v2224
        %v2815 = vunpack.c.l.b16 %v2225
        %v2816 = vunpack.c.l.b16 %v2226
        %v2817 = vunpack.c.l.b16 %v2227
        %v2818 = vunpack.c.l.b16 %v2228
        %v2819 = vunpack.c.l.b16 %v2229
        %v2820 = vunpack.c.l.b16 %v2230
        %v2821 = vunpack.c.l.b16 %v2231
        %v2822 = vunpack.c.l.b16 %v2232
        %v2823 = vunpack.c.l.b16 %v2233
        %v2824 = vunpack.c.l.b16 %v2234
        %v2825 = vunpack.c.l.b16 %v2235
        %v2826 = vunpack.c.l.b16 %v2236
        %v2827 = vunpack.c.l.b16 %v2237
        %v2828 = vunpack.c.l.b16 %v2238
        %v2829 = vunpack.c.l.b16 %v2239
        %v2830 = vunpack.c.l.b16 %v2240
        %v2831 = vunpack.c.l.b16 %v2241
        %v2832 = vunpack.c.l.b16 %v2242
        %v2833 = vunpack.c.l.b16 %v2243
        %v2834 = vunpack.c.l.b16 %v2244
        %v2835 = vpack.c.b16 %v2804, %v2803
        %v2836 = vpack.c.b16 %v2806, %v2805
        %v2837 = vpack.c.b16 %v2808, %v2807
        %v2838 = vpack.c.b16 %v2810, %v2809
        %v2839 = vpack.c.b16 %v2812, %v2811
        %v2840 = vpack.c.b16 %v2814, %v2813
        %v2841 = vpack.c.b16 %v2816, %v2815
        %v2842 = vpack.c.b16 %v2818, %v2817
        %v2843 = vpack.c.b16 %v2820, %v2819
        %v2844 = vpack.c.b16 %v2822, %v2821
        %v2845 = vpack.c.b16 %v2824, %v2823
        %v2846 = vpack.c.b16 %v2826, %v2825
        %v2847 = vpack.c.b16 %v2828, %v2827
        %v2848 = vpack.c.b16 %v2830, %v2829
        %v2849 = vpack.c.b16 %v2832, %v2831
        %v2850 = vpack.c.b16 %v2834, %v2833
        %2867 = vmatprep.subr.bf16.mxu0 0
        %2868 = vmatpush1.bf16.msra.mxu0 %v2835
        %2869 = vmatprep.subr.bf16.mxu0 0
        %2870 = vmatpush1.bf16.msra.mxu0 %v2836
        %2871 = vmatprep.subr.bf16.mxu0 0
        %2872 = vmatpush1.bf16.msra.mxu0 %v2837
        %2873 = vmatprep.subr.bf16.mxu0 0
        %2874 = vmatpush1.bf16.msra.mxu0 %v2838
        %2875 = vmatprep.subr.bf16.mxu0 0
        %2876 = vmatpush1.bf16.msra.mxu0 %v2839
        %2877 = vmatprep.subr.bf16.mxu0 0
        %2878 = vmatpush1.bf16.msra.mxu0 %v2840
        %2879 = vmatprep.subr.bf16.mxu0 0
        %2880 = vmatpush1.bf16.msra.mxu0 %v2841
        %2881 = vmatprep.subr.bf16.mxu0 0
        %2882 = vmatpush1.bf16.msra.mxu0 %v2842
        %2883 = vmatprep.subr.bf16.mxu0 0
        %2884 = vmatpush1.bf16.msra.mxu0 %v2843
        %2885 = vmatprep.subr.bf16.mxu0 0
        %2886 = vmatpush1.bf16.msra.mxu0 %v2844
        %2887 = vmatprep.subr.bf16.mxu0 0
        %2888 = vmatpush1.bf16.msra.mxu0 %v2845
        %2889 = vmatprep.subr.bf16.mxu0 0
        %2890 = vmatpush1.bf16.msra.mxu0 %v2846
        %2891 = vmatprep.subr.bf16.mxu0 0
        %2892 = vmatpush1.bf16.msra.mxu0 %v2847
        %2893 = vmatprep.subr.bf16.mxu0 0
        %2894 = vmatpush1.bf16.msra.mxu0 %v2848
        %2895 = vmatprep.subr.bf16.mxu0 0
        %2896 = vmatpush1.bf16.msra.mxu0 %v2849
        %2897 = vmatprep.subr.bf16.mxu0 0
        %2898 = vmatpush1.bf16.msra.mxu0 %v2850
        %2899 = vmatprep.mubr.bf16.mxu0 %v2206
        %2900 = vmatmul.mubr.bf16.gmra.mrb[0].mxu0 %v2205
        %v2901 = vpop.f32.mrb[0].mxu0
        %v2902 = vadd.f32 %v2741, %v2901
        %v2903 = vpop.f32.mrb[0].mxu0
        %v2904 = vpop.f32.mrb[0].mxu0
        %v2905 = vadd.f32 %v2744, %v2904
        %v2906 = vpop.f32.mrb[0].mxu0
        %2907 = vmatprep.mubr.bf16.mxu0 %v2208
        %2908 = vmatmul.mubr.bf16.gmra.mrb[0].mxu0 %v2207
        %v2909 = vpop.f32.mrb[0].mxu0
        %v2910 = vadd.f32 %v2749, %v2909
        %v2911 = vpop.f32.mrb[0].mxu0
        %v2912 = vpop.f32.mrb[0].mxu0
        %v2913 = vadd.f32 %v2752, %v2912
        %v2914 = vpop.f32.mrb[0].mxu0
        %2915 = vmatprep.mubr.bf16.mxu0 %v2210
        %2916 = vmatmul.mubr.bf16.gmra.mrb[0].mxu0 %v2209
        %v2917 = vpop.f32.mrb[0].mxu0
        %v2918 = vadd.f32 %v2757, %v2917
        %v2919 = vpop.f32.mrb[0].mxu0
        %v2920 = vpop.f32.mrb[0].mxu0
        %v2921 = vadd.f32 %v2760, %v2920
        %v2922 = vpop.f32.mrb[0].mxu0
        %2923 = vmatprep.mubr.bf16.mxu0 %v2212
        %2924 = vmatmul.mubr.bf16.gmra.mrb[0].mxu0 %v2211
        %v2925 = vpop.f32.mrb[0].mxu0
        %v2926 = vadd.f32 %v2765, %v2925
        %v2927 = vpop.f32.mrb[0].mxu0
        %v2928 = vpop.f32.mrb[0].mxu0
        %v2929 = vadd.f32 %v2768, %v2928
        %v2930 = vpop.f32.mrb[0].mxu0
        %2931 = vdwg.mxu0
        %v2932 = vld [vmem:[%s9] sm:$0x1]
        %v2934 = vlaneseq
        %v2935 = vshrl.u32 %v2934, 7
        %v2936 = vsub.s32 0, %v2935
        %v2937 = vrot.slane %v2932, %v2936
        %v2939 = vadd.f32 %v2902, %v2937
        %v2940 = vadd.f32 %v2905, %v2937
        %v2941 = vadd.f32 %v2910, %v2937
        %v2942 = vadd.f32 %v2913, %v2937
        %v2943 = vadd.f32 %v2918, %v2937
        %v2944 = vadd.f32 %v2921, %v2937
        %v2945 = vadd.f32 %v2926, %v2937
        %v2946 = vadd.f32 %v2929, %v2937
        %v2947 = vlaneseq
        %v2948 = vshrl.u32 %v2947, 7
        %v2949 = vsub.s32 0, %v2948
        %v2950 = vrot.slane %v507, %v2949
        %v2951 = vlaneseq
        %v2952 = vshrl.u32 %v2951, 7
        %v2953 = vsub.s32 0, %v2952
        %v2954 = vrot.slane %v508, %v2953
        %v2957 = vmul.f32 %v2950, %v2939
        %v2958 = vmul.f32 %v2950, %v2940
        %v2959 = vmul.f32 %v2950, %v2941
        %v2960 = vmul.f32 %v2950, %v2942
        %v2961 = vmul.f32 %v2954, %v2943
        %v2962 = vmul.f32 %v2954, %v2944
        %v2963 = vmul.f32 %v2954, %v2945
        %v2964 = vmul.f32 %v2954, %v2946
        %v2965 = vadd.f32 %v1868, %v2957
        %v2966 = vadd.f32 %v1869, %v2958
        %v2967 = vadd.f32 %v1870, %v2959
        %v2968 = vadd.f32 %v1871, %v2960
        %v2969 = vadd.f32 %v1872, %v2961
        %v2970 = vadd.f32 %v1873, %v2962
        %v2971 = vadd.f32 %v1874, %v2963
        %v2972 = vadd.f32 %v1875, %v2964
        %2973 = vst [vmem:[%s473] sm:$0xff] %v2965
        %2974 = vst [vmem:[%s473 + $0x8] sm:$0xff] %v2966
        %2975 = vst [vmem:[%s473 + $0x10] sm:$0xff] %v2967
        %2976 = vst [vmem:[%s473 + $0x18] sm:$0xff] %v2968
        %2977 = vst [vmem:[%s473 + $0x20] sm:$0xff] %v2969
        %2978 = vst [vmem:[%s473 + $0x28] sm:$0xff] %v2970
        %2979 = vst [vmem:[%s473 + $0x30] sm:$0xff] %v2971
        %2980 = vst [vmem:[%s473 + $0x38] sm:$0xff] %v2972
        %s2981 = sand.u32 %s253, 1
        %s2982 = scalar_lea.sflag [#allocation5], %s2981
        %s2983 = sand.u32 %s253, 1
        %s2984 = smul.addr %s2983, 64
        %s2985 = scalar_lea.vmem [#allocation14], %s2984
        // Predicated region
        $region85: #{tpu_custom_call.1} parent=59 // pred_check
          %p2986 = pneg %p263
        $region86: #{tpu_custom_call.1} parent=59 // pred_check_branch
          %2988 = sbr.rel (%p2986) target = $region88
        $region87: #{tpu_custom_call.1} parent=59 // pred_region
          #allocation18 [shape = 'u32[6]{0}', space=smem, size = 0x18, scoped, tag = 'DMA stride descriptor']
          %s2989 = smul.u32 4, %s30
          %s2991 = ssub.s32 1024, 1024
          %2992 = vsyncadd %s2982, %s2991
          %s2993 = smul.addr %s2989, 128
          %s2994 = scalar_lea.hbm %s10, %s2993
          %s2996 = sshll.u32 1, 14
          %s2997 = sxor.u32 4294967295, %s2996
          %s3000 = sshll.u32 7, 18
          %s3001 = sxor.u32 4294967295, %s3000
          %s3002 = sand.u32 0, %s3001
          %s3004 = sor.u32 %s3002, 0
          %s3006 = sshll.u32 3, 24
          %s3007 = sxor.u32 4294967295, %s3006
          %s3008 = sand.u32 %s3004, %s3007
          %s3010 = sor.u32 %s3008, 0
          %s3011 = sshll.u32 %s2985, 4
          %s3012 = int_to_ptr.vmem [resolvable:$true] %s3011
          %3018 = sst [smem:[#allocation18]] 512
          %s3019 = scalar_lea.smem [#allocation18], 1
          %3020 = sst [smem:[%s3019]] 1024
          %s3021 = scalar_lea.smem [#allocation18], 2
          %3022 = sst [smem:[%s3021]] 4
          %s3023 = scalar_lea.smem [#allocation18], 3
          %3024 = sst [smem:[%s3023]] 128
          %s3025 = scalar_lea.smem [#allocation18], 4
          %3026 = sst [smem:[%s3025]] 128
          %s3027 = scalar_lea.smem [#allocation18], 5
          %3028 = sst [smem:[%s3027]] 8
          %3030 = dma.general %s3012, 1024, %s2994, %s2982, [#allocation17], [#allocation18], %s3010, 0
        $region88: #{tpu_custom_call.1} parent=59 // pred_fallthru
          _
      $region60: #{tpu_custom_call.1} parent=5 // pred_fallthru
        _
      %p3031 = scmp.le.s32.totalorder 2, %s25
      // Predicated region
      $region89: #{tpu_custom_call.1} parent=5 // pred_check
        %p3032 = pneg %p3031
      $region90: #{tpu_custom_call.1} parent=5 // pred_check_branch
        %3034 = sbr.rel (%p3032) target = $region92
      $region91: #{tpu_custom_call.1} parent=5 // pred_region
        %s3035 = ssub.s32 %s25, 2
        // Predicated region
        $region93: #{tpu_custom_call.1} parent=91 // pred_check
          %p3036 = pneg %p269
        $region94: #{tpu_custom_call.1} parent=91 // pred_check_branch
          %3038 = sbr.rel (%p3036) target = $region96
        $region95: #{tpu_custom_call.1} parent=91 // pred_region
          %s3039 = sand.u32 %s254, 1
          %s3040 = scalar_lea.sflag [#allocation5], %s3039
          %s3041 = sand.u32 %s254, 1
          %s3042 = smul.addr %s3041, 64
          %s3043 = scalar_lea.vmem [#allocation14], %s3042
          %3044 = dma.done %s3040, 1024
        $region96: #{tpu_custom_call.1} parent=91 // pred_fallthru
          _
      $region92: #{tpu_custom_call.1} parent=5 // pred_fallthru
        _
    $region6: #{tpu_custom_call.1} parent=1 // loop_footer
      %s29 = sadd.s32 1, %s25
    $region7: #{tpu_custom_call.1} parent=1 // loop_footer_branch
      %24 = sbr.rel target = $region3
    $region8: #{tpu_custom_call.1} parent=1 // loop_exit
      _
    %3045 = vsyncpa [#allocation4], 1
    %s3046 = scalar_lea.sflag [#allocation4], 1
    %3047 = vsyncpa %s3046, 1
    %3048 = vsyncpa [#allocation7], 1
    %3049 = vsyncpa [#allocation10], 1
    %3050 = vsyncpa [#allocation13], 1
    %3051 = vsyncpa [#allocation5], 1
    %s3052 = scalar_lea.sflag [#allocation5], 1
    %3053 = vsyncpa %s3052, 1

</llo_original>
